<compile_context>
chip_gen: v7x
topology: tpu7x:2x2x1
jax: 0.10.0
libtpu: 0.0.40
codegen_flags: <defaults>
</compile_context>

<pallas_src>
import functools

import jax
import jax.numpy as jnp
from jax import lax
from jax.experimental import pallas as pl
from jax.experimental.pallas import tpu as pltpu

# ----------------------------- small-scale config -----------------------------
B = 2                 # batch
IN_CH = 3             # ViT in_channels
IMG = 16              # image side (original 128)
PATCH = 4             # patch side (same as original)
TOKENS = (IMG // PATCH) ** 2          # 16 patches
TOKEN_DIM = IN_CH * PATCH * PATCH     # 48
SEQ = TOKENS + 1                      # +1 cls token
DIM = 8               # transformer width (original dim=2, scaled to be valid w/ heads)
HEADS = 2
DIM_HEAD = DIM // HEADS               # 4
DIM_MLP = 32          # transformer MLP hidden (original 1024)
BLOCKS = 2            # transformer depth (original 6)
# latent tensor (B, L0, L1, LH, LW); original is (B, 64, 48, 128, 128)
L0, L1, LH, LW = 4, 3, 16, 16
NUM_CLASSES = L0 * L1 * LH * LW       # 3072 (lane-dense multiple of 128)
LN_EPS = 1e-5
HEAD_TILE = 1024                      # lane-dense tile of the classification head / reparam


# ------------------------------ fused ViT trunk kernel --------------------------------
def _vit_trunk_kernel(
    patches_ref, proj_w_ref, proj_b_ref, cls_ref, pos_ref,
    qkv_w_ref, wo_w_ref, ln1_g_ref, ln1_b_ref,
    w1_ref, b1_ref, w2_ref, b2_ref, ln2_g_ref, ln2_b_ref,
    cls_out_ref,
    h_sc, qkv_sc, attn_sc,
):
    """One grid step == one ViT branch (mean or logvar).  Everything VMEM-resident."""
    scale = DIM_HEAD ** -0.5
    hdh = HEADS * DIM_HEAD

    def layernorm(h, g, beta):
        mu = jnp.mean(h, axis=-1, keepdims=True)
        xc = h - mu
        var = jnp.mean(xc * xc, axis=-1, keepdims=True)
        return xc * lax.rsqrt(var + LN_EPS) * g + beta

    proj_w = proj_w_ref[...]            # (TOKEN_DIM, DIM)
    proj_b = proj_b_ref[...]            # (1, DIM)
    pos = pos_ref[...]                  # (SEQ, DIM)

    for b in range(B):                  # static unroll, B=2
        # patch embedding + cls token + positional embedding
        tok = jnp.dot(patches_ref[b], proj_w, preferred_element_type=jnp.float32) + proj_b
        h_sc[0:1, :] = cls_ref[...]
        h_sc[1:SEQ, :] = tok
        h = h_sc[...] + pos             # (SEQ, DIM)

        for bi in range(BLOCKS):        # static unroll
            # ---- multi-head self-attention (qkv/W_O have no bias, like self_attention_cv) ----
            qkv_sc[...] = jnp.dot(h, qkv_w_ref[bi], preferred_element_type=jnp.float32)
            for hd in range(HEADS):
                q = qkv_sc[:, hd * DIM_HEAD:(hd + 1) * DIM_HEAD]
                k = qkv_sc[:, hdh + hd * DIM_HEAD:hdh + (hd + 1) * DIM_HEAD]
                v = qkv_sc[:, 2 * hdh + hd * DIM_HEAD:2 * hdh + (hd + 1) * DIM_HEAD]
                s = lax.dot_general(q, k, (((1,), (1,)), ((), ())),
                                    preferred_element_type=jnp.float32) * scale
                m = jnp.max(s, axis=-1, keepdims=True)
                p = jnp.exp(s - m)
                p = p * pl.reciprocal(jnp.sum(p, axis=-1, keepdims=True), approx=True)
                attn_sc[:, hd * DIM_HEAD:(hd + 1) * DIM_HEAD] = jnp.dot(
                    p, v, preferred_element_type=jnp.float32)
            o = jnp.dot(attn_sc[...], wo_w_ref[bi], preferred_element_type=jnp.float32)

            # ---- post-norm residual block (self_attention_cv default prenorm=False;
            #      dropout is identity in eval mode) ----
            y = layernorm(o + h, ln1_g_ref[bi], ln1_b_ref[bi])
            # TODO(synk): torch nn.GELU defaults to the exact erf GELU; tanh approximation here.
            hh = jax.nn.gelu(
                jnp.dot(y, w1_ref[bi], preferred_element_type=jnp.float32) + b1_ref[bi],
                approximate=True)
            m2 = jnp.dot(hh, w2_ref[bi], preferred_element_type=jnp.float32) + b2_ref[bi]
            h = layernorm(m2 + y, ln2_g_ref[bi], ln2_b_ref[bi])

        # keep only the cls token for the classification head
        cls_out_ref[b:b + 1, :] = h[0:1, :]


def vit_trunk(params, patches):
    """Run BOTH ViT branches (mean, logvar) in one pallas_call: grid=(2,) over branches."""
    p = params

    def bspec(a):
        # per-branch block; branch dim squeezed out of the kernel ref
        return pl.BlockSpec((None,) + a.shape[1:],
                            lambda br, n=a.ndim: (br,) + (0,) * (n - 1))

    shared_spec = pl.BlockSpec(patches.shape, lambda br: (0,) * patches.ndim)

    return pl.pallas_call(
        _vit_trunk_kernel,
        out_shape=jax.ShapeDtypeStruct((2, B, DIM), jnp.float32),
        grid=(2,),
        in_specs=[
            shared_spec,
            bspec(p["proj_w"]), bspec(p["proj_b"]), bspec(p["cls"]), bspec(p["pos"]),
            bspec(p["qkv_w"]), bspec(p["wo_w"]), bspec(p["ln1_g"]), bspec(p["ln1_b"]),
            bspec(p["w1"]), bspec(p["b1"]), bspec(p["w2"]), bspec(p["b2"]),
            bspec(p["ln2_g"]), bspec(p["ln2_b"]),
        ],
        out_specs=pl.BlockSpec((None, B, DIM), lambda br: (br, 0, 0)),
        scratch_shapes=[
            pltpu.VMEM((SEQ, DIM), jnp.float32),                       # hidden-state staging
            pltpu.VMEM((SEQ, 3 * HEADS * DIM_HEAD), jnp.float32),      # qkv
            pltpu.VMEM((SEQ, HEADS * DIM_HEAD), jnp.float32),          # attention output
        ],
        compiler_params=pltpu.CompilerParams(
            dimension_semantics=("parallel",)),                        # 2 branches -> 2 TCs on v7x
    )(
        patches,
        p["proj_w"], p["proj_b"], p["cls"], p["pos"],
        p["qkv_w"], p["wo_w"], p["ln1_g"], p["ln1_b"],
        p["w1"], p["b1"], p["w2"], p["b2"], p["ln2_g"], p["ln2_b"],
    )


# --------------------- fused classification head + reparametrization ---------------------
def _head_reparam_kernel(cls_ref, hw_ref, hb_ref, eps_ref, z_ref, mean_ref, lv_ref):
    # branch 0 = mean head, branch 1 = logvar head; both matmuls share one lane-dense tile
    mean = jnp.dot(cls_ref[0], hw_ref[0], preferred_element_type=jnp.float32) + hb_ref[0]
    lv = jnp.dot(cls_ref[1], hw_ref[1], preferred_element_type=jnp.float32) + hb_ref[1]
    mean_ref[...] = mean
    lv_ref[...] = lv
    z_ref[...] = mean + jnp.exp(0.5 * lv) * eps_ref[...]   # exp rides the EUP slot


def head_reparam(cls_out, head_w, head_b, eps):
    grid = (NUM_CLASSES // HEAD_TILE,)
    out_block = pl.BlockSpec((B, HEAD_TILE), lambda j: (0, j))
    out_shape = jax.ShapeDtypeStruct((B, NUM_CLASSES), jnp.float32)
    return pl.pallas_call(
        _head_reparam_kernel,
        out_shape=(out_shape, out_shape, out_shape),           # z, mean, logvar
        grid=grid,
        in_specs=[
            pl.BlockSpec((2, B, DIM), lambda j: (0, 0, 0)),
            pl.BlockSpec((2, DIM, HEAD_TILE), lambda j: (0, 0, j)),
            pl.BlockSpec((2, 1, HEAD_TILE), lambda j: (0, 0, j)),
            pl.BlockSpec((B, HEAD_TILE), lambda j: (0, j)),
        ],
        out_specs=(out_block, out_block, out_block),
        compiler_params=pltpu.CompilerParams(dimension_semantics=("parallel",)),
    )(cls_out, head_w, head_b, eps)


# ------------------------------ parameter setup --------------------------------
def init_params(key):
    """Deterministic synthetic weights, stacked along a leading branch axis of size 2
    (branch 0 = out_mean ViT, branch 1 = out_logvar ViT)."""
    ks = jax.random.split(key, 8)

    def w(k, shape, scale=0.02):
        return scale * jax.random.normal(k, shape, jnp.float32)

    return {
        "proj_w": w(ks[0], (2, TOKEN_DIM, DIM)),
        "proj_b": jnp.zeros((2, 1, DIM), jnp.float32),
        "cls": w(ks[1], (2, 1, DIM), 1.0),
        "pos": w(ks[2], (2, SEQ, DIM), 1.0),
        "qkv_w": w(ks[3], (2, BLOCKS, DIM, 3 * HEADS * DIM_HEAD)),
        "wo_w": w(ks[4], (2, BLOCKS, HEADS * DIM_HEAD, DIM)),
        "ln1_g": jnp.ones((2, BLOCKS, 1, DIM), jnp.float32),
        "ln1_b": jnp.zeros((2, BLOCKS, 1, DIM), jnp.float32),
        "w1": w(ks[5], (2, BLOCKS, DIM, DIM_MLP)),
        "b1": jnp.zeros((2, BLOCKS, 1, DIM_MLP), jnp.float32),
        "w2": w(ks[6], (2, BLOCKS, DIM_MLP, DIM)),
        "b2": jnp.zeros((2, BLOCKS, 1, DIM), jnp.float32),
        "ln2_g": jnp.ones((2, BLOCKS, 1, DIM), jnp.float32),
        "ln2_b": jnp.zeros((2, BLOCKS, 1, DIM), jnp.float32),
        "head_w": w(ks[7], (2, DIM, NUM_CLASSES)),
        "head_b": jnp.zeros((2, 1, NUM_CLASSES), jnp.float32),
    }


# --------------------------------- model glue ----------------------------------
def extract_patches(x):
    # x: (B, C, H, W) NCHW -> (B, tokens, P*P*C); pure layout plumbing, stays in XLA.
    Bc, C, H, W = x.shape
    gh, gw = H // PATCH, W // PATCH
    x = x.reshape(Bc, C, gh, PATCH, gw, PATCH)
    x = x.transpose(0, 2, 4, 3, 5, 1)          # (B, gh, gw, ph, pw, C)
    return x.reshape(Bc, gh * gw, PATCH * PATCH * C)


def encoder_transformer_forward(params, x, eps, sample=True):
    Bc = x.shape[0]
    patches = extract_patches(x)                                  # (B, TOKENS, TOKEN_DIM)
    cls_out = vit_trunk(params, patches)                          # (2, B, DIM) — both branches
    z, mean, log_var = head_reparam(
        cls_out, params["head_w"], params["head_b"], eps.reshape(Bc, NUM_CLASSES))
    mean5 = mean.reshape(Bc, L0, L1, LH, LW)
    if not sample:
        # Returned values match the PyTorch sample=False path (extra logvar work is discarded).
        return mean5, None, None
    return (
        z.reshape(Bc, L0, L1, LH, LW),
        mean5,
        log_var.reshape(Bc, L0, L1, LH, LW),
    )


# ----------------------------------- main ---------------------------------------
if __name__ == "__main__":
    key = jax.random.PRNGKey(0)
    kx, kp, keps = jax.random.split(key, 3)

    x = jax.random.normal(kx, (B, IN_CH, IMG, IMG), jnp.float32)
    params = init_params(kp)
    eps = jax.random.normal(keps, (B, L0, L1, LH, LW), jnp.float32)

    fwd = jax.jit(functools.partial(encoder_transformer_forward, sample=True))
    z, mean, log_var = fwd(params, x, eps)
    jax.block_until_ready((z, mean, log_var))

    assert z.shape == (B, L0, L1, LH, LW)
    assert mean.shape == (B, L0, L1, LH, LW)
    assert log_var.shape == (B, L0, L1, LH, LW)
    assert bool(jnp.all(jnp.isfinite(z)))
    assert bool(jnp.all(jnp.isfinite(mean)))
    assert bool(jnp.all(jnp.isfinite(log_var)))
    print("KERNEL_OK")
</pallas_src>

<mosaic_0001>
module attributes {stable_mosaic.version = 11 : i64} {
  func.func @_head_reparam_kernel(%arg0: i32, %arg1: memref<2x2x8xf32, #tpu.memory_space<vmem>>, %arg2: memref<2x8x1024xf32, #tpu.memory_space<vmem>>, %arg3: memref<2x1x1024xf32, #tpu.memory_space<vmem>>, %arg4: memref<2x1024xf32, #tpu.memory_space<vmem>>, %arg5: memref<2x1024xf32, #tpu.memory_space<vmem>>, %arg6: memref<2x1024xf32, #tpu.memory_space<vmem>>, %arg7: memref<2x1024xf32, #tpu.memory_space<vmem>>) attributes {dimension_semantics = [#tpu.dimension_semantics<parallel>], iteration_bounds = array<i64: 3>, scalar_prefetch = 0 : i64, scratch_operands = 0 : i64, tpu.core_type = #tpu.core_type<tc>, window_params = [{pipeline_mode = #tpu.pipeline_mode<synchronous>, transform_indices = @transform_0, window_bounds = array<i64: 2, 2, 8>}, {transform_indices = @transform_1, window_bounds = array<i64: 2, 8, 1024>}, {transform_indices = @transform_2, window_bounds = array<i64: 2, 1, 1024>}, {transform_indices = @transform_3, window_bounds = array<i64: 2, 1024>}, {transform_indices = @transform_4, window_bounds = array<i64: 2, 1024>}, {transform_indices = @transform_5, window_bounds = array<i64: 2, 1024>}, {transform_indices = @transform_6, window_bounds = array<i64: 2, 1024>}]} {
    %c0 = arith.constant 0 : index
    %c0_0 = arith.constant 0 : index
    %c0_1 = arith.constant 0 : index
    %0 = vector.load %arg1[%c0, %c0_0, %c0_1] : memref<2x2x8xf32, #tpu.memory_space<vmem>>, vector<1x2x8xf32>
    %1 = vector.shape_cast %0 : vector<1x2x8xf32> to vector<2x8xf32>
    %c0_2 = arith.constant 0 : index
    %c0_3 = arith.constant 0 : index
    %c0_4 = arith.constant 0 : index
    %2 = vector.load %arg2[%c0_2, %c0_3, %c0_4] : memref<2x8x1024xf32, #tpu.memory_space<vmem>>, vector<1x8x1024xf32>
    %3 = vector.shape_cast %2 : vector<1x8x1024xf32> to vector<8x1024xf32>
    %cst = arith.constant dense<0.000000e+00> : vector<2x1024xf32>
    %4 = tpu.matmul %1, %3, %cst {dimension_numbers = #tpu.dot_dimension_numbers<[1], [0], [0], [1], [0, 0, 1, 1], [], []>} : vector<2x8xf32>, vector<8x1024xf32>, vector<2x1024xf32> -> vector<2x1024xf32>
    %c0_5 = arith.constant 0 : index
    %c0_6 = arith.constant 0 : index
    %c0_7 = arith.constant 0 : index
    %5 = vector.load %arg3[%c0_5, %c0_6, %c0_7] : memref<2x1x1024xf32, #tpu.memory_space<vmem>>, vector<1x1x1024xf32>
    %6 = vector.shape_cast %5 : vector<1x1x1024xf32> to vector<1x1024xf32>
    %7 = vector.broadcast %6 : vector<1x1024xf32> to vector<2x1024xf32>
    %8 = arith.addf %4, %7 : vector<2x1024xf32>
    %c1 = arith.constant 1 : index
    %c0_8 = arith.constant 0 : index
    %c0_9 = arith.constant 0 : index
    %9 = vector.load %arg1[%c1, %c0_8, %c0_9] : memref<2x2x8xf32, #tpu.memory_space<vmem>>, vector<1x2x8xf32>
    %10 = vector.shape_cast %9 : vector<1x2x8xf32> to vector<2x8xf32>
    %c1_10 = arith.constant 1 : index
    %c0_11 = arith.constant 0 : index
    %c0_12 = arith.constant 0 : index
    %11 = vector.load %arg2[%c1_10, %c0_11, %c0_12] : memref<2x8x1024xf32, #tpu.memory_space<vmem>>, vector<1x8x1024xf32>
    %12 = vector.shape_cast %11 : vector<1x8x1024xf32> to vector<8x1024xf32>
    %cst_13 = arith.constant dense<0.000000e+00> : vector<2x1024xf32>
    %13 = tpu.matmul %10, %12, %cst_13 {dimension_numbers = #tpu.dot_dimension_numbers<[1], [0], [0], [1], [0, 0, 1, 1], [], []>} : vector<2x8xf32>, vector<8x1024xf32>, vector<2x1024xf32> -> vector<2x1024xf32>
    %c1_14 = arith.constant 1 : index
    %c0_15 = arith.constant 0 : index
    %c0_16 = arith.constant 0 : index
    %14 = vector.load %arg3[%c1_14, %c0_15, %c0_16] : memref<2x1x1024xf32, #tpu.memory_space<vmem>>, vector<1x1x1024xf32>
    %15 = vector.shape_cast %14 : vector<1x1x1024xf32> to vector<1x1024xf32>
    %16 = vector.broadcast %15 : vector<1x1024xf32> to vector<2x1024xf32>
    %17 = arith.addf %13, %16 : vector<2x1024xf32>
    %c0_17 = arith.constant 0 : index
    %c0_18 = arith.constant 0 : index
    %18 = vector.load %arg6[%c0_17, %c0_18] : memref<2x1024xf32, #tpu.memory_space<vmem>>, vector<2x1024xf32>
    tpu.vector_store %arg6[%c0_17, %c0_18], %8 {strides = array<i32>} : memref<2x1024xf32, #tpu.memory_space<vmem>>, vector<2x1024xf32>,
    %c0_19 = arith.constant 0 : index
    %c0_20 = arith.constant 0 : index
    %19 = vector.load %arg7[%c0_19, %c0_20] : memref<2x1024xf32, #tpu.memory_space<vmem>>, vector<2x1024xf32>
    tpu.vector_store %arg7[%c0_19, %c0_20], %17 {strides = array<i32>} : memref<2x1024xf32, #tpu.memory_space<vmem>>, vector<2x1024xf32>,
    %cst_21 = arith.constant 5.000000e-01 : f32
    %20 = vector.broadcast %cst_21 : f32 to vector<2x1024xf32>
    %21 = arith.mulf %20, %17 : vector<2x1024xf32>
    %22 = math.exp %21 : vector<2x1024xf32>
    %c0_22 = arith.constant 0 : index
    %c0_23 = arith.constant 0 : index
    %23 = vector.load %arg4[%c0_22, %c0_23] : memref<2x1024xf32, #tpu.memory_space<vmem>>, vector<2x1024xf32>
    %24 = arith.mulf %22, %23 : vector<2x1024xf32>
    %25 = arith.addf %8, %24 : vector<2x1024xf32>
    %c0_24 = arith.constant 0 : index
    %c0_25 = arith.constant 0 : index
    %26 = vector.load %arg5[%c0_24, %c0_25] : memref<2x1024xf32, #tpu.memory_space<vmem>>, vector<2x1024xf32>
    tpu.vector_store %arg5[%c0_24, %c0_25], %25 {strides = array<i32>} : memref<2x1024xf32, #tpu.memory_space<vmem>>, vector<2x1024xf32>,
    return
  }
  func.func @transform_0(%arg0: i32) -> (i32, i32, i32) {
    %c0_i32 = arith.constant 0 : i32
    %c0_i32_0 = arith.constant 0 : i32
    %c0_i32_1 = arith.constant 0 : i32
    %c0_i32_2 = arith.constant 0 : i32
    return %c0_i32, %c0_i32_0, %c0_i32_1 : i32, i32, i32
  }
  func.func @transform_1(%arg0: i32) -> (i32, i32, i32) {
    %c0_i32 = arith.constant 0 : i32
    %c0_i32_0 = arith.constant 0 : i32
    %c0_i32_1 = arith.constant 0 : i32
    return %c0_i32, %c0_i32_0, %arg0 : i32, i32, i32
  }
  func.func @transform_2(%arg0: i32) -> (i32, i32, i32) {
    %c0_i32 = arith.constant 0 : i32
    %c0_i32_0 = arith.constant 0 : i32
    %c0_i32_1 = arith.constant 0 : i32
    return %c0_i32, %c0_i32_0, %arg0 : i32, i32, i32
  }
  func.func @transform_3(%arg0: i32) -> (i32, i32) {
    %c0_i32 = arith.constant 0 : i32
    %c0_i32_0 = arith.constant 0 : i32
    return %c0_i32, %arg0 : i32, i32
  }
  func.func @transform_4(%arg0: i32) -> (i32, i32) {
    %c0_i32 = arith.constant 0 : i32
    %c0_i32_0 = arith.constant 0 : i32
    return %c0_i32, %arg0 : i32, i32
  }
  func.func @transform_5(%arg0: i32) -> (i32, i32) {
    %c0_i32 = arith.constant 0 : i32
    %c0_i32_0 = arith.constant 0 : i32
    return %c0_i32, %arg0 : i32, i32
  }
  func.func @transform_6(%arg0: i32) -> (i32, i32) {
    %c0_i32 = arith.constant 0 : i32
    %c0_i32_0 = arith.constant 0 : i32
    return %c0_i32, %arg0 : i32, i32
  }
}

module attributes {stable_mosaic.version = 11 : i64} {
  func.func @_vit_trunk_kernel(%arg0: i32, %arg1: memref<2x16x48xf32, #tpu.memory_space<vmem>>, %arg2: memref<1x48x8xf32, #tpu.memory_space<vmem>>, %arg3: memref<1x1x8xf32, #tpu.memory_space<vmem>>, %arg4: memref<1x1x8xf32, #tpu.memory_space<vmem>>, %arg5: memref<1x17x8xf32, #tpu.memory_space<vmem>>, %arg6: memref<1x2x8x24xf32, #tpu.memory_space<vmem>>, %arg7: memref<1x2x8x8xf32, #tpu.memory_space<vmem>>, %arg8: memref<1x2x1x8xf32, #tpu.memory_space<vmem>>, %arg9: memref<1x2x1x8xf32, #tpu.memory_space<vmem>>, %arg10: memref<1x2x8x32xf32, #tpu.memory_space<vmem>>, %arg11: memref<1x2x1x32xf32, #tpu.memory_space<vmem>>, %arg12: memref<1x2x32x8xf32, #tpu.memory_space<vmem>>, %arg13: memref<1x2x1x8xf32, #tpu.memory_space<vmem>>, %arg14: memref<1x2x1x8xf32, #tpu.memory_space<vmem>>, %arg15: memref<1x2x1x8xf32, #tpu.memory_space<vmem>>, %arg16: memref<1x2x8xf32, #tpu.memory_space<vmem>>, %arg17: memref<17x8xf32, #tpu.memory_space<vmem>>, %arg18: memref<17x24xf32, #tpu.memory_space<vmem>>, %arg19: memref<17x8xf32, #tpu.memory_space<vmem>>) attributes {dimension_semantics = [#tpu.dimension_semantics<parallel>], iteration_bounds = array<i64: 2>, scalar_prefetch = 0 : i64, scratch_operands = 3 : i64, tpu.core_type = #tpu.core_type<tc>, window_params = [{pipeline_mode = #tpu.pipeline_mode<synchronous>, transform_indices = @transform_0, window_bounds = array<i64: 2, 16, 48>}, {transform_indices = @transform_1, window_bounds = array<i64: 1, 48, 8>}, {transform_indices = @transform_2, window_bounds = array<i64: 1, 1, 8>}, {transform_indices = @transform_3, window_bounds = array<i64: 1, 1, 8>}, {transform_indices = @transform_4, window_bounds = array<i64: 1, 17, 8>}, {transform_indices = @transform_5, window_bounds = array<i64: 1, 2, 8, 24>}, {transform_indices = @transform_6, window_bounds = array<i64: 1, 2, 8, 8>}, {transform_indices = @transform_7, window_bounds = array<i64: 1, 2, 1, 8>}, {transform_indices = @transform_8, window_bounds = array<i64: 1, 2, 1, 8>}, {transform_indices = @transform_9, window_bounds = array<i64: 1, 2, 8, 32>}, {transform_indices = @transform_10, window_bounds = array<i64: 1, 2, 1, 32>}, {transform_indices = @transform_11, window_bounds = array<i64: 1, 2, 32, 8>}, {transform_indices = @transform_12, window_bounds = array<i64: 1, 2, 1, 8>}, {transform_indices = @transform_13, window_bounds = array<i64: 1, 2, 1, 8>}, {transform_indices = @transform_14, window_bounds = array<i64: 1, 2, 1, 8>}, {transform_indices = @transform_15, window_bounds = array<i64: 1, 2, 8>}]} {
    %c0 = arith.constant 0 : index
    %c0_0 = arith.constant 0 : index
    %c0_1 = arith.constant 0 : index
    %0 = vector.load %arg2[%c0, %c0_0, %c0_1] : memref<1x48x8xf32, #tpu.memory_space<vmem>>, vector<1x48x8xf32>
    %1 = vector.shape_cast %0 : vector<1x48x8xf32> to vector<48x8xf32>
    %c0_2 = arith.constant 0 : index
    %c0_3 = arith.constant 0 : index
    %c0_4 = arith.constant 0 : index
    %2 = vector.load %arg3[%c0_2, %c0_3, %c0_4] : memref<1x1x8xf32, #tpu.memory_space<vmem>>, vector<1x1x8xf32>
    %3 = vector.shape_cast %2 : vector<1x1x8xf32> to vector<1x8xf32>
    %c0_5 = arith.constant 0 : index
    %c0_6 = arith.constant 0 : index
    %c0_7 = arith.constant 0 : index
    %4 = vector.load %arg5[%c0_5, %c0_6, %c0_7] : memref<1x17x8xf32, #tpu.memory_space<vmem>>, vector<1x17x8xf32>
    %5 = vector.shape_cast %4 : vector<1x17x8xf32> to vector<17x8xf32>
    %c0_8 = arith.constant 0 : index
    %c0_9 = arith.constant 0 : index
    %c0_10 = arith.constant 0 : index
    %6 = vector.load %arg1[%c0_8, %c0_9, %c0_10] : memref<2x16x48xf32, #tpu.memory_space<vmem>>, vector<1x16x48xf32>
    %7 = vector.shape_cast %6 : vector<1x16x48xf32> to vector<16x48xf32>
    %cst = arith.constant dense<0.000000e+00> : vector<16x8xf32>
    %8 = tpu.matmul %7, %1, %cst {dimension_numbers = #tpu.dot_dimension_numbers<[1], [0], [0], [1], [0, 0, 1, 1], [], []>} : vector<16x48xf32>, vector<48x8xf32>, vector<16x8xf32> -> vector<16x8xf32>
    %9 = vector.broadcast %3 : vector<1x8xf32> to vector<16x8xf32>
    %10 = arith.addf %8, %9 : vector<16x8xf32>
    %c0_11 = arith.constant 0 : index
    %c0_12 = arith.constant 0 : index
    %c0_13 = arith.constant 0 : index
    %11 = vector.load %arg4[%c0_11, %c0_12, %c0_13] : memref<1x1x8xf32, #tpu.memory_space<vmem>>, vector<1x1x8xf32>
    %12 = vector.shape_cast %11 : vector<1x1x8xf32> to vector<1x8xf32>
    %c0_14 = arith.constant 0 : index
    %c0_15 = arith.constant 0 : index
    %13 = vector.load %arg17[%c0_14, %c0_15] : memref<17x8xf32, #tpu.memory_space<vmem>>, vector<1x8xf32>
    tpu.vector_store %arg17[%c0_14, %c0_15], %12 {strides = array<i32>} : memref<17x8xf32, #tpu.memory_space<vmem>>, vector<1x8xf32>,
    %c1 = arith.constant 1 : index
    %c0_16 = arith.constant 0 : index
    %14 = vector.load %arg17[%c1, %c0_16] : memref<17x8xf32, #tpu.memory_space<vmem>>, vector<16x8xf32>
    tpu.vector_store %arg17[%c1, %c0_16], %10 {strides = array<i32>} : memref<17x8xf32, #tpu.memory_space<vmem>>, vector<16x8xf32>,
    %c0_17 = arith.constant 0 : index
    %c0_18 = arith.constant 0 : index
    %15 = vector.load %arg17[%c0_17, %c0_18] : memref<17x8xf32, #tpu.memory_space<vmem>>, vector<17x8xf32>
    %16 = arith.addf %15, %5 : vector<17x8xf32>
    %c0_19 = arith.constant 0 : index
    %c0_20 = arith.constant 0 : index
    %c0_21 = arith.constant 0 : index
    %c0_22 = arith.constant 0 : index
    %17 = vector.load %arg6[%c0_19, %c0_20, %c0_21, %c0_22] : memref<1x2x8x24xf32, #tpu.memory_space<vmem>>, vector<1x1x8x24xf32>
    %18 = vector.shape_cast %17 : vector<1x1x8x24xf32> to vector<8x24xf32>
    %cst_23 = arith.constant dense<0.000000e+00> : vector<17x24xf32>
    %19 = tpu.matmul %16, %18, %cst_23 {dimension_numbers = #tpu.dot_dimension_numbers<[1], [0], [0], [1], [0, 0, 1, 1], [], []>} : vector<17x8xf32>, vector<8x24xf32>, vector<17x24xf32> -> vector<17x24xf32>
    %c0_24 = arith.constant 0 : index
    %c0_25 = arith.constant 0 : index
    %20 = vector.load %arg18[%c0_24, %c0_25] : memref<17x24xf32, #tpu.memory_space<vmem>>, vector<17x24xf32>
    tpu.vector_store %arg18[%c0_24, %c0_25], %19 {strides = array<i32>} : memref<17x24xf32, #tpu.memory_space<vmem>>, vector<17x24xf32>,
    %c0_26 = arith.constant 0 : index
    %c0_27 = arith.constant 0 : index
    %21 = vector.load %arg18[%c0_26, %c0_27] : memref<17x24xf32, #tpu.memory_space<vmem>>, vector<17x4xf32>
    %c0_28 = arith.constant 0 : index
    %c8 = arith.constant 8 : index
    %22 = vector.load %arg18[%c0_28, %c8] : memref<17x24xf32, #tpu.memory_space<vmem>>, vector<17x4xf32>
    %c0_29 = arith.constant 0 : index
    %c16 = arith.constant 16 : index
    %23 = vector.load %arg18[%c0_29, %c16] : memref<17x24xf32, #tpu.memory_space<vmem>>, vector<17x4xf32>
    %cst_30 = arith.constant dense<0.000000e+00> : vector<17x17xf32>
    %24 = tpu.matmul %21, %22, %cst_30 {dimension_numbers = #tpu.dot_dimension_numbers<[1], [1], [0], [0], [0, 0, 1, 0], [], []>} : vector<17x4xf32>, vector<17x4xf32>, vector<17x17xf32> -> vector<17x17xf32>
    %cst_31 = arith.constant 5.000000e-01 : f32
    %25 = vector.broadcast %cst_31 : f32 to vector<17x17xf32>
    %26 = arith.mulf %24, %25 : vector<17x17xf32>
    %cst_32 = arith.constant dense<0xFF800000> : vector<17xf32>
    %27 = vector.multi_reduction <maximumf>, %26, %cst_32 [1] : vector<17x17xf32> to vector<17xf32>
    %28 = vector.shape_cast %27 : vector<17xf32> to vector<17x1xf32>
    %29 = vector.broadcast %28 : vector<17x1xf32> to vector<17x17xf32>
    %30 = arith.subf %26, %29 : vector<17x17xf32>
    %31 = math.exp %30 : vector<17x17xf32>
    %cst_33 = arith.constant dense<0.000000e+00> : vector<17xf32>
    %32 = vector.multi_reduction <add>, %31, %cst_33 [1] : vector<17x17xf32> to vector<17xf32>
    %33 = vector.shape_cast %32 : vector<17xf32> to vector<17x1xf32>
    %34 = tpu.reciprocal %33 {approx = true} : vector<17x1xf32> -> vector<17x1xf32>
    %35 = vector.broadcast %34 : vector<17x1xf32> to vector<17x17xf32>
    %36 = arith.mulf %31, %35 : vector<17x17xf32>
    %cst_34 = arith.constant dense<0.000000e+00> : vector<17x4xf32>
    %37 = tpu.matmul %36, %23, %cst_34 {dimension_numbers = #tpu.dot_dimension_numbers<[1], [0], [0], [1], [0, 0, 1, 1], [], []>} : vector<17x17xf32>, vector<17x4xf32>, vector<17x4xf32> -> vector<17x4xf32>
    %c0_35 = arith.constant 0 : index
    %c0_36 = arith.constant 0 : index
    %38 = vector.load %arg19[%c0_35, %c0_36] : memref<17x8xf32, #tpu.memory_space<vmem>>, vector<17x4xf32>
    tpu.vector_store %arg19[%c0_35, %c0_36], %37 {strides = array<i32>} : memref<17x8xf32, #tpu.memory_space<vmem>>, vector<17x4xf32>,
    %c0_37 = arith.constant 0 : index
    %c4 = arith.constant 4 : index
    %39 = vector.load %arg18[%c0_37, %c4] : memref<17x24xf32, #tpu.memory_space<vmem>>, vector<17x4xf32>
    %c0_38 = arith.constant 0 : index
    %c12 = arith.constant 12 : index
    %40 = vector.load %arg18[%c0_38, %c12] : memref<17x24xf32, #tpu.memory_space<vmem>>, vector<17x4xf32>
    %c0_39 = arith.constant 0 : index
    %c20 = arith.constant 20 : index
    %41 = vector.load %arg18[%c0_39, %c20] : memref<17x24xf32, #tpu.memory_space<vmem>>, vector<17x4xf32>
    %cst_40 = arith.constant dense<0.000000e+00> : vector<17x17xf32>
    %42 = tpu.matmul %39, %40, %cst_40 {dimension_numbers = #tpu.dot_dimension_numbers<[1], [1], [0], [0], [0, 0, 1, 0], [], []>} : vector<17x4xf32>, vector<17x4xf32>, vector<17x17xf32> -> vector<17x17xf32>
    %cst_41 = arith.constant 5.000000e-01 : f32
    %43 = vector.broadcast %cst_41 : f32 to vector<17x17xf32>
    %44 = arith.mulf %42, %43 : vector<17x17xf32>
    %cst_42 = arith.constant dense<0xFF800000> : vector<17xf32>
    %45 = vector.multi_reduction <maximumf>, %44, %cst_42 [1] : vector<17x17xf32> to vector<17xf32>
    %46 = vector.shape_cast %45 : vector<17xf32> to vector<17x1xf32>
    %47 = vector.broadcast %46 : vector<17x1xf32> to vector<17x17xf32>
    %48 = arith.subf %44, %47 : vector<17x17xf32>
    %49 = math.exp %48 : vector<17x17xf32>
    %cst_43 = arith.constant dense<0.000000e+00> : vector<17xf32>
    %50 = vector.multi_reduction <add>, %49, %cst_43 [1] : vector<17x17xf32> to vector<17xf32>
    %51 = vector.shape_cast %50 : vector<17xf32> to vector<17x1xf32>
    %52 = tpu.reciprocal %51 {approx = true} : vector<17x1xf32> -> vector<17x1xf32>
    %53 = vector.broadcast %52 : vector<17x1xf32> to vector<17x17xf32>
    %54 = arith.mulf %49, %53 : vector<17x17xf32>
    %cst_44 = arith.constant dense<0.000000e+00> : vector<17x4xf32>
    %55 = tpu.matmul %54, %41, %cst_44 {dimension_numbers = #tpu.dot_dimension_numbers<[1], [0], [0], [1], [0, 0, 1, 1], [], []>} : vector<17x17xf32>, vector<17x4xf32>, vector<17x4xf32> -> vector<17x4xf32>
    %c0_45 = arith.constant 0 : index
    %c4_46 = arith.constant 4 : index
    %56 = vector.load %arg19[%c0_45, %c4_46] : memref<17x8xf32, #tpu.memory_space<vmem>>, vector<17x4xf32>
    tpu.vector_store %arg19[%c0_45, %c4_46], %55 {strides = array<i32>} : memref<17x8xf32, #tpu.memory_space<vmem>>, vector<17x4xf32>,
    %c0_47 = arith.constant 0 : index
    %c0_48 = arith.constant 0 : index
    %57 = vector.load %arg19[%c0_47, %c0_48] : memref<17x8xf32, #tpu.memory_space<vmem>>, vector<17x8xf32>
    %c0_49 = arith.constant 0 : index
    %c0_50 = arith.constant 0 : index
    %c0_51 = arith.constant 0 : index
    %c0_52 = arith.constant 0 : index
    %58 = vector.load %arg7[%c0_49, %c0_50, %c0_51, %c0_52] : memref<1x2x8x8xf32, #tpu.memory_space<vmem>>, vector<1x1x8x8xf32>
    %59 = vector.shape_cast %58 : vector<1x1x8x8xf32> to vector<8x8xf32>
    %cst_53 = arith.constant dense<0.000000e+00> : vector<17x8xf32>
    %60 = tpu.matmul %57, %59, %cst_53 {dimension_numbers = #tpu.dot_dimension_numbers<[1], [0], [0], [1], [0, 0, 1, 1], [], []>} : vector<17x8xf32>, vector<8x8xf32>, vector<17x8xf32> -> vector<17x8xf32>
    %61 = arith.addf %60, %16 : vector<17x8xf32>
    %c0_54 = arith.constant 0 : index
    %c0_55 = arith.constant 0 : index
    %c0_56 = arith.constant 0 : index
    %c0_57 = arith.constant 0 : index
    %62 = vector.load %arg8[%c0_54, %c0_55, %c0_56, %c0_57] : memref<1x2x1x8xf32, #tpu.memory_space<vmem>>, vector<1x1x1x8xf32>
    %63 = vector.shape_cast %62 : vector<1x1x1x8xf32> to vector<1x8xf32>
    %c0_58 = arith.constant 0 : index
    %c0_59 = arith.constant 0 : index
    %c0_60 = arith.constant 0 : index
    %c0_61 = arith.constant 0 : index
    %64 = vector.load %arg9[%c0_58, %c0_59, %c0_60, %c0_61] : memref<1x2x1x8xf32, #tpu.memory_space<vmem>>, vector<1x1x1x8xf32>
    %65 = vector.shape_cast %64 : vector<1x1x1x8xf32> to vector<1x8xf32>
    %cst_62 = arith.constant dense<0.000000e+00> : vector<17xf32>
    %66 = vector.multi_reduction <add>, %61, %cst_62 [1] : vector<17x8xf32> to vector<17xf32>
    %67 = vector.shape_cast %66 : vector<17xf32> to vector<17x1xf32>
    %cst_63 = arith.constant 8.000000e+00 : f32
    %68 = vector.broadcast %cst_63 : f32 to vector<17x1xf32>
    %69 = arith.divf %67, %68 : vector<17x1xf32>
    %70 = vector.broadcast %69 : vector<17x1xf32> to vector<17x8xf32>
    %71 = arith.subf %61, %70 : vector<17x8xf32>
    %72 = arith.mulf %71, %71 : vector<17x8xf32>
    %cst_64 = arith.constant dense<0.000000e+00> : vector<17xf32>
    %73 = vector.multi_reduction <add>, %72, %cst_64 [1] : vector<17x8xf32> to vector<17xf32>
    %74 = vector.shape_cast %73 : vector<17xf32> to vector<17x1xf32>
    %cst_65 = arith.constant 8.000000e+00 : f32
    %75 = vector.broadcast %cst_65 : f32 to vector<17x1xf32>
    %76 = arith.divf %74, %75 : vector<17x1xf32>
    %cst_66 = arith.constant 9.99999974E-6 : f32
    %77 = vector.broadcast %cst_66 : f32 to vector<17x1xf32>
    %78 = arith.addf %76, %77 : vector<17x1xf32>
    %79 = math.rsqrt %78 : vector<17x1xf32>
    %80 = vector.broadcast %79 : vector<17x1xf32> to vector<17x8xf32>
    %81 = arith.mulf %71, %80 : vector<17x8xf32>
    %82 = vector.broadcast %63 : vector<1x8xf32> to vector<17x8xf32>
    %83 = arith.mulf %81, %82 : vector<17x8xf32>
    %84 = vector.broadcast %65 : vector<1x8xf32> to vector<17x8xf32>
    %85 = arith.addf %83, %84 : vector<17x8xf32>
    %c0_67 = arith.constant 0 : index
    %c0_68 = arith.constant 0 : index
    %c0_69 = arith.constant 0 : index
    %c0_70 = arith.constant 0 : index
    %86 = vector.load %arg10[%c0_67, %c0_68, %c0_69, %c0_70] : memref<1x2x8x32xf32, #tpu.memory_space<vmem>>, vector<1x1x8x32xf32>
    %87 = vector.shape_cast %86 : vector<1x1x8x32xf32> to vector<8x32xf32>
    %cst_71 = arith.constant dense<0.000000e+00> : vector<17x32xf32>
    %88 = tpu.matmul %85, %87, %cst_71 {dimension_numbers = #tpu.dot_dimension_numbers<[1], [0], [0], [1], [0, 0, 1, 1], [], []>} : vector<17x8xf32>, vector<8x32xf32>, vector<17x32xf32> -> vector<17x32xf32>
    %c0_72 = arith.constant 0 : index
    %c0_73 = arith.constant 0 : index
    %c0_74 = arith.constant 0 : index
    %c0_75 = arith.constant 0 : index
    %89 = vector.load %arg11[%c0_72, %c0_73, %c0_74, %c0_75] : memref<1x2x1x32xf32, #tpu.memory_space<vmem>>, vector<1x1x1x32xf32>
    %90 = vector.shape_cast %89 : vector<1x1x1x32xf32> to vector<1x32xf32>
    %91 = vector.broadcast %90 : vector<1x32xf32> to vector<17x32xf32>
    %92 = arith.addf %88, %91 : vector<17x32xf32>
    %93 = arith.mulf %92, %92 : vector<17x32xf32>
    %94 = arith.mulf %92, %93 : vector<17x32xf32>
    %cst_76 = arith.constant 4.471500e-02 : f32
    %95 = vector.broadcast %cst_76 : f32 to vector<17x32xf32>
    %96 = arith.mulf %95, %94 : vector<17x32xf32>
    %97 = arith.addf %92, %96 : vector<17x32xf32>
    %cst_77 = arith.constant 0.797884583 : f32
    %98 = vector.broadcast %cst_77 : f32 to vector<17x32xf32>
    %99 = arith.mulf %98, %97 : vector<17x32xf32>
    %100 = math.tanh %99 : vector<17x32xf32>
    %cst_78 = arith.constant 1.000000e+00 : f32
    %101 = vector.broadcast %cst_78 : f32 to vector<17x32xf32>
    %102 = arith.addf %101, %100 : vector<17x32xf32>
    %cst_79 = arith.constant 5.000000e-01 : f32
    %103 = vector.broadcast %cst_79 : f32 to vector<17x32xf32>
    %104 = arith.mulf %103, %102 : vector<17x32xf32>
    %105 = arith.mulf %92, %104 : vector<17x32xf32>
    %c0_80 = arith.constant 0 : index
    %c0_81 = arith.constant 0 : index
    %c0_82 = arith.constant 0 : index
    %c0_83 = arith.constant 0 : index
    %106 = vector.load %arg12[%c0_80, %c0_81, %c0_82, %c0_83] : memref<1x2x32x8xf32, #tpu.memory_space<vmem>>, vector<1x1x32x8xf32>
    %107 = vector.shape_cast %106 : vector<1x1x32x8xf32> to vector<32x8xf32>
    %cst_84 = arith.constant dense<0.000000e+00> : vector<17x8xf32>
    %108 = tpu.matmul %105, %107, %cst_84 {dimension_numbers = #tpu.dot_dimension_numbers<[1], [0], [0], [1], [0, 0, 1, 1], [], []>} : vector<17x32xf32>, vector<32x8xf32>, vector<17x8xf32> -> vector<17x8xf32>
    %c0_85 = arith.constant 0 : index
    %c0_86 = arith.constant 0 : index
    %c0_87 = arith.constant 0 : index
    %c0_88 = arith.constant 0 : index
    %109 = vector.load %arg13[%c0_85, %c0_86, %c0_87, %c0_88] : memref<1x2x1x8xf32, #tpu.memory_space<vmem>>, vector<1x1x1x8xf32>
    %110 = vector.shape_cast %109 : vector<1x1x1x8xf32> to vector<1x8xf32>
    %111 = vector.broadcast %110 : vector<1x8xf32> to vector<17x8xf32>
    %112 = arith.addf %108, %111 : vector<17x8xf32>
    %113 = arith.addf %112, %85 : vector<17x8xf32>
    %c0_89 = arith.constant 0 : index
    %c0_90 = arith.constant 0 : index
    %c0_91 = arith.constant 0 : index
    %c0_92 = arith.constant 0 : index
    %114 = vector.load %arg14[%c0_89, %c0_90, %c0_91, %c0_92] : memref<1x2x1x8xf32, #tpu.memory_space<vmem>>, vector<1x1x1x8xf32>
    %115 = vector.shape_cast %114 : vector<1x1x1x8xf32> to vector<1x8xf32>
    %c0_93 = arith.constant 0 : index
    %c0_94 = arith.constant 0 : index
    %c0_95 = arith.constant 0 : index
    %c0_96 = arith.constant 0 : index
    %116 = vector.load %arg15[%c0_93, %c0_94, %c0_95, %c0_96] : memref<1x2x1x8xf32, #tpu.memory_space<vmem>>, vector<1x1x1x8xf32>
    %117 = vector.shape_cast %116 : vector<1x1x1x8xf32> to vector<1x8xf32>
    %cst_97 = arith.constant dense<0.000000e+00> : vector<17xf32>
    %118 = vector.multi_reduction <add>, %113, %cst_97 [1] : vector<17x8xf32> to vector<17xf32>
    %119 = vector.shape_cast %118 : vector<17xf32> to vector<17x1xf32>
    %cst_98 = arith.constant 8.000000e+00 : f32
    %120 = vector.broadcast %cst_98 : f32 to vector<17x1xf32>
    %121 = arith.divf %119, %120 : vector<17x1xf32>
    %122 = vector.broadcast %121 : vector<17x1xf32> to vector<17x8xf32>
    %123 = arith.subf %113, %122 : vector<17x8xf32>
    %124 = arith.mulf %123, %123 : vector<17x8xf32>
    %cst_99 = arith.constant dense<0.000000e+00> : vector<17xf32>
    %125 = vector.multi_reduction <add>, %124, %cst_99 [1] : vector<17x8xf32> to vector<17xf32>
    %126 = vector.shape_cast %125 : vector<17xf32> to vector<17x1xf32>
    %cst_100 = arith.constant 8.000000e+00 : f32
    %127 = vector.broadcast %cst_100 : f32 to vector<17x1xf32>
    %128 = arith.divf %126, %127 : vector<17x1xf32>
    %cst_101 = arith.constant 9.99999974E-6 : f32
    %129 = vector.broadcast %cst_101 : f32 to vector<17x1xf32>
    %130 = arith.addf %128, %129 : vector<17x1xf32>
    %131 = math.rsqrt %130 : vector<17x1xf32>
    %132 = vector.broadcast %131 : vector<17x1xf32> to vector<17x8xf32>
    %133 = arith.mulf %123, %132 : vector<17x8xf32>
    %134 = vector.broadcast %115 : vector<1x8xf32> to vector<17x8xf32>
    %135 = arith.mulf %133, %134 : vector<17x8xf32>
    %136 = vector.broadcast %117 : vector<1x8xf32> to vector<17x8xf32>
    %137 = arith.addf %135, %136 : vector<17x8xf32>
    %c0_102 = arith.constant 0 : index
    %c1_103 = arith.constant 1 : index
    %c0_104 = arith.constant 0 : index
    %c0_105 = arith.constant 0 : index
    %138 = vector.load %arg6[%c0_102, %c1_103, %c0_104, %c0_105] : memref<1x2x8x24xf32, #tpu.memory_space<vmem>>, vector<1x1x8x24xf32>
    %139 = vector.shape_cast %138 : vector<1x1x8x24xf32> to vector<8x24xf32>
    %cst_106 = arith.constant dense<0.000000e+00> : vector<17x24xf32>
    %140 = tpu.matmul %137, %139, %cst_106 {dimension_numbers = #tpu.dot_dimension_numbers<[1], [0], [0], [1], [0, 0, 1, 1], [], []>} : vector<17x8xf32>, vector<8x24xf32>, vector<17x24xf32> -> vector<17x24xf32>
    %c0_107 = arith.constant 0 : index
    %c0_108 = arith.constant 0 : index
    %141 = vector.load %arg18[%c0_107, %c0_108] : memref<17x24xf32, #tpu.memory_space<vmem>>, vector<17x24xf32>
    tpu.vector_store %arg18[%c0_107, %c0_108], %140 {strides = array<i32>} : memref<17x24xf32, #tpu.memory_space<vmem>>, vector<17x24xf32>,
    %c0_109 = arith.constant 0 : index
    %c0_110 = arith.constant 0 : index
    %142 = vector.load %arg18[%c0_109, %c0_110] : memref<17x24xf32, #tpu.memory_space<vmem>>, vector<17x4xf32>
    %c0_111 = arith.constant 0 : index
    %c8_112 = arith.constant 8 : index
    %143 = vector.load %arg18[%c0_111, %c8_112] : memref<17x24xf32, #tpu.memory_space<vmem>>, vector<17x4xf32>
    %c0_113 = arith.constant 0 : index
    %c16_114 = arith.constant 16 : index
    %144 = vector.load %arg18[%c0_113, %c16_114] : memref<17x24xf32, #tpu.memory_space<vmem>>, vector<17x4xf32>
    %cst_115 = arith.constant dense<0.000000e+00> : vector<17x17xf32>
    %145 = tpu.matmul %142, %143, %cst_115 {dimension_numbers = #tpu.dot_dimension_numbers<[1], [1], [0], [0], [0, 0, 1, 0], [], []>} : vector<17x4xf32>, vector<17x4xf32>, vector<17x17xf32> -> vector<17x17xf32>
    %cst_116 = arith.constant 5.000000e-01 : f32
    %146 = vector.broadcast %cst_116 : f32 to vector<17x17xf32>
    %147 = arith.mulf %145, %146 : vector<17x17xf32>
    %cst_117 = arith.constant dense<0xFF800000> : vector<17xf32>
    %148 = vector.multi_reduction <maximumf>, %147, %cst_117 [1] : vector<17x17xf32> to vector<17xf32>
    %149 = vector.shape_cast %148 : vector<17xf32> to vector<17x1xf32>
    %150 = vector.broadcast %149 : vector<17x1xf32> to vector<17x17xf32>
    %151 = arith.subf %147, %150 : vector<17x17xf32>
    %152 = math.exp %151 : vector<17x17xf32>
    %cst_118 = arith.constant dense<0.000000e+00> : vector<17xf32>
    %153 = vector.multi_reduction <add>, %152, %cst_118 [1] : vector<17x17xf32> to vector<17xf32>
    %154 = vector.shape_cast %153 : vector<17xf32> to vector<17x1xf32>
    %155 = tpu.reciprocal %154 {approx = true} : vector<17x1xf32> -> vector<17x1xf32>
    %156 = vector.broadcast %155 : vector<17x1xf32> to vector<17x17xf32>
    %157 = arith.mulf %152, %156 : vector<17x17xf32>
    %cst_119 = arith.constant dense<0.000000e+00> : vector<17x4xf32>
    %158 = tpu.matmul %157, %144, %cst_119 {dimension_numbers = #tpu.dot_dimension_numbers<[1], [0], [0], [1], [0, 0, 1, 1], [], []>} : vector<17x17xf32>, vector<17x4xf32>, vector<17x4xf32> -> vector<17x4xf32>
    %c0_120 = arith.constant 0 : index
    %c0_121 = arith.constant 0 : index
    %159 = vector.load %arg19[%c0_120, %c0_121] : memref<17x8xf32, #tpu.memory_space<vmem>>, vector<17x4xf32>
    tpu.vector_store %arg19[%c0_120, %c0_121], %158 {strides = array<i32>} : memref<17x8xf32, #tpu.memory_space<vmem>>, vector<17x4xf32>,
    %c0_122 = arith.constant 0 : index
    %c4_123 = arith.constant 4 : index
    %160 = vector.load %arg18[%c0_122, %c4_123] : memref<17x24xf32, #tpu.memory_space<vmem>>, vector<17x4xf32>
    %c0_124 = arith.constant 0 : index
    %c12_125 = arith.constant 12 : index
    %161 = vector.load %arg18[%c0_124, %c12_125] : memref<17x24xf32, #tpu.memory_space<vmem>>, vector<17x4xf32>
    %c0_126 = arith.constant 0 : index
    %c20_127 = arith.constant 20 : index
    %162 = vector.load %arg18[%c0_126, %c20_127] : memref<17x24xf32, #tpu.memory_space<vmem>>, vector<17x4xf32>
    %cst_128 = arith.constant dense<0.000000e+00> : vector<17x17xf32>
    %163 = tpu.matmul %160, %161, %cst_128 {dimension_numbers = #tpu.dot_dimension_numbers<[1], [1], [0], [0], [0, 0, 1, 0], [], []>} : vector<17x4xf32>, vector<17x4xf32>, vector<17x17xf32> -> vector<17x17xf32>
    %cst_129 = arith.constant 5.000000e-01 : f32
    %164 = vector.broadcast %cst_129 : f32 to vector<17x17xf32>
    %165 = arith.mulf %163, %164 : vector<17x17xf32>
    %cst_130 = arith.constant dense<0xFF800000> : vector<17xf32>
    %166 = vector.multi_reduction <maximumf>, %165, %cst_130 [1] : vector<17x17xf32> to vector<17xf32>
    %167 = vector.shape_cast %166 : vector<17xf32> to vector<17x1xf32>
    %168 = vector.broadcast %167 : vector<17x1xf32> to vector<17x17xf32>
    %169 = arith.subf %165, %168 : vector<17x17xf32>
    %170 = math.exp %169 : vector<17x17xf32>
    %cst_131 = arith.constant dense<0.000000e+00> : vector<17xf32>
    %171 = vector.multi_reduction <add>, %170, %cst_131 [1] : vector<17x17xf32> to vector<17xf32>
    %172 = vector.shape_cast %171 : vector<17xf32> to vector<17x1xf32>
    %173 = tpu.reciprocal %172 {approx = true} : vector<17x1xf32> -> vector<17x1xf32>
    %174 = vector.broadcast %173 : vector<17x1xf32> to vector<17x17xf32>
    %175 = arith.mulf %170, %174 : vector<17x17xf32>
    %cst_132 = arith.constant dense<0.000000e+00> : vector<17x4xf32>
    %176 = tpu.matmul %175, %162, %cst_132 {dimension_numbers = #tpu.dot_dimension_numbers<[1], [0], [0], [1], [0, 0, 1, 1], [], []>} : vector<17x17xf32>, vector<17x4xf32>, vector<17x4xf32> -> vector<17x4xf32>
    %c0_133 = arith.constant 0 : index
    %c4_134 = arith.constant 4 : index
    %177 = vector.load %arg19[%c0_133, %c4_134] : memref<17x8xf32, #tpu.memory_space<vmem>>, vector<17x4xf32>
    tpu.vector_store %arg19[%c0_133, %c4_134], %176 {strides = array<i32>} : memref<17x8xf32, #tpu.memory_space<vmem>>, vector<17x4xf32>,
    %c0_135 = arith.constant 0 : index
    %c0_136 = arith.constant 0 : index
    %178 = vector.load %arg19[%c0_135, %c0_136] : memref<17x8xf32, #tpu.memory_space<vmem>>, vector<17x8xf32>
    %c0_137 = arith.constant 0 : index
    %c1_138 = arith.constant 1 : index
    %c0_139 = arith.constant 0 : index
    %c0_140 = arith.constant 0 : index
    %179 = vector.load %arg7[%c0_137, %c1_138, %c0_139, %c0_140] : memref<1x2x8x8xf32, #tpu.memory_space<vmem>>, vector<1x1x8x8xf32>
    %180 = vector.shape_cast %179 : vector<1x1x8x8xf32> to vector<8x8xf32>
    %cst_141 = arith.constant dense<0.000000e+00> : vector<17x8xf32>
    %181 = tpu.matmul %178, %180, %cst_141 {dimension_numbers = #tpu.dot_dimension_numbers<[1], [0], [0], [1], [0, 0, 1, 1], [], []>} : vector<17x8xf32>, vector<8x8xf32>, vector<17x8xf32> -> vector<17x8xf32>
    %182 = arith.addf %181, %137 : vector<17x8xf32>
    %c0_142 = arith.constant 0 : index
    %c1_143 = arith.constant 1 : index
    %c0_144 = arith.constant 0 : index
    %c0_145 = arith.constant 0 : index
    %183 = vector.load %arg8[%c0_142, %c1_143, %c0_144, %c0_145] : memref<1x2x1x8xf32, #tpu.memory_space<vmem>>, vector<1x1x1x8xf32>
    %184 = vector.shape_cast %183 : vector<1x1x1x8xf32> to vector<1x8xf32>
    %c0_146 = arith.constant 0 : index
    %c1_147 = arith.constant 1 : index
    %c0_148 = arith.constant 0 : index
    %c0_149 = arith.constant 0 : index
    %185 = vector.load %arg9[%c0_146, %c1_147, %c0_148, %c0_149] : memref<1x2x1x8xf32, #tpu.memory_space<vmem>>, vector<1x1x1x8xf32>
    %186 = vector.shape_cast %185 : vector<1x1x1x8xf32> to vector<1x8xf32>
    %cst_150 = arith.constant dense<0.000000e+00> : vector<17xf32>
    %187 = vector.multi_reduction <add>, %182, %cst_150 [1] : vector<17x8xf32> to vector<17xf32>
    %188 = vector.shape_cast %187 : vector<17xf32> to vector<17x1xf32>
    %cst_151 = arith.constant 8.000000e+00 : f32
    %189 = vector.broadcast %cst_151 : f32 to vector<17x1xf32>
    %190 = arith.divf %188, %189 : vector<17x1xf32>
    %191 = vector.broadcast %190 : vector<17x1xf32> to vector<17x8xf32>
    %192 = arith.subf %182, %191 : vector<17x8xf32>
    %193 = arith.mulf %192, %192 : vector<17x8xf32>
    %cst_152 = arith.constant dense<0.000000e+00> : vector<17xf32>
    %194 = vector.multi_reduction <add>, %193, %cst_152 [1] : vector<17x8xf32> to vector<17xf32>
    %195 = vector.shape_cast %194 : vector<17xf32> to vector<17x1xf32>
    %cst_153 = arith.constant 8.000000e+00 : f32
    %196 = vector.broadcast %cst_153 : f32 to vector<17x1xf32>
    %197 = arith.divf %195, %196 : vector<17x1xf32>
    %cst_154 = arith.constant 9.99999974E-6 : f32
    %198 = vector.broadcast %cst_154 : f32 to vector<17x1xf32>
    %199 = arith.addf %197, %198 : vector<17x1xf32>
    %200 = math.rsqrt %199 : vector<17x1xf32>
    %201 = vector.broadcast %200 : vector<17x1xf32> to vector<17x8xf32>
    %202 = arith.mulf %192, %201 : vector<17x8xf32>
    %203 = vector.broadcast %184 : vector<1x8xf32> to vector<17x8xf32>
    %204 = arith.mulf %202, %203 : vector<17x8xf32>
    %205 = vector.broadcast %186 : vector<1x8xf32> to vector<17x8xf32>
    %206 = arith.addf %204, %205 : vector<17x8xf32>
    %c0_155 = arith.constant 0 : index
    %c1_156 = arith.constant 1 : index
    %c0_157 = arith.constant 0 : index
    %c0_158 = arith.constant 0 : index
    %207 = vector.load %arg10[%c0_155, %c1_156, %c0_157, %c0_158] : memref<1x2x8x32xf32, #tpu.memory_space<vmem>>, vector<1x1x8x32xf32>
    %208 = vector.shape_cast %207 : vector<1x1x8x32xf32> to vector<8x32xf32>
    %cst_159 = arith.constant dense<0.000000e+00> : vector<17x32xf32>
    %209 = tpu.matmul %206, %208, %cst_159 {dimension_numbers = #tpu.dot_dimension_numbers<[1], [0], [0], [1], [0, 0, 1, 1], [], []>} : vector<17x8xf32>, vector<8x32xf32>, vector<17x32xf32> -> vector<17x32xf32>
    %c0_160 = arith.constant 0 : index
    %c1_161 = arith.constant 1 : index
    %c0_162 = arith.constant 0 : index
    %c0_163 = arith.constant 0 : index
    %210 = vector.load %arg11[%c0_160, %c1_161, %c0_162, %c0_163] : memref<1x2x1x32xf32, #tpu.memory_space<vmem>>, vector<1x1x1x32xf32>
    %211 = vector.shape_cast %210 : vector<1x1x1x32xf32> to vector<1x32xf32>
    %212 = vector.broadcast %211 : vector<1x32xf32> to vector<17x32xf32>
    %213 = arith.addf %209, %212 : vector<17x32xf32>
    %214 = arith.mulf %213, %213 : vector<17x32xf32>
    %215 = arith.mulf %213, %214 : vector<17x32xf32>
    %cst_164 = arith.constant 4.471500e-02 : f32
    %216 = vector.broadcast %cst_164 : f32 to vector<17x32xf32>
    %217 = arith.mulf %216, %215 : vector<17x32xf32>
    %218 = arith.addf %213, %217 : vector<17x32xf32>
    %cst_165 = arith.constant 0.797884583 : f32
    %219 = vector.broadcast %cst_165 : f32 to vector<17x32xf32>
    %220 = arith.mulf %219, %218 : vector<17x32xf32>
    %221 = math.tanh %220 : vector<17x32xf32>
    %cst_166 = arith.constant 1.000000e+00 : f32
    %222 = vector.broadcast %cst_166 : f32 to vector<17x32xf32>
    %223 = arith.addf %222, %221 : vector<17x32xf32>
    %cst_167 = arith.constant 5.000000e-01 : f32
    %224 = vector.broadcast %cst_167 : f32 to vector<17x32xf32>
    %225 = arith.mulf %224, %223 : vector<17x32xf32>
    %226 = arith.mulf %213, %225 : vector<17x32xf32>
    %c0_168 = arith.constant 0 : index
    %c1_169 = arith.constant 1 : index
    %c0_170 = arith.constant 0 : index
    %c0_171 = arith.constant 0 : index
    %227 = vector.load %arg12[%c0_168, %c1_169, %c0_170, %c0_171] : memref<1x2x32x8xf32, #tpu.memory_space<vmem>>, vector<1x1x32x8xf32>
    %228 = vector.shape_cast %227 : vector<1x1x32x8xf32> to vector<32x8xf32>
    %cst_172 = arith.constant dense<0.000000e+00> : vector<17x8xf32>
    %229 = tpu.matmul %226, %228, %cst_172 {dimension_numbers = #tpu.dot_dimension_numbers<[1], [0], [0], [1], [0, 0, 1, 1], [], []>} : vector<17x32xf32>, vector<32x8xf32>, vector<17x8xf32> -> vector<17x8xf32>
    %c0_173 = arith.constant 0 : index
    %c1_174 = arith.constant 1 : index
    %c0_175 = arith.constant 0 : index
    %c0_176 = arith.constant 0 : index
    %230 = vector.load %arg13[%c0_173, %c1_174, %c0_175, %c0_176] : memref<1x2x1x8xf32, #tpu.memory_space<vmem>>, vector<1x1x1x8xf32>
    %231 = vector.shape_cast %230 : vector<1x1x1x8xf32> to vector<1x8xf32>
    %232 = vector.broadcast %231 : vector<1x8xf32> to vector<17x8xf32>
    %233 = arith.addf %229, %232 : vector<17x8xf32>
    %234 = arith.addf %233, %206 : vector<17x8xf32>
    %c0_177 = arith.constant 0 : index
    %c1_178 = arith.constant 1 : index
    %c0_179 = arith.constant 0 : index
    %c0_180 = arith.constant 0 : index
    %235 = vector.load %arg14[%c0_177, %c1_178, %c0_179, %c0_180] : memref<1x2x1x8xf32, #tpu.memory_space<vmem>>, vector<1x1x1x8xf32>
    %236 = vector.shape_cast %235 : vector<1x1x1x8xf32> to vector<1x8xf32>
    %c0_181 = arith.constant 0 : index
    %c1_182 = arith.constant 1 : index
    %c0_183 = arith.constant 0 : index
    %c0_184 = arith.constant 0 : index
    %237 = vector.load %arg15[%c0_181, %c1_182, %c0_183, %c0_184] : memref<1x2x1x8xf32, #tpu.memory_space<vmem>>, vector<1x1x1x8xf32>
    %238 = vector.shape_cast %237 : vector<1x1x1x8xf32> to vector<1x8xf32>
    %cst_185 = arith.constant dense<0.000000e+00> : vector<17xf32>
    %239 = vector.multi_reduction <add>, %234, %cst_185 [1] : vector<17x8xf32> to vector<17xf32>
    %240 = vector.shape_cast %239 : vector<17xf32> to vector<17x1xf32>
    %cst_186 = arith.constant 8.000000e+00 : f32
    %241 = vector.broadcast %cst_186 : f32 to vector<17x1xf32>
    %242 = arith.divf %240, %241 : vector<17x1xf32>
    %243 = vector.broadcast %242 : vector<17x1xf32> to vector<17x8xf32>
    %244 = arith.subf %234, %243 : vector<17x8xf32>
    %245 = arith.mulf %244, %244 : vector<17x8xf32>
    %cst_187 = arith.constant dense<0.000000e+00> : vector<17xf32>
    %246 = vector.multi_reduction <add>, %245, %cst_187 [1] : vector<17x8xf32> to vector<17xf32>
    %247 = vector.shape_cast %246 : vector<17xf32> to vector<17x1xf32>
    %cst_188 = arith.constant 8.000000e+00 : f32
    %248 = vector.broadcast %cst_188 : f32 to vector<17x1xf32>
    %249 = arith.divf %247, %248 : vector<17x1xf32>
    %cst_189 = arith.constant 9.99999974E-6 : f32
    %250 = vector.broadcast %cst_189 : f32 to vector<17x1xf32>
    %251 = arith.addf %249, %250 : vector<17x1xf32>
    %252 = math.rsqrt %251 : vector<17x1xf32>
    %253 = vector.broadcast %252 : vector<17x1xf32> to vector<17x8xf32>
    %254 = arith.mulf %244, %253 : vector<17x8xf32>
    %255 = vector.broadcast %236 : vector<1x8xf32> to vector<17x8xf32>
    %256 = arith.mulf %254, %255 : vector<17x8xf32>
    %257 = vector.broadcast %238 : vector<1x8xf32> to vector<17x8xf32>
    %258 = arith.addf %256, %257 : vector<17x8xf32>
    %259 = vector.extract_strided_slice %258 {offsets = [0, 0], sizes = [1, 8], strides = [1, 1]} : vector<17x8xf32> to vector<1x8xf32>
    %c0_190 = arith.constant 0 : index
    %c0_191 = arith.constant 0 : index
    %c0_192 = arith.constant 0 : index
    %260 = vector.load %arg16[%c0_190, %c0_191, %c0_192] : memref<1x2x8xf32, #tpu.memory_space<vmem>>, vector<1x1x8xf32>
    %261 = vector.shape_cast %260 : vector<1x1x8xf32> to vector<1x8xf32>
    %262 = vector.shape_cast %259 : vector<1x8xf32> to vector<1x1x8xf32>
    tpu.vector_store %arg16[%c0_190, %c0_191, %c0_192], %262 {strides = array<i32>} : memref<1x2x8xf32, #tpu.memory_space<vmem>>, vector<1x1x8xf32>,
    %c1_193 = arith.constant 1 : index
    %c0_194 = arith.constant 0 : index
    %c0_195 = arith.constant 0 : index
    %263 = vector.load %arg1[%c1_193, %c0_194, %c0_195] : memref<2x16x48xf32, #tpu.memory_space<vmem>>, vector<1x16x48xf32>
    %264 = vector.shape_cast %263 : vector<1x16x48xf32> to vector<16x48xf32>
    %cst_196 = arith.constant dense<0.000000e+00> : vector<16x8xf32>
    %265 = tpu.matmul %264, %1, %cst_196 {dimension_numbers = #tpu.dot_dimension_numbers<[1], [0], [0], [1], [0, 0, 1, 1], [], []>} : vector<16x48xf32>, vector<48x8xf32>, vector<16x8xf32> -> vector<16x8xf32>
    %266 = vector.broadcast %3 : vector<1x8xf32> to vector<16x8xf32>
    %267 = arith.addf %265, %266 : vector<16x8xf32>
    %c0_197 = arith.constant 0 : index
    %c0_198 = arith.constant 0 : index
    %c0_199 = arith.constant 0 : index
    %268 = vector.load %arg4[%c0_197, %c0_198, %c0_199] : memref<1x1x8xf32, #tpu.memory_space<vmem>>, vector<1x1x8xf32>
    %269 = vector.shape_cast %268 : vector<1x1x8xf32> to vector<1x8xf32>
    %c0_200 = arith.constant 0 : index
    %c0_201 = arith.constant 0 : index
    %270 = vector.load %arg17[%c0_200, %c0_201] : memref<17x8xf32, #tpu.memory_space<vmem>>, vector<1x8xf32>
    tpu.vector_store %arg17[%c0_200, %c0_201], %269 {strides = array<i32>} : memref<17x8xf32, #tpu.memory_space<vmem>>, vector<1x8xf32>,
    %c1_202 = arith.constant 1 : index
    %c0_203 = arith.constant 0 : index
    %271 = vector.load %arg17[%c1_202, %c0_203] : memref<17x8xf32, #tpu.memory_space<vmem>>, vector<16x8xf32>
    tpu.vector_store %arg17[%c1_202, %c0_203], %267 {strides = array<i32>} : memref<17x8xf32, #tpu.memory_space<vmem>>, vector<16x8xf32>,
    %c0_204 = arith.constant 0 : index
    %c0_205 = arith.constant 0 : index
    %272 = vector.load %arg17[%c0_204, %c0_205] : memref<17x8xf32, #tpu.memory_space<vmem>>, vector<17x8xf32>
    %273 = arith.addf %272, %5 : vector<17x8xf32>
    %c0_206 = arith.constant 0 : index
    %c0_207 = arith.constant 0 : index
    %c0_208 = arith.constant 0 : index
    %c0_209 = arith.constant 0 : index
    %274 = vector.load %arg6[%c0_206, %c0_207, %c0_208, %c0_209] : memref<1x2x8x24xf32, #tpu.memory_space<vmem>>, vector<1x1x8x24xf32>
    %275 = vector.shape_cast %274 : vector<1x1x8x24xf32> to vector<8x24xf32>
    %cst_210 = arith.constant dense<0.000000e+00> : vector<17x24xf32>
    %276 = tpu.matmul %273, %275, %cst_210 {dimension_numbers = #tpu.dot_dimension_numbers<[1], [0], [0], [1], [0, 0, 1, 1], [], []>} : vector<17x8xf32>, vector<8x24xf32>, vector<17x24xf32> -> vector<17x24xf32>
    %c0_211 = arith.constant 0 : index
    %c0_212 = arith.constant 0 : index
    %277 = vector.load %arg18[%c0_211, %c0_212] : memref<17x24xf32, #tpu.memory_space<vmem>>, vector<17x24xf32>
    tpu.vector_store %arg18[%c0_211, %c0_212], %276 {strides = array<i32>} : memref<17x24xf32, #tpu.memory_space<vmem>>, vector<17x24xf32>,
    %c0_213 = arith.constant 0 : index
    %c0_214 = arith.constant 0 : index
    %278 = vector.load %arg18[%c0_213, %c0_214] : memref<17x24xf32, #tpu.memory_space<vmem>>, vector<17x4xf32>
    %c0_215 = arith.constant 0 : index
    %c8_216 = arith.constant 8 : index
    %279 = vector.load %arg18[%c0_215, %c8_216] : memref<17x24xf32, #tpu.memory_space<vmem>>, vector<17x4xf32>
    %c0_217 = arith.constant 0 : index
    %c16_218 = arith.constant 16 : index
    %280 = vector.load %arg18[%c0_217, %c16_218] : memref<17x24xf32, #tpu.memory_space<vmem>>, vector<17x4xf32>
    %cst_219 = arith.constant dense<0.000000e+00> : vector<17x17xf32>
    %281 = tpu.matmul %278, %279, %cst_219 {dimension_numbers = #tpu.dot_dimension_numbers<[1], [1], [0], [0], [0, 0, 1, 0], [], []>} : vector<17x4xf32>, vector<17x4xf32>, vector<17x17xf32> -> vector<17x17xf32>
    %cst_220 = arith.constant 5.000000e-01 : f32
    %282 = vector.broadcast %cst_220 : f32 to vector<17x17xf32>
    %283 = arith.mulf %281, %282 : vector<17x17xf32>
    %cst_221 = arith.constant dense<0xFF800000> : vector<17xf32>
    %284 = vector.multi_reduction <maximumf>, %283, %cst_221 [1] : vector<17x17xf32> to vector<17xf32>
    %285 = vector.shape_cast %284 : vector<17xf32> to vector<17x1xf32>
    %286 = vector.broadcast %285 : vector<17x1xf32> to vector<17x17xf32>
    %287 = arith.subf %283, %286 : vector<17x17xf32>
    %288 = math.exp %287 : vector<17x17xf32>
    %cst_222 = arith.constant dense<0.000000e+00> : vector<17xf32>
    %289 = vector.multi_reduction <add>, %288, %cst_222 [1] : vector<17x17xf32> to vector<17xf32>
    %290 = vector.shape_cast %289 : vector<17xf32> to vector<17x1xf32>
    %291 = tpu.reciprocal %290 {approx = true} : vector<17x1xf32> -> vector<17x1xf32>
    %292 = vector.broadcast %291 : vector<17x1xf32> to vector<17x17xf32>
    %293 = arith.mulf %288, %292 : vector<17x17xf32>
    %cst_223 = arith.constant dense<0.000000e+00> : vector<17x4xf32>
    %294 = tpu.matmul %293, %280, %cst_223 {dimension_numbers = #tpu.dot_dimension_numbers<[1], [0], [0], [1], [0, 0, 1, 1], [], []>} : vector<17x17xf32>, vector<17x4xf32>, vector<17x4xf32> -> vector<17x4xf32>
    %c0_224 = arith.constant 0 : index
    %c0_225 = arith.constant 0 : index
    %295 = vector.load %arg19[%c0_224, %c0_225] : memref<17x8xf32, #tpu.memory_space<vmem>>, vector<17x4xf32>
    tpu.vector_store %arg19[%c0_224, %c0_225], %294 {strides = array<i32>} : memref<17x8xf32, #tpu.memory_space<vmem>>, vector<17x4xf32>,
    %c0_226 = arith.constant 0 : index
    %c4_227 = arith.constant 4 : index
    %296 = vector.load %arg18[%c0_226, %c4_227] : memref<17x24xf32, #tpu.memory_space<vmem>>, vector<17x4xf32>
    %c0_228 = arith.constant 0 : index
    %c12_229 = arith.constant 12 : index
    %297 = vector.load %arg18[%c0_228, %c12_229] : memref<17x24xf32, #tpu.memory_space<vmem>>, vector<17x4xf32>
    %c0_230 = arith.constant 0 : index
    %c20_231 = arith.constant 20 : index
    %298 = vector.load %arg18[%c0_230, %c20_231] : memref<17x24xf32, #tpu.memory_space<vmem>>, vector<17x4xf32>
    %cst_232 = arith.constant dense<0.000000e+00> : vector<17x17xf32>
    %299 = tpu.matmul %296, %297, %cst_232 {dimension_numbers = #tpu.dot_dimension_numbers<[1], [1], [0], [0], [0, 0, 1, 0], [], []>} : vector<17x4xf32>, vector<17x4xf32>, vector<17x17xf32> -> vector<17x17xf32>
    %cst_233 = arith.constant 5.000000e-01 : f32
    %300 = vector.broadcast %cst_233 : f32 to vector<17x17xf32>
    %301 = arith.mulf %299, %300 : vector<17x17xf32>
    %cst_234 = arith.constant dense<0xFF800000> : vector<17xf32>
    %302 = vector.multi_reduction <maximumf>, %301, %cst_234 [1] : vector<17x17xf32> to vector<17xf32>
    %303 = vector.shape_cast %302 : vector<17xf32> to vector<17x1xf32>
    %304 = vector.broadcast %303 : vector<17x1xf32> to vector<17x17xf32>
    %305 = arith.subf %301, %304 : vector<17x17xf32>
    %306 = math.exp %305 : vector<17x17xf32>
    %cst_235 = arith.constant dense<0.000000e+00> : vector<17xf32>
    %307 = vector.multi_reduction <add>, %306, %cst_235 [1] : vector<17x17xf32> to vector<17xf32>
    %308 = vector.shape_cast %307 : vector<17xf32> to vector<17x1xf32>
    %309 = tpu.reciprocal %308 {approx = true} : vector<17x1xf32> -> vector<17x1xf32>
    %310 = vector.broadcast %309 : vector<17x1xf32> to vector<17x17xf32>
    %311 = arith.mulf %306, %310 : vector<17x17xf32>
    %cst_236 = arith.constant dense<0.000000e+00> : vector<17x4xf32>
    %312 = tpu.matmul %311, %298, %cst_236 {dimension_numbers = #tpu.dot_dimension_numbers<[1], [0], [0], [1], [0, 0, 1, 1], [], []>} : vector<17x17xf32>, vector<17x4xf32>, vector<17x4xf32> -> vector<17x4xf32>
    %c0_237 = arith.constant 0 : index
    %c4_238 = arith.constant 4 : index
    %313 = vector.load %arg19[%c0_237, %c4_238] : memref<17x8xf32, #tpu.memory_space<vmem>>, vector<17x4xf32>
    tpu.vector_store %arg19[%c0_237, %c4_238], %312 {strides = array<i32>} : memref<17x8xf32, #tpu.memory_space<vmem>>, vector<17x4xf32>,
    %c0_239 = arith.constant 0 : index
    %c0_240 = arith.constant 0 : index
    %314 = vector.load %arg19[%c0_239, %c0_240] : memref<17x8xf32, #tpu.memory_space<vmem>>, vector<17x8xf32>
    %c0_241 = arith.constant 0 : index
    %c0_242 = arith.constant 0 : index
    %c0_243 = arith.constant 0 : index
    %c0_244 = arith.constant 0 : index
    %315 = vector.load %arg7[%c0_241, %c0_242, %c0_243, %c0_244] : memref<1x2x8x8xf32, #tpu.memory_space<vmem>>, vector<1x1x8x8xf32>
    %316 = vector.shape_cast %315 : vector<1x1x8x8xf32> to vector<8x8xf32>
    %cst_245 = arith.constant dense<0.000000e+00> : vector<17x8xf32>
    %317 = tpu.matmul %314, %316, %cst_245 {dimension_numbers = #tpu.dot_dimension_numbers<[1], [0], [0], [1], [0, 0, 1, 1], [], []>} : vector<17x8xf32>, vector<8x8xf32>, vector<17x8xf32> -> vector<17x8xf32>
    %318 = arith.addf %317, %273 : vector<17x8xf32>
    %c0_246 = arith.constant 0 : index
    %c0_247 = arith.constant 0 : index
    %c0_248 = arith.constant 0 : index
    %c0_249 = arith.constant 0 : index
    %319 = vector.load %arg8[%c0_246, %c0_247, %c0_248, %c0_249] : memref<1x2x1x8xf32, #tpu.memory_space<vmem>>, vector<1x1x1x8xf32>
    %320 = vector.shape_cast %319 : vector<1x1x1x8xf32> to vector<1x8xf32>
    %c0_250 = arith.constant 0 : index
    %c0_251 = arith.constant 0 : index
    %c0_252 = arith.constant 0 : index
    %c0_253 = arith.constant 0 : index
    %321 = vector.load %arg9[%c0_250, %c0_251, %c0_252, %c0_253] : memref<1x2x1x8xf32, #tpu.memory_space<vmem>>, vector<1x1x1x8xf32>
    %322 = vector.shape_cast %321 : vector<1x1x1x8xf32> to vector<1x8xf32>
    %cst_254 = arith.constant dense<0.000000e+00> : vector<17xf32>
    %323 = vector.multi_reduction <add>, %318, %cst_254 [1] : vector<17x8xf32> to vector<17xf32>
    %324 = vector.shape_cast %323 : vector<17xf32> to vector<17x1xf32>
    %cst_255 = arith.constant 8.000000e+00 : f32
    %325 = vector.broadcast %cst_255 : f32 to vector<17x1xf32>
    %326 = arith.divf %324, %325 : vector<17x1xf32>
    %327 = vector.broadcast %326 : vector<17x1xf32> to vector<17x8xf32>
    %328 = arith.subf %318, %327 : vector<17x8xf32>
    %329 = arith.mulf %328, %328 : vector<17x8xf32>
    %cst_256 = arith.constant dense<0.000000e+00> : vector<17xf32>
    %330 = vector.multi_reduction <add>, %329, %cst_256 [1] : vector<17x8xf32> to vector<17xf32>
    %331 = vector.shape_cast %330 : vector<17xf32> to vector<17x1xf32>
    %cst_257 = arith.constant 8.000000e+00 : f32
    %332 = vector.broadcast %cst_257 : f32 to vector<17x1xf32>
    %333 = arith.divf %331, %332 : vector<17x1xf32>
    %cst_258 = arith.constant 9.99999974E-6 : f32
    %334 = vector.broadcast %cst_258 : f32 to vector<17x1xf32>
    %335 = arith.addf %333, %334 : vector<17x1xf32>
    %336 = math.rsqrt %335 : vector<17x1xf32>
    %337 = vector.broadcast %336 : vector<17x1xf32> to vector<17x8xf32>
    %338 = arith.mulf %328, %337 : vector<17x8xf32>
    %339 = vector.broadcast %320 : vector<1x8xf32> to vector<17x8xf32>
    %340 = arith.mulf %338, %339 : vector<17x8xf32>
    %341 = vector.broadcast %322 : vector<1x8xf32> to vector<17x8xf32>
    %342 = arith.addf %340, %341 : vector<17x8xf32>
    %c0_259 = arith.constant 0 : index
    %c0_260 = arith.constant 0 : index
    %c0_261 = arith.constant 0 : index
    %c0_262 = arith.constant 0 : index
    %343 = vector.load %arg10[%c0_259, %c0_260, %c0_261, %c0_262] : memref<1x2x8x32xf32, #tpu.memory_space<vmem>>, vector<1x1x8x32xf32>
    %344 = vector.shape_cast %343 : vector<1x1x8x32xf32> to vector<8x32xf32>
    %cst_263 = arith.constant dense<0.000000e+00> : vector<17x32xf32>
    %345 = tpu.matmul %342, %344, %cst_263 {dimension_numbers = #tpu.dot_dimension_numbers<[1], [0], [0], [1], [0, 0, 1, 1], [], []>} : vector<17x8xf32>, vector<8x32xf32>, vector<17x32xf32> -> vector<17x32xf32>
    %c0_264 = arith.constant 0 : index
    %c0_265 = arith.constant 0 : index
    %c0_266 = arith.constant 0 : index
    %c0_267 = arith.constant 0 : index
    %346 = vector.load %arg11[%c0_264, %c0_265, %c0_266, %c0_267] : memref<1x2x1x32xf32, #tpu.memory_space<vmem>>, vector<1x1x1x32xf32>
    %347 = vector.shape_cast %346 : vector<1x1x1x32xf32> to vector<1x32xf32>
    %348 = vector.broadcast %347 : vector<1x32xf32> to vector<17x32xf32>
    %349 = arith.addf %345, %348 : vector<17x32xf32>
    %350 = arith.mulf %349, %349 : vector<17x32xf32>
    %351 = arith.mulf %349, %350 : vector<17x32xf32>
    %cst_268 = arith.constant 4.471500e-02 : f32
    %352 = vector.broadcast %cst_268 : f32 to vector<17x32xf32>
    %353 = arith.mulf %352, %351 : vector<17x32xf32>
    %354 = arith.addf %349, %353 : vector<17x32xf32>
    %cst_269 = arith.constant 0.797884583 : f32
    %355 = vector.broadcast %cst_269 : f32 to vector<17x32xf32>
    %356 = arith.mulf %355, %354 : vector<17x32xf32>
    %357 = math.tanh %356 : vector<17x32xf32>
    %cst_270 = arith.constant 1.000000e+00 : f32
    %358 = vector.broadcast %cst_270 : f32 to vector<17x32xf32>
    %359 = arith.addf %358, %357 : vector<17x32xf32>
    %cst_271 = arith.constant 5.000000e-01 : f32
    %360 = vector.broadcast %cst_271 : f32 to vector<17x32xf32>
    %361 = arith.mulf %360, %359 : vector<17x32xf32>
    %362 = arith.mulf %349, %361 : vector<17x32xf32>
    %c0_272 = arith.constant 0 : index
    %c0_273 = arith.constant 0 : index
    %c0_274 = arith.constant 0 : index
    %c0_275 = arith.constant 0 : index
    %363 = vector.load %arg12[%c0_272, %c0_273, %c0_274, %c0_275] : memref<1x2x32x8xf32, #tpu.memory_space<vmem>>, vector<1x1x32x8xf32>
    %364 = vector.shape_cast %363 : vector<1x1x32x8xf32> to vector<32x8xf32>
    %cst_276 = arith.constant dense<0.000000e+00> : vector<17x8xf32>
    %365 = tpu.matmul %362, %364, %cst_276 {dimension_numbers = #tpu.dot_dimension_numbers<[1], [0], [0], [1], [0, 0, 1, 1], [], []>} : vector<17x32xf32>, vector<32x8xf32>, vector<17x8xf32> -> vector<17x8xf32>
    %c0_277 = arith.constant 0 : index
    %c0_278 = arith.constant 0 : index
    %c0_279 = arith.constant 0 : index
    %c0_280 = arith.constant 0 : index
    %366 = vector.load %arg13[%c0_277, %c0_278, %c0_279, %c0_280] : memref<1x2x1x8xf32, #tpu.memory_space<vmem>>, vector<1x1x1x8xf32>
    %367 = vector.shape_cast %366 : vector<1x1x1x8xf32> to vector<1x8xf32>
    %368 = vector.broadcast %367 : vector<1x8xf32> to vector<17x8xf32>
    %369 = arith.addf %365, %368 : vector<17x8xf32>
    %370 = arith.addf %369, %342 : vector<17x8xf32>
    %c0_281 = arith.constant 0 : index
    %c0_282 = arith.constant 0 : index
    %c0_283 = arith.constant 0 : index
    %c0_284 = arith.constant 0 : index
    %371 = vector.load %arg14[%c0_281, %c0_282, %c0_283, %c0_284] : memref<1x2x1x8xf32, #tpu.memory_space<vmem>>, vector<1x1x1x8xf32>
    %372 = vector.shape_cast %371 : vector<1x1x1x8xf32> to vector<1x8xf32>
    %c0_285 = arith.constant 0 : index
    %c0_286 = arith.constant 0 : index
    %c0_287 = arith.constant 0 : index
    %c0_288 = arith.constant 0 : index
    %373 = vector.load %arg15[%c0_285, %c0_286, %c0_287, %c0_288] : memref<1x2x1x8xf32, #tpu.memory_space<vmem>>, vector<1x1x1x8xf32>
    %374 = vector.shape_cast %373 : vector<1x1x1x8xf32> to vector<1x8xf32>
    %cst_289 = arith.constant dense<0.000000e+00> : vector<17xf32>
    %375 = vector.multi_reduction <add>, %370, %cst_289 [1] : vector<17x8xf32> to vector<17xf32>
    %376 = vector.shape_cast %375 : vector<17xf32> to vector<17x1xf32>
    %cst_290 = arith.constant 8.000000e+00 : f32
    %377 = vector.broadcast %cst_290 : f32 to vector<17x1xf32>
    %378 = arith.divf %376, %377 : vector<17x1xf32>
    %379 = vector.broadcast %378 : vector<17x1xf32> to vector<17x8xf32>
    %380 = arith.subf %370, %379 : vector<17x8xf32>
    %381 = arith.mulf %380, %380 : vector<17x8xf32>
    %cst_291 = arith.constant dense<0.000000e+00> : vector<17xf32>
    %382 = vector.multi_reduction <add>, %381, %cst_291 [1] : vector<17x8xf32> to vector<17xf32>
    %383 = vector.shape_cast %382 : vector<17xf32> to vector<17x1xf32>
    %cst_292 = arith.constant 8.000000e+00 : f32
    %384 = vector.broadcast %cst_292 : f32 to vector<17x1xf32>
    %385 = arith.divf %383, %384 : vector<17x1xf32>
    %cst_293 = arith.constant 9.99999974E-6 : f32
    %386 = vector.broadcast %cst_293 : f32 to vector<17x1xf32>
    %387 = arith.addf %385, %386 : vector<17x1xf32>
    %388 = math.rsqrt %387 : vector<17x1xf32>
    %389 = vector.broadcast %388 : vector<17x1xf32> to vector<17x8xf32>
    %390 = arith.mulf %380, %389 : vector<17x8xf32>
    %391 = vector.broadcast %372 : vector<1x8xf32> to vector<17x8xf32>
    %392 = arith.mulf %390, %391 : vector<17x8xf32>
    %393 = vector.broadcast %374 : vector<1x8xf32> to vector<17x8xf32>
    %394 = arith.addf %392, %393 : vector<17x8xf32>
    %c0_294 = arith.constant 0 : index
    %c1_295 = arith.constant 1 : index
    %c0_296 = arith.constant 0 : index
    %c0_297 = arith.constant 0 : index
    %395 = vector.load %arg6[%c0_294, %c1_295, %c0_296, %c0_297] : memref<1x2x8x24xf32, #tpu.memory_space<vmem>>, vector<1x1x8x24xf32>
    %396 = vector.shape_cast %395 : vector<1x1x8x24xf32> to vector<8x24xf32>
    %cst_298 = arith.constant dense<0.000000e+00> : vector<17x24xf32>
    %397 = tpu.matmul %394, %396, %cst_298 {dimension_numbers = #tpu.dot_dimension_numbers<[1], [0], [0], [1], [0, 0, 1, 1], [], []>} : vector<17x8xf32>, vector<8x24xf32>, vector<17x24xf32> -> vector<17x24xf32>
    %c0_299 = arith.constant 0 : index
    %c0_300 = arith.constant 0 : index
    %398 = vector.load %arg18[%c0_299, %c0_300] : memref<17x24xf32, #tpu.memory_space<vmem>>, vector<17x24xf32>
    tpu.vector_store %arg18[%c0_299, %c0_300], %397 {strides = array<i32>} : memref<17x24xf32, #tpu.memory_space<vmem>>, vector<17x24xf32>,
    %c0_301 = arith.constant 0 : index
    %c0_302 = arith.constant 0 : index
    %399 = vector.load %arg18[%c0_301, %c0_302] : memref<17x24xf32, #tpu.memory_space<vmem>>, vector<17x4xf32>
    %c0_303 = arith.constant 0 : index
    %c8_304 = arith.constant 8 : index
    %400 = vector.load %arg18[%c0_303, %c8_304] : memref<17x24xf32, #tpu.memory_space<vmem>>, vector<17x4xf32>
    %c0_305 = arith.constant 0 : index
    %c16_306 = arith.constant 16 : index
    %401 = vector.load %arg18[%c0_305, %c16_306] : memref<17x24xf32, #tpu.memory_space<vmem>>, vector<17x4xf32>
    %cst_307 = arith.constant dense<0.000000e+00> : vector<17x17xf32>
    %402 = tpu.matmul %399, %400, %cst_307 {dimension_numbers = #tpu.dot_dimension_numbers<[1], [1], [0], [0], [0, 0, 1, 0], [], []>} : vector<17x4xf32>, vector<17x4xf32>, vector<17x17xf32> -> vector<17x17xf32>
    %cst_308 = arith.constant 5.000000e-01 : f32
    %403 = vector.broadcast %cst_308 : f32 to vector<17x17xf32>
    %404 = arith.mulf %402, %403 : vector<17x17xf32>
    %cst_309 = arith.constant dense<0xFF800000> : vector<17xf32>
    %405 = vector.multi_reduction <maximumf>, %404, %cst_309 [1] : vector<17x17xf32> to vector<17xf32>
    %406 = vector.shape_cast %405 : vector<17xf32> to vector<17x1xf32>
    %407 = vector.broadcast %406 : vector<17x1xf32> to vector<17x17xf32>
    %408 = arith.subf %404, %407 : vector<17x17xf32>
    %409 = math.exp %408 : vector<17x17xf32>
    %cst_310 = arith.constant dense<0.000000e+00> : vector<17xf32>
    %410 = vector.multi_reduction <add>, %409, %cst_310 [1] : vector<17x17xf32> to vector<17xf32>
    %411 = vector.shape_cast %410 : vector<17xf32> to vector<17x1xf32>
    %412 = tpu.reciprocal %411 {approx = true} : vector<17x1xf32> -> vector<17x1xf32>
    %413 = vector.broadcast %412 : vector<17x1xf32> to vector<17x17xf32>
    %414 = arith.mulf %409, %413 : vector<17x17xf32>
    %cst_311 = arith.constant dense<0.000000e+00> : vector<17x4xf32>
    %415 = tpu.matmul %414, %401, %cst_311 {dimension_numbers = #tpu.dot_dimension_numbers<[1], [0], [0], [1], [0, 0, 1, 1], [], []>} : vector<17x17xf32>, vector<17x4xf32>, vector<17x4xf32> -> vector<17x4xf32>
    %c0_312 = arith.constant 0 : index
    %c0_313 = arith.constant 0 : index
    %416 = vector.load %arg19[%c0_312, %c0_313] : memref<17x8xf32, #tpu.memory_space<vmem>>, vector<17x4xf32>
    tpu.vector_store %arg19[%c0_312, %c0_313], %415 {strides = array<i32>} : memref<17x8xf32, #tpu.memory_space<vmem>>, vector<17x4xf32>,
    %c0_314 = arith.constant 0 : index
    %c4_315 = arith.constant 4 : index
    %417 = vector.load %arg18[%c0_314, %c4_315] : memref<17x24xf32, #tpu.memory_space<vmem>>, vector<17x4xf32>
    %c0_316 = arith.constant 0 : index
    %c12_317 = arith.constant 12 : index
    %418 = vector.load %arg18[%c0_316, %c12_317] : memref<17x24xf32, #tpu.memory_space<vmem>>, vector<17x4xf32>
    %c0_318 = arith.constant 0 : index
    %c20_319 = arith.constant 20 : index
    %419 = vector.load %arg18[%c0_318, %c20_319] : memref<17x24xf32, #tpu.memory_space<vmem>>, vector<17x4xf32>
    %cst_320 = arith.constant dense<0.000000e+00> : vector<17x17xf32>
    %420 = tpu.matmul %417, %418, %cst_320 {dimension_numbers = #tpu.dot_dimension_numbers<[1], [1], [0], [0], [0, 0, 1, 0], [], []>} : vector<17x4xf32>, vector<17x4xf32>, vector<17x17xf32> -> vector<17x17xf32>
    %cst_321 = arith.constant 5.000000e-01 : f32
    %421 = vector.broadcast %cst_321 : f32 to vector<17x17xf32>
    %422 = arith.mulf %420, %421 : vector<17x17xf32>
    %cst_322 = arith.constant dense<0xFF800000> : vector<17xf32>
    %423 = vector.multi_reduction <maximumf>, %422, %cst_322 [1] : vector<17x17xf32> to vector<17xf32>
    %424 = vector.shape_cast %423 : vector<17xf32> to vector<17x1xf32>
    %425 = vector.broadcast %424 : vector<17x1xf32> to vector<17x17xf32>
    %426 = arith.subf %422, %425 : vector<17x17xf32>
    %427 = math.exp %426 : vector<17x17xf32>
    %cst_323 = arith.constant dense<0.000000e+00> : vector<17xf32>
    %428 = vector.multi_reduction <add>, %427, %cst_323 [1] : vector<17x17xf32> to vector<17xf32>
    %429 = vector.shape_cast %428 : vector<17xf32> to vector<17x1xf32>
    %430 = tpu.reciprocal %429 {approx = true} : vector<17x1xf32> -> vector<17x1xf32>
    %431 = vector.broadcast %430 : vector<17x1xf32> to vector<17x17xf32>
    %432 = arith.mulf %427, %431 : vector<17x17xf32>
    %cst_324 = arith.constant dense<0.000000e+00> : vector<17x4xf32>
    %433 = tpu.matmul %432, %419, %cst_324 {dimension_numbers = #tpu.dot_dimension_numbers<[1], [0], [0], [1], [0, 0, 1, 1], [], []>} : vector<17x17xf32>, vector<17x4xf32>, vector<17x4xf32> -> vector<17x4xf32>
    %c0_325 = arith.constant 0 : index
    %c4_326 = arith.constant 4 : index
    %434 = vector.load %arg19[%c0_325, %c4_326] : memref<17x8xf32, #tpu.memory_space<vmem>>, vector<17x4xf32>
    tpu.vector_store %arg19[%c0_325, %c4_326], %433 {strides = array<i32>} : memref<17x8xf32, #tpu.memory_space<vmem>>, vector<17x4xf32>,
    %c0_327 = arith.constant 0 : index
    %c0_328 = arith.constant 0 : index
    %435 = vector.load %arg19[%c0_327, %c0_328] : memref<17x8xf32, #tpu.memory_space<vmem>>, vector<17x8xf32>
    %c0_329 = arith.constant 0 : index
    %c1_330 = arith.constant 1 : index
    %c0_331 = arith.constant 0 : index
    %c0_332 = arith.constant 0 : index
    %436 = vector.load %arg7[%c0_329, %c1_330, %c0_331, %c0_332] : memref<1x2x8x8xf32, #tpu.memory_space<vmem>>, vector<1x1x8x8xf32>
    %437 = vector.shape_cast %436 : vector<1x1x8x8xf32> to vector<8x8xf32>
    %cst_333 = arith.constant dense<0.000000e+00> : vector<17x8xf32>
    %438 = tpu.matmul %435, %437, %cst_333 {dimension_numbers = #tpu.dot_dimension_numbers<[1], [0], [0], [1], [0, 0, 1, 1], [], []>} : vector<17x8xf32>, vector<8x8xf32>, vector<17x8xf32> -> vector<17x8xf32>
    %439 = arith.addf %438, %394 : vector<17x8xf32>
    %c0_334 = arith.constant 0 : index
    %c1_335 = arith.constant 1 : index
    %c0_336 = arith.constant 0 : index
    %c0_337 = arith.constant 0 : index
    %440 = vector.load %arg8[%c0_334, %c1_335, %c0_336, %c0_337] : memref<1x2x1x8xf32, #tpu.memory_space<vmem>>, vector<1x1x1x8xf32>
    %441 = vector.shape_cast %440 : vector<1x1x1x8xf32> to vector<1x8xf32>
    %c0_338 = arith.constant 0 : index
    %c1_339 = arith.constant 1 : index
    %c0_340 = arith.constant 0 : index
    %c0_341 = arith.constant 0 : index
    %442 = vector.load %arg9[%c0_338, %c1_339, %c0_340, %c0_341] : memref<1x2x1x8xf32, #tpu.memory_space<vmem>>, vector<1x1x1x8xf32>
    %443 = vector.shape_cast %442 : vector<1x1x1x8xf32> to vector<1x8xf32>
    %cst_342 = arith.constant dense<0.000000e+00> : vector<17xf32>
    %444 = vector.multi_reduction <add>, %439, %cst_342 [1] : vector<17x8xf32> to vector<17xf32>
    %445 = vector.shape_cast %444 : vector<17xf32> to vector<17x1xf32>
    %cst_343 = arith.constant 8.000000e+00 : f32
    %446 = vector.broadcast %cst_343 : f32 to vector<17x1xf32>
    %447 = arith.divf %445, %446 : vector<17x1xf32>
    %448 = vector.broadcast %447 : vector<17x1xf32> to vector<17x8xf32>
    %449 = arith.subf %439, %448 : vector<17x8xf32>
    %450 = arith.mulf %449, %449 : vector<17x8xf32>
    %cst_344 = arith.constant dense<0.000000e+00> : vector<17xf32>
    %451 = vector.multi_reduction <add>, %450, %cst_344 [1] : vector<17x8xf32> to vector<17xf32>
    %452 = vector.shape_cast %451 : vector<17xf32> to vector<17x1xf32>
    %cst_345 = arith.constant 8.000000e+00 : f32
    %453 = vector.broadcast %cst_345 : f32 to vector<17x1xf32>
    %454 = arith.divf %452, %453 : vector<17x1xf32>
    %cst_346 = arith.constant 9.99999974E-6 : f32
    %455 = vector.broadcast %cst_346 : f32 to vector<17x1xf32>
    %456 = arith.addf %454, %455 : vector<17x1xf32>
    %457 = math.rsqrt %456 : vector<17x1xf32>
    %458 = vector.broadcast %457 : vector<17x1xf32> to vector<17x8xf32>
    %459 = arith.mulf %449, %458 : vector<17x8xf32>
    %460 = vector.broadcast %441 : vector<1x8xf32> to vector<17x8xf32>
    %461 = arith.mulf %459, %460 : vector<17x8xf32>
    %462 = vector.broadcast %443 : vector<1x8xf32> to vector<17x8xf32>
    %463 = arith.addf %461, %462 : vector<17x8xf32>
    %c0_347 = arith.constant 0 : index
    %c1_348 = arith.constant 1 : index
    %c0_349 = arith.constant 0 : index
    %c0_350 = arith.constant 0 : index
    %464 = vector.load %arg10[%c0_347, %c1_348, %c0_349, %c0_350] : memref<1x2x8x32xf32, #tpu.memory_space<vmem>>, vector<1x1x8x32xf32>
    %465 = vector.shape_cast %464 : vector<1x1x8x32xf32> to vector<8x32xf32>
    %cst_351 = arith.constant dense<0.000000e+00> : vector<17x32xf32>
    %466 = tpu.matmul %463, %465, %cst_351 {dimension_numbers = #tpu.dot_dimension_numbers<[1], [0], [0], [1], [0, 0, 1, 1], [], []>} : vector<17x8xf32>, vector<8x32xf32>, vector<17x32xf32> -> vector<17x32xf32>
    %c0_352 = arith.constant 0 : index
    %c1_353 = arith.constant 1 : index
    %c0_354 = arith.constant 0 : index
    %c0_355 = arith.constant 0 : index
    %467 = vector.load %arg11[%c0_352, %c1_353, %c0_354, %c0_355] : memref<1x2x1x32xf32, #tpu.memory_space<vmem>>, vector<1x1x1x32xf32>
    %468 = vector.shape_cast %467 : vector<1x1x1x32xf32> to vector<1x32xf32>
    %469 = vector.broadcast %468 : vector<1x32xf32> to vector<17x32xf32>
    %470 = arith.addf %466, %469 : vector<17x32xf32>
    %471 = arith.mulf %470, %470 : vector<17x32xf32>
    %472 = arith.mulf %470, %471 : vector<17x32xf32>
    %cst_356 = arith.constant 4.471500e-02 : f32
    %473 = vector.broadcast %cst_356 : f32 to vector<17x32xf32>
    %474 = arith.mulf %473, %472 : vector<17x32xf32>
    %475 = arith.addf %470, %474 : vector<17x32xf32>
    %cst_357 = arith.constant 0.797884583 : f32
    %476 = vector.broadcast %cst_357 : f32 to vector<17x32xf32>
    %477 = arith.mulf %476, %475 : vector<17x32xf32>
    %478 = math.tanh %477 : vector<17x32xf32>
    %cst_358 = arith.constant 1.000000e+00 : f32
    %479 = vector.broadcast %cst_358 : f32 to vector<17x32xf32>
    %480 = arith.addf %479, %478 : vector<17x32xf32>
    %cst_359 = arith.constant 5.000000e-01 : f32
    %481 = vector.broadcast %cst_359 : f32 to vector<17x32xf32>
    %482 = arith.mulf %481, %480 : vector<17x32xf32>
    %483 = arith.mulf %470, %482 : vector<17x32xf32>
    %c0_360 = arith.constant 0 : index
    %c1_361 = arith.constant 1 : index
    %c0_362 = arith.constant 0 : index
    %c0_363 = arith.constant 0 : index
    %484 = vector.load %arg12[%c0_360, %c1_361, %c0_362, %c0_363] : memref<1x2x32x8xf32, #tpu.memory_space<vmem>>, vector<1x1x32x8xf32>
    %485 = vector.shape_cast %484 : vector<1x1x32x8xf32> to vector<32x8xf32>
    %cst_364 = arith.constant dense<0.000000e+00> : vector<17x8xf32>
    %486 = tpu.matmul %483, %485, %cst_364 {dimension_numbers = #tpu.dot_dimension_numbers<[1], [0], [0], [1], [0, 0, 1, 1], [], []>} : vector<17x32xf32>, vector<32x8xf32>, vector<17x8xf32> -> vector<17x8xf32>
    %c0_365 = arith.constant 0 : index
    %c1_366 = arith.constant 1 : index
    %c0_367 = arith.constant 0 : index
    %c0_368 = arith.constant 0 : index
    %487 = vector.load %arg13[%c0_365, %c1_366, %c0_367, %c0_368] : memref<1x2x1x8xf32, #tpu.memory_space<vmem>>, vector<1x1x1x8xf32>
    %488 = vector.shape_cast %487 : vector<1x1x1x8xf32> to vector<1x8xf32>
    %489 = vector.broadcast %488 : vector<1x8xf32> to vector<17x8xf32>
    %490 = arith.addf %486, %489 : vector<17x8xf32>
    %491 = arith.addf %490, %463 : vector<17x8xf32>
    %c0_369 = arith.constant 0 : index
    %c1_370 = arith.constant 1 : index
    %c0_371 = arith.constant 0 : index
    %c0_372 = arith.constant 0 : index
    %492 = vector.load %arg14[%c0_369, %c1_370, %c0_371, %c0_372] : memref<1x2x1x8xf32, #tpu.memory_space<vmem>>, vector<1x1x1x8xf32>
    %493 = vector.shape_cast %492 : vector<1x1x1x8xf32> to vector<1x8xf32>
    %c0_373 = arith.constant 0 : index
    %c1_374 = arith.constant 1 : index
    %c0_375 = arith.constant 0 : index
    %c0_376 = arith.constant 0 : index
    %494 = vector.load %arg15[%c0_373, %c1_374, %c0_375, %c0_376] : memref<1x2x1x8xf32, #tpu.memory_space<vmem>>, vector<1x1x1x8xf32>
    %495 = vector.shape_cast %494 : vector<1x1x1x8xf32> to vector<1x8xf32>
    %cst_377 = arith.constant dense<0.000000e+00> : vector<17xf32>
    %496 = vector.multi_reduction <add>, %491, %cst_377 [1] : vector<17x8xf32> to vector<17xf32>
    %497 = vector.shape_cast %496 : vector<17xf32> to vector<17x1xf32>
    %cst_378 = arith.constant 8.000000e+00 : f32
    %498 = vector.broadcast %cst_378 : f32 to vector<17x1xf32>
    %499 = arith.divf %497, %498 : vector<17x1xf32>
    %500 = vector.broadcast %499 : vector<17x1xf32> to vector<17x8xf32>
    %501 = arith.subf %491, %500 : vector<17x8xf32>
    %502 = arith.mulf %501, %501 : vector<17x8xf32>
    %cst_379 = arith.constant dense<0.000000e+00> : vector<17xf32>
    %503 = vector.multi_reduction <add>, %502, %cst_379 [1] : vector<17x8xf32> to vector<17xf32>
    %504 = vector.shape_cast %503 : vector<17xf32> to vector<17x1xf32>
    %cst_380 = arith.constant 8.000000e+00 : f32
    %505 = vector.broadcast %cst_380 : f32 to vector<17x1xf32>
    %506 = arith.divf %504, %505 : vector<17x1xf32>
    %cst_381 = arith.constant 9.99999974E-6 : f32
    %507 = vector.broadcast %cst_381 : f32 to vector<17x1xf32>
    %508 = arith.addf %506, %507 : vector<17x1xf32>
    %509 = math.rsqrt %508 : vector<17x1xf32>
    %510 = vector.broadcast %509 : vector<17x1xf32> to vector<17x8xf32>
    %511 = arith.mulf %501, %510 : vector<17x8xf32>
    %512 = vector.broadcast %493 : vector<1x8xf32> to vector<17x8xf32>
    %513 = arith.mulf %511, %512 : vector<17x8xf32>
    %514 = vector.broadcast %495 : vector<1x8xf32> to vector<17x8xf32>
    %515 = arith.addf %513, %514 : vector<17x8xf32>
    %516 = vector.extract_strided_slice %515 {offsets = [0, 0], sizes = [1, 8], strides = [1, 1]} : vector<17x8xf32> to vector<1x8xf32>
    %c0_382 = arith.constant 0 : index
    %c1_383 = arith.constant 1 : index
    %c0_384 = arith.constant 0 : index
    %517 = vector.load %arg16[%c0_382, %c1_383, %c0_384] : memref<1x2x8xf32, #tpu.memory_space<vmem>>, vector<1x1x8xf32>
    %518 = vector.shape_cast %517 : vector<1x1x8xf32> to vector<1x8xf32>
    %519 = vector.shape_cast %516 : vector<1x8xf32> to vector<1x1x8xf32>
    tpu.vector_store %arg16[%c0_382, %c1_383, %c0_384], %519 {strides = array<i32>} : memref<1x2x8xf32, #tpu.memory_space<vmem>>, vector<1x1x8xf32>,
    return
  }
  func.func @transform_0(%arg0: i32) -> (i32, i32, i32) {
    %c0_i32 = arith.constant 0 : i32
    %c0_i32_0 = arith.constant 0 : i32
    %c0_i32_1 = arith.constant 0 : i32
    %c0_i32_2 = arith.constant 0 : i32
    return %c0_i32, %c0_i32_0, %c0_i32_1 : i32, i32, i32
  }
  func.func @transform_1(%arg0: i32) -> (i32, i32, i32) {
    %c0_i32 = arith.constant 0 : i32
    %c0_i32_0 = arith.constant 0 : i32
    %c0_i32_1 = arith.constant 0 : i32
    return %arg0, %c0_i32, %c0_i32_0 : i32, i32, i32
  }
  func.func @transform_2(%arg0: i32) -> (i32, i32, i32) {
    %c0_i32 = arith.constant 0 : i32
    %c0_i32_0 = arith.constant 0 : i32
    %c0_i32_1 = arith.constant 0 : i32
    return %arg0, %c0_i32, %c0_i32_0 : i32, i32, i32
  }
  func.func @transform_3(%arg0: i32) -> (i32, i32, i32) {
    %c0_i32 = arith.constant 0 : i32
    %c0_i32_0 = arith.constant 0 : i32
    %c0_i32_1 = arith.constant 0 : i32
    return %arg0, %c0_i32, %c0_i32_0 : i32, i32, i32
  }
  func.func @transform_4(%arg0: i32) -> (i32, i32, i32) {
    %c0_i32 = arith.constant 0 : i32
    %c0_i32_0 = arith.constant 0 : i32
    %c0_i32_1 = arith.constant 0 : i32
    return %arg0, %c0_i32, %c0_i32_0 : i32, i32, i32
  }
  func.func @transform_5(%arg0: i32) -> (i32, i32, i32, i32) {
    %c0_i32 = arith.constant 0 : i32
    %c0_i32_0 = arith.constant 0 : i32
    %c0_i32_1 = arith.constant 0 : i32
    %c0_i32_2 = arith.constant 0 : i32
    return %arg0, %c0_i32, %c0_i32_0, %c0_i32_1 : i32, i32, i32, i32
  }
  func.func @transform_6(%arg0: i32) -> (i32, i32, i32, i32) {
    %c0_i32 = arith.constant 0 : i32
    %c0_i32_0 = arith.constant 0 : i32
    %c0_i32_1 = arith.constant 0 : i32
    %c0_i32_2 = arith.constant 0 : i32
    return %arg0, %c0_i32, %c0_i32_0, %c0_i32_1 : i32, i32, i32, i32
  }
  func.func @transform_7(%arg0: i32) -> (i32, i32, i32, i32) {
    %c0_i32 = arith.constant 0 : i32
    %c0_i32_0 = arith.constant 0 : i32
    %c0_i32_1 = arith.constant 0 : i32
    %c0_i32_2 = arith.constant 0 : i32
    return %arg0, %c0_i32, %c0_i32_0, %c0_i32_1 : i32, i32, i32, i32
  }
  func.func @transform_8(%arg0: i32) -> (i32, i32, i32, i32) {
    %c0_i32 = arith.constant 0 : i32
    %c0_i32_0 = arith.constant 0 : i32
    %c0_i32_1 = arith.constant 0 : i32
    %c0_i32_2 = arith.constant 0 : i32
    return %arg0, %c0_i32, %c0_i32_0, %c0_i32_1 : i32, i32, i32, i32
  }
  func.func @transform_9(%arg0: i32) -> (i32, i32, i32, i32) {
    %c0_i32 = arith.constant 0 : i32
    %c0_i32_0 = arith.constant 0 : i32
    %c0_i32_1 = arith.constant 0 : i32
    %c0_i32_2 = arith.constant 0 : i32
    return %arg0, %c0_i32, %c0_i32_0, %c0_i32_1 : i32, i32, i32, i32
  }
  func.func @transform_10(%arg0: i32) -> (i32, i32, i32, i32) {
    %c0_i32 = arith.constant 0 : i32
    %c0_i32_0 = arith.constant 0 : i32
    %c0_i32_1 = arith.constant 0 : i32
    %c0_i32_2 = arith.constant 0 : i32
    return %arg0, %c0_i32, %c0_i32_0, %c0_i32_1 : i32, i32, i32, i32
  }
  func.func @transform_11(%arg0: i32) -> (i32, i32, i32, i32) {
    %c0_i32 = arith.constant 0 : i32
    %c0_i32_0 = arith.constant 0 : i32
    %c0_i32_1 = arith.constant 0 : i32
    %c0_i32_2 = arith.constant 0 : i32
    return %arg0, %c0_i32, %c0_i32_0, %c0_i32_1 : i32, i32, i32, i32
  }
  func.func @transform_12(%arg0: i32) -> (i32, i32, i32, i32) {
    %c0_i32 = arith.constant 0 : i32
    %c0_i32_0 = arith.constant 0 : i32
    %c0_i32_1 = arith.constant 0 : i32
    %c0_i32_2 = arith.constant 0 : i32
    return %arg0, %c0_i32, %c0_i32_0, %c0_i32_1 : i32, i32, i32, i32
  }
  func.func @transform_13(%arg0: i32) -> (i32, i32, i32, i32) {
    %c0_i32 = arith.constant 0 : i32
    %c0_i32_0 = arith.constant 0 : i32
    %c0_i32_1 = arith.constant 0 : i32
    %c0_i32_2 = arith.constant 0 : i32
    return %arg0, %c0_i32, %c0_i32_0, %c0_i32_1 : i32, i32, i32, i32
  }
  func.func @transform_14(%arg0: i32) -> (i32, i32, i32, i32) {
    %c0_i32 = arith.constant 0 : i32
    %c0_i32_0 = arith.constant 0 : i32
    %c0_i32_1 = arith.constant 0 : i32
    %c0_i32_2 = arith.constant 0 : i32
    return %arg0, %c0_i32, %c0_i32_0, %c0_i32_1 : i32, i32, i32, i32
  }
  func.func @transform_15(%arg0: i32) -> (i32, i32, i32) {
    %c0_i32 = arith.constant 0 : i32
    %c0_i32_0 = arith.constant 0 : i32
    %c0_i32_1 = arith.constant 0 : i32
    return %arg0, %c0_i32, %c0_i32_0 : i32, i32, i32
  }
}

</mosaic_0001>

<llo_original>
// kernel: encoder_transformer_forward.3
$region0: #{encoder_transformer_forward.3}
  #allocation0 [shape = 'u32[]', space=smem, size = 0x4, offset = 0x4, fixed_abs, tag = 'smem constant byte address 0x4 - core index']
  #allocation1 [shape = 'u32[144,128]{1,0:T(1,128)}', space=vmem, size = 0x12000, scoped, tag = 'internal scratch']
  %s0 = inlined_call_operand.vmem [shape: f32[2,2,8], index: 0, kind: input, shape index: {}]
  %s1 = inlined_call_operand.vmem [shape: f32[2,8,3072], index: 1, kind: input, shape index: {}]
  %s2 = inlined_call_operand.vmem [shape: f32[2,1,3072], index: 2, kind: input, shape index: {}]
  %s3 = inlined_call_operand.vmem [shape: f32[2,3072], index: 3, kind: input, shape index: {}]
  %s4 = inlined_call_operand.vmem [shape: f32[2,3072], index: 4, kind: output, shape index: {0}]
  %s5 = inlined_call_operand.vmem [shape: f32[2,3072], index: 5, kind: output, shape index: {1}]
  %s6 = inlined_call_operand.vmem [shape: f32[2,3072], index: 6, kind: output, shape index: {2}]
  %7 = xla_tuple %s4, %s5, %s6
  %s8 = sld [smem:[#allocation0]]
  $region126: #{encoder_transformer_forward.3} parent=0
    _
  %s10 = ssub.s32 1, %s8
  %s11 = scalar_select 0, %s10, %s8
  $region1: #{encoder_transformer_forward.3} parent=0
    #allocation2 [shape = 'u8[131072]{0}', space=vmem, size = 0x20000, scoped, tag = 'input window, operand 1']
    #allocation3 [shape = 'u8[16384]{0}', space=vmem, size = 0x4000, scoped, tag = 'input window, operand 2']
    loop: start=0, step=1, limit=5
    $region2: #{encoder_transformer_forward.3} parent=1 // loop_pre_header
      _
    $region3: #{encoder_transformer_forward.3} parent=1 // loop_header
      %s13 = sphi 0, %s17
      %p14 = scmp.ge.s32.totalorder %s13, 5
      %s21 = sphi 0, %s21
      %s23 = sphi 0, %s21
      %s24 = sphi 0, %s23
      %s38 = sphi 0, %s24
      %s44 = sphi 0, %s46
      %s47 = sphi 0, %s44
      %s48 = sphi 0, %s47
      %s64 = sphi 0, %s48
      %s70 = sphi 0, %s72
      %s73 = sphi 0, %s70
      %s74 = sphi 0, %s73
      %s90 = sphi 0, %s74
      %s96 = sphi 0, %s98
      %s99 = sphi 0, %s96
      %s100 = sphi 0, %s99
      %s116 = sphi 0, %s100
      %s122 = sphi 0, %s124
      %s125 = sphi 0, %s122
      %s126 = sphi 0, %s125
      %s142 = sphi 0, %s126
      %s148 = sphi 0, %s150
      %s151 = sphi 0, %s148
      %s152 = sphi 0, %s151
      %s168 = sphi 0, %s152
      %s174 = sphi 0, %s176
      %s177 = sphi 0, %s174
      %s178 = sphi 0, %s177
      %s194 = sphi 0, %s178
    $region4: #{encoder_transformer_forward.3} parent=1 // loop_header_branch
      %16 = sbr.rel (%p14) target = $region8
    $region5: #{encoder_transformer_forward.3} parent=1 // loop_body
      %s18 = ssub.s32 %s13, 1
      %s19 = ssub.s32 %s13, 2
      %s20 = sadd.s32 %s13, 1
      %s22 = sadd.s32 %s21, 1
      %p25 = scmp.eq.s32.totalorder %s13, 2
      %p26 = scmp.ne.s32.totalorder %s21, %s23
      %p27 = scmp.eq.s32.totalorder %s13, 0
      %p28 = por %p26, %p27
      %p29 = scmp.ne.s32.totalorder %s21, %s23
      %p30 = scmp.eq.s32.totalorder %s18, 2
      %p31 = por %p29, %p30
      %p32 = scmp.ne.s32.totalorder %s23, %s24
      %p33 = scmp.eq.s32.totalorder %s18, 0
      %p34 = por %p32, %p33
      %p35 = scmp.ne.s32.totalorder %s23, %s24
      %p36 = scmp.eq.s32.totalorder %s19, 2
      %p37 = por %p35, %p36
      %p39 = scmp.ne.s32.totalorder %s24, %s38
      %p40 = scmp.eq.s32.totalorder %s19, 0
      %p41 = por %p39, %p40
      %s42 = ssub.s32 %s13, %s20
      %p43 = scmp.eq.s32.totalorder %s42, 0
      %s45 = sadd.s32 %s44, 1
      %s46 = scalar_select %p43, %s44, %s45
      %p49 = pneg %p43
      %p50 = scmp.eq.s32.totalorder %s13, 2
      %p51 = por %p49, %p50
      %p52 = scmp.ne.s32.totalorder %s44, %s47
      %p53 = scmp.eq.s32.totalorder %s13, 0
      %p54 = por %p52, %p53
      %p55 = scmp.ne.s32.totalorder %s44, %s47
      %p56 = scmp.eq.s32.totalorder %s18, 2
      %p57 = por %p55, %p56
      %p58 = scmp.ne.s32.totalorder %s47, %s48
      %p59 = scmp.eq.s32.totalorder %s18, 0
      %p60 = por %p58, %p59
      %p61 = scmp.ne.s32.totalorder %s47, %s48
      %p62 = scmp.eq.s32.totalorder %s19, 2
      %p63 = por %p61, %p62
      %p65 = scmp.ne.s32.totalorder %s48, %s64
      %p66 = scmp.eq.s32.totalorder %s19, 0
      %p67 = por %p65, %p66
      %s68 = ssub.s32 %s13, %s20
      %p69 = scmp.eq.s32.totalorder %s68, 0
      %s71 = sadd.s32 %s70, 1
      %s72 = scalar_select %p69, %s70, %s71
      %p75 = pneg %p69
      %p76 = scmp.eq.s32.totalorder %s13, 2
      %p77 = por %p75, %p76
      %p78 = scmp.ne.s32.totalorder %s70, %s73
      %p79 = scmp.eq.s32.totalorder %s13, 0
      %p80 = por %p78, %p79
      %p81 = scmp.ne.s32.totalorder %s70, %s73
      %p82 = scmp.eq.s32.totalorder %s18, 2
      %p83 = por %p81, %p82
      %p84 = scmp.ne.s32.totalorder %s73, %s74
      %p85 = scmp.eq.s32.totalorder %s18, 0
      %p86 = por %p84, %p85
      %p87 = scmp.ne.s32.totalorder %s73, %s74
      %p88 = scmp.eq.s32.totalorder %s19, 2
      %p89 = por %p87, %p88
      %p91 = scmp.ne.s32.totalorder %s74, %s90
      %p92 = scmp.eq.s32.totalorder %s19, 0
      %p93 = por %p91, %p92
      %s94 = ssub.s32 %s13, %s20
      %p95 = scmp.eq.s32.totalorder %s94, 0
      %s97 = sadd.s32 %s96, 1
      %s98 = scalar_select %p95, %s96, %s97
      %p101 = pneg %p95
      %p102 = scmp.eq.s32.totalorder %s13, 2
      %p103 = por %p101, %p102
      %p104 = scmp.ne.s32.totalorder %s96, %s99
      %p105 = scmp.eq.s32.totalorder %s13, 0
      %p106 = por %p104, %p105
      %p107 = scmp.ne.s32.totalorder %s96, %s99
      %p108 = scmp.eq.s32.totalorder %s18, 2
      %p109 = por %p107, %p108
      %p110 = scmp.ne.s32.totalorder %s99, %s100
      %p111 = scmp.eq.s32.totalorder %s18, 0
      %p112 = por %p110, %p111
      %p113 = scmp.ne.s32.totalorder %s99, %s100
      %p114 = scmp.eq.s32.totalorder %s19, 2
      %p115 = por %p113, %p114
      %p117 = scmp.ne.s32.totalorder %s100, %s116
      %p118 = scmp.eq.s32.totalorder %s19, 0
      %p119 = por %p117, %p118
      %s120 = ssub.s32 %s13, %s20
      %p121 = scmp.eq.s32.totalorder %s120, 0
      %s123 = sadd.s32 %s122, 1
      %s124 = scalar_select %p121, %s122, %s123
      %p127 = pneg %p121
      %p128 = scmp.eq.s32.totalorder %s13, 2
      %p129 = por %p127, %p128
      %p130 = scmp.ne.s32.totalorder %s122, %s125
      %p131 = scmp.eq.s32.totalorder %s13, 0
      %p132 = por %p130, %p131
      %p133 = scmp.ne.s32.totalorder %s122, %s125
      %p134 = scmp.eq.s32.totalorder %s18, 2
      %p135 = por %p133, %p134
      %p136 = scmp.ne.s32.totalorder %s125, %s126
      %p137 = scmp.eq.s32.totalorder %s18, 0
      %p138 = por %p136, %p137
      %p139 = scmp.ne.s32.totalorder %s125, %s126
      %p140 = scmp.eq.s32.totalorder %s19, 2
      %p141 = por %p139, %p140
      %p143 = scmp.ne.s32.totalorder %s126, %s142
      %p144 = scmp.eq.s32.totalorder %s19, 0
      %p145 = por %p143, %p144
      %s146 = ssub.s32 %s13, %s20
      %p147 = scmp.eq.s32.totalorder %s146, 0
      %s149 = sadd.s32 %s148, 1
      %s150 = scalar_select %p147, %s148, %s149
      %p153 = pneg %p147
      %p154 = scmp.eq.s32.totalorder %s13, 2
      %p155 = por %p153, %p154
      %p156 = scmp.ne.s32.totalorder %s148, %s151
      %p157 = scmp.eq.s32.totalorder %s13, 0
      %p158 = por %p156, %p157
      %p159 = scmp.ne.s32.totalorder %s148, %s151
      %p160 = scmp.eq.s32.totalorder %s18, 2
      %p161 = por %p159, %p160
      %p162 = scmp.ne.s32.totalorder %s151, %s152
      %p163 = scmp.eq.s32.totalorder %s18, 0
      %p164 = por %p162, %p163
      %p165 = scmp.ne.s32.totalorder %s151, %s152
      %p166 = scmp.eq.s32.totalorder %s19, 2
      %p167 = por %p165, %p166
      %p169 = scmp.ne.s32.totalorder %s152, %s168
      %p170 = scmp.eq.s32.totalorder %s19, 0
      %p171 = por %p169, %p170
      %s172 = ssub.s32 %s13, %s20
      %p173 = scmp.eq.s32.totalorder %s172, 0
      %s175 = sadd.s32 %s174, 1
      %s176 = scalar_select %p173, %s174, %s175
      %p179 = pneg %p173
      %p180 = scmp.eq.s32.totalorder %s13, 2
      %p181 = por %p179, %p180
      %p182 = scmp.ne.s32.totalorder %s174, %s177
      %p183 = scmp.eq.s32.totalorder %s13, 0
      %p184 = por %p182, %p183
      %p185 = scmp.ne.s32.totalorder %s174, %s177
      %p186 = scmp.eq.s32.totalorder %s18, 2
      %p187 = por %p185, %p186
      %p188 = scmp.ne.s32.totalorder %s177, %s178
      %p189 = scmp.eq.s32.totalorder %s18, 0
      %p190 = por %p188, %p189
      %p191 = scmp.ne.s32.totalorder %s177, %s178
      %p192 = scmp.eq.s32.totalorder %s19, 2
      %p193 = por %p191, %p192
      %p195 = scmp.ne.s32.totalorder %s178, %s194
      %p196 = scmp.eq.s32.totalorder %s19, 0
      %p197 = por %p195, %p196
      %p198 = scmp.le.s32.totalorder 1, %s13
      %p199 = scmp.lt.s32.totalorder %s13, 4
      %p200 = pnand %p198, %p199
      %p201 = pneg %p200
      // Predicated region
      $region9: #{encoder_transformer_forward.3} parent=5 // pred_check
        _
      $region10: #{encoder_transformer_forward.3} parent=5 // pred_check_branch
        %203 = sbr.rel (%p200) target = $region12
      $region11: #{encoder_transformer_forward.3} parent=5 // pred_region
        %s204 = ssub.s32 %s13, 1
        // Predicated region
        $region13: #{encoder_transformer_forward.3} parent=11 // pred_check
          %p205 = pneg %p34
        $region14: #{encoder_transformer_forward.3} parent=11 // pred_check_branch
          %207 = sbr.rel (%p205) target = $region16
        $region15: #{encoder_transformer_forward.3} parent=11 // pred_region
          _
        $region16: #{encoder_transformer_forward.3} parent=11 // pred_fallthru
          _
      $region12: #{encoder_transformer_forward.3} parent=5 // pred_fallthru
        _
      %p208 = scmp.lt.s32.totalorder %s13, 3
      // Predicated region
      $region17: #{encoder_transformer_forward.3} parent=5 // pred_check
        %p209 = pneg %p208
      $region18: #{encoder_transformer_forward.3} parent=5 // pred_check_branch
        %211 = sbr.rel (%p209) target = $region20
      $region19: #{encoder_transformer_forward.3} parent=5 // pred_region
        // Predicated region
        $region21: #{encoder_transformer_forward.3} parent=19 // pred_check
          %p212 = pneg %p54
        $region22: #{encoder_transformer_forward.3} parent=19 // pred_check_branch
          %214 = sbr.rel (%p212) target = $region24
        $region23: #{encoder_transformer_forward.3} parent=19 // pred_region
          %s215 = sand.u32 %s44, 1
          %s216 = sand.u32 %s44, 1
          %s217 = smul.addr %s216, 128
          %s218 = scalar_lea.vmem [#allocation2], %s217
          %s219 = smul.u32 8, %s13
          %s220 = smul.addr %s219, 8
          %s221 = scalar_lea.vmem %s1, %s220
          // Predicated region
          $region25: #{encoder_transformer_forward.3} parent=23 // pred_check
            _
          $region26: #{encoder_transformer_forward.3} parent=23 // pred_check_branch
            %223 = sbr.rel (0) target = $region28
          $region27: #{encoder_transformer_forward.3} parent=23 // pred_region
            // Predicated region
            $region29: #{encoder_transformer_forward.3} parent=27 // pred_check
              _
            $region30: #{encoder_transformer_forward.3} parent=27 // pred_check_branch
              %225 = sbr.rel (0) target = $region32
            $region31: #{encoder_transformer_forward.3} parent=27 // pred_region
              loop: start=0, step=1, limit=1
              $region33: #{encoder_transformer_forward.3} parent=31 // loop_pre_header
                _
              $region34: #{encoder_transformer_forward.3} parent=31 // loop_header
                %s227 = sphi 0, %s231
                %p228 = scmp.ge.s32.totalorder %s227, 1
                %s232 = sphi %s221, %s221
                %s233 = sphi %s218, %s218
              $region35: #{encoder_transformer_forward.3} parent=31 // loop_header_branch
                %230 = sbr.rel (%p228) target = $region39
              $region36: #{encoder_transformer_forward.3} parent=31 // loop_body
                %v234 = vld [vmem:[%s232] sm:$0xff]
                %235 = vst [vmem:[%s233] sm:$0xff] %v234
                %v236 = vld [vmem:[%s232 + $0x8] sm:$0xff]
                %237 = vst [vmem:[%s233 + $0x8] sm:$0xff] %v236
                %v238 = vld [vmem:[%s232 + $0x10] sm:$0xff]
                %239 = vst [vmem:[%s233 + $0x10] sm:$0xff] %v238
                %v240 = vld [vmem:[%s232 + $0x18] sm:$0xff]
                %241 = vst [vmem:[%s233 + $0x18] sm:$0xff] %v240
                %v242 = vld [vmem:[%s232 + $0x20] sm:$0xff]
                %243 = vst [vmem:[%s233 + $0x20] sm:$0xff] %v242
                %v244 = vld [vmem:[%s232 + $0x28] sm:$0xff]
                %245 = vst [vmem:[%s233 + $0x28] sm:$0xff] %v244
                %v246 = vld [vmem:[%s232 + $0x30] sm:$0xff]
                %247 = vst [vmem:[%s233 + $0x30] sm:$0xff] %v246
                %v248 = vld [vmem:[%s232 + $0x38] sm:$0xff]
                %249 = vst [vmem:[%s233 + $0x38] sm:$0xff] %v248
                %v250 = vld [vmem:[%s232 + $0xc0] sm:$0xff]
                %251 = vst [vmem:[%s233 + $0x40] sm:$0xff] %v250
                %v252 = vld [vmem:[%s232 + $0xc8] sm:$0xff]
                %253 = vst [vmem:[%s233 + $0x48] sm:$0xff] %v252
                %v254 = vld [vmem:[%s232 + $0xd0] sm:$0xff]
                %255 = vst [vmem:[%s233 + $0x50] sm:$0xff] %v254
                %v256 = vld [vmem:[%s232 + $0xd8] sm:$0xff]
                %257 = vst [vmem:[%s233 + $0x58] sm:$0xff] %v256
                %v258 = vld [vmem:[%s232 + $0xe0] sm:$0xff]
                %259 = vst [vmem:[%s233 + $0x60] sm:$0xff] %v258
                %v260 = vld [vmem:[%s232 + $0xe8] sm:$0xff]
                %261 = vst [vmem:[%s233 + $0x68] sm:$0xff] %v260
                %v262 = vld [vmem:[%s232 + $0xf0] sm:$0xff]
                %263 = vst [vmem:[%s233 + $0x70] sm:$0xff] %v262
                %v264 = vld [vmem:[%s232 + $0xf8] sm:$0xff]
                %265 = vst [vmem:[%s233 + $0x78] sm:$0xff] %v264
              $region37: #{encoder_transformer_forward.3} parent=31 // loop_footer
                %s231 = sadd.s32 1, %s227
              $region38: #{encoder_transformer_forward.3} parent=31 // loop_footer_branch
                %226 = sbr.rel target = $region34
              $region39: #{encoder_transformer_forward.3} parent=31 // loop_exit
                _
            $region32: #{encoder_transformer_forward.3} parent=27 // pred_fallthru
              _
            // Predicated region
            $region40: #{encoder_transformer_forward.3} parent=27 // pred_check
              _
            $region41: #{encoder_transformer_forward.3} parent=27 // pred_check_branch
              %267 = sbr.rel target = $region43
            $region42: #{encoder_transformer_forward.3} parent=27 // pred_region
              _
            $region43: #{encoder_transformer_forward.3} parent=27 // pred_fallthru
              _
          $region28: #{encoder_transformer_forward.3} parent=23 // pred_fallthru
            _
          %268 = vnop
        $region24: #{encoder_transformer_forward.3} parent=19 // pred_fallthru
          _
        // Predicated region
        $region44: #{encoder_transformer_forward.3} parent=19 // pred_check
          %p269 = pneg %p80
        $region45: #{encoder_transformer_forward.3} parent=19 // pred_check_branch
          %271 = sbr.rel (%p269) target = $region47
        $region46: #{encoder_transformer_forward.3} parent=19 // pred_region
          %s272 = sand.u32 %s70, 1
          %s273 = sand.u32 %s70, 1
          %s274 = smul.addr %s273, 16
          %s275 = scalar_lea.vmem [#allocation3], %s274
          %s276 = smul.u32 8, %s13
          %s277 = scalar_lea.vmem %s2, %s276
          // Predicated region
          $region48: #{encoder_transformer_forward.3} parent=46 // pred_check
            _
          $region49: #{encoder_transformer_forward.3} parent=46 // pred_check_branch
            %279 = sbr.rel (0) target = $region51
          $region50: #{encoder_transformer_forward.3} parent=46 // pred_region
            // Predicated region
            $region52: #{encoder_transformer_forward.3} parent=50 // pred_check
              _
            $region53: #{encoder_transformer_forward.3} parent=50 // pred_check_branch
              %281 = sbr.rel (0) target = $region55
            $region54: #{encoder_transformer_forward.3} parent=50 // pred_region
              // Predicated region
              $region67: #{encoder_transformer_forward.3} parent=54 // pred_check
                _
              $region68: #{encoder_transformer_forward.3} parent=54 // pred_check_branch
                %298 = sbr.rel (0) target = $region70
              $region69: #{encoder_transformer_forward.3} parent=54 // pred_region
                loop: start=0, step=1, limit=1
                $region71: #{encoder_transformer_forward.3} parent=69 // loop_pre_header
                  _
                $region72: #{encoder_transformer_forward.3} parent=69 // loop_header
                  %s300 = sphi 0, %s304
                  %p301 = scmp.ge.s32.totalorder %s300, 1
                  %s305 = sphi %s277, %s277
                  %s306 = sphi %s275, %s275
                $region73: #{encoder_transformer_forward.3} parent=69 // loop_header_branch
                  %303 = sbr.rel (%p301) target = $region77
                $region74: #{encoder_transformer_forward.3} parent=69 // loop_body
                  %v307 = vld [vmem:[%s305] sm:$0xff]
                  %308 = vst [vmem:[%s306] sm:$0xff] %v307
                  %v309 = vld [vmem:[%s305 + $0x18] sm:$0xff]
                  %310 = vst [vmem:[%s306 + $0x8] sm:$0xff] %v309
                $region75: #{encoder_transformer_forward.3} parent=69 // loop_footer
                  %s304 = sadd.s32 1, %s300
                $region76: #{encoder_transformer_forward.3} parent=69 // loop_footer_branch
                  %299 = sbr.rel target = $region72
                $region77: #{encoder_transformer_forward.3} parent=69 // loop_exit
                  _
              $region70: #{encoder_transformer_forward.3} parent=54 // pred_fallthru
                _
              // Predicated region
              $region78: #{encoder_transformer_forward.3} parent=54 // pred_check
                _
              $region79: #{encoder_transformer_forward.3} parent=54 // pred_check_branch
                %312 = sbr.rel target = $region81
              $region80: #{encoder_transformer_forward.3} parent=54 // pred_region
                _
              $region81: #{encoder_transformer_forward.3} parent=54 // pred_fallthru
                _
            $region55: #{encoder_transformer_forward.3} parent=50 // pred_fallthru
              _
            // Predicated region
            $region56: #{encoder_transformer_forward.3} parent=50 // pred_check
              _
            $region57: #{encoder_transformer_forward.3} parent=50 // pred_check_branch
              %283 = sbr.rel target = $region59
            $region58: #{encoder_transformer_forward.3} parent=50 // pred_region
              loop: start=0, step=1, limit=1
              $region60: #{encoder_transformer_forward.3} parent=58 // loop_pre_header
                _
              $region61: #{encoder_transformer_forward.3} parent=58 // loop_header
                %s286 = sphi 0, %s290
                %p287 = scmp.ge.s32.totalorder %s286, 1
                %s291 = sphi %s277, %s277
                %s292 = sphi %s275, %s275
              $region62: #{encoder_transformer_forward.3} parent=58 // loop_header_branch
                %289 = sbr.rel (%p287) target = $region66
              $region63: #{encoder_transformer_forward.3} parent=58 // loop_body
                %v293 = vld [vmem:[%s291] sm:$0xff]
                %294 = vst [vmem:[%s292] sm:$0xff] %v293
                %v295 = vld [vmem:[%s291 + $0x18] sm:$0xff]
                %296 = vst [vmem:[%s292 + $0x8] sm:$0xff] %v295
              $region64: #{encoder_transformer_forward.3} parent=58 // loop_footer
                %s290 = sadd.s32 1, %s286
              $region65: #{encoder_transformer_forward.3} parent=58 // loop_footer_branch
                %285 = sbr.rel target = $region61
              $region66: #{encoder_transformer_forward.3} parent=58 // loop_exit
                _
            $region59: #{encoder_transformer_forward.3} parent=50 // pred_fallthru
              _
          $region51: #{encoder_transformer_forward.3} parent=46 // pred_fallthru
            _
          %313 = vnop
        $region47: #{encoder_transformer_forward.3} parent=19 // pred_fallthru
          _
        // Predicated region
        $region82: #{encoder_transformer_forward.3} parent=19 // pred_check
          %p314 = pneg %p106
        $region83: #{encoder_transformer_forward.3} parent=19 // pred_check_branch
          %316 = sbr.rel (%p314) target = $region85
        $region84: #{encoder_transformer_forward.3} parent=19 // pred_region
          %s317 = smul.u32 8, %s13
          %p318 = scmp.lt.s32.totalorder %s317, 23
          %s319 = scalar_select %p318, %s317, 23
          %s320 = smul.addr %s319, 2
          %s321 = scalar_lea.vmem %s3, %s320
          %s322 = smul.u32 8, %s13
        $region85: #{encoder_transformer_forward.3} parent=19 // pred_fallthru
          _
      $region20: #{encoder_transformer_forward.3} parent=5 // pred_fallthru
        _
      %p323 = scmp.le.s32.totalorder 1, %s13
      %p324 = scmp.lt.s32.totalorder %s13, 4
      %p325 = pnand %p323, %p324
      %p326 = pneg %p325
      // Predicated region
      $region86: #{encoder_transformer_forward.3} parent=5 // pred_check
        _
      $region87: #{encoder_transformer_forward.3} parent=5 // pred_check_branch
        %328 = sbr.rel (%p325) target = $region89
      $region88: #{encoder_transformer_forward.3} parent=5 // pred_region
        %s329 = ssub.s32 %s13, 1
        %s330 = sand.u32 %s47, 1
        %s331 = sand.u32 %s47, 1
        %s332 = smul.addr %s331, 128
        %s333 = scalar_lea.vmem [#allocation2], %s332
        // Predicated region
        $region90: #{encoder_transformer_forward.3} parent=88 // pred_check
          %p334 = pneg %p60
        $region91: #{encoder_transformer_forward.3} parent=88 // pred_check_branch
          %336 = sbr.rel (%p334) target = $region93
        $region92: #{encoder_transformer_forward.3} parent=88 // pred_region
          _
        $region93: #{encoder_transformer_forward.3} parent=88 // pred_fallthru
          _
        %s337 = sand.u32 %s73, 1
        %s338 = sand.u32 %s73, 1
        %s339 = smul.addr %s338, 16
        %s340 = scalar_lea.vmem [#allocation3], %s339
        // Predicated region
        $region94: #{encoder_transformer_forward.3} parent=88 // pred_check
          %p341 = pneg %p86
        $region95: #{encoder_transformer_forward.3} parent=88 // pred_check_branch
          %343 = sbr.rel (%p341) target = $region97
        $region96: #{encoder_transformer_forward.3} parent=88 // pred_region
          _
        $region97: #{encoder_transformer_forward.3} parent=88 // pred_fallthru
          _
        %p344 = pneg %p34
        %p345 = pneg %p31
        %s346 = sand.u32 %s47, 1
        %s347 = sand.u32 %s47, 1
        %s348 = smul.addr %s347, 128
        %s349 = scalar_lea.vmem [#allocation2], %s348
        %p350 = pneg %p60
        %p351 = pneg %p57
        %s352 = sand.u32 %s73, 1
        %s353 = sand.u32 %s73, 1
        %s354 = smul.addr %s353, 16
        %s355 = scalar_lea.vmem [#allocation3], %s354
        %p356 = pneg %p86
        %p357 = pneg %p83
        %s358 = smul.u32 8, %s18
        %p359 = scmp.lt.s32.totalorder %s358, 23
        %s360 = scalar_select %p359, %s358, 23
        %s361 = smul.addr %s360, 2
        %s362 = scalar_lea.vmem %s3, %s361
        %p363 = pneg %p112
        %p364 = pneg %p109
        %p365 = pneg %p138
        %p366 = pneg %p135
        %s367 = smul.u32 8, %s18
        %p368 = scmp.lt.s32.totalorder %s367, 23
        %s369 = scalar_select %p368, %s367, 23
        %s370 = smul.addr %s369, 2
        %s371 = scalar_lea.vmem %s4, %s370
        %p372 = pneg %p164
        %p373 = pneg %p161
        %s374 = smul.u32 8, %s18
        %p375 = scmp.lt.s32.totalorder %s374, 23
        %s376 = scalar_select %p375, %s374, 23
        %s377 = smul.addr %s376, 2
        %s378 = scalar_lea.vmem %s5, %s377
        %p379 = pneg %p190
        %p380 = pneg %p187
        %s381 = smul.u32 8, %s18
        %p382 = scmp.lt.s32.totalorder %s381, 23
        %s383 = scalar_select %p382, %s381, 23
        %s384 = smul.addr %s383, 2
        %s385 = scalar_lea.vmem %s6, %s384
        %s386 = smul.u32 8, %s18
        %s387 = smul.u32 8, %s18
        %s388 = smul.u32 8, %s18
        %p389 = scmp.lt.s32.totalorder %s388, 23
        %s390 = scalar_select %p389, %s388, 23
        %s391 = smul.addr %s390, 2
        %s392 = scalar_lea.vmem %s3, %s391
        %s393 = smul.u32 8, %s18
        %s394 = smul.u32 8, %s18
        %p395 = scmp.lt.s32.totalorder %s394, 23
        %s396 = scalar_select %p395, %s394, 23
        %s397 = smul.addr %s396, 2
        %s398 = scalar_lea.vmem %s4, %s397
        %s399 = smul.u32 8, %s18
        %s400 = smul.u32 8, %s18
        %p401 = scmp.lt.s32.totalorder %s400, 23
        %s402 = scalar_select %p401, %s400, 23
        %s403 = smul.addr %s402, 2
        %s404 = scalar_lea.vmem %s5, %s403
        %s405 = smul.u32 8, %s18
        %s406 = smul.u32 8, %s18
        %p407 = scmp.lt.s32.totalorder %s406, 23
        %s408 = scalar_select %p407, %s406, 23
        %s409 = smul.addr %s408, 2
        %s410 = scalar_lea.vmem %s6, %s409
        %s411 = smul.u32 8, %s18
        %v412 = vld [vmem:[%s0] sm:$0x3]
        %v413 = vld [vmem:[%s333] sm:$0xff]
        %v414 = vld [vmem:[%s333 + $0x8] sm:$0xff]
        %v415 = vld [vmem:[%s333 + $0x10] sm:$0xff]
        %v416 = vld [vmem:[%s333 + $0x18] sm:$0xff]
        %v417 = vld [vmem:[%s333 + $0x20] sm:$0xff]
        %v418 = vld [vmem:[%s333 + $0x28] sm:$0xff]
        %v419 = vld [vmem:[%s333 + $0x30] sm:$0xff]
        %v420 = vld [vmem:[%s333 + $0x38] sm:$0xff]
        %v421 = vld [vmem:[%s340] sm:$0xff]
        %v423 = vlaneseq
        %v424 = vshrl.u32 %v423, 7
        %v425 = vsub.s32 0, %v424
        %v426 = vrot.slane %v421, %v425
        %v427 = vlaneseq
        %v428 = vshrl.u32 %v427, 7
        %v429 = vsub.s32 1, %v428
        %v430 = vrot.slane %v421, %v429
        %v431 = vlaneseq
        %v432 = vshrl.u32 %v431, 7
        %v433 = vsub.s32 2, %v432
        %v434 = vrot.slane %v421, %v433
        %v435 = vlaneseq
        %v436 = vshrl.u32 %v435, 7
        %v437 = vsub.s32 3, %v436
        %v438 = vrot.slane %v421, %v437
        %v439 = vlaneseq
        %v440 = vshrl.u32 %v439, 7
        %v441 = vsub.s32 4, %v440
        %v442 = vrot.slane %v421, %v441
        %v443 = vlaneseq
        %v444 = vshrl.u32 %v443, 7
        %v445 = vsub.s32 5, %v444
        %v446 = vrot.slane %v421, %v445
        %v447 = vlaneseq
        %v448 = vshrl.u32 %v447, 7
        %v449 = vsub.s32 6, %v448
        %v450 = vrot.slane %v421, %v449
        %v451 = vlaneseq
        %v452 = vshrl.u32 %v451, 7
        %v453 = vsub.s32 7, %v452
        %v454 = vrot.slane %v421, %v453
        %vm463 = vcmask 64512
        %v465 = vsel %vm463, %v412, 0
        %467 = vmatprep.subr.mxu0 %v414
        %468 = vmatpush1.msra.mxu0 %v413
        %469 = vmatprep.subr.mxu0 0.0
        %470 = vmatpush1.msra.mxu0 0.0
        %471 = vmatprep.subr.mxu0 0.0
        %472 = vmatpush1.msra.mxu0 0.0
        %473 = vmatprep.subr.mxu0 0.0
        %474 = vmatpush1.msra.mxu0 0.0
        %475 = vmatprep.subr.mxu0 0.0
        %476 = vmatpush1.msra.mxu0 0.0
        %477 = vmatprep.subr.mxu0 0.0
        %478 = vmatpush1.msra.mxu0 0.0
        %479 = vmatprep.subr.mxu0 0.0
        %480 = vmatpush1.msra.mxu0 0.0
        %481 = vmatprep.subr.mxu0 0.0
        %482 = vmatpush1.msra.mxu0 0.0
        %483 = vmatprep.subr.mxu0 0.0
        %484 = vmatpush1.msra.mxu0 0.0
        %485 = vmatprep.subr.mxu0 0.0
        %486 = vmatpush1.msra.mxu0 0.0
        %487 = vmatprep.subr.mxu0 0.0
        %488 = vmatpush1.msra.mxu0 0.0
        %489 = vmatprep.subr.mxu0 0.0
        %490 = vmatpush1.msra.mxu0 0.0
        %491 = vmatprep.subr.mxu0 0.0
        %492 = vmatpush1.msra.mxu0 0.0
        %493 = vmatprep.subr.mxu0 0.0
        %494 = vmatpush1.msra.mxu0 0.0
        %495 = vmatprep.subr.mxu0 0.0
        %496 = vmatpush1.msra.mxu0 0.0
        %497 = vmatprep.subr.mxu0 0.0
        %498 = vmatpush1.msra.mxu0 0.0
        %499 = vmatprep.subr.mxu0 0.0
        %500 = vmatpush1.msra.mxu0 0.0
        %501 = vmatprep.subr.mxu0 0.0
        %502 = vmatpush1.msra.mxu0 0.0
        %503 = vmatprep.subr.mxu0 0.0
        %504 = vmatpush1.msra.mxu0 0.0
        %505 = vmatprep.subr.mxu0 0.0
        %506 = vmatpush1.msra.mxu0 0.0
        %507 = vmatprep.subr.mxu0 0.0
        %508 = vmatpush1.msra.mxu0 0.0
        %509 = vmatprep.subr.mxu0 0.0
        %510 = vmatpush1.msra.mxu0 0.0
        %511 = vmatprep.subr.mxu0 0.0
        %512 = vmatpush1.msra.mxu0 0.0
        %513 = vmatprep.subr.mxu0 0.0
        %514 = vmatpush1.msra.mxu0 0.0
        %515 = vmatprep.subr.mxu0 0.0
        %516 = vmatpush1.msra.mxu0 0.0
        %517 = vmatprep.subr.mxu0 0.0
        %518 = vmatpush1.msra.mxu0 0.0
        %519 = vmatprep.subr.mxu0 0.0
        %520 = vmatpush1.msra.mxu0 0.0
        %521 = vmatprep.subr.mxu0 0.0
        %522 = vmatpush1.msra.mxu0 0.0
        %523 = vmatprep.subr.mxu0 0.0
        %524 = vmatpush1.msra.mxu0 0.0
        %525 = vmatprep.subr.mxu0 0.0
        %526 = vmatpush1.msra.mxu0 0.0
        %527 = vmatprep.subr.mxu0 0.0
        %528 = vmatpush1.msra.mxu0 0.0
        %529 = vmatprep.subr.mxu0 0.0
        %530 = vmatpush1.msra.mxu0 0.0
        %531 = vmatprep.mubr.f32.mxu0 0.0
        %532 = vmatmul.mubr.f32.gmra.mrb[0].mxu0 %v465
        %v533 = vpop.f32.mrb[0].mxu0
        %v534 = vadd.f32 %v426, %v533
        %v535 = vpop.f32.mrb[0].mxu0
        %v536 = vadd.f32 %v430, %v535
        %537 = vdwg.mxu0
        %538 = vmatprep.subr.mxu0 %v416
        %539 = vmatpush1.msra.mxu0 %v415
        %540 = vmatprep.subr.mxu0 0.0
        %541 = vmatpush1.msra.mxu0 0.0
        %542 = vmatprep.subr.mxu0 0.0
        %543 = vmatpush1.msra.mxu0 0.0
        %544 = vmatprep.subr.mxu0 0.0
        %545 = vmatpush1.msra.mxu0 0.0
        %546 = vmatprep.subr.mxu0 0.0
        %547 = vmatpush1.msra.mxu0 0.0
        %548 = vmatprep.subr.mxu0 0.0
        %549 = vmatpush1.msra.mxu0 0.0
        %550 = vmatprep.subr.mxu0 0.0
        %551 = vmatpush1.msra.mxu0 0.0
        %552 = vmatprep.subr.mxu0 0.0
        %553 = vmatpush1.msra.mxu0 0.0
        %554 = vmatprep.subr.mxu0 0.0
        %555 = vmatpush1.msra.mxu0 0.0
        %556 = vmatprep.subr.mxu0 0.0
        %557 = vmatpush1.msra.mxu0 0.0
        %558 = vmatprep.subr.mxu0 0.0
        %559 = vmatpush1.msra.mxu0 0.0
        %560 = vmatprep.subr.mxu0 0.0
        %561 = vmatpush1.msra.mxu0 0.0
        %562 = vmatprep.subr.mxu0 0.0
        %563 = vmatpush1.msra.mxu0 0.0
        %564 = vmatprep.subr.mxu0 0.0
        %565 = vmatpush1.msra.mxu0 0.0
        %566 = vmatprep.subr.mxu0 0.0
        %567 = vmatpush1.msra.mxu0 0.0
        %568 = vmatprep.subr.mxu0 0.0
        %569 = vmatpush1.msra.mxu0 0.0
        %570 = vmatprep.subr.mxu0 0.0
        %571 = vmatpush1.msra.mxu0 0.0
        %572 = vmatprep.subr.mxu0 0.0
        %573 = vmatpush1.msra.mxu0 0.0
        %574 = vmatprep.subr.mxu0 0.0
        %575 = vmatpush1.msra.mxu0 0.0
        %576 = vmatprep.subr.mxu0 0.0
        %577 = vmatpush1.msra.mxu0 0.0
        %578 = vmatprep.subr.mxu0 0.0
        %579 = vmatpush1.msra.mxu0 0.0
        %580 = vmatprep.subr.mxu0 0.0
        %581 = vmatpush1.msra.mxu0 0.0
        %582 = vmatprep.subr.mxu0 0.0
        %583 = vmatpush1.msra.mxu0 0.0
        %584 = vmatprep.subr.mxu0 0.0
        %585 = vmatpush1.msra.mxu0 0.0
        %586 = vmatprep.subr.mxu0 0.0
        %587 = vmatpush1.msra.mxu0 0.0
        %588 = vmatprep.subr.mxu0 0.0
        %589 = vmatpush1.msra.mxu0 0.0
        %590 = vmatprep.subr.mxu0 0.0
        %591 = vmatpush1.msra.mxu0 0.0
        %592 = vmatprep.subr.mxu0 0.0
        %593 = vmatpush1.msra.mxu0 0.0
        %594 = vmatprep.subr.mxu0 0.0
        %595 = vmatpush1.msra.mxu0 0.0
        %596 = vmatprep.subr.mxu0 0.0
        %597 = vmatpush1.msra.mxu0 0.0
        %598 = vmatprep.subr.mxu0 0.0
        %599 = vmatpush1.msra.mxu0 0.0
        %600 = vmatprep.subr.mxu0 0.0
        %601 = vmatpush1.msra.mxu0 0.0
        %602 = vmatprep.mubr.f32.mxu0 0.0
        %603 = vmatmul.mubr.f32.gmra.mrb[0].mxu0 %v465
        %v604 = vpop.f32.mrb[0].mxu0
        %v605 = vadd.f32 %v434, %v604
        %v606 = vpop.f32.mrb[0].mxu0
        %v607 = vadd.f32 %v438, %v606
        %608 = vdwg.mxu0
        %609 = vmatprep.subr.mxu0 %v418
        %610 = vmatpush1.msra.mxu0 %v417
        %611 = vmatprep.subr.mxu0 0.0
        %612 = vmatpush1.msra.mxu0 0.0
        %613 = vmatprep.subr.mxu0 0.0
        %614 = vmatpush1.msra.mxu0 0.0
        %615 = vmatprep.subr.mxu0 0.0
        %616 = vmatpush1.msra.mxu0 0.0
        %617 = vmatprep.subr.mxu0 0.0
        %618 = vmatpush1.msra.mxu0 0.0
        %619 = vmatprep.subr.mxu0 0.0
        %620 = vmatpush1.msra.mxu0 0.0
        %621 = vmatprep.subr.mxu0 0.0
        %622 = vmatpush1.msra.mxu0 0.0
        %623 = vmatprep.subr.mxu0 0.0
        %624 = vmatpush1.msra.mxu0 0.0
        %625 = vmatprep.subr.mxu0 0.0
        %626 = vmatpush1.msra.mxu0 0.0
        %627 = vmatprep.subr.mxu0 0.0
        %628 = vmatpush1.msra.mxu0 0.0
        %629 = vmatprep.subr.mxu0 0.0
        %630 = vmatpush1.msra.mxu0 0.0
        %631 = vmatprep.subr.mxu0 0.0
        %632 = vmatpush1.msra.mxu0 0.0
        %633 = vmatprep.subr.mxu0 0.0
        %634 = vmatpush1.msra.mxu0 0.0
        %635 = vmatprep.subr.mxu0 0.0
        %636 = vmatpush1.msra.mxu0 0.0
        %637 = vmatprep.subr.mxu0 0.0
        %638 = vmatpush1.msra.mxu0 0.0
        %639 = vmatprep.subr.mxu0 0.0
        %640 = vmatpush1.msra.mxu0 0.0
        %641 = vmatprep.subr.mxu0 0.0
        %642 = vmatpush1.msra.mxu0 0.0
        %643 = vmatprep.subr.mxu0 0.0
        %644 = vmatpush1.msra.mxu0 0.0
        %645 = vmatprep.subr.mxu0 0.0
        %646 = vmatpush1.msra.mxu0 0.0
        %647 = vmatprep.subr.mxu0 0.0
        %648 = vmatpush1.msra.mxu0 0.0
        %649 = vmatprep.subr.mxu0 0.0
        %650 = vmatpush1.msra.mxu0 0.0
        %651 = vmatprep.subr.mxu0 0.0
        %652 = vmatpush1.msra.mxu0 0.0
        %653 = vmatprep.subr.mxu0 0.0
        %654 = vmatpush1.msra.mxu0 0.0
        %655 = vmatprep.subr.mxu0 0.0
        %656 = vmatpush1.msra.mxu0 0.0
        %657 = vmatprep.subr.mxu0 0.0
        %658 = vmatpush1.msra.mxu0 0.0
        %659 = vmatprep.subr.mxu0 0.0
        %660 = vmatpush1.msra.mxu0 0.0
        %661 = vmatprep.subr.mxu0 0.0
        %662 = vmatpush1.msra.mxu0 0.0
        %663 = vmatprep.subr.mxu0 0.0
        %664 = vmatpush1.msra.mxu0 0.0
        %665 = vmatprep.subr.mxu0 0.0
        %666 = vmatpush1.msra.mxu0 0.0
        %667 = vmatprep.subr.mxu0 0.0
        %668 = vmatpush1.msra.mxu0 0.0
        %669 = vmatprep.subr.mxu0 0.0
        %670 = vmatpush1.msra.mxu0 0.0
        %671 = vmatprep.subr.mxu0 0.0
        %672 = vmatpush1.msra.mxu0 0.0
        %673 = vmatprep.mubr.f32.mxu0 0.0
        %674 = vmatmul.mubr.f32.gmra.mrb[0].mxu0 %v465
        %v675 = vpop.f32.mrb[0].mxu0
        %v676 = vadd.f32 %v442, %v675
        %v677 = vpop.f32.mrb[0].mxu0
        %v678 = vadd.f32 %v446, %v677
        %679 = vdwg.mxu0
        %680 = vmatprep.subr.mxu0 %v420
        %681 = vmatpush1.msra.mxu0 %v419
        %682 = vmatprep.subr.mxu0 0.0
        %683 = vmatpush1.msra.mxu0 0.0
        %684 = vmatprep.subr.mxu0 0.0
        %685 = vmatpush1.msra.mxu0 0.0
        %686 = vmatprep.subr.mxu0 0.0
        %687 = vmatpush1.msra.mxu0 0.0
        %688 = vmatprep.subr.mxu0 0.0
        %689 = vmatpush1.msra.mxu0 0.0
        %690 = vmatprep.subr.mxu0 0.0
        %691 = vmatpush1.msra.mxu0 0.0
        %692 = vmatprep.subr.mxu0 0.0
        %693 = vmatpush1.msra.mxu0 0.0
        %694 = vmatprep.subr.mxu0 0.0
        %695 = vmatpush1.msra.mxu0 0.0
        %696 = vmatprep.subr.mxu0 0.0
        %697 = vmatpush1.msra.mxu0 0.0
        %698 = vmatprep.subr.mxu0 0.0
        %699 = vmatpush1.msra.mxu0 0.0
        %700 = vmatprep.subr.mxu0 0.0
        %701 = vmatpush1.msra.mxu0 0.0
        %702 = vmatprep.subr.mxu0 0.0
        %703 = vmatpush1.msra.mxu0 0.0
        %704 = vmatprep.subr.mxu0 0.0
        %705 = vmatpush1.msra.mxu0 0.0
        %706 = vmatprep.subr.mxu0 0.0
        %707 = vmatpush1.msra.mxu0 0.0
        %708 = vmatprep.subr.mxu0 0.0
        %709 = vmatpush1.msra.mxu0 0.0
        %710 = vmatprep.subr.mxu0 0.0
        %711 = vmatpush1.msra.mxu0 0.0
        %712 = vmatprep.subr.mxu0 0.0
        %713 = vmatpush1.msra.mxu0 0.0
        %714 = vmatprep.subr.mxu0 0.0
        %715 = vmatpush1.msra.mxu0 0.0
        %716 = vmatprep.subr.mxu0 0.0
        %717 = vmatpush1.msra.mxu0 0.0
        %718 = vmatprep.subr.mxu0 0.0
        %719 = vmatpush1.msra.mxu0 0.0
        %720 = vmatprep.subr.mxu0 0.0
        %721 = vmatpush1.msra.mxu0 0.0
        %722 = vmatprep.subr.mxu0 0.0
        %723 = vmatpush1.msra.mxu0 0.0
        %724 = vmatprep.subr.mxu0 0.0
        %725 = vmatpush1.msra.mxu0 0.0
        %726 = vmatprep.subr.mxu0 0.0
        %727 = vmatpush1.msra.mxu0 0.0
        %728 = vmatprep.subr.mxu0 0.0
        %729 = vmatpush1.msra.mxu0 0.0
        %730 = vmatprep.subr.mxu0 0.0
        %731 = vmatpush1.msra.mxu0 0.0
        %732 = vmatprep.subr.mxu0 0.0
        %733 = vmatpush1.msra.mxu0 0.0
        %734 = vmatprep.subr.mxu0 0.0
        %735 = vmatpush1.msra.mxu0 0.0
        %736 = vmatprep.subr.mxu0 0.0
        %737 = vmatpush1.msra.mxu0 0.0
        %738 = vmatprep.subr.mxu0 0.0
        %739 = vmatpush1.msra.mxu0 0.0
        %740 = vmatprep.subr.mxu0 0.0
        %741 = vmatpush1.msra.mxu0 0.0
        %742 = vmatprep.subr.mxu0 0.0
        %743 = vmatpush1.msra.mxu0 0.0
        %744 = vmatprep.mubr.f32.mxu0 0.0
        %745 = vmatmul.mubr.f32.gmra.mrb[0].mxu0 %v465
        %v746 = vpop.f32.mrb[0].mxu0
        %v747 = vadd.f32 %v450, %v746
        %v748 = vpop.f32.mrb[0].mxu0
        %v749 = vadd.f32 %v454, %v748
        %750 = vdwg.mxu0
        %s751 = scalar_lea.vmem %s0, 2
        %v752 = vld [vmem:[%s751] sm:$0x3]
        %s753 = scalar_lea.vmem %s333, 64 [#allocation2]
        %v754 = vld [vmem:[%s753] sm:$0xff]
        %v755 = vld [vmem:[%s753 + $0x8] sm:$0xff]
        %v756 = vld [vmem:[%s753 + $0x10] sm:$0xff]
        %v757 = vld [vmem:[%s753 + $0x18] sm:$0xff]
        %v758 = vld [vmem:[%s753 + $0x20] sm:$0xff]
        %v759 = vld [vmem:[%s753 + $0x28] sm:$0xff]
        %v760 = vld [vmem:[%s753 + $0x30] sm:$0xff]
        %v761 = vld [vmem:[%s753 + $0x38] sm:$0xff]
        %s762 = scalar_lea.vmem %s340, 8 [#allocation3]
        %v763 = vld [vmem:[%s762] sm:$0xff]
        %v765 = vlaneseq
        %v766 = vshrl.u32 %v765, 7
        %v767 = vsub.s32 0, %v766
        %v768 = vrot.slane %v763, %v767
        %v769 = vlaneseq
        %v770 = vshrl.u32 %v769, 7
        %v771 = vsub.s32 1, %v770
        %v772 = vrot.slane %v763, %v771
        %v773 = vlaneseq
        %v774 = vshrl.u32 %v773, 7
        %v775 = vsub.s32 2, %v774
        %v776 = vrot.slane %v763, %v775
        %v777 = vlaneseq
        %v778 = vshrl.u32 %v777, 7
        %v779 = vsub.s32 3, %v778
        %v780 = vrot.slane %v763, %v779
        %v781 = vlaneseq
        %v782 = vshrl.u32 %v781, 7
        %v783 = vsub.s32 4, %v782
        %v784 = vrot.slane %v763, %v783
        %v785 = vlaneseq
        %v786 = vshrl.u32 %v785, 7
        %v787 = vsub.s32 5, %v786
        %v788 = vrot.slane %v763, %v787
        %v789 = vlaneseq
        %v790 = vshrl.u32 %v789, 7
        %v791 = vsub.s32 6, %v790
        %v792 = vrot.slane %v763, %v791
        %v793 = vlaneseq
        %v794 = vshrl.u32 %v793, 7
        %v795 = vsub.s32 7, %v794
        %v796 = vrot.slane %v763, %v795
        %v806 = vsel %vm463, %v752, 0
        %808 = vmatprep.subr.mxu0 %v755
        %809 = vmatpush1.msra.mxu0 %v754
        %810 = vmatprep.subr.mxu0 0.0
        %811 = vmatpush1.msra.mxu0 0.0
        %812 = vmatprep.subr.mxu0 0.0
        %813 = vmatpush1.msra.mxu0 0.0
        %814 = vmatprep.subr.mxu0 0.0
        %815 = vmatpush1.msra.mxu0 0.0
        %816 = vmatprep.subr.mxu0 0.0
        %817 = vmatpush1.msra.mxu0 0.0
        %818 = vmatprep.subr.mxu0 0.0
        %819 = vmatpush1.msra.mxu0 0.0
        %820 = vmatprep.subr.mxu0 0.0
        %821 = vmatpush1.msra.mxu0 0.0
        %822 = vmatprep.subr.mxu0 0.0
        %823 = vmatpush1.msra.mxu0 0.0
        %824 = vmatprep.subr.mxu0 0.0
        %825 = vmatpush1.msra.mxu0 0.0
        %826 = vmatprep.subr.mxu0 0.0
        %827 = vmatpush1.msra.mxu0 0.0
        %828 = vmatprep.subr.mxu0 0.0
        %829 = vmatpush1.msra.mxu0 0.0
        %830 = vmatprep.subr.mxu0 0.0
        %831 = vmatpush1.msra.mxu0 0.0
        %832 = vmatprep.subr.mxu0 0.0
        %833 = vmatpush1.msra.mxu0 0.0
        %834 = vmatprep.subr.mxu0 0.0
        %835 = vmatpush1.msra.mxu0 0.0
        %836 = vmatprep.subr.mxu0 0.0
        %837 = vmatpush1.msra.mxu0 0.0
        %838 = vmatprep.subr.mxu0 0.0
        %839 = vmatpush1.msra.mxu0 0.0
        %840 = vmatprep.subr.mxu0 0.0
        %841 = vmatpush1.msra.mxu0 0.0
        %842 = vmatprep.subr.mxu0 0.0
        %843 = vmatpush1.msra.mxu0 0.0
        %844 = vmatprep.subr.mxu0 0.0
        %845 = vmatpush1.msra.mxu0 0.0
        %846 = vmatprep.subr.mxu0 0.0
        %847 = vmatpush1.msra.mxu0 0.0
        %848 = vmatprep.subr.mxu0 0.0
        %849 = vmatpush1.msra.mxu0 0.0
        %850 = vmatprep.subr.mxu0 0.0
        %851 = vmatpush1.msra.mxu0 0.0
        %852 = vmatprep.subr.mxu0 0.0
        %853 = vmatpush1.msra.mxu0 0.0
        %854 = vmatprep.subr.mxu0 0.0
        %855 = vmatpush1.msra.mxu0 0.0
        %856 = vmatprep.subr.mxu0 0.0
        %857 = vmatpush1.msra.mxu0 0.0
        %858 = vmatprep.subr.mxu0 0.0
        %859 = vmatpush1.msra.mxu0 0.0
        %860 = vmatprep.subr.mxu0 0.0
        %861 = vmatpush1.msra.mxu0 0.0
        %862 = vmatprep.subr.mxu0 0.0
        %863 = vmatpush1.msra.mxu0 0.0
        %864 = vmatprep.subr.mxu0 0.0
        %865 = vmatpush1.msra.mxu0 0.0
        %866 = vmatprep.subr.mxu0 0.0
        %867 = vmatpush1.msra.mxu0 0.0
        %868 = vmatprep.subr.mxu0 0.0
        %869 = vmatpush1.msra.mxu0 0.0
        %870 = vmatprep.subr.mxu0 0.0
        %871 = vmatpush1.msra.mxu0 0.0
        %872 = vmatprep.mubr.f32.mxu0 0.0
        %873 = vmatmul.mubr.f32.gmra.mrb[0].mxu0 %v806
        %v874 = vpop.f32.mrb[0].mxu0
        %v875 = vadd.f32 %v768, %v874
        %v876 = vpop.f32.mrb[0].mxu0
        %v877 = vadd.f32 %v772, %v876
        %878 = vdwg.mxu0
        %879 = vmatprep.subr.mxu0 %v757
        %880 = vmatpush1.msra.mxu0 %v756
        %881 = vmatprep.subr.mxu0 0.0
        %882 = vmatpush1.msra.mxu0 0.0
        %883 = vmatprep.subr.mxu0 0.0
        %884 = vmatpush1.msra.mxu0 0.0
        %885 = vmatprep.subr.mxu0 0.0
        %886 = vmatpush1.msra.mxu0 0.0
        %887 = vmatprep.subr.mxu0 0.0
        %888 = vmatpush1.msra.mxu0 0.0
        %889 = vmatprep.subr.mxu0 0.0
        %890 = vmatpush1.msra.mxu0 0.0
        %891 = vmatprep.subr.mxu0 0.0
        %892 = vmatpush1.msra.mxu0 0.0
        %893 = vmatprep.subr.mxu0 0.0
        %894 = vmatpush1.msra.mxu0 0.0
        %895 = vmatprep.subr.mxu0 0.0
        %896 = vmatpush1.msra.mxu0 0.0
        %897 = vmatprep.subr.mxu0 0.0
        %898 = vmatpush1.msra.mxu0 0.0
        %899 = vmatprep.subr.mxu0 0.0
        %900 = vmatpush1.msra.mxu0 0.0
        %901 = vmatprep.subr.mxu0 0.0
        %902 = vmatpush1.msra.mxu0 0.0
        %903 = vmatprep.subr.mxu0 0.0
        %904 = vmatpush1.msra.mxu0 0.0
        %905 = vmatprep.subr.mxu0 0.0
        %906 = vmatpush1.msra.mxu0 0.0
        %907 = vmatprep.subr.mxu0 0.0
        %908 = vmatpush1.msra.mxu0 0.0
        %909 = vmatprep.subr.mxu0 0.0
        %910 = vmatpush1.msra.mxu0 0.0
        %911 = vmatprep.subr.mxu0 0.0
        %912 = vmatpush1.msra.mxu0 0.0
        %913 = vmatprep.subr.mxu0 0.0
        %914 = vmatpush1.msra.mxu0 0.0
        %915 = vmatprep.subr.mxu0 0.0
        %916 = vmatpush1.msra.mxu0 0.0
        %917 = vmatprep.subr.mxu0 0.0
        %918 = vmatpush1.msra.mxu0 0.0
        %919 = vmatprep.subr.mxu0 0.0
        %920 = vmatpush1.msra.mxu0 0.0
        %921 = vmatprep.subr.mxu0 0.0
        %922 = vmatpush1.msra.mxu0 0.0
        %923 = vmatprep.subr.mxu0 0.0
        %924 = vmatpush1.msra.mxu0 0.0
        %925 = vmatprep.subr.mxu0 0.0
        %926 = vmatpush1.msra.mxu0 0.0
        %927 = vmatprep.subr.mxu0 0.0
        %928 = vmatpush1.msra.mxu0 0.0
        %929 = vmatprep.subr.mxu0 0.0
        %930 = vmatpush1.msra.mxu0 0.0
        %931 = vmatprep.subr.mxu0 0.0
        %932 = vmatpush1.msra.mxu0 0.0
        %933 = vmatprep.subr.mxu0 0.0
        %934 = vmatpush1.msra.mxu0 0.0
        %935 = vmatprep.subr.mxu0 0.0
        %936 = vmatpush1.msra.mxu0 0.0
        %937 = vmatprep.subr.mxu0 0.0
        %938 = vmatpush1.msra.mxu0 0.0
        %939 = vmatprep.subr.mxu0 0.0
        %940 = vmatpush1.msra.mxu0 0.0
        %941 = vmatprep.subr.mxu0 0.0
        %942 = vmatpush1.msra.mxu0 0.0
        %943 = vmatprep.mubr.f32.mxu0 0.0
        %944 = vmatmul.mubr.f32.gmra.mrb[0].mxu0 %v806
        %v945 = vpop.f32.mrb[0].mxu0
        %v946 = vadd.f32 %v776, %v945
        %v947 = vpop.f32.mrb[0].mxu0
        %v948 = vadd.f32 %v780, %v947
        %949 = vdwg.mxu0
        %950 = vmatprep.subr.mxu0 %v759
        %951 = vmatpush1.msra.mxu0 %v758
        %952 = vmatprep.subr.mxu0 0.0
        %953 = vmatpush1.msra.mxu0 0.0
        %954 = vmatprep.subr.mxu0 0.0
        %955 = vmatpush1.msra.mxu0 0.0
        %956 = vmatprep.subr.mxu0 0.0
        %957 = vmatpush1.msra.mxu0 0.0
        %958 = vmatprep.subr.mxu0 0.0
        %959 = vmatpush1.msra.mxu0 0.0
        %960 = vmatprep.subr.mxu0 0.0
        %961 = vmatpush1.msra.mxu0 0.0
        %962 = vmatprep.subr.mxu0 0.0
        %963 = vmatpush1.msra.mxu0 0.0
        %964 = vmatprep.subr.mxu0 0.0
        %965 = vmatpush1.msra.mxu0 0.0
        %966 = vmatprep.subr.mxu0 0.0
        %967 = vmatpush1.msra.mxu0 0.0
        %968 = vmatprep.subr.mxu0 0.0
        %969 = vmatpush1.msra.mxu0 0.0
        %970 = vmatprep.subr.mxu0 0.0
        %971 = vmatpush1.msra.mxu0 0.0
        %972 = vmatprep.subr.mxu0 0.0
        %973 = vmatpush1.msra.mxu0 0.0
        %974 = vmatprep.subr.mxu0 0.0
        %975 = vmatpush1.msra.mxu0 0.0
        %976 = vmatprep.subr.mxu0 0.0
        %977 = vmatpush1.msra.mxu0 0.0
        %978 = vmatprep.subr.mxu0 0.0
        %979 = vmatpush1.msra.mxu0 0.0
        %980 = vmatprep.subr.mxu0 0.0
        %981 = vmatpush1.msra.mxu0 0.0
        %982 = vmatprep.subr.mxu0 0.0
        %983 = vmatpush1.msra.mxu0 0.0
        %984 = vmatprep.subr.mxu0 0.0
        %985 = vmatpush1.msra.mxu0 0.0
        %986 = vmatprep.subr.mxu0 0.0
        %987 = vmatpush1.msra.mxu0 0.0
        %988 = vmatprep.subr.mxu0 0.0
        %989 = vmatpush1.msra.mxu0 0.0
        %990 = vmatprep.subr.mxu0 0.0
        %991 = vmatpush1.msra.mxu0 0.0
        %992 = vmatprep.subr.mxu0 0.0
        %993 = vmatpush1.msra.mxu0 0.0
        %994 = vmatprep.subr.mxu0 0.0
        %995 = vmatpush1.msra.mxu0 0.0
        %996 = vmatprep.subr.mxu0 0.0
        %997 = vmatpush1.msra.mxu0 0.0
        %998 = vmatprep.subr.mxu0 0.0
        %999 = vmatpush1.msra.mxu0 0.0
        %1000 = vmatprep.subr.mxu0 0.0
        %1001 = vmatpush1.msra.mxu0 0.0
        %1002 = vmatprep.subr.mxu0 0.0
        %1003 = vmatpush1.msra.mxu0 0.0
        %1004 = vmatprep.subr.mxu0 0.0
        %1005 = vmatpush1.msra.mxu0 0.0
        %1006 = vmatprep.subr.mxu0 0.0
        %1007 = vmatpush1.msra.mxu0 0.0
        %1008 = vmatprep.subr.mxu0 0.0
        %1009 = vmatpush1.msra.mxu0 0.0
        %1010 = vmatprep.subr.mxu0 0.0
        %1011 = vmatpush1.msra.mxu0 0.0
        %1012 = vmatprep.subr.mxu0 0.0
        %1013 = vmatpush1.msra.mxu0 0.0
        %1014 = vmatprep.mubr.f32.mxu0 0.0
        %1015 = vmatmul.mubr.f32.gmra.mrb[0].mxu0 %v806
        %v1016 = vpop.f32.mrb[0].mxu0
        %v1017 = vadd.f32 %v784, %v1016
        %v1018 = vpop.f32.mrb[0].mxu0
        %v1019 = vadd.f32 %v788, %v1018
        %1020 = vdwg.mxu0
        %1021 = vmatprep.subr.mxu0 %v761
        %1022 = vmatpush1.msra.mxu0 %v760
        %1023 = vmatprep.subr.mxu0 0.0
        %1024 = vmatpush1.msra.mxu0 0.0
        %1025 = vmatprep.subr.mxu0 0.0
        %1026 = vmatpush1.msra.mxu0 0.0
        %1027 = vmatprep.subr.mxu0 0.0
        %1028 = vmatpush1.msra.mxu0 0.0
        %1029 = vmatprep.subr.mxu0 0.0
        %1030 = vmatpush1.msra.mxu0 0.0
        %1031 = vmatprep.subr.mxu0 0.0
        %1032 = vmatpush1.msra.mxu0 0.0
        %1033 = vmatprep.subr.mxu0 0.0
        %1034 = vmatpush1.msra.mxu0 0.0
        %1035 = vmatprep.subr.mxu0 0.0
        %1036 = vmatpush1.msra.mxu0 0.0
        %1037 = vmatprep.subr.mxu0 0.0
        %1038 = vmatpush1.msra.mxu0 0.0
        %1039 = vmatprep.subr.mxu0 0.0
        %1040 = vmatpush1.msra.mxu0 0.0
        %1041 = vmatprep.subr.mxu0 0.0
        %1042 = vmatpush1.msra.mxu0 0.0
        %1043 = vmatprep.subr.mxu0 0.0
        %1044 = vmatpush1.msra.mxu0 0.0
        %1045 = vmatprep.subr.mxu0 0.0
        %1046 = vmatpush1.msra.mxu0 0.0
        %1047 = vmatprep.subr.mxu0 0.0
        %1048 = vmatpush1.msra.mxu0 0.0
        %1049 = vmatprep.subr.mxu0 0.0
        %1050 = vmatpush1.msra.mxu0 0.0
        %1051 = vmatprep.subr.mxu0 0.0
        %1052 = vmatpush1.msra.mxu0 0.0
        %1053 = vmatprep.subr.mxu0 0.0
        %1054 = vmatpush1.msra.mxu0 0.0
        %1055 = vmatprep.subr.mxu0 0.0
        %1056 = vmatpush1.msra.mxu0 0.0
        %1057 = vmatprep.subr.mxu0 0.0
        %1058 = vmatpush1.msra.mxu0 0.0
        %1059 = vmatprep.subr.mxu0 0.0
        %1060 = vmatpush1.msra.mxu0 0.0
        %1061 = vmatprep.subr.mxu0 0.0
        %1062 = vmatpush1.msra.mxu0 0.0
        %1063 = vmatprep.subr.mxu0 0.0
        %1064 = vmatpush1.msra.mxu0 0.0
        %1065 = vmatprep.subr.mxu0 0.0
        %1066 = vmatpush1.msra.mxu0 0.0
        %1067 = vmatprep.subr.mxu0 0.0
        %1068 = vmatpush1.msra.mxu0 0.0
        %1069 = vmatprep.subr.mxu0 0.0
        %1070 = vmatpush1.msra.mxu0 0.0
        %1071 = vmatprep.subr.mxu0 0.0
        %1072 = vmatpush1.msra.mxu0 0.0
        %1073 = vmatprep.subr.mxu0 0.0
        %1074 = vmatpush1.msra.mxu0 0.0
        %1075 = vmatprep.subr.mxu0 0.0
        %1076 = vmatpush1.msra.mxu0 0.0
        %1077 = vmatprep.subr.mxu0 0.0
        %1078 = vmatpush1.msra.mxu0 0.0
        %1079 = vmatprep.subr.mxu0 0.0
        %1080 = vmatpush1.msra.mxu0 0.0
        %1081 = vmatprep.subr.mxu0 0.0
        %1082 = vmatpush1.msra.mxu0 0.0
        %1083 = vmatprep.subr.mxu0 0.0
        %1084 = vmatpush1.msra.mxu0 0.0
        %1085 = vmatprep.mubr.f32.mxu0 0.0
        %1086 = vmatmul.mubr.f32.gmra.mrb[0].mxu0 %v806
        %v1087 = vpop.f32.mrb[0].mxu0
        %v1088 = vadd.f32 %v792, %v1087
        %v1089 = vpop.f32.mrb[0].mxu0
        %v1090 = vadd.f32 %v796, %v1089
        %1091 = vdwg.mxu0
        %v1100 = vcombine.low %v534, %v536
        %v1101 = vcombine.low %v605, %v607
        %v1103 = vunpack.c.l.s4 1983009808
        %v1104 = vunpack.c.0.s8 %v1103
        %v1105 = vlaneseq
        %v1106 = vshrl.u32 %v1105, 7
        %v1107 = vsub.s32 %v1104, %v1106
        %v1108 = vrot.slane %v1100, %v1107
        %v1110 = vunpack.c.l.s4 1983009808
        %v1111 = vunpack.c.0.s8 %v1110
        %v1112 = vlaneseq
        %v1113 = vshrl.u32 %v1112, 7
        %v1114 = vsub.s32 %v1111, %v1113
        %v1115 = vrot.slane %v1101, %v1114
        %v1116 = vcombine.low %v1108, %v1115
        %v1117 = vcombine.low %v676, %v678
        %v1118 = vcombine.low %v747, %v749
        %v1120 = vunpack.c.l.s4 1983009808
        %v1121 = vunpack.c.0.s8 %v1120
        %v1122 = vlaneseq
        %v1123 = vshrl.u32 %v1122, 7
        %v1124 = vsub.s32 %v1121, %v1123
        %v1125 = vrot.slane %v1117, %v1124
        %v1127 = vunpack.c.l.s4 1983009808
        %v1128 = vunpack.c.0.s8 %v1127
        %v1129 = vlaneseq
        %v1130 = vshrl.u32 %v1129, 7
        %v1131 = vsub.s32 %v1128, %v1130
        %v1132 = vrot.slane %v1118, %v1131
        %v1133 = vcombine.low %v1125, %v1132
        %1136 = vst [vmem:[%s404] sm:$0xff] %v1116
        %1137 = vst [vmem:[%s404 + $0x8] sm:$0xff] %v1133
        %v1146 = vcombine.low %v875, %v877
        %v1147 = vcombine.low %v946, %v948
        %v1149 = vunpack.c.l.s4 1983009808
        %v1150 = vunpack.c.0.s8 %v1149
        %v1151 = vlaneseq
        %v1152 = vshrl.u32 %v1151, 7
        %v1153 = vsub.s32 %v1150, %v1152
        %v1154 = vrot.slane %v1146, %v1153
        %v1156 = vunpack.c.l.s4 1983009808
        %v1157 = vunpack.c.0.s8 %v1156
        %v1158 = vlaneseq
        %v1159 = vshrl.u32 %v1158, 7
        %v1160 = vsub.s32 %v1157, %v1159
        %v1161 = vrot.slane %v1147, %v1160
        %v1162 = vcombine.low %v1154, %v1161
        %v1163 = vcombine.low %v1017, %v1019
        %v1164 = vcombine.low %v1088, %v1090
        %v1166 = vunpack.c.l.s4 1983009808
        %v1167 = vunpack.c.0.s8 %v1166
        %v1168 = vlaneseq
        %v1169 = vshrl.u32 %v1168, 7
        %v1170 = vsub.s32 %v1167, %v1169
        %v1171 = vrot.slane %v1163, %v1170
        %v1173 = vunpack.c.l.s4 1983009808
        %v1174 = vunpack.c.0.s8 %v1173
        %v1175 = vlaneseq
        %v1176 = vshrl.u32 %v1175, 7
        %v1177 = vsub.s32 %v1174, %v1176
        %v1178 = vrot.slane %v1164, %v1177
        %v1179 = vcombine.low %v1171, %v1178
        %1182 = vst [vmem:[%s410] sm:$0xff] %v1162
        %1183 = vst [vmem:[%s410 + $0x8] sm:$0xff] %v1179
        %v1184 = vmul.f32 %v875, 0.5
        %v1185 = vmul.f32 %v877, 0.5
        %v1186 = vmul.f32 %v946, 0.5
        %v1187 = vmul.f32 %v948, 0.5
        %v1188 = vmul.f32 %v1017, 0.5
        %v1189 = vmul.f32 %v1019, 0.5
        %v1190 = vmul.f32 %v1088, 0.5
        %v1191 = vmul.f32 %v1090, 0.5
        %v1192 = vmul.f32 %v1184, 1.442695
        %v1193 = vpow.pop %v1192
        %v1194 = vmul.f32 %v1185, 1.442695
        %v1195 = vpow.pop %v1194
        %v1196 = vmul.f32 %v1186, 1.442695
        %v1197 = vpow.pop %v1196
        %v1198 = vmul.f32 %v1187, 1.442695
        %v1199 = vpow.pop %v1198
        %v1200 = vmul.f32 %v1188, 1.442695
        %v1201 = vpow.pop %v1200
        %v1202 = vmul.f32 %v1189, 1.442695
        %v1203 = vpow.pop %v1202
        %v1204 = vmul.f32 %v1190, 1.442695
        %v1205 = vpow.pop %v1204
        %v1206 = vmul.f32 %v1191, 1.442695
        %v1207 = vpow.pop %v1206
        %v1208 = vld [vmem:[%s392] sm:$0xff]
        %v1209 = vld [vmem:[%s392 + $0x8] sm:$0xff]
        %v1212 = vcombine.high %v1208, %v1208
        %v1214 = vunpack.c.l.s4 1983009808
        %v1215 = vunpack.c.0.s8 %v1214
        %v1216 = vlaneseq
        %v1217 = vshrl.u32 %v1216, 7
        %v1218 = vsub.s32 %v1215, %v1217
        %v1219 = vrot.slane %v1208, %v1218
        %v1221 = vunpack.c.l.s4 1983009808
        %v1222 = vunpack.c.0.s8 %v1221
        %v1223 = vlaneseq
        %v1224 = vshrl.u32 %v1223, 7
        %v1225 = vsub.s32 %v1222, %v1224
        %v1226 = vrot.slane %v1212, %v1225
        %v1227 = vcombine.high %v1219, %v1219
        %v1228 = vcombine.high %v1226, %v1226
        %v1229 = vcombine.high %v1209, %v1209
        %v1231 = vunpack.c.l.s4 1983009808
        %v1232 = vunpack.c.0.s8 %v1231
        %v1233 = vlaneseq
        %v1234 = vshrl.u32 %v1233, 7
        %v1235 = vsub.s32 %v1232, %v1234
        %v1236 = vrot.slane %v1209, %v1235
        %v1238 = vunpack.c.l.s4 1983009808
        %v1239 = vunpack.c.0.s8 %v1238
        %v1240 = vlaneseq
        %v1241 = vshrl.u32 %v1240, 7
        %v1242 = vsub.s32 %v1239, %v1241
        %v1243 = vrot.slane %v1229, %v1242
        %v1244 = vcombine.high %v1236, %v1236
        %v1245 = vcombine.high %v1243, %v1243
        %v1254 = vmul.f32 %v1193, %v1219
        %v1255 = vmul.f32 %v1195, %v1227
        %v1256 = vmul.f32 %v1197, %v1226
        %v1257 = vmul.f32 %v1199, %v1228
        %v1258 = vmul.f32 %v1201, %v1236
        %v1259 = vmul.f32 %v1203, %v1244
        %v1260 = vmul.f32 %v1205, %v1243
        %v1261 = vmul.f32 %v1207, %v1245
        %v1262 = vadd.f32 %v534, %v1254
        %v1263 = vadd.f32 %v536, %v1255
        %v1264 = vadd.f32 %v605, %v1256
        %v1265 = vadd.f32 %v607, %v1257
        %v1266 = vadd.f32 %v676, %v1258
        %v1267 = vadd.f32 %v678, %v1259
        %v1268 = vadd.f32 %v747, %v1260
        %v1269 = vadd.f32 %v749, %v1261
        %v1278 = vcombine.low %v1262, %v1263
        %v1279 = vcombine.low %v1264, %v1265
        %v1281 = vunpack.c.l.s4 1983009808
        %v1282 = vunpack.c.0.s8 %v1281
        %v1283 = vlaneseq
        %v1284 = vshrl.u32 %v1283, 7
        %v1285 = vsub.s32 %v1282, %v1284
        %v1286 = vrot.slane %v1278, %v1285
        %v1288 = vunpack.c.l.s4 1983009808
        %v1289 = vunpack.c.0.s8 %v1288
        %v1290 = vlaneseq
        %v1291 = vshrl.u32 %v1290, 7
        %v1292 = vsub.s32 %v1289, %v1291
        %v1293 = vrot.slane %v1279, %v1292
        %v1294 = vcombine.low %v1286, %v1293
        %v1295 = vcombine.low %v1266, %v1267
        %v1296 = vcombine.low %v1268, %v1269
        %v1298 = vunpack.c.l.s4 1983009808
        %v1299 = vunpack.c.0.s8 %v1298
        %v1300 = vlaneseq
        %v1301 = vshrl.u32 %v1300, 7
        %v1302 = vsub.s32 %v1299, %v1301
        %v1303 = vrot.slane %v1295, %v1302
        %v1305 = vunpack.c.l.s4 1983009808
        %v1306 = vunpack.c.0.s8 %v1305
        %v1307 = vlaneseq
        %v1308 = vshrl.u32 %v1307, 7
        %v1309 = vsub.s32 %v1306, %v1308
        %v1310 = vrot.slane %v1296, %v1309
        %v1311 = vcombine.low %v1303, %v1310
        %1314 = vst [vmem:[%s398] sm:$0xff] %v1294
        %1315 = vst [vmem:[%s398 + $0x8] sm:$0xff] %v1311
        %s1316 = smul.u32 8, %s18
        %p1317 = scmp.lt.s32.totalorder %s1316, 23
        %s1318 = scalar_select %p1317, %s1316, 23
        %s1319 = smul.addr %s1318, 2
        %s1320 = scalar_lea.vmem %s4, %s1319
        %s1321 = smul.u32 8, %s18
        %p1322 = scmp.lt.s32.totalorder %s1321, 23
        %s1323 = scalar_select %p1322, %s1321, 23
        %s1324 = smul.addr %s1323, 2
        %s1325 = scalar_lea.vmem %s5, %s1324
        %s1326 = smul.u32 8, %s18
        %p1327 = scmp.lt.s32.totalorder %s1326, 23
        %s1328 = scalar_select %p1327, %s1326, 23
        %s1329 = smul.addr %s1328, 2
        %s1330 = scalar_lea.vmem %s6, %s1329
        // Predicated region
        $region98: #{encoder_transformer_forward.3} parent=88 // pred_check
          %p1331 = pneg %p135
        $region99: #{encoder_transformer_forward.3} parent=88 // pred_check_branch
          %1333 = sbr.rel (%p1331) target = $region101
        $region100: #{encoder_transformer_forward.3} parent=88 // pred_region
          %s1334 = smul.u32 8, %s18
        $region101: #{encoder_transformer_forward.3} parent=88 // pred_fallthru
          _
        // Predicated region
        $region102: #{encoder_transformer_forward.3} parent=88 // pred_check
          %p1335 = pneg %p161
        $region103: #{encoder_transformer_forward.3} parent=88 // pred_check_branch
          %1337 = sbr.rel (%p1335) target = $region105
        $region104: #{encoder_transformer_forward.3} parent=88 // pred_region
          %s1338 = smul.u32 8, %s18
        $region105: #{encoder_transformer_forward.3} parent=88 // pred_fallthru
          _
        // Predicated region
        $region106: #{encoder_transformer_forward.3} parent=88 // pred_check
          %p1339 = pneg %p187
        $region107: #{encoder_transformer_forward.3} parent=88 // pred_check_branch
          %1341 = sbr.rel (%p1339) target = $region109
        $region108: #{encoder_transformer_forward.3} parent=88 // pred_region
          %s1342 = smul.u32 8, %s18
        $region109: #{encoder_transformer_forward.3} parent=88 // pred_fallthru
          _
      $region89: #{encoder_transformer_forward.3} parent=5 // pred_fallthru
        _
      %p1343 = scmp.le.s32.totalorder 2, %s13
      // Predicated region
      $region110: #{encoder_transformer_forward.3} parent=5 // pred_check
        %p1344 = pneg %p1343
      $region111: #{encoder_transformer_forward.3} parent=5 // pred_check_branch
        %1346 = sbr.rel (%p1344) target = $region113
      $region112: #{encoder_transformer_forward.3} parent=5 // pred_region
        %s1347 = ssub.s32 %s13, 2
        // Predicated region
        $region114: #{encoder_transformer_forward.3} parent=112 // pred_check
          %p1348 = pneg %p141
        $region115: #{encoder_transformer_forward.3} parent=112 // pred_check_branch
          %1350 = sbr.rel (%p1348) target = $region117
        $region116: #{encoder_transformer_forward.3} parent=112 // pred_region
          %s1351 = smul.u32 8, %s19
          %p1352 = scmp.lt.s32.totalorder %s1351, 23
          %s1353 = scalar_select %p1352, %s1351, 23
          %s1354 = smul.addr %s1353, 2
          %s1355 = scalar_lea.vmem %s4, %s1354
        $region117: #{encoder_transformer_forward.3} parent=112 // pred_fallthru
          _
        // Predicated region
        $region118: #{encoder_transformer_forward.3} parent=112 // pred_check
          %p1356 = pneg %p167
        $region119: #{encoder_transformer_forward.3} parent=112 // pred_check_branch
          %1358 = sbr.rel (%p1356) target = $region121
        $region120: #{encoder_transformer_forward.3} parent=112 // pred_region
          %s1359 = smul.u32 8, %s19
          %p1360 = scmp.lt.s32.totalorder %s1359, 23
          %s1361 = scalar_select %p1360, %s1359, 23
          %s1362 = smul.addr %s1361, 2
          %s1363 = scalar_lea.vmem %s5, %s1362
        $region121: #{encoder_transformer_forward.3} parent=112 // pred_fallthru
          _
        // Predicated region
        $region122: #{encoder_transformer_forward.3} parent=112 // pred_check
          %p1364 = pneg %p193
        $region123: #{encoder_transformer_forward.3} parent=112 // pred_check_branch
          %1366 = sbr.rel (%p1364) target = $region125
        $region124: #{encoder_transformer_forward.3} parent=112 // pred_region
          %s1367 = smul.u32 8, %s19
          %p1368 = scmp.lt.s32.totalorder %s1367, 23
          %s1369 = scalar_select %p1368, %s1367, 23
          %s1370 = smul.addr %s1369, 2
          %s1371 = scalar_lea.vmem %s6, %s1370
        $region125: #{encoder_transformer_forward.3} parent=112 // pred_fallthru
          _
      $region113: #{encoder_transformer_forward.3} parent=5 // pred_fallthru
        _
    $region6: #{encoder_transformer_forward.3} parent=1 // loop_footer
      %s17 = sadd.s32 1, %s13
    $region7: #{encoder_transformer_forward.3} parent=1 // loop_footer_branch
      %12 = sbr.rel target = $region3
    $region8: #{encoder_transformer_forward.3} parent=1 // loop_exit
      _

// kernel: encoder_transformer_forward.2
$region0: #{encoder_transformer_forward.2}
  #allocation0 [shape = 'u32[]', space=smem, size = 0x4, offset = 0x4, fixed_abs, tag = 'smem constant byte address 0x4 - core index']
  #allocation1 [shape = 'u32[144,128]{1,0:T(1,128)}', space=vmem, size = 0x12000, scoped, tag = 'internal scratch']
  #allocation2 [shape = 'f32[17,8]{1,0:T(8,128)}', space=vmem, size = 0x3000, scoped, tag = 'scratch operand']
  #allocation3 [shape = 'f32[17,24]{1,0:T(8,128)}', space=vmem, size = 0x3000, scoped, tag = 'scratch operand']
  #allocation4 [shape = 'f32[17,8]{1,0:T(8,128)}', space=vmem, size = 0x3000, scoped, tag = 'scratch operand']
  %s0 = inlined_call_operand.vmem [shape: f32[2,16,48], index: 0, kind: input, shape index: {}]
  %s1 = inlined_call_operand.vmem [shape: f32[2,48,8], index: 1, kind: input, shape index: {}]
  %s2 = inlined_call_operand.vmem [shape: f32[2,1,8], index: 2, kind: input, shape index: {}]
  %s3 = inlined_call_operand.vmem [shape: f32[2,1,8], index: 3, kind: input, shape index: {}]
  %s4 = inlined_call_operand.vmem [shape: f32[2,17,8], index: 4, kind: input, shape index: {}]
  %s5 = inlined_call_operand.vmem [shape: f32[2,2,8,24], index: 5, kind: input, shape index: {}]
  %s6 = inlined_call_operand.vmem [shape: f32[2,2,8,8], index: 6, kind: input, shape index: {}]
  %s7 = inlined_call_operand.vmem [shape: f32[2,2,1,8], index: 7, kind: input, shape index: {}]
  %s8 = inlined_call_operand.vmem [shape: f32[2,2,1,8], index: 8, kind: input, shape index: {}]
  %s9 = inlined_call_operand.vmem [shape: f32[2,2,8,32], index: 9, kind: input, shape index: {}]
  %s10 = inlined_call_operand.vmem [shape: f32[2,2,1,32], index: 10, kind: input, shape index: {}]
  %s11 = inlined_call_operand.vmem [shape: f32[2,2,32,8], index: 11, kind: input, shape index: {}]
  %s12 = inlined_call_operand.vmem [shape: f32[2,2,1,8], index: 12, kind: input, shape index: {}]
  %s13 = inlined_call_operand.vmem [shape: f32[2,2,1,8], index: 13, kind: input, shape index: {}]
  %s14 = inlined_call_operand.vmem [shape: f32[2,2,1,8], index: 14, kind: input, shape index: {}]
  %s15 = inlined_call_operand.vmem [shape: f32[2,2,8], index: 15, kind: output, shape index: {}]
  %s16 = sld [smem:[#allocation0]]
  $region93: #{encoder_transformer_forward.2} parent=0
    _
  %s18 = ssub.s32 1, %s16
  %s19 = scalar_select 0, %s18, %s16
  loop: start=0, step=1, limit=4
  $region2: #{encoder_transformer_forward.2} parent=0 // loop_pre_header
    _
  $region3: #{encoder_transformer_forward.2} parent=0 // loop_header
    %s21 = sphi 0, %s25
    %p22 = scmp.ge.s32.totalorder %s21, 4
    %s29 = sphi 0, %s29
    %s31 = sphi 0, %s29
    %s32 = sphi 0, %s31
    %s46 = sphi 0, %s32
    %s52 = sphi 0, %s54
    %s55 = sphi 0, %s52
    %s56 = sphi 0, %s55
    %s72 = sphi 0, %s56
    %s78 = sphi 0, %s80
    %s81 = sphi 0, %s78
    %s82 = sphi 0, %s81
    %s98 = sphi 0, %s82
    %s104 = sphi 0, %s106
    %s107 = sphi 0, %s104
    %s108 = sphi 0, %s107
    %s124 = sphi 0, %s108
    %s130 = sphi 0, %s132
    %s133 = sphi 0, %s130
    %s134 = sphi 0, %s133
    %s150 = sphi 0, %s134
    %s156 = sphi 0, %s158
    %s159 = sphi 0, %s156
    %s160 = sphi 0, %s159
    %s176 = sphi 0, %s160
    %s182 = sphi 0, %s184
    %s185 = sphi 0, %s182
    %s186 = sphi 0, %s185
    %s202 = sphi 0, %s186
    %s208 = sphi 0, %s210
    %s211 = sphi 0, %s208
    %s212 = sphi 0, %s211
    %s228 = sphi 0, %s212
    %s234 = sphi 0, %s236
    %s237 = sphi 0, %s234
    %s238 = sphi 0, %s237
    %s254 = sphi 0, %s238
    %s260 = sphi 0, %s262
    %s263 = sphi 0, %s260
    %s264 = sphi 0, %s263
    %s280 = sphi 0, %s264
    %s286 = sphi 0, %s288
    %s289 = sphi 0, %s286
    %s290 = sphi 0, %s289
    %s306 = sphi 0, %s290
    %s312 = sphi 0, %s314
    %s315 = sphi 0, %s312
    %s316 = sphi 0, %s315
    %s332 = sphi 0, %s316
    %s338 = sphi 0, %s340
    %s341 = sphi 0, %s338
    %s342 = sphi 0, %s341
    %s358 = sphi 0, %s342
    %s364 = sphi 0, %s366
    %s367 = sphi 0, %s364
    %s368 = sphi 0, %s367
    %s384 = sphi 0, %s368
    %s390 = sphi 0, %s392
    %s393 = sphi 0, %s390
    %s394 = sphi 0, %s393
    %s410 = sphi 0, %s394
    %s416 = sphi 0, %s418
    %s419 = sphi 0, %s416
    %s420 = sphi 0, %s419
    %s436 = sphi 0, %s420
  $region4: #{encoder_transformer_forward.2} parent=0 // loop_header_branch
    %24 = sbr.rel (%p22) target = $region8
  $region5: #{encoder_transformer_forward.2} parent=0 // loop_body
    %s26 = ssub.s32 %s21, 1
    %s27 = ssub.s32 %s21, 2
    %s28 = sadd.s32 %s21, 1
    %s30 = sadd.s32 %s29, 1
    %p33 = scmp.eq.s32.totalorder %s21, 1
    %p34 = scmp.ne.s32.totalorder %s29, %s31
    %p35 = scmp.eq.s32.totalorder %s21, 0
    %p36 = por %p34, %p35
    %p37 = scmp.ne.s32.totalorder %s29, %s31
    %p38 = scmp.eq.s32.totalorder %s26, 1
    %p39 = por %p37, %p38
    %p40 = scmp.ne.s32.totalorder %s31, %s32
    %p41 = scmp.eq.s32.totalorder %s26, 0
    %p42 = por %p40, %p41
    %p43 = scmp.ne.s32.totalorder %s31, %s32
    %p44 = scmp.eq.s32.totalorder %s27, 1
    %p45 = por %p43, %p44
    %p47 = scmp.ne.s32.totalorder %s32, %s46
    %p48 = scmp.eq.s32.totalorder %s27, 0
    %p49 = por %p47, %p48
    %s50 = ssub.s32 %s21, %s28
    %p51 = scmp.eq.s32.totalorder %s50, 0
    %s53 = sadd.s32 %s52, 1
    %s54 = scalar_select %p51, %s52, %s53
    %p57 = pneg %p51
    %p58 = scmp.eq.s32.totalorder %s21, 1
    %p59 = por %p57, %p58
    %p60 = scmp.ne.s32.totalorder %s52, %s55
    %p61 = scmp.eq.s32.totalorder %s21, 0
    %p62 = por %p60, %p61
    %p63 = scmp.ne.s32.totalorder %s52, %s55
    %p64 = scmp.eq.s32.totalorder %s26, 1
    %p65 = por %p63, %p64
    %p66 = scmp.ne.s32.totalorder %s55, %s56
    %p67 = scmp.eq.s32.totalorder %s26, 0
    %p68 = por %p66, %p67
    %p69 = scmp.ne.s32.totalorder %s55, %s56
    %p70 = scmp.eq.s32.totalorder %s27, 1
    %p71 = por %p69, %p70
    %p73 = scmp.ne.s32.totalorder %s56, %s72
    %p74 = scmp.eq.s32.totalorder %s27, 0
    %p75 = por %p73, %p74
    %s76 = ssub.s32 %s21, %s28
    %p77 = scmp.eq.s32.totalorder %s76, 0
    %s79 = sadd.s32 %s78, 1
    %s80 = scalar_select %p77, %s78, %s79
    %p83 = pneg %p77
    %p84 = scmp.eq.s32.totalorder %s21, 1
    %p85 = por %p83, %p84
    %p86 = scmp.ne.s32.totalorder %s78, %s81
    %p87 = scmp.eq.s32.totalorder %s21, 0
    %p88 = por %p86, %p87
    %p89 = scmp.ne.s32.totalorder %s78, %s81
    %p90 = scmp.eq.s32.totalorder %s26, 1
    %p91 = por %p89, %p90
    %p92 = scmp.ne.s32.totalorder %s81, %s82
    %p93 = scmp.eq.s32.totalorder %s26, 0
    %p94 = por %p92, %p93
    %p95 = scmp.ne.s32.totalorder %s81, %s82
    %p96 = scmp.eq.s32.totalorder %s27, 1
    %p97 = por %p95, %p96
    %p99 = scmp.ne.s32.totalorder %s82, %s98
    %p100 = scmp.eq.s32.totalorder %s27, 0
    %p101 = por %p99, %p100
    %s102 = ssub.s32 %s21, %s28
    %p103 = scmp.eq.s32.totalorder %s102, 0
    %s105 = sadd.s32 %s104, 1
    %s106 = scalar_select %p103, %s104, %s105
    %p109 = pneg %p103
    %p110 = scmp.eq.s32.totalorder %s21, 1
    %p111 = por %p109, %p110
    %p112 = scmp.ne.s32.totalorder %s104, %s107
    %p113 = scmp.eq.s32.totalorder %s21, 0
    %p114 = por %p112, %p113
    %p115 = scmp.ne.s32.totalorder %s104, %s107
    %p116 = scmp.eq.s32.totalorder %s26, 1
    %p117 = por %p115, %p116
    %p118 = scmp.ne.s32.totalorder %s107, %s108
    %p119 = scmp.eq.s32.totalorder %s26, 0
    %p120 = por %p118, %p119
    %p121 = scmp.ne.s32.totalorder %s107, %s108
    %p122 = scmp.eq.s32.totalorder %s27, 1
    %p123 = por %p121, %p122
    %p125 = scmp.ne.s32.totalorder %s108, %s124
    %p126 = scmp.eq.s32.totalorder %s27, 0
    %p127 = por %p125, %p126
    %s128 = ssub.s32 %s21, %s28
    %p129 = scmp.eq.s32.totalorder %s128, 0
    %s131 = sadd.s32 %s130, 1
    %s132 = scalar_select %p129, %s130, %s131
    %p135 = pneg %p129
    %p136 = scmp.eq.s32.totalorder %s21, 1
    %p137 = por %p135, %p136
    %p138 = scmp.ne.s32.totalorder %s130, %s133
    %p139 = scmp.eq.s32.totalorder %s21, 0
    %p140 = por %p138, %p139
    %p141 = scmp.ne.s32.totalorder %s130, %s133
    %p142 = scmp.eq.s32.totalorder %s26, 1
    %p143 = por %p141, %p142
    %p144 = scmp.ne.s32.totalorder %s133, %s134
    %p145 = scmp.eq.s32.totalorder %s26, 0
    %p146 = por %p144, %p145
    %p147 = scmp.ne.s32.totalorder %s133, %s134
    %p148 = scmp.eq.s32.totalorder %s27, 1
    %p149 = por %p147, %p148
    %p151 = scmp.ne.s32.totalorder %s134, %s150
    %p152 = scmp.eq.s32.totalorder %s27, 0
    %p153 = por %p151, %p152
    %s154 = ssub.s32 %s21, %s28
    %p155 = scmp.eq.s32.totalorder %s154, 0
    %s157 = sadd.s32 %s156, 1
    %s158 = scalar_select %p155, %s156, %s157
    %p161 = pneg %p155
    %p162 = scmp.eq.s32.totalorder %s21, 1
    %p163 = por %p161, %p162
    %p164 = scmp.ne.s32.totalorder %s156, %s159
    %p165 = scmp.eq.s32.totalorder %s21, 0
    %p166 = por %p164, %p165
    %p167 = scmp.ne.s32.totalorder %s156, %s159
    %p168 = scmp.eq.s32.totalorder %s26, 1
    %p169 = por %p167, %p168
    %p170 = scmp.ne.s32.totalorder %s159, %s160
    %p171 = scmp.eq.s32.totalorder %s26, 0
    %p172 = por %p170, %p171
    %p173 = scmp.ne.s32.totalorder %s159, %s160
    %p174 = scmp.eq.s32.totalorder %s27, 1
    %p175 = por %p173, %p174
    %p177 = scmp.ne.s32.totalorder %s160, %s176
    %p178 = scmp.eq.s32.totalorder %s27, 0
    %p179 = por %p177, %p178
    %s180 = ssub.s32 %s21, %s28
    %p181 = scmp.eq.s32.totalorder %s180, 0
    %s183 = sadd.s32 %s182, 1
    %s184 = scalar_select %p181, %s182, %s183
    %p187 = pneg %p181
    %p188 = scmp.eq.s32.totalorder %s21, 1
    %p189 = por %p187, %p188
    %p190 = scmp.ne.s32.totalorder %s182, %s185
    %p191 = scmp.eq.s32.totalorder %s21, 0
    %p192 = por %p190, %p191
    %p193 = scmp.ne.s32.totalorder %s182, %s185
    %p194 = scmp.eq.s32.totalorder %s26, 1
    %p195 = por %p193, %p194
    %p196 = scmp.ne.s32.totalorder %s185, %s186
    %p197 = scmp.eq.s32.totalorder %s26, 0
    %p198 = por %p196, %p197
    %p199 = scmp.ne.s32.totalorder %s185, %s186
    %p200 = scmp.eq.s32.totalorder %s27, 1
    %p201 = por %p199, %p200
    %p203 = scmp.ne.s32.totalorder %s186, %s202
    %p204 = scmp.eq.s32.totalorder %s27, 0
    %p205 = por %p203, %p204
    %s206 = ssub.s32 %s21, %s28
    %p207 = scmp.eq.s32.totalorder %s206, 0
    %s209 = sadd.s32 %s208, 1
    %s210 = scalar_select %p207, %s208, %s209
    %p213 = pneg %p207
    %p214 = scmp.eq.s32.totalorder %s21, 1
    %p215 = por %p213, %p214
    %p216 = scmp.ne.s32.totalorder %s208, %s211
    %p217 = scmp.eq.s32.totalorder %s21, 0
    %p218 = por %p216, %p217
    %p219 = scmp.ne.s32.totalorder %s208, %s211
    %p220 = scmp.eq.s32.totalorder %s26, 1
    %p221 = por %p219, %p220
    %p222 = scmp.ne.s32.totalorder %s211, %s212
    %p223 = scmp.eq.s32.totalorder %s26, 0
    %p224 = por %p222, %p223
    %p225 = scmp.ne.s32.totalorder %s211, %s212
    %p226 = scmp.eq.s32.totalorder %s27, 1
    %p227 = por %p225, %p226
    %p229 = scmp.ne.s32.totalorder %s212, %s228
    %p230 = scmp.eq.s32.totalorder %s27, 0
    %p231 = por %p229, %p230
    %s232 = ssub.s32 %s21, %s28
    %p233 = scmp.eq.s32.totalorder %s232, 0
    %s235 = sadd.s32 %s234, 1
    %s236 = scalar_select %p233, %s234, %s235
    %p239 = pneg %p233
    %p240 = scmp.eq.s32.totalorder %s21, 1
    %p241 = por %p239, %p240
    %p242 = scmp.ne.s32.totalorder %s234, %s237
    %p243 = scmp.eq.s32.totalorder %s21, 0
    %p244 = por %p242, %p243
    %p245 = scmp.ne.s32.totalorder %s234, %s237
    %p246 = scmp.eq.s32.totalorder %s26, 1
    %p247 = por %p245, %p246
    %p248 = scmp.ne.s32.totalorder %s237, %s238
    %p249 = scmp.eq.s32.totalorder %s26, 0
    %p250 = por %p248, %p249
    %p251 = scmp.ne.s32.totalorder %s237, %s238
    %p252 = scmp.eq.s32.totalorder %s27, 1
    %p253 = por %p251, %p252
    %p255 = scmp.ne.s32.totalorder %s238, %s254
    %p256 = scmp.eq.s32.totalorder %s27, 0
    %p257 = por %p255, %p256
    %s258 = ssub.s32 %s21, %s28
    %p259 = scmp.eq.s32.totalorder %s258, 0
    %s261 = sadd.s32 %s260, 1
    %s262 = scalar_select %p259, %s260, %s261
    %p265 = pneg %p259
    %p266 = scmp.eq.s32.totalorder %s21, 1
    %p267 = por %p265, %p266
    %p268 = scmp.ne.s32.totalorder %s260, %s263
    %p269 = scmp.eq.s32.totalorder %s21, 0
    %p270 = por %p268, %p269
    %p271 = scmp.ne.s32.totalorder %s260, %s263
    %p272 = scmp.eq.s32.totalorder %s26, 1
    %p273 = por %p271, %p272
    %p274 = scmp.ne.s32.totalorder %s263, %s264
    %p275 = scmp.eq.s32.totalorder %s26, 0
    %p276 = por %p274, %p275
    %p277 = scmp.ne.s32.totalorder %s263, %s264
    %p278 = scmp.eq.s32.totalorder %s27, 1
    %p279 = por %p277, %p278
    %p281 = scmp.ne.s32.totalorder %s264, %s280
    %p282 = scmp.eq.s32.totalorder %s27, 0
    %p283 = por %p281, %p282
    %s284 = ssub.s32 %s21, %s28
    %p285 = scmp.eq.s32.totalorder %s284, 0
    %s287 = sadd.s32 %s286, 1
    %s288 = scalar_select %p285, %s286, %s287
    %p291 = pneg %p285
    %p292 = scmp.eq.s32.totalorder %s21, 1
    %p293 = por %p291, %p292
    %p294 = scmp.ne.s32.totalorder %s286, %s289
    %p295 = scmp.eq.s32.totalorder %s21, 0
    %p296 = por %p294, %p295
    %p297 = scmp.ne.s32.totalorder %s286, %s289
    %p298 = scmp.eq.s32.totalorder %s26, 1
    %p299 = por %p297, %p298
    %p300 = scmp.ne.s32.totalorder %s289, %s290
    %p301 = scmp.eq.s32.totalorder %s26, 0
    %p302 = por %p300, %p301
    %p303 = scmp.ne.s32.totalorder %s289, %s290
    %p304 = scmp.eq.s32.totalorder %s27, 1
    %p305 = por %p303, %p304
    %p307 = scmp.ne.s32.totalorder %s290, %s306
    %p308 = scmp.eq.s32.totalorder %s27, 0
    %p309 = por %p307, %p308
    %s310 = ssub.s32 %s21, %s28
    %p311 = scmp.eq.s32.totalorder %s310, 0
    %s313 = sadd.s32 %s312, 1
    %s314 = scalar_select %p311, %s312, %s313
    %p317 = pneg %p311
    %p318 = scmp.eq.s32.totalorder %s21, 1
    %p319 = por %p317, %p318
    %p320 = scmp.ne.s32.totalorder %s312, %s315
    %p321 = scmp.eq.s32.totalorder %s21, 0
    %p322 = por %p320, %p321
    %p323 = scmp.ne.s32.totalorder %s312, %s315
    %p324 = scmp.eq.s32.totalorder %s26, 1
    %p325 = por %p323, %p324
    %p326 = scmp.ne.s32.totalorder %s315, %s316
    %p327 = scmp.eq.s32.totalorder %s26, 0
    %p328 = por %p326, %p327
    %p329 = scmp.ne.s32.totalorder %s315, %s316
    %p330 = scmp.eq.s32.totalorder %s27, 1
    %p331 = por %p329, %p330
    %p333 = scmp.ne.s32.totalorder %s316, %s332
    %p334 = scmp.eq.s32.totalorder %s27, 0
    %p335 = por %p333, %p334
    %s336 = ssub.s32 %s21, %s28
    %p337 = scmp.eq.s32.totalorder %s336, 0
    %s339 = sadd.s32 %s338, 1
    %s340 = scalar_select %p337, %s338, %s339
    %p343 = pneg %p337
    %p344 = scmp.eq.s32.totalorder %s21, 1
    %p345 = por %p343, %p344
    %p346 = scmp.ne.s32.totalorder %s338, %s341
    %p347 = scmp.eq.s32.totalorder %s21, 0
    %p348 = por %p346, %p347
    %p349 = scmp.ne.s32.totalorder %s338, %s341
    %p350 = scmp.eq.s32.totalorder %s26, 1
    %p351 = por %p349, %p350
    %p352 = scmp.ne.s32.totalorder %s341, %s342
    %p353 = scmp.eq.s32.totalorder %s26, 0
    %p354 = por %p352, %p353
    %p355 = scmp.ne.s32.totalorder %s341, %s342
    %p356 = scmp.eq.s32.totalorder %s27, 1
    %p357 = por %p355, %p356
    %p359 = scmp.ne.s32.totalorder %s342, %s358
    %p360 = scmp.eq.s32.totalorder %s27, 0
    %p361 = por %p359, %p360
    %s362 = ssub.s32 %s21, %s28
    %p363 = scmp.eq.s32.totalorder %s362, 0
    %s365 = sadd.s32 %s364, 1
    %s366 = scalar_select %p363, %s364, %s365
    %p369 = pneg %p363
    %p370 = scmp.eq.s32.totalorder %s21, 1
    %p371 = por %p369, %p370
    %p372 = scmp.ne.s32.totalorder %s364, %s367
    %p373 = scmp.eq.s32.totalorder %s21, 0
    %p374 = por %p372, %p373
    %p375 = scmp.ne.s32.totalorder %s364, %s367
    %p376 = scmp.eq.s32.totalorder %s26, 1
    %p377 = por %p375, %p376
    %p378 = scmp.ne.s32.totalorder %s367, %s368
    %p379 = scmp.eq.s32.totalorder %s26, 0
    %p380 = por %p378, %p379
    %p381 = scmp.ne.s32.totalorder %s367, %s368
    %p382 = scmp.eq.s32.totalorder %s27, 1
    %p383 = por %p381, %p382
    %p385 = scmp.ne.s32.totalorder %s368, %s384
    %p386 = scmp.eq.s32.totalorder %s27, 0
    %p387 = por %p385, %p386
    %s388 = ssub.s32 %s21, %s28
    %p389 = scmp.eq.s32.totalorder %s388, 0
    %s391 = sadd.s32 %s390, 1
    %s392 = scalar_select %p389, %s390, %s391
    %p395 = pneg %p389
    %p396 = scmp.eq.s32.totalorder %s21, 1
    %p397 = por %p395, %p396
    %p398 = scmp.ne.s32.totalorder %s390, %s393
    %p399 = scmp.eq.s32.totalorder %s21, 0
    %p400 = por %p398, %p399
    %p401 = scmp.ne.s32.totalorder %s390, %s393
    %p402 = scmp.eq.s32.totalorder %s26, 1
    %p403 = por %p401, %p402
    %p404 = scmp.ne.s32.totalorder %s393, %s394
    %p405 = scmp.eq.s32.totalorder %s26, 0
    %p406 = por %p404, %p405
    %p407 = scmp.ne.s32.totalorder %s393, %s394
    %p408 = scmp.eq.s32.totalorder %s27, 1
    %p409 = por %p407, %p408
    %p411 = scmp.ne.s32.totalorder %s394, %s410
    %p412 = scmp.eq.s32.totalorder %s27, 0
    %p413 = por %p411, %p412
    %s414 = ssub.s32 %s21, %s28
    %p415 = scmp.eq.s32.totalorder %s414, 0
    %s417 = sadd.s32 %s416, 1
    %s418 = scalar_select %p415, %s416, %s417
    %p421 = pneg %p415
    %p422 = scmp.eq.s32.totalorder %s21, 1
    %p423 = por %p421, %p422
    %p424 = scmp.ne.s32.totalorder %s416, %s419
    %p425 = scmp.eq.s32.totalorder %s21, 0
    %p426 = por %p424, %p425
    %p427 = scmp.ne.s32.totalorder %s416, %s419
    %p428 = scmp.eq.s32.totalorder %s26, 1
    %p429 = por %p427, %p428
    %p430 = scmp.ne.s32.totalorder %s419, %s420
    %p431 = scmp.eq.s32.totalorder %s26, 0
    %p432 = por %p430, %p431
    %p433 = scmp.ne.s32.totalorder %s419, %s420
    %p434 = scmp.eq.s32.totalorder %s27, 1
    %p435 = por %p433, %p434
    %p437 = scmp.ne.s32.totalorder %s420, %s436
    %p438 = scmp.eq.s32.totalorder %s27, 0
    %p439 = por %p437, %p438
    %p440 = scmp.le.s32.totalorder 1, %s21
    %p441 = scmp.lt.s32.totalorder %s21, 3
    %p442 = pnand %p440, %p441
    %p443 = pneg %p442
    // Predicated region
    $region9: #{encoder_transformer_forward.2} parent=5 // pred_check
      _
    $region10: #{encoder_transformer_forward.2} parent=5 // pred_check_branch
      %445 = sbr.rel (%p442) target = $region12
    $region11: #{encoder_transformer_forward.2} parent=5 // pred_region
      %s446 = ssub.s32 %s21, 1
      // Predicated region
      $region13: #{encoder_transformer_forward.2} parent=11 // pred_check
        %p447 = pneg %p42
      $region14: #{encoder_transformer_forward.2} parent=11 // pred_check_branch
        %449 = sbr.rel (%p447) target = $region16
      $region15: #{encoder_transformer_forward.2} parent=11 // pred_region
        _
      $region16: #{encoder_transformer_forward.2} parent=11 // pred_fallthru
        _
    $region12: #{encoder_transformer_forward.2} parent=5 // pred_fallthru
      _
    %p450 = scmp.lt.s32.totalorder %s21, 2
    // Predicated region
    $region17: #{encoder_transformer_forward.2} parent=5 // pred_check
      %p451 = pneg %p450
    $region18: #{encoder_transformer_forward.2} parent=5 // pred_check_branch
      %453 = sbr.rel (%p451) target = $region20
    $region19: #{encoder_transformer_forward.2} parent=5 // pred_region
      // Predicated region
      $region21: #{encoder_transformer_forward.2} parent=19 // pred_check
        %p454 = pneg %p62
      $region22: #{encoder_transformer_forward.2} parent=19 // pred_check_branch
        %456 = sbr.rel (%p454) target = $region24
      $region23: #{encoder_transformer_forward.2} parent=19 // pred_region
        %p457 = scmp.lt.s32.totalorder %s21, 1
        %s458 = scalar_select %p457, %s21, 1
        %s459 = smul.addr %s458, 6
        %s460 = smul.addr %s459, 8
        %s461 = scalar_lea.vmem %s1, %s460
      $region24: #{encoder_transformer_forward.2} parent=19 // pred_fallthru
        _
      // Predicated region
      $region25: #{encoder_transformer_forward.2} parent=19 // pred_check
        %p462 = pneg %p88
      $region26: #{encoder_transformer_forward.2} parent=19 // pred_check_branch
        %464 = sbr.rel (%p462) target = $region28
      $region27: #{encoder_transformer_forward.2} parent=19 // pred_region
        %p465 = scmp.lt.s32.totalorder %s21, 1
        %s466 = scalar_select %p465, %s21, 1
        %s467 = scalar_lea.vmem %s2, %s466
      $region28: #{encoder_transformer_forward.2} parent=19 // pred_fallthru
        _
      // Predicated region
      $region29: #{encoder_transformer_forward.2} parent=19 // pred_check
        %p468 = pneg %p114
      $region30: #{encoder_transformer_forward.2} parent=19 // pred_check_branch
        %470 = sbr.rel (%p468) target = $region32
      $region31: #{encoder_transformer_forward.2} parent=19 // pred_region
        %p471 = scmp.lt.s32.totalorder %s21, 1
        %s472 = scalar_select %p471, %s21, 1
        %s473 = scalar_lea.vmem %s3, %s472
      $region32: #{encoder_transformer_forward.2} parent=19 // pred_fallthru
        _
      // Predicated region
      $region33: #{encoder_transformer_forward.2} parent=19 // pred_check
        %p474 = pneg %p140
      $region34: #{encoder_transformer_forward.2} parent=19 // pred_check_branch
        %476 = sbr.rel (%p474) target = $region36
      $region35: #{encoder_transformer_forward.2} parent=19 // pred_region
        %p477 = scmp.lt.s32.totalorder %s21, 1
        %s478 = scalar_select %p477, %s21, 1
        %s479 = smul.addr %s478, 3
        %s480 = smul.addr %s479, 8
        %s481 = scalar_lea.vmem %s4, %s480
      $region36: #{encoder_transformer_forward.2} parent=19 // pred_fallthru
        _
      // Predicated region
      $region37: #{encoder_transformer_forward.2} parent=19 // pred_check
        %p482 = pneg %p166
      $region38: #{encoder_transformer_forward.2} parent=19 // pred_check_branch
        %484 = sbr.rel (%p482) target = $region40
      $region39: #{encoder_transformer_forward.2} parent=19 // pred_region
        %p485 = scmp.lt.s32.totalorder %s21, 1
        %s486 = scalar_select %p485, %s21, 1
        %s487 = smul.addr %s486, 2
        %s488 = smul.addr %s487, 8
        %s489 = scalar_lea.vmem %s5, %s488
      $region40: #{encoder_transformer_forward.2} parent=19 // pred_fallthru
        _
      // Predicated region
      $region41: #{encoder_transformer_forward.2} parent=19 // pred_check
        %p490 = pneg %p192
      $region42: #{encoder_transformer_forward.2} parent=19 // pred_check_branch
        %492 = sbr.rel (%p490) target = $region44
      $region43: #{encoder_transformer_forward.2} parent=19 // pred_region
        %p493 = scmp.lt.s32.totalorder %s21, 1
        %s494 = scalar_select %p493, %s21, 1
        %s495 = smul.addr %s494, 2
        %s496 = smul.addr %s495, 8
        %s497 = scalar_lea.vmem %s6, %s496
      $region44: #{encoder_transformer_forward.2} parent=19 // pred_fallthru
        _
      // Predicated region
      $region45: #{encoder_transformer_forward.2} parent=19 // pred_check
        %p498 = pneg %p218
      $region46: #{encoder_transformer_forward.2} parent=19 // pred_check_branch
        %500 = sbr.rel (%p498) target = $region48
      $region47: #{encoder_transformer_forward.2} parent=19 // pred_region
        %p501 = scmp.lt.s32.totalorder %s21, 1
        %s502 = scalar_select %p501, %s21, 1
        %s503 = smul.addr %s502, 2
        %s504 = scalar_lea.vmem %s7, %s503
      $region48: #{encoder_transformer_forward.2} parent=19 // pred_fallthru
        _
      // Predicated region
      $region49: #{encoder_transformer_forward.2} parent=19 // pred_check
        %p505 = pneg %p244
      $region50: #{encoder_transformer_forward.2} parent=19 // pred_check_branch
        %507 = sbr.rel (%p505) target = $region52
      $region51: #{encoder_transformer_forward.2} parent=19 // pred_region
        %p508 = scmp.lt.s32.totalorder %s21, 1
        %s509 = scalar_select %p508, %s21, 1
        %s510 = smul.addr %s509, 2
        %s511 = scalar_lea.vmem %s8, %s510
      $region52: #{encoder_transformer_forward.2} parent=19 // pred_fallthru
        _
      // Predicated region
      $region53: #{encoder_transformer_forward.2} parent=19 // pred_check
        %p512 = pneg %p270
      $region54: #{encoder_transformer_forward.2} parent=19 // pred_check_branch
        %514 = sbr.rel (%p512) target = $region56
      $region55: #{encoder_transformer_forward.2} parent=19 // pred_region
        %p515 = scmp.lt.s32.totalorder %s21, 1
        %s516 = scalar_select %p515, %s21, 1
        %s517 = smul.addr %s516, 2
        %s518 = smul.addr %s517, 8
        %s519 = scalar_lea.vmem %s9, %s518
      $region56: #{encoder_transformer_forward.2} parent=19 // pred_fallthru
        _
      // Predicated region
      $region57: #{encoder_transformer_forward.2} parent=19 // pred_check
        %p520 = pneg %p296
      $region58: #{encoder_transformer_forward.2} parent=19 // pred_check_branch
        %522 = sbr.rel (%p520) target = $region60
      $region59: #{encoder_transformer_forward.2} parent=19 // pred_region
        %p523 = scmp.lt.s32.totalorder %s21, 1
        %s524 = scalar_select %p523, %s21, 1
        %s525 = smul.addr %s524, 2
        %s526 = scalar_lea.vmem %s10, %s525
      $region60: #{encoder_transformer_forward.2} parent=19 // pred_fallthru
        _
      // Predicated region
      $region61: #{encoder_transformer_forward.2} parent=19 // pred_check
        %p527 = pneg %p322
      $region62: #{encoder_transformer_forward.2} parent=19 // pred_check_branch
        %529 = sbr.rel (%p527) target = $region64
      $region63: #{encoder_transformer_forward.2} parent=19 // pred_region
        %p530 = scmp.lt.s32.totalorder %s21, 1
        %s531 = scalar_select %p530, %s21, 1
        %s532 = smul.addr %s531, 8
        %s533 = smul.addr %s532, 8
        %s534 = scalar_lea.vmem %s11, %s533
      $region64: #{encoder_transformer_forward.2} parent=19 // pred_fallthru
        _
      // Predicated region
      $region65: #{encoder_transformer_forward.2} parent=19 // pred_check
        %p535 = pneg %p348
      $region66: #{encoder_transformer_forward.2} parent=19 // pred_check_branch
        %537 = sbr.rel (%p535) target = $region68
      $region67: #{encoder_transformer_forward.2} parent=19 // pred_region
        %p538 = scmp.lt.s32.totalorder %s21, 1
        %s539 = scalar_select %p538, %s21, 1
        %s540 = smul.addr %s539, 2
        %s541 = scalar_lea.vmem %s12, %s540
      $region68: #{encoder_transformer_forward.2} parent=19 // pred_fallthru
        _
      // Predicated region
      $region69: #{encoder_transformer_forward.2} parent=19 // pred_check
        %p542 = pneg %p374
      $region70: #{encoder_transformer_forward.2} parent=19 // pred_check_branch
        %544 = sbr.rel (%p542) target = $region72
      $region71: #{encoder_transformer_forward.2} parent=19 // pred_region
        %p545 = scmp.lt.s32.totalorder %s21, 1
        %s546 = scalar_select %p545, %s21, 1
        %s547 = smul.addr %s546, 2
        %s548 = scalar_lea.vmem %s13, %s547
      $region72: #{encoder_transformer_forward.2} parent=19 // pred_fallthru
        _
      // Predicated region
      $region73: #{encoder_transformer_forward.2} parent=19 // pred_check
        %p549 = pneg %p400
      $region74: #{encoder_transformer_forward.2} parent=19 // pred_check_branch
        %551 = sbr.rel (%p549) target = $region76
      $region75: #{encoder_transformer_forward.2} parent=19 // pred_region
        %p552 = scmp.lt.s32.totalorder %s21, 1
        %s553 = scalar_select %p552, %s21, 1
        %s554 = smul.addr %s553, 2
        %s555 = scalar_lea.vmem %s14, %s554
      $region76: #{encoder_transformer_forward.2} parent=19 // pred_fallthru
        _
    $region20: #{encoder_transformer_forward.2} parent=5 // pred_fallthru
      _
    %p556 = scmp.le.s32.totalorder 1, %s21
    %p557 = scmp.lt.s32.totalorder %s21, 3
    %p558 = pnand %p556, %p557
    %p559 = pneg %p558
    // Predicated region
    $region77: #{encoder_transformer_forward.2} parent=5 // pred_check
      _
    $region78: #{encoder_transformer_forward.2} parent=5 // pred_check_branch
      %561 = sbr.rel (%p558) target = $region80
    $region79: #{encoder_transformer_forward.2} parent=5 // pred_region
      %s562 = ssub.s32 %s21, 1
      %p563 = pneg %p42
      %p564 = pneg %p39
      %p565 = scmp.lt.s32.totalorder %s26, 1
      %s566 = scalar_select %p565, %s26, 1
      %s567 = smul.addr %s566, 6
      %s568 = smul.addr %s567, 8
      %s569 = scalar_lea.vmem %s1, %s568
      %p570 = pneg %p68
      %p571 = pneg %p65
      %p572 = scmp.lt.s32.totalorder %s26, 1
      %s573 = scalar_select %p572, %s26, 1
      %s574 = scalar_lea.vmem %s2, %s573
      %p575 = pneg %p94
      %p576 = pneg %p91
      %p577 = scmp.lt.s32.totalorder %s26, 1
      %s578 = scalar_select %p577, %s26, 1
      %s579 = scalar_lea.vmem %s3, %s578
      %p580 = pneg %p120
      %p581 = pneg %p117
      %p582 = scmp.lt.s32.totalorder %s26, 1
      %s583 = scalar_select %p582, %s26, 1
      %s584 = smul.addr %s583, 3
      %s585 = smul.addr %s584, 8
      %s586 = scalar_lea.vmem %s4, %s585
      %p587 = pneg %p146
      %p588 = pneg %p143
      %p589 = scmp.lt.s32.totalorder %s26, 1
      %s590 = scalar_select %p589, %s26, 1
      %s591 = smul.addr %s590, 2
      %s592 = smul.addr %s591, 8
      %s593 = scalar_lea.vmem %s5, %s592
      %p594 = pneg %p172
      %p595 = pneg %p169
      %p596 = scmp.lt.s32.totalorder %s26, 1
      %s597 = scalar_select %p596, %s26, 1
      %s598 = smul.addr %s597, 2
      %s599 = smul.addr %s598, 8
      %s600 = scalar_lea.vmem %s6, %s599
      %p601 = pneg %p198
      %p602 = pneg %p195
      %p603 = scmp.lt.s32.totalorder %s26, 1
      %s604 = scalar_select %p603, %s26, 1
      %s605 = smul.addr %s604, 2
      %s606 = scalar_lea.vmem %s7, %s605
      %p607 = pneg %p224
      %p608 = pneg %p221
      %p609 = scmp.lt.s32.totalorder %s26, 1
      %s610 = scalar_select %p609, %s26, 1
      %s611 = smul.addr %s610, 2
      %s612 = scalar_lea.vmem %s8, %s611
      %p613 = pneg %p250
      %p614 = pneg %p247
      %p615 = scmp.lt.s32.totalorder %s26, 1
      %s616 = scalar_select %p615, %s26, 1
      %s617 = smul.addr %s616, 2
      %s618 = smul.addr %s617, 8
      %s619 = scalar_lea.vmem %s9, %s618
      %p620 = pneg %p276
      %p621 = pneg %p273
      %p622 = scmp.lt.s32.totalorder %s26, 1
      %s623 = scalar_select %p622, %s26, 1
      %s624 = smul.addr %s623, 2
      %s625 = scalar_lea.vmem %s10, %s624
      %p626 = pneg %p302
      %p627 = pneg %p299
      %p628 = scmp.lt.s32.totalorder %s26, 1
      %s629 = scalar_select %p628, %s26, 1
      %s630 = smul.addr %s629, 8
      %s631 = smul.addr %s630, 8
      %s632 = scalar_lea.vmem %s11, %s631
      %p633 = pneg %p328
      %p634 = pneg %p325
      %p635 = scmp.lt.s32.totalorder %s26, 1
      %s636 = scalar_select %p635, %s26, 1
      %s637 = smul.addr %s636, 2
      %s638 = scalar_lea.vmem %s12, %s637
      %p639 = pneg %p354
      %p640 = pneg %p351
      %p641 = scmp.lt.s32.totalorder %s26, 1
      %s642 = scalar_select %p641, %s26, 1
      %s643 = smul.addr %s642, 2
      %s644 = scalar_lea.vmem %s13, %s643
      %p645 = pneg %p380
      %p646 = pneg %p377
      %p647 = scmp.lt.s32.totalorder %s26, 1
      %s648 = scalar_select %p647, %s26, 1
      %s649 = smul.addr %s648, 2
      %s650 = scalar_lea.vmem %s14, %s649
      %p651 = pneg %p406
      %p652 = pneg %p403
      %p653 = pneg %p432
      %p654 = pneg %p429
      %p655 = scmp.lt.s32.totalorder %s26, 1
      %s656 = scalar_select %p655, %s26, 1
      %s657 = smul.addr %s656, 2
      %s658 = scalar_lea.vmem %s15, %s657
      %p659 = scmp.lt.s32.totalorder %s26, 1
      %s660 = scalar_select %p659, %s26, 1
      %s661 = smul.addr %s660, 6
      %s662 = smul.addr %s661, 8
      %s663 = scalar_lea.vmem %s1, %s662
      %p664 = scmp.lt.s32.totalorder %s26, 1
      %s665 = scalar_select %p664, %s26, 1
      %s666 = scalar_lea.vmem %s2, %s665
      %p667 = scmp.lt.s32.totalorder %s26, 1
      %s668 = scalar_select %p667, %s26, 1
      %s669 = scalar_lea.vmem %s3, %s668
      %p670 = scmp.lt.s32.totalorder %s26, 1
      %s671 = scalar_select %p670, %s26, 1
      %s672 = smul.addr %s671, 3
      %s673 = smul.addr %s672, 8
      %s674 = scalar_lea.vmem %s4, %s673
      %p675 = scmp.lt.s32.totalorder %s26, 1
      %s676 = scalar_select %p675, %s26, 1
      %s677 = smul.addr %s676, 2
      %s678 = smul.addr %s677, 8
      %s679 = scalar_lea.vmem %s5, %s678
      %p680 = scmp.lt.s32.totalorder %s26, 1
      %s681 = scalar_select %p680, %s26, 1
      %s682 = smul.addr %s681, 2
      %s683 = smul.addr %s682, 8
      %s684 = scalar_lea.vmem %s6, %s683
      %p685 = scmp.lt.s32.totalorder %s26, 1
      %s686 = scalar_select %p685, %s26, 1
      %s687 = smul.addr %s686, 2
      %s688 = scalar_lea.vmem %s7, %s687
      %p689 = scmp.lt.s32.totalorder %s26, 1
      %s690 = scalar_select %p689, %s26, 1
      %s691 = smul.addr %s690, 2
      %s692 = scalar_lea.vmem %s8, %s691
      %p693 = scmp.lt.s32.totalorder %s26, 1
      %s694 = scalar_select %p693, %s26, 1
      %s695 = smul.addr %s694, 2
      %s696 = smul.addr %s695, 8
      %s697 = scalar_lea.vmem %s9, %s696
      %p698 = scmp.lt.s32.totalorder %s26, 1
      %s699 = scalar_select %p698, %s26, 1
      %s700 = smul.addr %s699, 2
      %s701 = scalar_lea.vmem %s10, %s700
      %p702 = scmp.lt.s32.totalorder %s26, 1
      %s703 = scalar_select %p702, %s26, 1
      %s704 = smul.addr %s703, 8
      %s705 = smul.addr %s704, 8
      %s706 = scalar_lea.vmem %s11, %s705
      %p707 = scmp.lt.s32.totalorder %s26, 1
      %s708 = scalar_select %p707, %s26, 1
      %s709 = smul.addr %s708, 2
      %s710 = scalar_lea.vmem %s12, %s709
      %p711 = scmp.lt.s32.totalorder %s26, 1
      %s712 = scalar_select %p711, %s26, 1
      %s713 = smul.addr %s712, 2
      %s714 = scalar_lea.vmem %s13, %s713
      %p715 = scmp.lt.s32.totalorder %s26, 1
      %s716 = scalar_select %p715, %s26, 1
      %s717 = smul.addr %s716, 2
      %s718 = scalar_lea.vmem %s14, %s717
      %p719 = scmp.lt.s32.totalorder %s26, 1
      %s720 = scalar_select %p719, %s26, 1
      %s721 = smul.addr %s720, 2
      %s722 = scalar_lea.vmem %s15, %s721
      %v723 = vld [vmem:[%s663] sm:$0xff]
      %v724 = vld [vmem:[%s663 + $0x8] sm:$0xff]
      %v725 = vld [vmem:[%s663 + $0x10] sm:$0xff]
      %v726 = vld [vmem:[%s663 + $0x18] sm:$0xff]
      %v727 = vld [vmem:[%s663 + $0x20] sm:$0xff]
      %v728 = vld [vmem:[%s663 + $0x28] sm:$0xff]
      %v729 = vld [vmem:[%s666] sm:$0x1]
      %v730 = vld [vmem:[%s674] sm:$0xff]
      %v731 = vld [vmem:[%s674 + $0x8] sm:$0xff]
      %v732 = vld [vmem:[%s674 + $0x10] sm:$0x1]
      %v733 = vld [vmem:[%s0] sm:$0xff]
      %v734 = vld [vmem:[%s0 + $0x8] sm:$0xff]
      %v736 = vlaneseq
      %v737 = vshrl.u32 %v736, 7
      %v738 = vsub.s32 0, %v737
      %v739 = vrot.slane %v729, %v738
      %vm741 = vcmask 392192
      %v743 = vsel %vm741, %v733, 0
      %v746 = vsel %vm741, %v734, 0
      %748 = vmatprep.subr.mxu0 0.0
      %749 = vmatpush1.msra.mxu0 %v723
      %750 = vmatprep.subr.mxu0 0.0
      %751 = vmatpush1.msra.mxu0 %v724
      %752 = vmatprep.subr.mxu0 0.0
      %753 = vmatpush1.msra.mxu0 %v725
      %754 = vmatprep.subr.mxu0 0.0
      %755 = vmatpush1.msra.mxu0 %v726
      %756 = vmatprep.subr.mxu0 0.0
      %757 = vmatpush1.msra.mxu0 %v727
      %758 = vmatprep.subr.mxu0 0.0
      %759 = vmatpush1.msra.mxu0 %v728
      %760 = vmatprep.subr.mxu0 0.0
      %761 = vmatpush1.msra.mxu0 0.0
      %762 = vmatprep.subr.mxu0 0.0
      %763 = vmatpush1.msra.mxu0 0.0
      %764 = vmatprep.subr.mxu0 0.0
      %765 = vmatpush1.msra.mxu0 0.0
      %766 = vmatprep.subr.mxu0 0.0
      %767 = vmatpush1.msra.mxu0 0.0
      %768 = vmatprep.subr.mxu0 0.0
      %769 = vmatpush1.msra.mxu0 0.0
      %770 = vmatprep.subr.mxu0 0.0
      %771 = vmatpush1.msra.mxu0 0.0
      %772 = vmatprep.subr.mxu0 0.0
      %773 = vmatpush1.msra.mxu0 0.0
      %774 = vmatprep.subr.mxu0 0.0
      %775 = vmatpush1.msra.mxu0 0.0
      %776 = vmatprep.subr.mxu0 0.0
      %777 = vmatpush1.msra.mxu0 0.0
      %778 = vmatprep.subr.mxu0 0.0
      %779 = vmatpush1.msra.mxu0 0.0
      %780 = vmatprep.subr.mxu0 0.0
      %781 = vmatpush1.msra.mxu0 0.0
      %782 = vmatprep.subr.mxu0 0.0
      %783 = vmatpush1.msra.mxu0 0.0
      %784 = vmatprep.subr.mxu0 0.0
      %785 = vmatpush1.msra.mxu0 0.0
      %786 = vmatprep.subr.mxu0 0.0
      %787 = vmatpush1.msra.mxu0 0.0
      %788 = vmatprep.subr.mxu0 0.0
      %789 = vmatpush1.msra.mxu0 0.0
      %790 = vmatprep.subr.mxu0 0.0
      %791 = vmatpush1.msra.mxu0 0.0
      %792 = vmatprep.subr.mxu0 0.0
      %793 = vmatpush1.msra.mxu0 0.0
      %794 = vmatprep.subr.mxu0 0.0
      %795 = vmatpush1.msra.mxu0 0.0
      %796 = vmatprep.subr.mxu0 0.0
      %797 = vmatpush1.msra.mxu0 0.0
      %798 = vmatprep.subr.mxu0 0.0
      %799 = vmatpush1.msra.mxu0 0.0
      %800 = vmatprep.subr.mxu0 0.0
      %801 = vmatpush1.msra.mxu0 0.0
      %802 = vmatprep.subr.mxu0 0.0
      %803 = vmatpush1.msra.mxu0 0.0
      %804 = vmatprep.subr.mxu0 0.0
      %805 = vmatpush1.msra.mxu0 0.0
      %806 = vmatprep.subr.mxu0 0.0
      %807 = vmatpush1.msra.mxu0 0.0
      %808 = vmatprep.subr.mxu0 0.0
      %809 = vmatpush1.msra.mxu0 0.0
      %810 = vmatprep.subr.mxu0 0.0
      %811 = vmatpush1.msra.mxu0 0.0
      %812 = vmatprep.mubr.f32.mxu0 0.0
      %813 = vmatmul.mubr.f32.gmra.mrb[0].mxu0 %v743
      %v814 = vpop.f32.mrb[0].mxu0
      %v815 = vadd.f32 %v739, %v814
      %v816 = vpop.f32.mrb[0].mxu0
      %817 = vmatprep.mubr.f32.mxu0 0.0
      %818 = vmatmul.mubr.f32.gmra.mrb[0].mxu0 %v746
      %v819 = vpop.f32.mrb[0].mxu0
      %v820 = vadd.f32 %v739, %v819
      %v821 = vpop.f32.mrb[0].mxu0
      %822 = vdwg.mxu0
      %v823 = vld [vmem:[%s669] sm:$0x1]
      %vm824 = vcmask 57344
      %825 = vst.msk [vmem:[#allocation2] sm:$0x1] %vm824, %v823
      %vm826 = vcmask 64512
      %827 = vst.msk [vmem:[#allocation2 + $0x1] sm:$0xff] %vm826, %v815
      %828 = vst.msk [vmem:[#allocation2 + $0x9] sm:$0xff] %vm826, %v820
      %v829 = vld [vmem:[#allocation2] sm:$0xff]
      %v830 = vld [vmem:[#allocation2 + $0x8] sm:$0xff]
      %v831 = vld [vmem:[#allocation2 + $0x10] sm:$0x1]
      %v832 = vadd.f32 %v829, %v730
      %v833 = vadd.f32 %v830, %v731
      %v834 = vadd.f32 %v831, %v732
      %v835 = vld [vmem:[%s679] sm:$0xff]
      %v837 = vsel %vm826, %v832, 0
      %v840 = vsel %vm826, %v833, 0
      %v843 = vsel %vm826, %v834, 0
      %845 = vmatprep.subr.mxu0 0.0
      %846 = vmatpush1.msra.mxu0 %v835
      %847 = vmatprep.subr.mxu0 0.0
      %848 = vmatpush1.msra.mxu0 0.0
      %849 = vmatprep.subr.mxu0 0.0
      %850 = vmatpush1.msra.mxu0 0.0
      %851 = vmatprep.subr.mxu0 0.0
      %852 = vmatpush1.msra.mxu0 0.0
      %853 = vmatprep.subr.mxu0 0.0
      %854 = vmatpush1.msra.mxu0 0.0
      %855 = vmatprep.subr.mxu0 0.0
      %856 = vmatpush1.msra.mxu0 0.0
      %857 = vmatprep.subr.mxu0 0.0
      %858 = vmatpush1.msra.mxu0 0.0
      %859 = vmatprep.subr.mxu0 0.0
      %860 = vmatpush1.msra.mxu0 0.0
      %861 = vmatprep.subr.mxu0 0.0
      %862 = vmatpush1.msra.mxu0 0.0
      %863 = vmatprep.subr.mxu0 0.0
      %864 = vmatpush1.msra.mxu0 0.0
      %865 = vmatprep.subr.mxu0 0.0
      %866 = vmatpush1.msra.mxu0 0.0
      %867 = vmatprep.subr.mxu0 0.0
      %868 = vmatpush1.msra.mxu0 0.0
      %869 = vmatprep.subr.mxu0 0.0
      %870 = vmatpush1.msra.mxu0 0.0
      %871 = vmatprep.subr.mxu0 0.0
      %872 = vmatpush1.msra.mxu0 0.0
      %873 = vmatprep.subr.mxu0 0.0
      %874 = vmatpush1.msra.mxu0 0.0
      %875 = vmatprep.subr.mxu0 0.0
      %876 = vmatpush1.msra.mxu0 0.0
      %877 = vmatprep.subr.mxu0 0.0
      %878 = vmatpush1.msra.mxu0 0.0
      %879 = vmatprep.subr.mxu0 0.0
      %880 = vmatpush1.msra.mxu0 0.0
      %881 = vmatprep.subr.mxu0 0.0
      %882 = vmatpush1.msra.mxu0 0.0
      %883 = vmatprep.subr.mxu0 0.0
      %884 = vmatpush1.msra.mxu0 0.0
      %885 = vmatprep.subr.mxu0 0.0
      %886 = vmatpush1.msra.mxu0 0.0
      %887 = vmatprep.subr.mxu0 0.0
      %888 = vmatpush1.msra.mxu0 0.0
      %889 = vmatprep.subr.mxu0 0.0
      %890 = vmatpush1.msra.mxu0 0.0
      %891 = vmatprep.subr.mxu0 0.0
      %892 = vmatpush1.msra.mxu0 0.0
      %893 = vmatprep.subr.mxu0 0.0
      %894 = vmatpush1.msra.mxu0 0.0
      %895 = vmatprep.subr.mxu0 0.0
      %896 = vmatpush1.msra.mxu0 0.0
      %897 = vmatprep.subr.mxu0 0.0
      %898 = vmatpush1.msra.mxu0 0.0
      %899 = vmatprep.subr.mxu0 0.0
      %900 = vmatpush1.msra.mxu0 0.0
      %901 = vmatprep.subr.mxu0 0.0
      %902 = vmatpush1.msra.mxu0 0.0
      %903 = vmatprep.subr.mxu0 0.0
      %904 = vmatpush1.msra.mxu0 0.0
      %905 = vmatprep.subr.mxu0 0.0
      %906 = vmatpush1.msra.mxu0 0.0
      %907 = vmatprep.subr.mxu0 0.0
      %908 = vmatpush1.msra.mxu0 0.0
      %909 = vmatprep.mubr.f32.mxu0 0.0
      %910 = vmatmul.mubr.f32.gmra.mrb[0].mxu0 %v837
      %v911 = vpop.f32.mrb[0].mxu0
      %v912 = vadd.f32 0.0, %v911
      %v913 = vpop.f32.mrb[0].mxu0
      %914 = vmatprep.mubr.f32.mxu0 0.0
      %915 = vmatmul.mubr.f32.gmra.mrb[0].mxu0 %v840
      %v916 = vpop.f32.mrb[0].mxu0
      %v917 = vadd.f32 0.0, %v916
      %v918 = vpop.f32.mrb[0].mxu0
      %919 = vmatprep.mubr.f32.mxu0 0.0
      %920 = vmatmul.mubr.f32.gmra.mrb[0].mxu0 %v843
      %v921 = vpop.f32.mrb[0].mxu0
      %v922 = vadd.f32 0.0, %v921
      %v923 = vpop.f32.mrb[0].mxu0
      %924 = vdwg.mxu0
      %vm925 = vcmask 195584
      %926 = vst.msk [vmem:[#allocation3] sm:$0xff] %vm925, %v912
      %927 = vst.msk [vmem:[#allocation3 + $0x8] sm:$0xff] %vm925, %v917
      %vm928 = vcmask 188416
      %929 = vst.msk [vmem:[#allocation3 + $0x10] sm:$0x1] %vm928, %v922
      %v930 = vld [vmem:[#allocation3] sm:$0xff]
      %v931 = vld [vmem:[#allocation3 + $0x8] sm:$0xff]
      %v932 = vld [vmem:[#allocation3 + $0x10] sm:$0x1]
      %936 = vrot.lane.b32.xlu0 %v930, 120
      %v937 = vpop.permute.xlu0 %936
      %938 = vrot.lane.b32.xlu0 %v931, 120
      %v939 = vpop.permute.xlu0 %938
      %940 = vrot.lane.b32.xlu0 %v932, 120
      %v941 = vpop.permute.xlu0 %940
      %vm942 = vcmask 31744
      %v943 = vsel %vm942, %v930, 0
      %v945 = vsel %vm942, %v931, 0
      %v947 = vsel %vm942, %v932, 0
      %v949 = vsel %vm942, %v937, 0
      %v951 = vsel %vm942, %v939, 0
      %v953 = vsel %vm942, %v941, 0
      %955 = vmatprep.subr.mxu0 0.0
      %956 = vmatpush1.xpose.msra.mxu0 %v949
      %957 = vmatprep.subr.mxu0 0.0
      %958 = vmatpush1.xpose.msra.mxu0 %v951
      %959 = vmatprep.subr.mxu0 0.0
      %960 = vmatpush1.xpose.msra.mxu0 %v953
      %961 = vmatprep.subr.mxu0 0.0
      %962 = vmatpush1.xpose.msra.mxu0 0.0
      %963 = vmatprep.subr.mxu0 0.0
      %964 = vmatpush1.xpose.msra.mxu0 0.0
      %965 = vmatprep.subr.mxu0 0.0
      %966 = vmatpush1.xpose.msra.mxu0 0.0
      %967 = vmatprep.subr.mxu0 0.0
      %968 = vmatpush1.xpose.msra.mxu0 0.0
      %969 = vmatprep.subr.mxu0 0.0
      %970 = vmatpush1.xpose.msra.mxu0 0.0
      %971 = vmatprep.subr.mxu0 0.0
      %972 = vmatpush1.xpose.msra.mxu0 0.0
      %973 = vmatprep.subr.mxu0 0.0
      %974 = vmatpush1.xpose.msra.mxu0 0.0
      %975 = vmatprep.subr.mxu0 0.0
      %976 = vmatpush1.xpose.msra.mxu0 0.0
      %977 = vmatprep.subr.mxu0 0.0
      %978 = vmatpush1.xpose.msra.mxu0 0.0
      %979 = vmatprep.subr.mxu0 0.0
      %980 = vmatpush1.xpose.msra.mxu0 0.0
      %981 = vmatprep.subr.mxu0 0.0
      %982 = vmatpush1.xpose.msra.mxu0 0.0
      %983 = vmatprep.subr.mxu0 0.0
      %984 = vmatpush1.xpose.msra.mxu0 0.0
      %985 = vmatprep.subr.mxu0 0.0
      %986 = vmatpush1.xpose.msra.mxu0 0.0
      %987 = vmatprep.subr.mxu0 0.0
      %988 = vmatpush1.xpose.msra.mxu0 0.0
      %989 = vmatprep.subr.mxu0 0.0
      %990 = vmatpush1.xpose.msra.mxu0 0.0
      %991 = vmatprep.subr.mxu0 0.0
      %992 = vmatpush1.xpose.msra.mxu0 0.0
      %993 = vmatprep.subr.mxu0 0.0
      %994 = vmatpush1.xpose.msra.mxu0 0.0
      %995 = vmatprep.subr.mxu0 0.0
      %996 = vmatpush1.xpose.msra.mxu0 0.0
      %997 = vmatprep.subr.mxu0 0.0
      %998 = vmatpush1.xpose.msra.mxu0 0.0
      %999 = vmatprep.subr.mxu0 0.0
      %1000 = vmatpush1.xpose.msra.mxu0 0.0
      %1001 = vmatprep.subr.mxu0 0.0
      %1002 = vmatpush1.xpose.msra.mxu0 0.0
      %1003 = vmatprep.subr.mxu0 0.0
      %1004 = vmatpush1.xpose.msra.mxu0 0.0
      %1005 = vmatprep.subr.mxu0 0.0
      %1006 = vmatpush1.xpose.msra.mxu0 0.0
      %1007 = vmatprep.subr.mxu0 0.0
      %1008 = vmatpush1.xpose.msra.mxu0 0.0
      %1009 = vmatprep.subr.mxu0 0.0
      %1010 = vmatpush1.xpose.msra.mxu0 0.0
      %1011 = vmatprep.subr.mxu0 0.0
      %1012 = vmatpush1.xpose.msra.mxu0 0.0
      %1013 = vmatprep.subr.mxu0 0.0
      %1014 = vmatpush1.xpose.msra.mxu0 0.0
      %1015 = vmatprep.subr.mxu0 0.0
      %1016 = vmatpush1.xpose.msra.mxu0 0.0
      %1017 = vmatprep.subr.mxu0 0.0
      %1018 = vmatpush1.xpose.msra.mxu0 0.0
      %1019 = vmatprep.mubr.f32.mxu0 0.0
      %1020 = vmatmul.mubr.f32.gmra.mrb[0].mxu0 %v943
      %v1021 = vpop.f32.mrb[0].mxu0
      %v1022 = vadd.f32 0.0, %v1021
      %v1023 = vpop.f32.mrb[0].mxu0
      %1024 = vmatprep.mubr.f32.mxu0 0.0
      %1025 = vmatmul.mubr.f32.gmra.mrb[0].mxu0 %v945
      %v1026 = vpop.f32.mrb[0].mxu0
      %v1027 = vadd.f32 0.0, %v1026
      %v1028 = vpop.f32.mrb[0].mxu0
      %1029 = vmatprep.mubr.f32.mxu0 0.0
      %1030 = vmatmul.mubr.f32.gmra.mrb[0].mxu0 %v947
      %v1031 = vpop.f32.mrb[0].mxu0
      %v1032 = vadd.f32 0.0, %v1031
      %v1033 = vpop.f32.mrb[0].mxu0
      %1034 = vdwg.mxu0
      %v1035 = vmul.f32 %v1022, 0.5
      %v1036 = vmul.f32 %v1027, 0.5
      %v1037 = vmul.f32 %v1032, 0.5
      %vm1038 = vcmask 138240
      %v1039 = vsel %vm1038, %v1035, -inf
      %1040 = vmax.xlane.f32.xlu0 %v1039
      %v1041 = vpop.xlane.xlu0 %1040
      %v1042 = vsel %vm1038, %v1036, -inf
      %1043 = vmax.xlane.f32.xlu0 %v1042
      %v1044 = vpop.xlane.xlu0 %1043
      %vm1045 = vcmask 131072
      %v1046 = vsel %vm1045, %v1037, -inf
      %1047 = vmax.xlane.f32.xlu0 %v1046
      %v1048 = vpop.xlane.xlu0 %1047
      %v1049 = vsub.f32 %v1035, %v1041
      %v1050 = vsub.f32 %v1036, %v1044
      %v1051 = vsub.f32 %v1037, %v1048
      %v1052 = vmul.f32 %v1049, 1.442695
      %v1053 = vpow.pop %v1052
      %v1054 = vmul.f32 %v1050, 1.442695
      %v1055 = vpow.pop %v1054
      %v1056 = vmul.f32 %v1051, 1.442695
      %v1057 = vpow.pop %v1056
      %v1058 = vsel %vm1038, %v1053, 0.0
      %1059 = vadd.xlane.f32.xlu0 %v1058
      %v1060 = vpop.xlane.xlu0 %1059
      %v1061 = vsel %vm1038, %v1055, 0.0
      %1062 = vadd.xlane.f32.xlu0 %v1061
      %v1063 = vpop.xlane.xlu0 %1062
      %v1064 = vsel %vm1045, %v1057, 0.0
      %1065 = vadd.xlane.f32.xlu0 %v1064
      %v1066 = vpop.xlane.xlu0 %1065
      %v1067 = vrcp.pop %v1060
      %v1068 = vrcp.pop %v1063
      %v1069 = vrcp.pop %v1066
      %v1070 = vmul.f32 %v1053, %v1067
      %v1071 = vmul.f32 %v1055, %v1068
      %v1072 = vmul.f32 %v1057, %v1069
      %1073 = vrot.lane.b32.xlu0 %v930, 112
      %v1074 = vpop.permute.xlu0 %1073
      %1075 = vrot.lane.b32.xlu0 %v931, 112
      %v1076 = vpop.permute.xlu0 %1075
      %1077 = vrot.lane.b32.xlu0 %v932, 112
      %v1078 = vpop.permute.xlu0 %1077
      %v1082 = vsel %vm1038, %v1070, 0
      %v1085 = vsel %vm1038, %v1071, 0
      %v1088 = vsel %vm1038, %v1072, 0
      %vm1090 = vcmask 1040384
      %v1091 = vsel %vm1090, %v1078, 0
      %1093 = vmatprep.subr.mxu0 0.0
      %1094 = vmatpush1.msra.mxu0 %v1074
      %1095 = vmatprep.subr.mxu0 0.0
      %1096 = vmatpush1.msra.mxu0 %v1076
      %1097 = vmatprep.subr.mxu0 0.0
      %1098 = vmatpush1.msra.mxu0 %v1091
      %1099 = vmatprep.subr.mxu0 0.0
      %1100 = vmatpush1.msra.mxu0 0.0
      %1101 = vmatprep.subr.mxu0 0.0
      %1102 = vmatpush1.msra.mxu0 0.0
      %1103 = vmatprep.subr.mxu0 0.0
      %1104 = vmatpush1.msra.mxu0 0.0
      %1105 = vmatprep.subr.mxu0 0.0
      %1106 = vmatpush1.msra.mxu0 0.0
      %1107 = vmatprep.subr.mxu0 0.0
      %1108 = vmatpush1.msra.mxu0 0.0
      %1109 = vmatprep.subr.mxu0 0.0
      %1110 = vmatpush1.msra.mxu0 0.0
      %1111 = vmatprep.subr.mxu0 0.0
      %1112 = vmatpush1.msra.mxu0 0.0
      %1113 = vmatprep.subr.mxu0 0.0
      %1114 = vmatpush1.msra.mxu0 0.0
      %1115 = vmatprep.subr.mxu0 0.0
      %1116 = vmatpush1.msra.mxu0 0.0
      %1117 = vmatprep.subr.mxu0 0.0
      %1118 = vmatpush1.msra.mxu0 0.0
      %1119 = vmatprep.subr.mxu0 0.0
      %1120 = vmatpush1.msra.mxu0 0.0
      %1121 = vmatprep.subr.mxu0 0.0
      %1122 = vmatpush1.msra.mxu0 0.0
      %1123 = vmatprep.subr.mxu0 0.0
      %1124 = vmatpush1.msra.mxu0 0.0
      %1125 = vmatprep.subr.mxu0 0.0
      %1126 = vmatpush1.msra.mxu0 0.0
      %1127 = vmatprep.subr.mxu0 0.0
      %1128 = vmatpush1.msra.mxu0 0.0
      %1129 = vmatprep.subr.mxu0 0.0
      %1130 = vmatpush1.msra.mxu0 0.0
      %1131 = vmatprep.subr.mxu0 0.0
      %1132 = vmatpush1.msra.mxu0 0.0
      %1133 = vmatprep.subr.mxu0 0.0
      %1134 = vmatpush1.msra.mxu0 0.0
      %1135 = vmatprep.subr.mxu0 0.0
      %1136 = vmatpush1.msra.mxu0 0.0
      %1137 = vmatprep.subr.mxu0 0.0
      %1138 = vmatpush1.msra.mxu0 0.0
      %1139 = vmatprep.subr.mxu0 0.0
      %1140 = vmatpush1.msra.mxu0 0.0
      %1141 = vmatprep.subr.mxu0 0.0
      %1142 = vmatpush1.msra.mxu0 0.0
      %1143 = vmatprep.subr.mxu0 0.0
      %1144 = vmatpush1.msra.mxu0 0.0
      %1145 = vmatprep.subr.mxu0 0.0
      %1146 = vmatpush1.msra.mxu0 0.0
      %1147 = vmatprep.subr.mxu0 0.0
      %1148 = vmatpush1.msra.mxu0 0.0
      %1149 = vmatprep.subr.mxu0 0.0
      %1150 = vmatpush1.msra.mxu0 0.0
      %1151 = vmatprep.subr.mxu0 0.0
      %1152 = vmatpush1.msra.mxu0 0.0
      %1153 = vmatprep.subr.mxu0 0.0
      %1154 = vmatpush1.msra.mxu0 0.0
      %1155 = vmatprep.subr.mxu0 0.0
      %1156 = vmatpush1.msra.mxu0 0.0
      %1157 = vmatprep.mubr.f32.mxu0 0.0
      %1158 = vmatmul.mubr.f32.gmra.mrb[0].mxu0 %v1082
      %v1159 = vpop.f32.mrb[0].mxu0
      %v1160 = vadd.f32 0.0, %v1159
      %v1161 = vpop.f32.mrb[0].mxu0
      %1162 = vmatprep.mubr.f32.mxu0 0.0
      %1163 = vmatmul.mubr.f32.gmra.mrb[0].mxu0 %v1085
      %v1164 = vpop.f32.mrb[0].mxu0
      %v1165 = vadd.f32 0.0, %v1164
      %v1166 = vpop.f32.mrb[0].mxu0
      %1167 = vmatprep.mubr.f32.mxu0 0.0
      %1168 = vmatmul.mubr.f32.gmra.mrb[0].mxu0 %v1088
      %v1169 = vpop.f32.mrb[0].mxu0
      %v1170 = vadd.f32 0.0, %v1169
      %v1171 = vpop.f32.mrb[0].mxu0
      %1172 = vdwg.mxu0
      %1173 = vst.msk [vmem:[#allocation4] sm:$0xff] %vm942, %v1160
      %1174 = vst.msk [vmem:[#allocation4 + $0x8] sm:$0xff] %vm942, %v1165
      %vm1175 = vcmask 24576
      %1176 = vst.msk [vmem:[#allocation4 + $0x10] sm:$0x1] %vm1175, %v1170
      %v1177 = vld [vmem:[#allocation3] sm:$0xff]
      %v1178 = vld [vmem:[#allocation3 + $0x8] sm:$0xff]
      %v1179 = vld [vmem:[#allocation3 + $0x10] sm:$0x1]
      %1183 = vrot.lane.b32.xlu0 %v1177, 124
      %v1184 = vpop.permute.xlu0 %1183
      %1185 = vrot.lane.b32.xlu0 %v1178, 124
      %v1186 = vpop.permute.xlu0 %1185
      %1187 = vrot.lane.b32.xlu0 %v1179, 124
      %v1188 = vpop.permute.xlu0 %1187
      %1189 = vrot.lane.b32.xlu0 %v1177, 116
      %v1190 = vpop.permute.xlu0 %1189
      %1191 = vrot.lane.b32.xlu0 %v1178, 116
      %v1192 = vpop.permute.xlu0 %1191
      %1193 = vrot.lane.b32.xlu0 %v1179, 116
      %v1194 = vpop.permute.xlu0 %1193
      %v1195 = vsel %vm942, %v1184, 0
      %v1197 = vsel %vm942, %v1186, 0
      %v1199 = vsel %vm942, %v1188, 0
      %v1201 = vsel %vm942, %v1190, 0
      %v1203 = vsel %vm942, %v1192, 0
      %v1205 = vsel %vm942, %v1194, 0
      %1207 = vmatprep.subr.mxu0 0.0
      %1208 = vmatpush1.xpose.msra.mxu0 %v1201
      %1209 = vmatprep.subr.mxu0 0.0
      %1210 = vmatpush1.xpose.msra.mxu0 %v1203
      %1211 = vmatprep.subr.mxu0 0.0
      %1212 = vmatpush1.xpose.msra.mxu0 %v1205
      %1213 = vmatprep.subr.mxu0 0.0
      %1214 = vmatpush1.xpose.msra.mxu0 0.0
      %1215 = vmatprep.subr.mxu0 0.0
      %1216 = vmatpush1.xpose.msra.mxu0 0.0
      %1217 = vmatprep.subr.mxu0 0.0
      %1218 = vmatpush1.xpose.msra.mxu0 0.0
      %1219 = vmatprep.subr.mxu0 0.0
      %1220 = vmatpush1.xpose.msra.mxu0 0.0
      %1221 = vmatprep.subr.mxu0 0.0
      %1222 = vmatpush1.xpose.msra.mxu0 0.0
      %1223 = vmatprep.subr.mxu0 0.0
      %1224 = vmatpush1.xpose.msra.mxu0 0.0
      %1225 = vmatprep.subr.mxu0 0.0
      %1226 = vmatpush1.xpose.msra.mxu0 0.0
      %1227 = vmatprep.subr.mxu0 0.0
      %1228 = vmatpush1.xpose.msra.mxu0 0.0
      %1229 = vmatprep.subr.mxu0 0.0
      %1230 = vmatpush1.xpose.msra.mxu0 0.0
      %1231 = vmatprep.subr.mxu0 0.0
      %1232 = vmatpush1.xpose.msra.mxu0 0.0
      %1233 = vmatprep.subr.mxu0 0.0
      %1234 = vmatpush1.xpose.msra.mxu0 0.0
      %1235 = vmatprep.subr.mxu0 0.0
      %1236 = vmatpush1.xpose.msra.mxu0 0.0
      %1237 = vmatprep.subr.mxu0 0.0
      %1238 = vmatpush1.xpose.msra.mxu0 0.0
      %1239 = vmatprep.subr.mxu0 0.0
      %1240 = vmatpush1.xpose.msra.mxu0 0.0
      %1241 = vmatprep.subr.mxu0 0.0
      %1242 = vmatpush1.xpose.msra.mxu0 0.0
      %1243 = vmatprep.subr.mxu0 0.0
      %1244 = vmatpush1.xpose.msra.mxu0 0.0
      %1245 = vmatprep.subr.mxu0 0.0
      %1246 = vmatpush1.xpose.msra.mxu0 0.0
      %1247 = vmatprep.subr.mxu0 0.0
      %1248 = vmatpush1.xpose.msra.mxu0 0.0
      %1249 = vmatprep.subr.mxu0 0.0
      %1250 = vmatpush1.xpose.msra.mxu0 0.0
      %1251 = vmatprep.subr.mxu0 0.0
      %1252 = vmatpush1.xpose.msra.mxu0 0.0
      %1253 = vmatprep.subr.mxu0 0.0
      %1254 = vmatpush1.xpose.msra.mxu0 0.0
      %1255 = vmatprep.subr.mxu0 0.0
      %1256 = vmatpush1.xpose.msra.mxu0 0.0
      %1257 = vmatprep.subr.mxu0 0.0
      %1258 = vmatpush1.xpose.msra.mxu0 0.0
      %1259 = vmatprep.subr.mxu0 0.0
      %1260 = vmatpush1.xpose.msra.mxu0 0.0
      %1261 = vmatprep.subr.mxu0 0.0
      %1262 = vmatpush1.xpose.msra.mxu0 0.0
      %1263 = vmatprep.subr.mxu0 0.0
      %1264 = vmatpush1.xpose.msra.mxu0 0.0
      %1265 = vmatprep.subr.mxu0 0.0
      %1266 = vmatpush1.xpose.msra.mxu0 0.0
      %1267 = vmatprep.subr.mxu0 0.0
      %1268 = vmatpush1.xpose.msra.mxu0 0.0
      %1269 = vmatprep.subr.mxu0 0.0
      %1270 = vmatpush1.xpose.msra.mxu0 0.0
      %1271 = vmatprep.mubr.f32.mxu0 0.0
      %1272 = vmatmul.mubr.f32.gmra.mrb[0].mxu0 %v1195
      %v1273 = vpop.f32.mrb[0].mxu0
      %v1274 = vadd.f32 0.0, %v1273
      %v1275 = vpop.f32.mrb[0].mxu0
      %1276 = vmatprep.mubr.f32.mxu0 0.0
      %1277 = vmatmul.mubr.f32.gmra.mrb[0].mxu0 %v1197
      %v1278 = vpop.f32.mrb[0].mxu0
      %v1279 = vadd.f32 0.0, %v1278
      %v1280 = vpop.f32.mrb[0].mxu0
      %1281 = vmatprep.mubr.f32.mxu0 0.0
      %1282 = vmatmul.mubr.f32.gmra.mrb[0].mxu0 %v1199
      %v1283 = vpop.f32.mrb[0].mxu0
      %v1284 = vadd.f32 0.0, %v1283
      %v1285 = vpop.f32.mrb[0].mxu0
      %1286 = vdwg.mxu0
      %v1287 = vmul.f32 %v1274, 0.5
      %v1288 = vmul.f32 %v1279, 0.5
      %v1289 = vmul.f32 %v1284, 0.5
      %v1290 = vsel %vm1038, %v1287, -inf
      %1291 = vmax.xlane.f32.xlu0 %v1290
      %v1292 = vpop.xlane.xlu0 %1291
      %v1293 = vsel %vm1038, %v1288, -inf
      %1294 = vmax.xlane.f32.xlu0 %v1293
      %v1295 = vpop.xlane.xlu0 %1294
      %v1296 = vsel %vm1045, %v1289, -inf
      %1297 = vmax.xlane.f32.xlu0 %v1296
      %v1298 = vpop.xlane.xlu0 %1297
      %v1299 = vsub.f32 %v1287, %v1292
      %v1300 = vsub.f32 %v1288, %v1295
      %v1301 = vsub.f32 %v1289, %v1298
      %v1302 = vmul.f32 %v1299, 1.442695
      %v1303 = vpow.pop %v1302
      %v1304 = vmul.f32 %v1300, 1.442695
      %v1305 = vpow.pop %v1304
      %v1306 = vmul.f32 %v1301, 1.442695
      %v1307 = vpow.pop %v1306
      %v1308 = vsel %vm1038, %v1303, 0.0
      %1309 = vadd.xlane.f32.xlu0 %v1308
      %v1310 = vpop.xlane.xlu0 %1309
      %v1311 = vsel %vm1038, %v1305, 0.0
      %1312 = vadd.xlane.f32.xlu0 %v1311
      %v1313 = vpop.xlane.xlu0 %1312
      %v1314 = vsel %vm1045, %v1307, 0.0
      %1315 = vadd.xlane.f32.xlu0 %v1314
      %v1316 = vpop.xlane.xlu0 %1315
      %v1317 = vrcp.pop %v1310
      %v1318 = vrcp.pop %v1313
      %v1319 = vrcp.pop %v1316
      %v1320 = vmul.f32 %v1303, %v1317
      %v1321 = vmul.f32 %v1305, %v1318
      %v1322 = vmul.f32 %v1307, %v1319
      %1323 = vrot.lane.b32.xlu0 %v1177, 108
      %v1324 = vpop.permute.xlu0 %1323
      %1325 = vrot.lane.b32.xlu0 %v1178, 108
      %v1326 = vpop.permute.xlu0 %1325
      %1327 = vrot.lane.b32.xlu0 %v1179, 108
      %v1328 = vpop.permute.xlu0 %1327
      %v1332 = vsel %vm1038, %v1320, 0
      %v1335 = vsel %vm1038, %v1321, 0
      %v1338 = vsel %vm1038, %v1322, 0
      %v1340 = vsel %vm1090, %v1328, 0
      %1342 = vmatprep.subr.mxu0 0.0
      %1343 = vmatpush1.msra.mxu0 %v1324
      %1344 = vmatprep.subr.mxu0 0.0
      %1345 = vmatpush1.msra.mxu0 %v1326
      %1346 = vmatprep.subr.mxu0 0.0
      %1347 = vmatpush1.msra.mxu0 %v1340
      %1348 = vmatprep.subr.mxu0 0.0
      %1349 = vmatpush1.msra.mxu0 0.0
      %1350 = vmatprep.subr.mxu0 0.0
      %1351 = vmatpush1.msra.mxu0 0.0
      %1352 = vmatprep.subr.mxu0 0.0
      %1353 = vmatpush1.msra.mxu0 0.0
      %1354 = vmatprep.subr.mxu0 0.0
      %1355 = vmatpush1.msra.mxu0 0.0
      %1356 = vmatprep.subr.mxu0 0.0
      %1357 = vmatpush1.msra.mxu0 0.0
      %1358 = vmatprep.subr.mxu0 0.0
      %1359 = vmatpush1.msra.mxu0 0.0
      %1360 = vmatprep.subr.mxu0 0.0
      %1361 = vmatpush1.msra.mxu0 0.0
      %1362 = vmatprep.subr.mxu0 0.0
      %1363 = vmatpush1.msra.mxu0 0.0
      %1364 = vmatprep.subr.mxu0 0.0
      %1365 = vmatpush1.msra.mxu0 0.0
      %1366 = vmatprep.subr.mxu0 0.0
      %1367 = vmatpush1.msra.mxu0 0.0
      %1368 = vmatprep.subr.mxu0 0.0
      %1369 = vmatpush1.msra.mxu0 0.0
      %1370 = vmatprep.subr.mxu0 0.0
      %1371 = vmatpush1.msra.mxu0 0.0
      %1372 = vmatprep.subr.mxu0 0.0
      %1373 = vmatpush1.msra.mxu0 0.0
      %1374 = vmatprep.subr.mxu0 0.0
      %1375 = vmatpush1.msra.mxu0 0.0
      %1376 = vmatprep.subr.mxu0 0.0
      %1377 = vmatpush1.msra.mxu0 0.0
      %1378 = vmatprep.subr.mxu0 0.0
      %1379 = vmatpush1.msra.mxu0 0.0
      %1380 = vmatprep.subr.mxu0 0.0
      %1381 = vmatpush1.msra.mxu0 0.0
      %1382 = vmatprep.subr.mxu0 0.0
      %1383 = vmatpush1.msra.mxu0 0.0
      %1384 = vmatprep.subr.mxu0 0.0
      %1385 = vmatpush1.msra.mxu0 0.0
      %1386 = vmatprep.subr.mxu0 0.0
      %1387 = vmatpush1.msra.mxu0 0.0
      %1388 = vmatprep.subr.mxu0 0.0
      %1389 = vmatpush1.msra.mxu0 0.0
      %1390 = vmatprep.subr.mxu0 0.0
      %1391 = vmatpush1.msra.mxu0 0.0
      %1392 = vmatprep.subr.mxu0 0.0
      %1393 = vmatpush1.msra.mxu0 0.0
      %1394 = vmatprep.subr.mxu0 0.0
      %1395 = vmatpush1.msra.mxu0 0.0
      %1396 = vmatprep.subr.mxu0 0.0
      %1397 = vmatpush1.msra.mxu0 0.0
      %1398 = vmatprep.subr.mxu0 0.0
      %1399 = vmatpush1.msra.mxu0 0.0
      %1400 = vmatprep.subr.mxu0 0.0
      %1401 = vmatpush1.msra.mxu0 0.0
      %1402 = vmatprep.subr.mxu0 0.0
      %1403 = vmatpush1.msra.mxu0 0.0
      %1404 = vmatprep.subr.mxu0 0.0
      %1405 = vmatpush1.msra.mxu0 0.0
      %1406 = vmatprep.mubr.f32.mxu0 0.0
      %1407 = vmatmul.mubr.f32.gmra.mrb[0].mxu0 %v1332
      %v1408 = vpop.f32.mrb[0].mxu0
      %v1409 = vadd.f32 0.0, %v1408
      %v1410 = vpop.f32.mrb[0].mxu0
      %1411 = vmatprep.mubr.f32.mxu0 0.0
      %1412 = vmatmul.mubr.f32.gmra.mrb[0].mxu0 %v1335
      %v1413 = vpop.f32.mrb[0].mxu0
      %v1414 = vadd.f32 0.0, %v1413
      %v1415 = vpop.f32.mrb[0].mxu0
      %1416 = vmatprep.mubr.f32.mxu0 0.0
      %1417 = vmatmul.mubr.f32.gmra.mrb[0].mxu0 %v1338
      %v1418 = vpop.f32.mrb[0].mxu0
      %v1419 = vadd.f32 0.0, %v1418
      %v1420 = vpop.f32.mrb[0].mxu0
      %1421 = vdwg.mxu0
      %1425 = vrot.lane.b32.xlu0 %v1409, 4
      %v1426 = vpop.permute.xlu0 %1425
      %1427 = vrot.lane.b32.xlu0 %v1414, 4
      %v1428 = vpop.permute.xlu0 %1427
      %1429 = vrot.lane.b32.xlu0 %v1419, 4
      %v1430 = vpop.permute.xlu0 %1429
      %vm1434 = vcmask 64544
      %1435 = vst.msk [vmem:[#allocation4] sm:$0xff] %vm1434, %v1426
      %1436 = vst.msk [vmem:[#allocation4 + $0x8] sm:$0xff] %vm1434, %v1428
      %vm1437 = vcmask 57376
      %1438 = vst.msk [vmem:[#allocation4 + $0x10] sm:$0x1] %vm1437, %v1430
      %v1439 = vld [vmem:[#allocation4] sm:$0xff]
      %v1440 = vld [vmem:[#allocation4 + $0x8] sm:$0xff]
      %v1441 = vld [vmem:[#allocation4 + $0x10] sm:$0x1]
      %v1442 = vld [vmem:[%s684] sm:$0xff]
      %v1444 = vsel %vm826, %v1439, 0
      %v1447 = vsel %vm826, %v1440, 0
      %v1450 = vsel %vm826, %v1441, 0
      %1452 = vmatprep.subr.mxu0 0.0
      %1453 = vmatpush1.msra.mxu0 %v1442
      %1454 = vmatprep.subr.mxu0 0.0
      %1455 = vmatpush1.msra.mxu0 0.0
      %1456 = vmatprep.subr.mxu0 0.0
      %1457 = vmatpush1.msra.mxu0 0.0
      %1458 = vmatprep.subr.mxu0 0.0
      %1459 = vmatpush1.msra.mxu0 0.0
      %1460 = vmatprep.subr.mxu0 0.0
      %1461 = vmatpush1.msra.mxu0 0.0
      %1462 = vmatprep.subr.mxu0 0.0
      %1463 = vmatpush1.msra.mxu0 0.0
      %1464 = vmatprep.subr.mxu0 0.0
      %1465 = vmatpush1.msra.mxu0 0.0
      %1466 = vmatprep.subr.mxu0 0.0
      %1467 = vmatpush1.msra.mxu0 0.0
      %1468 = vmatprep.subr.mxu0 0.0
      %1469 = vmatpush1.msra.mxu0 0.0
      %1470 = vmatprep.subr.mxu0 0.0
      %1471 = vmatpush1.msra.mxu0 0.0
      %1472 = vmatprep.subr.mxu0 0.0
      %1473 = vmatpush1.msra.mxu0 0.0
      %1474 = vmatprep.subr.mxu0 0.0
      %1475 = vmatpush1.msra.mxu0 0.0
      %1476 = vmatprep.subr.mxu0 0.0
      %1477 = vmatpush1.msra.mxu0 0.0
      %1478 = vmatprep.subr.mxu0 0.0
      %1479 = vmatpush1.msra.mxu0 0.0
      %1480 = vmatprep.subr.mxu0 0.0
      %1481 = vmatpush1.msra.mxu0 0.0
      %1482 = vmatprep.subr.mxu0 0.0
      %1483 = vmatpush1.msra.mxu0 0.0
      %1484 = vmatprep.subr.mxu0 0.0
      %1485 = vmatpush1.msra.mxu0 0.0
      %1486 = vmatprep.subr.mxu0 0.0
      %1487 = vmatpush1.msra.mxu0 0.0
      %1488 = vmatprep.subr.mxu0 0.0
      %1489 = vmatpush1.msra.mxu0 0.0
      %1490 = vmatprep.subr.mxu0 0.0
      %1491 = vmatpush1.msra.mxu0 0.0
      %1492 = vmatprep.subr.mxu0 0.0
      %1493 = vmatpush1.msra.mxu0 0.0
      %1494 = vmatprep.subr.mxu0 0.0
      %1495 = vmatpush1.msra.mxu0 0.0
      %1496 = vmatprep.subr.mxu0 0.0
      %1497 = vmatpush1.msra.mxu0 0.0
      %1498 = vmatprep.subr.mxu0 0.0
      %1499 = vmatpush1.msra.mxu0 0.0
      %1500 = vmatprep.subr.mxu0 0.0
      %1501 = vmatpush1.msra.mxu0 0.0
      %1502 = vmatprep.subr.mxu0 0.0
      %1503 = vmatpush1.msra.mxu0 0.0
      %1504 = vmatprep.subr.mxu0 0.0
      %1505 = vmatpush1.msra.mxu0 0.0
      %1506 = vmatprep.subr.mxu0 0.0
      %1507 = vmatpush1.msra.mxu0 0.0
      %1508 = vmatprep.subr.mxu0 0.0
      %1509 = vmatpush1.msra.mxu0 0.0
      %1510 = vmatprep.subr.mxu0 0.0
      %1511 = vmatpush1.msra.mxu0 0.0
      %1512 = vmatprep.subr.mxu0 0.0
      %1513 = vmatpush1.msra.mxu0 0.0
      %1514 = vmatprep.subr.mxu0 0.0
      %1515 = vmatpush1.msra.mxu0 0.0
      %1516 = vmatprep.mubr.f32.mxu0 0.0
      %1517 = vmatmul.mubr.f32.gmra.mrb[0].mxu0 %v1444
      %v1518 = vpop.f32.mrb[0].mxu0
      %v1519 = vadd.f32 %v832, %v1518
      %v1520 = vpop.f32.mrb[0].mxu0
      %1521 = vmatprep.mubr.f32.mxu0 0.0
      %1522 = vmatmul.mubr.f32.gmra.mrb[0].mxu0 %v1447
      %v1523 = vpop.f32.mrb[0].mxu0
      %v1524 = vadd.f32 %v833, %v1523
      %v1525 = vpop.f32.mrb[0].mxu0
      %1526 = vmatprep.mubr.f32.mxu0 0.0
      %1527 = vmatmul.mubr.f32.gmra.mrb[0].mxu0 %v1450
      %v1528 = vpop.f32.mrb[0].mxu0
      %v1529 = vadd.f32 %v834, %v1528
      %v1530 = vpop.f32.mrb[0].mxu0
      %1531 = vdwg.mxu0
      %v1532 = vld [vmem:[%s688] sm:$0x1]
      %v1533 = vld [vmem:[%s692] sm:$0x1]
      %v1534 = vsel %vm826, %v1519, 0.0
      %1535 = vadd.xlane.f32.xlu0 %v1534
      %v1536 = vpop.xlane.xlu0 %1535
      %v1537 = vsel %vm826, %v1524, 0.0
      %1538 = vadd.xlane.f32.xlu0 %v1537
      %v1539 = vpop.xlane.xlu0 %1538
      %v1540 = vsel %vm824, %v1529, 0.0
      %1541 = vadd.xlane.f32.xlu0 %v1540
      %v1542 = vpop.xlane.xlu0 %1541
      %v1543 = vrcp.pop 8.0
      %v1544 = vmul.f32 %v1536, %v1543
      %v1545 = vmul.f32 %v1539, %v1543
      %v1546 = vmul.f32 %v1542, %v1543
      %v1547 = vsub.f32 %v1519, %v1544
      %v1548 = vsub.f32 %v1524, %v1545
      %v1549 = vsub.f32 %v1529, %v1546
      %v1550 = vmul.f32 %v1547, %v1547
      %v1551 = vmul.f32 %v1548, %v1548
      %v1552 = vmul.f32 %v1549, %v1549
      %v1553 = vsel %vm826, %v1550, 0.0
      %1554 = vadd.xlane.f32.xlu0 %v1553
      %v1555 = vpop.xlane.xlu0 %1554
      %v1556 = vsel %vm826, %v1551, 0.0
      %1557 = vadd.xlane.f32.xlu0 %v1556
      %v1558 = vpop.xlane.xlu0 %1557
      %v1559 = vsel %vm824, %v1552, 0.0
      %1560 = vadd.xlane.f32.xlu0 %v1559
      %v1561 = vpop.xlane.xlu0 %1560
      %v1562 = vmul.f32 %v1555, %v1543
      %v1563 = vmul.f32 %v1558, %v1543
      %v1564 = vmul.f32 %v1561, %v1543
      %v1565 = vadd.f32 %v1562, 1e-05
      %v1566 = vadd.f32 %v1563, 1e-05
      %v1567 = vadd.f32 %v1564, 1e-05
      %v1568 = vrsqrt.pop %v1565
      %v1569 = vrsqrt.pop %v1566
      %v1570 = vrsqrt.pop %v1567
      %v1571 = vmul.f32 %v1547, %v1568
      %v1572 = vmul.f32 %v1548, %v1569
      %v1573 = vmul.f32 %v1549, %v1570
      %v1575 = vlaneseq
      %v1576 = vshrl.u32 %v1575, 7
      %v1577 = vsub.s32 0, %v1576
      %v1578 = vrot.slane %v1532, %v1577
      %v1580 = vmul.f32 %v1571, %v1578
      %v1581 = vmul.f32 %v1572, %v1578
      %v1582 = vmul.f32 %v1573, %v1578
      %v1584 = vlaneseq
      %v1585 = vshrl.u32 %v1584, 7
      %v1586 = vsub.s32 0, %v1585
      %v1587 = vrot.slane %v1533, %v1586
      %v1589 = vadd.f32 %v1580, %v1587
      %v1590 = vadd.f32 %v1581, %v1587
      %v1591 = vadd.f32 %v1582, %v1587
      %v1592 = vld [vmem:[%s697] sm:$0xff]
      %v1593 = vld [vmem:[%s701] sm:$0x1]
      %v1595 = vlaneseq
      %v1596 = vshrl.u32 %v1595, 7
      %v1597 = vsub.s32 0, %v1596
      %v1598 = vrot.slane %v1593, %v1597
      %v1601 = vsel %vm826, %v1589, 0
      %v1604 = vsel %vm826, %v1590, 0
      %v1607 = vsel %vm826, %v1591, 0
      %1609 = vmatprep.subr.mxu0 0.0
      %1610 = vmatpush1.msra.mxu0 %v1592
      %1611 = vmatprep.subr.mxu0 0.0
      %1612 = vmatpush1.msra.mxu0 0.0
      %1613 = vmatprep.subr.mxu0 0.0
      %1614 = vmatpush1.msra.mxu0 0.0
      %1615 = vmatprep.subr.mxu0 0.0
      %1616 = vmatpush1.msra.mxu0 0.0
      %1617 = vmatprep.subr.mxu0 0.0
      %1618 = vmatpush1.msra.mxu0 0.0
      %1619 = vmatprep.subr.mxu0 0.0
      %1620 = vmatpush1.msra.mxu0 0.0
      %1621 = vmatprep.subr.mxu0 0.0
      %1622 = vmatpush1.msra.mxu0 0.0
      %1623 = vmatprep.subr.mxu0 0.0
      %1624 = vmatpush1.msra.mxu0 0.0
      %1625 = vmatprep.subr.mxu0 0.0
      %1626 = vmatpush1.msra.mxu0 0.0
      %1627 = vmatprep.subr.mxu0 0.0
      %1628 = vmatpush1.msra.mxu0 0.0
      %1629 = vmatprep.subr.mxu0 0.0
      %1630 = vmatpush1.msra.mxu0 0.0
      %1631 = vmatprep.subr.mxu0 0.0
      %1632 = vmatpush1.msra.mxu0 0.0
      %1633 = vmatprep.subr.mxu0 0.0
      %1634 = vmatpush1.msra.mxu0 0.0
      %1635 = vmatprep.subr.mxu0 0.0
      %1636 = vmatpush1.msra.mxu0 0.0
      %1637 = vmatprep.subr.mxu0 0.0
      %1638 = vmatpush1.msra.mxu0 0.0
      %1639 = vmatprep.subr.mxu0 0.0
      %1640 = vmatpush1.msra.mxu0 0.0
      %1641 = vmatprep.subr.mxu0 0.0
      %1642 = vmatpush1.msra.mxu0 0.0
      %1643 = vmatprep.subr.mxu0 0.0
      %1644 = vmatpush1.msra.mxu0 0.0
      %1645 = vmatprep.subr.mxu0 0.0
      %1646 = vmatpush1.msra.mxu0 0.0
      %1647 = vmatprep.subr.mxu0 0.0
      %1648 = vmatpush1.msra.mxu0 0.0
      %1649 = vmatprep.subr.mxu0 0.0
      %1650 = vmatpush1.msra.mxu0 0.0
      %1651 = vmatprep.subr.mxu0 0.0
      %1652 = vmatpush1.msra.mxu0 0.0
      %1653 = vmatprep.subr.mxu0 0.0
      %1654 = vmatpush1.msra.mxu0 0.0
      %1655 = vmatprep.subr.mxu0 0.0
      %1656 = vmatpush1.msra.mxu0 0.0
      %1657 = vmatprep.subr.mxu0 0.0
      %1658 = vmatpush1.msra.mxu0 0.0
      %1659 = vmatprep.subr.mxu0 0.0
      %1660 = vmatpush1.msra.mxu0 0.0
      %1661 = vmatprep.subr.mxu0 0.0
      %1662 = vmatpush1.msra.mxu0 0.0
      %1663 = vmatprep.subr.mxu0 0.0
      %1664 = vmatpush1.msra.mxu0 0.0
      %1665 = vmatprep.subr.mxu0 0.0
      %1666 = vmatpush1.msra.mxu0 0.0
      %1667 = vmatprep.subr.mxu0 0.0
      %1668 = vmatpush1.msra.mxu0 0.0
      %1669 = vmatprep.subr.mxu0 0.0
      %1670 = vmatpush1.msra.mxu0 0.0
      %1671 = vmatprep.subr.mxu0 0.0
      %1672 = vmatpush1.msra.mxu0 0.0
      %1673 = vmatprep.mubr.f32.mxu0 0.0
      %1674 = vmatmul.mubr.f32.gmra.mrb[0].mxu0 %v1601
      %v1675 = vpop.f32.mrb[0].mxu0
      %v1676 = vadd.f32 %v1598, %v1675
      %v1677 = vpop.f32.mrb[0].mxu0
      %1678 = vmatprep.mubr.f32.mxu0 0.0
      %1679 = vmatmul.mubr.f32.gmra.mrb[0].mxu0 %v1604
      %v1680 = vpop.f32.mrb[0].mxu0
      %v1681 = vadd.f32 %v1598, %v1680
      %v1682 = vpop.f32.mrb[0].mxu0
      %1683 = vmatprep.mubr.f32.mxu0 0.0
      %1684 = vmatmul.mubr.f32.gmra.mrb[0].mxu0 %v1607
      %v1685 = vpop.f32.mrb[0].mxu0
      %v1686 = vadd.f32 %v1598, %v1685
      %v1687 = vpop.f32.mrb[0].mxu0
      %1688 = vdwg.mxu0
      %v1689 = vmul.f32 %v1676, %v1676
      %v1690 = vmul.f32 %v1681, %v1681
      %v1691 = vmul.f32 %v1686, %v1686
      %v1692 = vmul.f32 %v1676, %v1689
      %v1693 = vmul.f32 %v1681, %v1690
      %v1694 = vmul.f32 %v1686, %v1691
      %v1695 = vmul.f32 %v1692, 0.044715
      %v1696 = vmul.f32 %v1693, 0.044715
      %v1697 = vmul.f32 %v1694, 0.044715
      %v1698 = vadd.f32 %v1676, %v1695
      %v1699 = vadd.f32 %v1681, %v1696
      %v1700 = vadd.f32 %v1686, %v1697
      %v1701 = vmul.f32 %v1698, 0.7978846
      %v1702 = vmul.f32 %v1699, 0.7978846
      %v1703 = vmul.f32 %v1700, 0.7978846
      %v1704 = vtanh.pop %v1701
      %v1705 = vtanh.pop %v1702
      %v1706 = vtanh.pop %v1703
      %v1707 = vadd.f32 %v1704, 1.0
      %v1708 = vadd.f32 %v1705, 1.0
      %v1709 = vadd.f32 %v1706, 1.0
      %v1710 = vmul.f32 %v1707, 0.5
      %v1711 = vmul.f32 %v1708, 0.5
      %v1712 = vmul.f32 %v1709, 0.5
      %v1713 = vmul.f32 %v1676, %v1710
      %v1714 = vmul.f32 %v1681, %v1711
      %v1715 = vmul.f32 %v1686, %v1712
      %v1716 = vld [vmem:[%s706] sm:$0xff]
      %v1717 = vld [vmem:[%s706 + $0x8] sm:$0xff]
      %v1718 = vld [vmem:[%s706 + $0x10] sm:$0xff]
      %v1719 = vld [vmem:[%s706 + $0x18] sm:$0xff]
      %v1720 = vld [vmem:[%s710] sm:$0x1]
      %v1722 = vlaneseq
      %v1723 = vshrl.u32 %v1722, 7
      %v1724 = vsub.s32 0, %v1723
      %v1725 = vrot.slane %v1720, %v1724
      %vm1727 = vcmask 261120
      %v1729 = vsel %vm1727, %v1713, 0
      %v1732 = vsel %vm1727, %v1714, 0
      %v1735 = vsel %vm1727, %v1715, 0
      %1737 = vmatprep.subr.mxu0 0.0
      %1738 = vmatpush1.msra.mxu0 %v1716
      %1739 = vmatprep.subr.mxu0 0.0
      %1740 = vmatpush1.msra.mxu0 %v1717
      %1741 = vmatprep.subr.mxu0 0.0
      %1742 = vmatpush1.msra.mxu0 %v1718
      %1743 = vmatprep.subr.mxu0 0.0
      %1744 = vmatpush1.msra.mxu0 %v1719
      %1745 = vmatprep.subr.mxu0 0.0
      %1746 = vmatpush1.msra.mxu0 0.0
      %1747 = vmatprep.subr.mxu0 0.0
      %1748 = vmatpush1.msra.mxu0 0.0
      %1749 = vmatprep.subr.mxu0 0.0
      %1750 = vmatpush1.msra.mxu0 0.0
      %1751 = vmatprep.subr.mxu0 0.0
      %1752 = vmatpush1.msra.mxu0 0.0
      %1753 = vmatprep.subr.mxu0 0.0
      %1754 = vmatpush1.msra.mxu0 0.0
      %1755 = vmatprep.subr.mxu0 0.0
      %1756 = vmatpush1.msra.mxu0 0.0
      %1757 = vmatprep.subr.mxu0 0.0
      %1758 = vmatpush1.msra.mxu0 0.0
      %1759 = vmatprep.subr.mxu0 0.0
      %1760 = vmatpush1.msra.mxu0 0.0
      %1761 = vmatprep.subr.mxu0 0.0
      %1762 = vmatpush1.msra.mxu0 0.0
      %1763 = vmatprep.subr.mxu0 0.0
      %1764 = vmatpush1.msra.mxu0 0.0
      %1765 = vmatprep.subr.mxu0 0.0
      %1766 = vmatpush1.msra.mxu0 0.0
      %1767 = vmatprep.subr.mxu0 0.0
      %1768 = vmatpush1.msra.mxu0 0.0
      %1769 = vmatprep.subr.mxu0 0.0
      %1770 = vmatpush1.msra.mxu0 0.0
      %1771 = vmatprep.subr.mxu0 0.0
      %1772 = vmatpush1.msra.mxu0 0.0
      %1773 = vmatprep.subr.mxu0 0.0
      %1774 = vmatpush1.msra.mxu0 0.0
      %1775 = vmatprep.subr.mxu0 0.0
      %1776 = vmatpush1.msra.mxu0 0.0
      %1777 = vmatprep.subr.mxu0 0.0
      %1778 = vmatpush1.msra.mxu0 0.0
      %1779 = vmatprep.subr.mxu0 0.0
      %1780 = vmatpush1.msra.mxu0 0.0
      %1781 = vmatprep.subr.mxu0 0.0
      %1782 = vmatpush1.msra.mxu0 0.0
      %1783 = vmatprep.subr.mxu0 0.0
      %1784 = vmatpush1.msra.mxu0 0.0
      %1785 = vmatprep.subr.mxu0 0.0
      %1786 = vmatpush1.msra.mxu0 0.0
      %1787 = vmatprep.subr.mxu0 0.0
      %1788 = vmatpush1.msra.mxu0 0.0
      %1789 = vmatprep.subr.mxu0 0.0
      %1790 = vmatpush1.msra.mxu0 0.0
      %1791 = vmatprep.subr.mxu0 0.0
      %1792 = vmatpush1.msra.mxu0 0.0
      %1793 = vmatprep.subr.mxu0 0.0
      %1794 = vmatpush1.msra.mxu0 0.0
      %1795 = vmatprep.subr.mxu0 0.0
      %1796 = vmatpush1.msra.mxu0 0.0
      %1797 = vmatprep.subr.mxu0 0.0
      %1798 = vmatpush1.msra.mxu0 0.0
      %1799 = vmatprep.subr.mxu0 0.0
      %1800 = vmatpush1.msra.mxu0 0.0
      %1801 = vmatprep.mubr.f32.mxu0 0.0
      %1802 = vmatmul.mubr.f32.gmra.mrb[0].mxu0 %v1729
      %v1803 = vpop.f32.mrb[0].mxu0
      %v1804 = vadd.f32 %v1725, %v1803
      %v1805 = vpop.f32.mrb[0].mxu0
      %1806 = vmatprep.mubr.f32.mxu0 0.0
      %1807 = vmatmul.mubr.f32.gmra.mrb[0].mxu0 %v1732
      %v1808 = vpop.f32.mrb[0].mxu0
      %v1809 = vadd.f32 %v1725, %v1808
      %v1810 = vpop.f32.mrb[0].mxu0
      %1811 = vmatprep.mubr.f32.mxu0 0.0
      %1812 = vmatmul.mubr.f32.gmra.mrb[0].mxu0 %v1735
      %v1813 = vpop.f32.mrb[0].mxu0
      %v1814 = vadd.f32 %v1725, %v1813
      %v1815 = vpop.f32.mrb[0].mxu0
      %1816 = vdwg.mxu0
      %v1817 = vadd.f32 %v1804, %v1589
      %v1818 = vadd.f32 %v1809, %v1590
      %v1819 = vadd.f32 %v1814, %v1591
      %v1820 = vld [vmem:[%s714] sm:$0x1]
      %v1821 = vld [vmem:[%s718] sm:$0x1]
      %v1822 = vsel %vm826, %v1817, 0.0
      %1823 = vadd.xlane.f32.xlu0 %v1822
      %v1824 = vpop.xlane.xlu0 %1823
      %v1825 = vsel %vm826, %v1818, 0.0
      %1826 = vadd.xlane.f32.xlu0 %v1825
      %v1827 = vpop.xlane.xlu0 %1826
      %v1828 = vsel %vm824, %v1819, 0.0
      %1829 = vadd.xlane.f32.xlu0 %v1828
      %v1830 = vpop.xlane.xlu0 %1829
      %v1831 = vmul.f32 %v1824, %v1543
      %v1832 = vmul.f32 %v1827, %v1543
      %v1833 = vmul.f32 %v1830, %v1543
      %v1834 = vsub.f32 %v1817, %v1831
      %v1835 = vsub.f32 %v1818, %v1832
      %v1836 = vsub.f32 %v1819, %v1833
      %v1837 = vmul.f32 %v1834, %v1834
      %v1838 = vmul.f32 %v1835, %v1835
      %v1839 = vmul.f32 %v1836, %v1836
      %v1840 = vsel %vm826, %v1837, 0.0
      %1841 = vadd.xlane.f32.xlu0 %v1840
      %v1842 = vpop.xlane.xlu0 %1841
      %v1843 = vsel %vm826, %v1838, 0.0
      %1844 = vadd.xlane.f32.xlu0 %v1843
      %v1845 = vpop.xlane.xlu0 %1844
      %v1846 = vsel %vm824, %v1839, 0.0
      %1847 = vadd.xlane.f32.xlu0 %v1846
      %v1848 = vpop.xlane.xlu0 %1847
      %v1849 = vmul.f32 %v1842, %v1543
      %v1850 = vmul.f32 %v1845, %v1543
      %v1851 = vmul.f32 %v1848, %v1543
      %v1852 = vadd.f32 %v1849, 1e-05
      %v1853 = vadd.f32 %v1850, 1e-05
      %v1854 = vadd.f32 %v1851, 1e-05
      %v1855 = vrsqrt.pop %v1852
      %v1856 = vrsqrt.pop %v1853
      %v1857 = vrsqrt.pop %v1854
      %v1858 = vmul.f32 %v1834, %v1855
      %v1859 = vmul.f32 %v1835, %v1856
      %v1860 = vmul.f32 %v1836, %v1857
      %v1862 = vlaneseq
      %v1863 = vshrl.u32 %v1862, 7
      %v1864 = vsub.s32 0, %v1863
      %v1865 = vrot.slane %v1820, %v1864
      %v1867 = vmul.f32 %v1858, %v1865
      %v1868 = vmul.f32 %v1859, %v1865
      %v1869 = vmul.f32 %v1860, %v1865
      %v1871 = vlaneseq
      %v1872 = vshrl.u32 %v1871, 7
      %v1873 = vsub.s32 0, %v1872
      %v1874 = vrot.slane %v1821, %v1873
      %v1876 = vadd.f32 %v1867, %v1874
      %v1877 = vadd.f32 %v1868, %v1874
      %v1878 = vadd.f32 %v1869, %v1874
      %s1879 = scalar_lea.vmem %s679, 8
      %v1880 = vld [vmem:[%s1879] sm:$0xff]
      %v1882 = vsel %vm826, %v1876, 0
      %v1885 = vsel %vm826, %v1877, 0
      %v1888 = vsel %vm826, %v1878, 0
      %1890 = vmatprep.subr.mxu0 0.0
      %1891 = vmatpush1.msra.mxu0 %v1880
      %1892 = vmatprep.subr.mxu0 0.0
      %1893 = vmatpush1.msra.mxu0 0.0
      %1894 = vmatprep.subr.mxu0 0.0
      %1895 = vmatpush1.msra.mxu0 0.0
      %1896 = vmatprep.subr.mxu0 0.0
      %1897 = vmatpush1.msra.mxu0 0.0
      %1898 = vmatprep.subr.mxu0 0.0
      %1899 = vmatpush1.msra.mxu0 0.0
      %1900 = vmatprep.subr.mxu0 0.0
      %1901 = vmatpush1.msra.mxu0 0.0
      %1902 = vmatprep.subr.mxu0 0.0
      %1903 = vmatpush1.msra.mxu0 0.0
      %1904 = vmatprep.subr.mxu0 0.0
      %1905 = vmatpush1.msra.mxu0 0.0
      %1906 = vmatprep.subr.mxu0 0.0
      %1907 = vmatpush1.msra.mxu0 0.0
      %1908 = vmatprep.subr.mxu0 0.0
      %1909 = vmatpush1.msra.mxu0 0.0
      %1910 = vmatprep.subr.mxu0 0.0
      %1911 = vmatpush1.msra.mxu0 0.0
      %1912 = vmatprep.subr.mxu0 0.0
      %1913 = vmatpush1.msra.mxu0 0.0
      %1914 = vmatprep.subr.mxu0 0.0
      %1915 = vmatpush1.msra.mxu0 0.0
      %1916 = vmatprep.subr.mxu0 0.0
      %1917 = vmatpush1.msra.mxu0 0.0
      %1918 = vmatprep.subr.mxu0 0.0
      %1919 = vmatpush1.msra.mxu0 0.0
      %1920 = vmatprep.subr.mxu0 0.0
      %1921 = vmatpush1.msra.mxu0 0.0
      %1922 = vmatprep.subr.mxu0 0.0
      %1923 = vmatpush1.msra.mxu0 0.0
      %1924 = vmatprep.subr.mxu0 0.0
      %1925 = vmatpush1.msra.mxu0 0.0
      %1926 = vmatprep.subr.mxu0 0.0
      %1927 = vmatpush1.msra.mxu0 0.0
      %1928 = vmatprep.subr.mxu0 0.0
      %1929 = vmatpush1.msra.mxu0 0.0
      %1930 = vmatprep.subr.mxu0 0.0
      %1931 = vmatpush1.msra.mxu0 0.0
      %1932 = vmatprep.subr.mxu0 0.0
      %1933 = vmatpush1.msra.mxu0 0.0
      %1934 = vmatprep.subr.mxu0 0.0
      %1935 = vmatpush1.msra.mxu0 0.0
      %1936 = vmatprep.subr.mxu0 0.0
      %1937 = vmatpush1.msra.mxu0 0.0
      %1938 = vmatprep.subr.mxu0 0.0
      %1939 = vmatpush1.msra.mxu0 0.0
      %1940 = vmatprep.subr.mxu0 0.0
      %1941 = vmatpush1.msra.mxu0 0.0
      %1942 = vmatprep.subr.mxu0 0.0
      %1943 = vmatpush1.msra.mxu0 0.0
      %1944 = vmatprep.subr.mxu0 0.0
      %1945 = vmatpush1.msra.mxu0 0.0
      %1946 = vmatprep.subr.mxu0 0.0
      %1947 = vmatpush1.msra.mxu0 0.0
      %1948 = vmatprep.subr.mxu0 0.0
      %1949 = vmatpush1.msra.mxu0 0.0
      %1950 = vmatprep.subr.mxu0 0.0
      %1951 = vmatpush1.msra.mxu0 0.0
      %1952 = vmatprep.subr.mxu0 0.0
      %1953 = vmatpush1.msra.mxu0 0.0
      %1954 = vmatprep.mubr.f32.mxu0 0.0
      %1955 = vmatmul.mubr.f32.gmra.mrb[0].mxu0 %v1882
      %v1956 = vpop.f32.mrb[0].mxu0
      %v1957 = vadd.f32 0.0, %v1956
      %v1958 = vpop.f32.mrb[0].mxu0
      %1959 = vmatprep.mubr.f32.mxu0 0.0
      %1960 = vmatmul.mubr.f32.gmra.mrb[0].mxu0 %v1885
      %v1961 = vpop.f32.mrb[0].mxu0
      %v1962 = vadd.f32 0.0, %v1961
      %v1963 = vpop.f32.mrb[0].mxu0
      %1964 = vmatprep.mubr.f32.mxu0 0.0
      %1965 = vmatmul.mubr.f32.gmra.mrb[0].mxu0 %v1888
      %v1966 = vpop.f32.mrb[0].mxu0
      %v1967 = vadd.f32 0.0, %v1966
      %v1968 = vpop.f32.mrb[0].mxu0
      %1969 = vdwg.mxu0
      %1970 = vst.msk [vmem:[#allocation3] sm:$0xff] %vm925, %v1957
      %1971 = vst.msk [vmem:[#allocation3 + $0x8] sm:$0xff] %vm925, %v1962
      %1972 = vst.msk [vmem:[#allocation3 + $0x10] sm:$0x1] %vm928, %v1967
      %v1973 = vld [vmem:[#allocation3] sm:$0xff]
      %v1974 = vld [vmem:[#allocation3 + $0x8] sm:$0xff]
      %v1975 = vld [vmem:[#allocation3 + $0x10] sm:$0x1]
      %1979 = vrot.lane.b32.xlu0 %v1973, 120
      %v1980 = vpop.permute.xlu0 %1979
      %1981 = vrot.lane.b32.xlu0 %v1974, 120
      %v1982 = vpop.permute.xlu0 %1981
      %1983 = vrot.lane.b32.xlu0 %v1975, 120
      %v1984 = vpop.permute.xlu0 %1983
      %v1985 = vsel %vm942, %v1973, 0
      %v1987 = vsel %vm942, %v1974, 0
      %v1989 = vsel %vm942, %v1975, 0
      %v1991 = vsel %vm942, %v1980, 0
      %v1993 = vsel %vm942, %v1982, 0
      %v1995 = vsel %vm942, %v1984, 0
      %1997 = vmatprep.subr.mxu0 0.0
      %1998 = vmatpush1.xpose.msra.mxu0 %v1991
      %1999 = vmatprep.subr.mxu0 0.0
      %2000 = vmatpush1.xpose.msra.mxu0 %v1993
      %2001 = vmatprep.subr.mxu0 0.0
      %2002 = vmatpush1.xpose.msra.mxu0 %v1995
      %2003 = vmatprep.subr.mxu0 0.0
      %2004 = vmatpush1.xpose.msra.mxu0 0.0
      %2005 = vmatprep.subr.mxu0 0.0
      %2006 = vmatpush1.xpose.msra.mxu0 0.0
      %2007 = vmatprep.subr.mxu0 0.0
      %2008 = vmatpush1.xpose.msra.mxu0 0.0
      %2009 = vmatprep.subr.mxu0 0.0
      %2010 = vmatpush1.xpose.msra.mxu0 0.0
      %2011 = vmatprep.subr.mxu0 0.0
      %2012 = vmatpush1.xpose.msra.mxu0 0.0
      %2013 = vmatprep.subr.mxu0 0.0
      %2014 = vmatpush1.xpose.msra.mxu0 0.0
      %2015 = vmatprep.subr.mxu0 0.0
      %2016 = vmatpush1.xpose.msra.mxu0 0.0
      %2017 = vmatprep.subr.mxu0 0.0
      %2018 = vmatpush1.xpose.msra.mxu0 0.0
      %2019 = vmatprep.subr.mxu0 0.0
      %2020 = vmatpush1.xpose.msra.mxu0 0.0
      %2021 = vmatprep.subr.mxu0 0.0
      %2022 = vmatpush1.xpose.msra.mxu0 0.0
      %2023 = vmatprep.subr.mxu0 0.0
      %2024 = vmatpush1.xpose.msra.mxu0 0.0
      %2025 = vmatprep.subr.mxu0 0.0
      %2026 = vmatpush1.xpose.msra.mxu0 0.0
      %2027 = vmatprep.subr.mxu0 0.0
      %2028 = vmatpush1.xpose.msra.mxu0 0.0
      %2029 = vmatprep.subr.mxu0 0.0
      %2030 = vmatpush1.xpose.msra.mxu0 0.0
      %2031 = vmatprep.subr.mxu0 0.0
      %2032 = vmatpush1.xpose.msra.mxu0 0.0
      %2033 = vmatprep.subr.mxu0 0.0
      %2034 = vmatpush1.xpose.msra.mxu0 0.0
      %2035 = vmatprep.subr.mxu0 0.0
      %2036 = vmatpush1.xpose.msra.mxu0 0.0
      %2037 = vmatprep.subr.mxu0 0.0
      %2038 = vmatpush1.xpose.msra.mxu0 0.0
      %2039 = vmatprep.subr.mxu0 0.0
      %2040 = vmatpush1.xpose.msra.mxu0 0.0
      %2041 = vmatprep.subr.mxu0 0.0
      %2042 = vmatpush1.xpose.msra.mxu0 0.0
      %2043 = vmatprep.subr.mxu0 0.0
      %2044 = vmatpush1.xpose.msra.mxu0 0.0
      %2045 = vmatprep.subr.mxu0 0.0
      %2046 = vmatpush1.xpose.msra.mxu0 0.0
      %2047 = vmatprep.subr.mxu0 0.0
      %2048 = vmatpush1.xpose.msra.mxu0 0.0
      %2049 = vmatprep.subr.mxu0 0.0
      %2050 = vmatpush1.xpose.msra.mxu0 0.0
      %2051 = vmatprep.subr.mxu0 0.0
      %2052 = vmatpush1.xpose.msra.mxu0 0.0
      %2053 = vmatprep.subr.mxu0 0.0
      %2054 = vmatpush1.xpose.msra.mxu0 0.0
      %2055 = vmatprep.subr.mxu0 0.0
      %2056 = vmatpush1.xpose.msra.mxu0 0.0
      %2057 = vmatprep.subr.mxu0 0.0
      %2058 = vmatpush1.xpose.msra.mxu0 0.0
      %2059 = vmatprep.subr.mxu0 0.0
      %2060 = vmatpush1.xpose.msra.mxu0 0.0
      %2061 = vmatprep.mubr.f32.mxu0 0.0
      %2062 = vmatmul.mubr.f32.gmra.mrb[0].mxu0 %v1985
      %v2063 = vpop.f32.mrb[0].mxu0
      %v2064 = vadd.f32 0.0, %v2063
      %v2065 = vpop.f32.mrb[0].mxu0
      %2066 = vmatprep.mubr.f32.mxu0 0.0
      %2067 = vmatmul.mubr.f32.gmra.mrb[0].mxu0 %v1987
      %v2068 = vpop.f32.mrb[0].mxu0
      %v2069 = vadd.f32 0.0, %v2068
      %v2070 = vpop.f32.mrb[0].mxu0
      %2071 = vmatprep.mubr.f32.mxu0 0.0
      %2072 = vmatmul.mubr.f32.gmra.mrb[0].mxu0 %v1989
      %v2073 = vpop.f32.mrb[0].mxu0
      %v2074 = vadd.f32 0.0, %v2073
      %v2075 = vpop.f32.mrb[0].mxu0
      %2076 = vdwg.mxu0
      %v2077 = vmul.f32 %v2064, 0.5
      %v2078 = vmul.f32 %v2069, 0.5
      %v2079 = vmul.f32 %v2074, 0.5
      %v2080 = vsel %vm1038, %v2077, -inf
      %2081 = vmax.xlane.f32.xlu0 %v2080
      %v2082 = vpop.xlane.xlu0 %2081
      %v2083 = vsel %vm1038, %v2078, -inf
      %2084 = vmax.xlane.f32.xlu0 %v2083
      %v2085 = vpop.xlane.xlu0 %2084
      %v2086 = vsel %vm1045, %v2079, -inf
      %2087 = vmax.xlane.f32.xlu0 %v2086
      %v2088 = vpop.xlane.xlu0 %2087
      %v2089 = vsub.f32 %v2077, %v2082
      %v2090 = vsub.f32 %v2078, %v2085
      %v2091 = vsub.f32 %v2079, %v2088
      %v2092 = vmul.f32 %v2089, 1.442695
      %v2093 = vpow.pop %v2092
      %v2094 = vmul.f32 %v2090, 1.442695
      %v2095 = vpow.pop %v2094
      %v2096 = vmul.f32 %v2091, 1.442695
      %v2097 = vpow.pop %v2096
      %v2098 = vsel %vm1038, %v2093, 0.0
      %2099 = vadd.xlane.f32.xlu0 %v2098
      %v2100 = vpop.xlane.xlu0 %2099
      %v2101 = vsel %vm1038, %v2095, 0.0
      %2102 = vadd.xlane.f32.xlu0 %v2101
      %v2103 = vpop.xlane.xlu0 %2102
      %v2104 = vsel %vm1045, %v2097, 0.0
      %2105 = vadd.xlane.f32.xlu0 %v2104
      %v2106 = vpop.xlane.xlu0 %2105
      %v2107 = vrcp.pop %v2100
      %v2108 = vrcp.pop %v2103
      %v2109 = vrcp.pop %v2106
      %v2110 = vmul.f32 %v2093, %v2107
      %v2111 = vmul.f32 %v2095, %v2108
      %v2112 = vmul.f32 %v2097, %v2109
      %2113 = vrot.lane.b32.xlu0 %v1973, 112
      %v2114 = vpop.permute.xlu0 %2113
      %2115 = vrot.lane.b32.xlu0 %v1974, 112
      %v2116 = vpop.permute.xlu0 %2115
      %2117 = vrot.lane.b32.xlu0 %v1975, 112
      %v2118 = vpop.permute.xlu0 %2117
      %v2122 = vsel %vm1038, %v2110, 0
      %v2125 = vsel %vm1038, %v2111, 0
      %v2128 = vsel %vm1038, %v2112, 0
      %v2130 = vsel %vm1090, %v2118, 0
      %2132 = vmatprep.subr.mxu0 0.0
      %2133 = vmatpush1.msra.mxu0 %v2114
      %2134 = vmatprep.subr.mxu0 0.0
      %2135 = vmatpush1.msra.mxu0 %v2116
      %2136 = vmatprep.subr.mxu0 0.0
      %2137 = vmatpush1.msra.mxu0 %v2130
      %2138 = vmatprep.subr.mxu0 0.0
      %2139 = vmatpush1.msra.mxu0 0.0
      %2140 = vmatprep.subr.mxu0 0.0
      %2141 = vmatpush1.msra.mxu0 0.0
      %2142 = vmatprep.subr.mxu0 0.0
      %2143 = vmatpush1.msra.mxu0 0.0
      %2144 = vmatprep.subr.mxu0 0.0
      %2145 = vmatpush1.msra.mxu0 0.0
      %2146 = vmatprep.subr.mxu0 0.0
      %2147 = vmatpush1.msra.mxu0 0.0
      %2148 = vmatprep.subr.mxu0 0.0
      %2149 = vmatpush1.msra.mxu0 0.0
      %2150 = vmatprep.subr.mxu0 0.0
      %2151 = vmatpush1.msra.mxu0 0.0
      %2152 = vmatprep.subr.mxu0 0.0
      %2153 = vmatpush1.msra.mxu0 0.0
      %2154 = vmatprep.subr.mxu0 0.0
      %2155 = vmatpush1.msra.mxu0 0.0
      %2156 = vmatprep.subr.mxu0 0.0
      %2157 = vmatpush1.msra.mxu0 0.0
      %2158 = vmatprep.subr.mxu0 0.0
      %2159 = vmatpush1.msra.mxu0 0.0
      %2160 = vmatprep.subr.mxu0 0.0
      %2161 = vmatpush1.msra.mxu0 0.0
      %2162 = vmatprep.subr.mxu0 0.0
      %2163 = vmatpush1.msra.mxu0 0.0
      %2164 = vmatprep.subr.mxu0 0.0
      %2165 = vmatpush1.msra.mxu0 0.0
      %2166 = vmatprep.subr.mxu0 0.0
      %2167 = vmatpush1.msra.mxu0 0.0
      %2168 = vmatprep.subr.mxu0 0.0
      %2169 = vmatpush1.msra.mxu0 0.0
      %2170 = vmatprep.subr.mxu0 0.0
      %2171 = vmatpush1.msra.mxu0 0.0
      %2172 = vmatprep.subr.mxu0 0.0
      %2173 = vmatpush1.msra.mxu0 0.0
      %2174 = vmatprep.subr.mxu0 0.0
      %2175 = vmatpush1.msra.mxu0 0.0
      %2176 = vmatprep.subr.mxu0 0.0
      %2177 = vmatpush1.msra.mxu0 0.0
      %2178 = vmatprep.subr.mxu0 0.0
      %2179 = vmatpush1.msra.mxu0 0.0
      %2180 = vmatprep.subr.mxu0 0.0
      %2181 = vmatpush1.msra.mxu0 0.0
      %2182 = vmatprep.subr.mxu0 0.0
      %2183 = vmatpush1.msra.mxu0 0.0
      %2184 = vmatprep.subr.mxu0 0.0
      %2185 = vmatpush1.msra.mxu0 0.0
      %2186 = vmatprep.subr.mxu0 0.0
      %2187 = vmatpush1.msra.mxu0 0.0
      %2188 = vmatprep.subr.mxu0 0.0
      %2189 = vmatpush1.msra.mxu0 0.0
      %2190 = vmatprep.subr.mxu0 0.0
      %2191 = vmatpush1.msra.mxu0 0.0
      %2192 = vmatprep.subr.mxu0 0.0
      %2193 = vmatpush1.msra.mxu0 0.0
      %2194 = vmatprep.subr.mxu0 0.0
      %2195 = vmatpush1.msra.mxu0 0.0
      %2196 = vmatprep.mubr.f32.mxu0 0.0
      %2197 = vmatmul.mubr.f32.gmra.mrb[0].mxu0 %v2122
      %v2198 = vpop.f32.mrb[0].mxu0
      %v2199 = vadd.f32 0.0, %v2198
      %v2200 = vpop.f32.mrb[0].mxu0
      %2201 = vmatprep.mubr.f32.mxu0 0.0
      %2202 = vmatmul.mubr.f32.gmra.mrb[0].mxu0 %v2125
      %v2203 = vpop.f32.mrb[0].mxu0
      %v2204 = vadd.f32 0.0, %v2203
      %v2205 = vpop.f32.mrb[0].mxu0
      %2206 = vmatprep.mubr.f32.mxu0 0.0
      %2207 = vmatmul.mubr.f32.gmra.mrb[0].mxu0 %v2128
      %v2208 = vpop.f32.mrb[0].mxu0
      %v2209 = vadd.f32 0.0, %v2208
      %v2210 = vpop.f32.mrb[0].mxu0
      %2211 = vdwg.mxu0
      %2212 = vst.msk [vmem:[#allocation4] sm:$0xff] %vm942, %v2199
      %2213 = vst.msk [vmem:[#allocation4 + $0x8] sm:$0xff] %vm942, %v2204
      %2214 = vst.msk [vmem:[#allocation4 + $0x10] sm:$0x1] %vm1175, %v2209
      %v2215 = vld [vmem:[#allocation3] sm:$0xff]
      %v2216 = vld [vmem:[#allocation3 + $0x8] sm:$0xff]
      %v2217 = vld [vmem:[#allocation3 + $0x10] sm:$0x1]
      %2221 = vrot.lane.b32.xlu0 %v2215, 124
      %v2222 = vpop.permute.xlu0 %2221
      %2223 = vrot.lane.b32.xlu0 %v2216, 124
      %v2224 = vpop.permute.xlu0 %2223
      %2225 = vrot.lane.b32.xlu0 %v2217, 124
      %v2226 = vpop.permute.xlu0 %2225
      %2227 = vrot.lane.b32.xlu0 %v2215, 116
      %v2228 = vpop.permute.xlu0 %2227
      %2229 = vrot.lane.b32.xlu0 %v2216, 116
      %v2230 = vpop.permute.xlu0 %2229
      %2231 = vrot.lane.b32.xlu0 %v2217, 116
      %v2232 = vpop.permute.xlu0 %2231
      %v2233 = vsel %vm942, %v2222, 0
      %v2235 = vsel %vm942, %v2224, 0
      %v2237 = vsel %vm942, %v2226, 0
      %v2239 = vsel %vm942, %v2228, 0
      %v2241 = vsel %vm942, %v2230, 0
      %v2243 = vsel %vm942, %v2232, 0
      %2245 = vmatprep.subr.mxu0 0.0
      %2246 = vmatpush1.xpose.msra.mxu0 %v2239
      %2247 = vmatprep.subr.mxu0 0.0
      %2248 = vmatpush1.xpose.msra.mxu0 %v2241
      %2249 = vmatprep.subr.mxu0 0.0
      %2250 = vmatpush1.xpose.msra.mxu0 %v2243
      %2251 = vmatprep.subr.mxu0 0.0
      %2252 = vmatpush1.xpose.msra.mxu0 0.0
      %2253 = vmatprep.subr.mxu0 0.0
      %2254 = vmatpush1.xpose.msra.mxu0 0.0
      %2255 = vmatprep.subr.mxu0 0.0
      %2256 = vmatpush1.xpose.msra.mxu0 0.0
      %2257 = vmatprep.subr.mxu0 0.0
      %2258 = vmatpush1.xpose.msra.mxu0 0.0
      %2259 = vmatprep.subr.mxu0 0.0
      %2260 = vmatpush1.xpose.msra.mxu0 0.0
      %2261 = vmatprep.subr.mxu0 0.0
      %2262 = vmatpush1.xpose.msra.mxu0 0.0
      %2263 = vmatprep.subr.mxu0 0.0
      %2264 = vmatpush1.xpose.msra.mxu0 0.0
      %2265 = vmatprep.subr.mxu0 0.0
      %2266 = vmatpush1.xpose.msra.mxu0 0.0
      %2267 = vmatprep.subr.mxu0 0.0
      %2268 = vmatpush1.xpose.msra.mxu0 0.0
      %2269 = vmatprep.subr.mxu0 0.0
      %2270 = vmatpush1.xpose.msra.mxu0 0.0
      %2271 = vmatprep.subr.mxu0 0.0
      %2272 = vmatpush1.xpose.msra.mxu0 0.0
      %2273 = vmatprep.subr.mxu0 0.0
      %2274 = vmatpush1.xpose.msra.mxu0 0.0
      %2275 = vmatprep.subr.mxu0 0.0
      %2276 = vmatpush1.xpose.msra.mxu0 0.0
      %2277 = vmatprep.subr.mxu0 0.0
      %2278 = vmatpush1.xpose.msra.mxu0 0.0
      %2279 = vmatprep.subr.mxu0 0.0
      %2280 = vmatpush1.xpose.msra.mxu0 0.0
      %2281 = vmatprep.subr.mxu0 0.0
      %2282 = vmatpush1.xpose.msra.mxu0 0.0
      %2283 = vmatprep.subr.mxu0 0.0
      %2284 = vmatpush1.xpose.msra.mxu0 0.0
      %2285 = vmatprep.subr.mxu0 0.0
      %2286 = vmatpush1.xpose.msra.mxu0 0.0
      %2287 = vmatprep.subr.mxu0 0.0
      %2288 = vmatpush1.xpose.msra.mxu0 0.0
      %2289 = vmatprep.subr.mxu0 0.0
      %2290 = vmatpush1.xpose.msra.mxu0 0.0
      %2291 = vmatprep.subr.mxu0 0.0
      %2292 = vmatpush1.xpose.msra.mxu0 0.0
      %2293 = vmatprep.subr.mxu0 0.0
      %2294 = vmatpush1.xpose.msra.mxu0 0.0
      %2295 = vmatprep.subr.mxu0 0.0
      %2296 = vmatpush1.xpose.msra.mxu0 0.0
      %2297 = vmatprep.subr.mxu0 0.0
      %2298 = vmatpush1.xpose.msra.mxu0 0.0
      %2299 = vmatprep.subr.mxu0 0.0
      %2300 = vmatpush1.xpose.msra.mxu0 0.0
      %2301 = vmatprep.subr.mxu0 0.0
      %2302 = vmatpush1.xpose.msra.mxu0 0.0
      %2303 = vmatprep.subr.mxu0 0.0
      %2304 = vmatpush1.xpose.msra.mxu0 0.0
      %2305 = vmatprep.subr.mxu0 0.0
      %2306 = vmatpush1.xpose.msra.mxu0 0.0
      %2307 = vmatprep.subr.mxu0 0.0
      %2308 = vmatpush1.xpose.msra.mxu0 0.0
      %2309 = vmatprep.mubr.f32.mxu0 0.0
      %2310 = vmatmul.mubr.f32.gmra.mrb[0].mxu0 %v2233
      %v2311 = vpop.f32.mrb[0].mxu0
      %v2312 = vadd.f32 0.0, %v2311
      %v2313 = vpop.f32.mrb[0].mxu0
      %2314 = vmatprep.mubr.f32.mxu0 0.0
      %2315 = vmatmul.mubr.f32.gmra.mrb[0].mxu0 %v2235
      %v2316 = vpop.f32.mrb[0].mxu0
      %v2317 = vadd.f32 0.0, %v2316
      %v2318 = vpop.f32.mrb[0].mxu0
      %2319 = vmatprep.mubr.f32.mxu0 0.0
      %2320 = vmatmul.mubr.f32.gmra.mrb[0].mxu0 %v2237
      %v2321 = vpop.f32.mrb[0].mxu0
      %v2322 = vadd.f32 0.0, %v2321
      %v2323 = vpop.f32.mrb[0].mxu0
      %2324 = vdwg.mxu0
      %v2325 = vmul.f32 %v2312, 0.5
      %v2326 = vmul.f32 %v2317, 0.5
      %v2327 = vmul.f32 %v2322, 0.5
      %v2328 = vsel %vm1038, %v2325, -inf
      %2329 = vmax.xlane.f32.xlu0 %v2328
      %v2330 = vpop.xlane.xlu0 %2329
      %v2331 = vsel %vm1038, %v2326, -inf
      %2332 = vmax.xlane.f32.xlu0 %v2331
      %v2333 = vpop.xlane.xlu0 %2332
      %v2334 = vsel %vm1045, %v2327, -inf
      %2335 = vmax.xlane.f32.xlu0 %v2334
      %v2336 = vpop.xlane.xlu0 %2335
      %v2337 = vsub.f32 %v2325, %v2330
      %v2338 = vsub.f32 %v2326, %v2333
      %v2339 = vsub.f32 %v2327, %v2336
      %v2340 = vmul.f32 %v2337, 1.442695
      %v2341 = vpow.pop %v2340
      %v2342 = vmul.f32 %v2338, 1.442695
      %v2343 = vpow.pop %v2342
      %v2344 = vmul.f32 %v2339, 1.442695
      %v2345 = vpow.pop %v2344
      %v2346 = vsel %vm1038, %v2341, 0.0
      %2347 = vadd.xlane.f32.xlu0 %v2346
      %v2348 = vpop.xlane.xlu0 %2347
      %v2349 = vsel %vm1038, %v2343, 0.0
      %2350 = vadd.xlane.f32.xlu0 %v2349
      %v2351 = vpop.xlane.xlu0 %2350
      %v2352 = vsel %vm1045, %v2345, 0.0
      %2353 = vadd.xlane.f32.xlu0 %v2352
      %v2354 = vpop.xlane.xlu0 %2353
      %v2355 = vrcp.pop %v2348
      %v2356 = vrcp.pop %v2351
      %v2357 = vrcp.pop %v2354
      %v2358 = vmul.f32 %v2341, %v2355
      %v2359 = vmul.f32 %v2343, %v2356
      %v2360 = vmul.f32 %v2345, %v2357
      %2361 = vrot.lane.b32.xlu0 %v2215, 108
      %v2362 = vpop.permute.xlu0 %2361
      %2363 = vrot.lane.b32.xlu0 %v2216, 108
      %v2364 = vpop.permute.xlu0 %2363
      %2365 = vrot.lane.b32.xlu0 %v2217, 108
      %v2366 = vpop.permute.xlu0 %2365
      %v2370 = vsel %vm1038, %v2358, 0
      %v2373 = vsel %vm1038, %v2359, 0
      %v2376 = vsel %vm1038, %v2360, 0
      %v2378 = vsel %vm1090, %v2366, 0
      %2380 = vmatprep.subr.mxu0 0.0
      %2381 = vmatpush1.msra.mxu0 %v2362
      %2382 = vmatprep.subr.mxu0 0.0
      %2383 = vmatpush1.msra.mxu0 %v2364
      %2384 = vmatprep.subr.mxu0 0.0
      %2385 = vmatpush1.msra.mxu0 %v2378
      %2386 = vmatprep.subr.mxu0 0.0
      %2387 = vmatpush1.msra.mxu0 0.0
      %2388 = vmatprep.subr.mxu0 0.0
      %2389 = vmatpush1.msra.mxu0 0.0
      %2390 = vmatprep.subr.mxu0 0.0
      %2391 = vmatpush1.msra.mxu0 0.0
      %2392 = vmatprep.subr.mxu0 0.0
      %2393 = vmatpush1.msra.mxu0 0.0
      %2394 = vmatprep.subr.mxu0 0.0
      %2395 = vmatpush1.msra.mxu0 0.0
      %2396 = vmatprep.subr.mxu0 0.0
      %2397 = vmatpush1.msra.mxu0 0.0
      %2398 = vmatprep.subr.mxu0 0.0
      %2399 = vmatpush1.msra.mxu0 0.0
      %2400 = vmatprep.subr.mxu0 0.0
      %2401 = vmatpush1.msra.mxu0 0.0
      %2402 = vmatprep.subr.mxu0 0.0
      %2403 = vmatpush1.msra.mxu0 0.0
      %2404 = vmatprep.subr.mxu0 0.0
      %2405 = vmatpush1.msra.mxu0 0.0
      %2406 = vmatprep.subr.mxu0 0.0
      %2407 = vmatpush1.msra.mxu0 0.0
      %2408 = vmatprep.subr.mxu0 0.0
      %2409 = vmatpush1.msra.mxu0 0.0
      %2410 = vmatprep.subr.mxu0 0.0
      %2411 = vmatpush1.msra.mxu0 0.0
      %2412 = vmatprep.subr.mxu0 0.0
      %2413 = vmatpush1.msra.mxu0 0.0
      %2414 = vmatprep.subr.mxu0 0.0
      %2415 = vmatpush1.msra.mxu0 0.0
      %2416 = vmatprep.subr.mxu0 0.0
      %2417 = vmatpush1.msra.mxu0 0.0
      %2418 = vmatprep.subr.mxu0 0.0
      %2419 = vmatpush1.msra.mxu0 0.0
      %2420 = vmatprep.subr.mxu0 0.0
      %2421 = vmatpush1.msra.mxu0 0.0
      %2422 = vmatprep.subr.mxu0 0.0
      %2423 = vmatpush1.msra.mxu0 0.0
      %2424 = vmatprep.subr.mxu0 0.0
      %2425 = vmatpush1.msra.mxu0 0.0
      %2426 = vmatprep.subr.mxu0 0.0
      %2427 = vmatpush1.msra.mxu0 0.0
      %2428 = vmatprep.subr.mxu0 0.0
      %2429 = vmatpush1.msra.mxu0 0.0
      %2430 = vmatprep.subr.mxu0 0.0
      %2431 = vmatpush1.msra.mxu0 0.0
      %2432 = vmatprep.subr.mxu0 0.0
      %2433 = vmatpush1.msra.mxu0 0.0
      %2434 = vmatprep.subr.mxu0 0.0
      %2435 = vmatpush1.msra.mxu0 0.0
      %2436 = vmatprep.subr.mxu0 0.0
      %2437 = vmatpush1.msra.mxu0 0.0
      %2438 = vmatprep.subr.mxu0 0.0
      %2439 = vmatpush1.msra.mxu0 0.0
      %2440 = vmatprep.subr.mxu0 0.0
      %2441 = vmatpush1.msra.mxu0 0.0
      %2442 = vmatprep.subr.mxu0 0.0
      %2443 = vmatpush1.msra.mxu0 0.0
      %2444 = vmatprep.mubr.f32.mxu0 0.0
      %2445 = vmatmul.mubr.f32.gmra.mrb[0].mxu0 %v2370
      %v2446 = vpop.f32.mrb[0].mxu0
      %v2447 = vadd.f32 0.0, %v2446
      %v2448 = vpop.f32.mrb[0].mxu0
      %2449 = vmatprep.mubr.f32.mxu0 0.0
      %2450 = vmatmul.mubr.f32.gmra.mrb[0].mxu0 %v2373
      %v2451 = vpop.f32.mrb[0].mxu0
      %v2452 = vadd.f32 0.0, %v2451
      %v2453 = vpop.f32.mrb[0].mxu0
      %2454 = vmatprep.mubr.f32.mxu0 0.0
      %2455 = vmatmul.mubr.f32.gmra.mrb[0].mxu0 %v2376
      %v2456 = vpop.f32.mrb[0].mxu0
      %v2457 = vadd.f32 0.0, %v2456
      %v2458 = vpop.f32.mrb[0].mxu0
      %2459 = vdwg.mxu0
      %2463 = vrot.lane.b32.xlu0 %v2447, 4
      %v2464 = vpop.permute.xlu0 %2463
      %2465 = vrot.lane.b32.xlu0 %v2452, 4
      %v2466 = vpop.permute.xlu0 %2465
      %2467 = vrot.lane.b32.xlu0 %v2457, 4
      %v2468 = vpop.permute.xlu0 %2467
      %2472 = vst.msk [vmem:[#allocation4] sm:$0xff] %vm1434, %v2464
      %2473 = vst.msk [vmem:[#allocation4 + $0x8] sm:$0xff] %vm1434, %v2466
      %2474 = vst.msk [vmem:[#allocation4 + $0x10] sm:$0x1] %vm1437, %v2468
      %v2475 = vld [vmem:[#allocation4] sm:$0xff]
      %v2476 = vld [vmem:[#allocation4 + $0x8] sm:$0xff]
      %v2477 = vld [vmem:[#allocation4 + $0x10] sm:$0x1]
      %s2478 = scalar_lea.vmem %s684, 8
      %v2479 = vld [vmem:[%s2478] sm:$0xff]
      %v2481 = vsel %vm826, %v2475, 0
      %v2484 = vsel %vm826, %v2476, 0
      %v2487 = vsel %vm826, %v2477, 0
      %2489 = vmatprep.subr.mxu0 0.0
      %2490 = vmatpush1.msra.mxu0 %v2479
      %2491 = vmatprep.subr.mxu0 0.0
      %2492 = vmatpush1.msra.mxu0 0.0
      %2493 = vmatprep.subr.mxu0 0.0
      %2494 = vmatpush1.msra.mxu0 0.0
      %2495 = vmatprep.subr.mxu0 0.0
      %2496 = vmatpush1.msra.mxu0 0.0
      %2497 = vmatprep.subr.mxu0 0.0
      %2498 = vmatpush1.msra.mxu0 0.0
      %2499 = vmatprep.subr.mxu0 0.0
      %2500 = vmatpush1.msra.mxu0 0.0
      %2501 = vmatprep.subr.mxu0 0.0
      %2502 = vmatpush1.msra.mxu0 0.0
      %2503 = vmatprep.subr.mxu0 0.0
      %2504 = vmatpush1.msra.mxu0 0.0
      %2505 = vmatprep.subr.mxu0 0.0
      %2506 = vmatpush1.msra.mxu0 0.0
      %2507 = vmatprep.subr.mxu0 0.0
      %2508 = vmatpush1.msra.mxu0 0.0
      %2509 = vmatprep.subr.mxu0 0.0
      %2510 = vmatpush1.msra.mxu0 0.0
      %2511 = vmatprep.subr.mxu0 0.0
      %2512 = vmatpush1.msra.mxu0 0.0
      %2513 = vmatprep.subr.mxu0 0.0
      %2514 = vmatpush1.msra.mxu0 0.0
      %2515 = vmatprep.subr.mxu0 0.0
      %2516 = vmatpush1.msra.mxu0 0.0
      %2517 = vmatprep.subr.mxu0 0.0
      %2518 = vmatpush1.msra.mxu0 0.0
      %2519 = vmatprep.subr.mxu0 0.0
      %2520 = vmatpush1.msra.mxu0 0.0
      %2521 = vmatprep.subr.mxu0 0.0
      %2522 = vmatpush1.msra.mxu0 0.0
      %2523 = vmatprep.subr.mxu0 0.0
      %2524 = vmatpush1.msra.mxu0 0.0
      %2525 = vmatprep.subr.mxu0 0.0
      %2526 = vmatpush1.msra.mxu0 0.0
      %2527 = vmatprep.subr.mxu0 0.0
      %2528 = vmatpush1.msra.mxu0 0.0
      %2529 = vmatprep.subr.mxu0 0.0
      %2530 = vmatpush1.msra.mxu0 0.0
      %2531 = vmatprep.subr.mxu0 0.0
      %2532 = vmatpush1.msra.mxu0 0.0
      %2533 = vmatprep.subr.mxu0 0.0
      %2534 = vmatpush1.msra.mxu0 0.0
      %2535 = vmatprep.subr.mxu0 0.0
      %2536 = vmatpush1.msra.mxu0 0.0
      %2537 = vmatprep.subr.mxu0 0.0
      %2538 = vmatpush1.msra.mxu0 0.0
      %2539 = vmatprep.subr.mxu0 0.0
      %2540 = vmatpush1.msra.mxu0 0.0
      %2541 = vmatprep.subr.mxu0 0.0
      %2542 = vmatpush1.msra.mxu0 0.0
      %2543 = vmatprep.subr.mxu0 0.0
      %2544 = vmatpush1.msra.mxu0 0.0
      %2545 = vmatprep.subr.mxu0 0.0
      %2546 = vmatpush1.msra.mxu0 0.0
      %2547 = vmatprep.subr.mxu0 0.0
      %2548 = vmatpush1.msra.mxu0 0.0
      %2549 = vmatprep.subr.mxu0 0.0
      %2550 = vmatpush1.msra.mxu0 0.0
      %2551 = vmatprep.subr.mxu0 0.0
      %2552 = vmatpush1.msra.mxu0 0.0
      %2553 = vmatprep.mubr.f32.mxu0 0.0
      %2554 = vmatmul.mubr.f32.gmra.mrb[0].mxu0 %v2481
      %v2555 = vpop.f32.mrb[0].mxu0
      %v2556 = vadd.f32 %v1876, %v2555
      %v2557 = vpop.f32.mrb[0].mxu0
      %2558 = vmatprep.mubr.f32.mxu0 0.0
      %2559 = vmatmul.mubr.f32.gmra.mrb[0].mxu0 %v2484
      %v2560 = vpop.f32.mrb[0].mxu0
      %v2561 = vadd.f32 %v1877, %v2560
      %v2562 = vpop.f32.mrb[0].mxu0
      %2563 = vmatprep.mubr.f32.mxu0 0.0
      %2564 = vmatmul.mubr.f32.gmra.mrb[0].mxu0 %v2487
      %v2565 = vpop.f32.mrb[0].mxu0
      %v2566 = vadd.f32 %v1878, %v2565
      %v2567 = vpop.f32.mrb[0].mxu0
      %2568 = vdwg.mxu0
      %s2569 = scalar_lea.vmem %s688, 1
      %v2570 = vld [vmem:[%s2569] sm:$0x1]
      %s2571 = scalar_lea.vmem %s692, 1
      %v2572 = vld [vmem:[%s2571] sm:$0x1]
      %v2573 = vsel %vm826, %v2556, 0.0
      %2574 = vadd.xlane.f32.xlu0 %v2573
      %v2575 = vpop.xlane.xlu0 %2574
      %v2576 = vsel %vm826, %v2561, 0.0
      %2577 = vadd.xlane.f32.xlu0 %v2576
      %v2578 = vpop.xlane.xlu0 %2577
      %v2579 = vsel %vm824, %v2566, 0.0
      %2580 = vadd.xlane.f32.xlu0 %v2579
      %v2581 = vpop.xlane.xlu0 %2580
      %v2582 = vmul.f32 %v2575, %v1543
      %v2583 = vmul.f32 %v2578, %v1543
      %v2584 = vmul.f32 %v2581, %v1543
      %v2585 = vsub.f32 %v2556, %v2582
      %v2586 = vsub.f32 %v2561, %v2583
      %v2587 = vsub.f32 %v2566, %v2584
      %v2588 = vmul.f32 %v2585, %v2585
      %v2589 = vmul.f32 %v2586, %v2586
      %v2590 = vmul.f32 %v2587, %v2587
      %v2591 = vsel %vm826, %v2588, 0.0
      %2592 = vadd.xlane.f32.xlu0 %v2591
      %v2593 = vpop.xlane.xlu0 %2592
      %v2594 = vsel %vm826, %v2589, 0.0
      %2595 = vadd.xlane.f32.xlu0 %v2594
      %v2596 = vpop.xlane.xlu0 %2595
      %v2597 = vsel %vm824, %v2590, 0.0
      %2598 = vadd.xlane.f32.xlu0 %v2597
      %v2599 = vpop.xlane.xlu0 %2598
      %v2600 = vmul.f32 %v2593, %v1543
      %v2601 = vmul.f32 %v2596, %v1543
      %v2602 = vmul.f32 %v2599, %v1543
      %v2603 = vadd.f32 %v2600, 1e-05
      %v2604 = vadd.f32 %v2601, 1e-05
      %v2605 = vadd.f32 %v2602, 1e-05
      %v2606 = vrsqrt.pop %v2603
      %v2607 = vrsqrt.pop %v2604
      %v2608 = vrsqrt.pop %v2605
      %v2609 = vmul.f32 %v2585, %v2606
      %v2610 = vmul.f32 %v2586, %v2607
      %v2611 = vmul.f32 %v2587, %v2608
      %v2613 = vlaneseq
      %v2614 = vshrl.u32 %v2613, 7
      %v2615 = vsub.s32 0, %v2614
      %v2616 = vrot.slane %v2570, %v2615
      %v2618 = vmul.f32 %v2609, %v2616
      %v2619 = vmul.f32 %v2610, %v2616
      %v2620 = vmul.f32 %v2611, %v2616
      %v2622 = vlaneseq
      %v2623 = vshrl.u32 %v2622, 7
      %v2624 = vsub.s32 0, %v2623
      %v2625 = vrot.slane %v2572, %v2624
      %v2627 = vadd.f32 %v2618, %v2625
      %v2628 = vadd.f32 %v2619, %v2625
      %v2629 = vadd.f32 %v2620, %v2625
      %s2630 = scalar_lea.vmem %s697, 8
      %v2631 = vld [vmem:[%s2630] sm:$0xff]
      %s2632 = scalar_lea.vmem %s701, 1
      %v2633 = vld [vmem:[%s2632] sm:$0x1]
      %v2635 = vlaneseq
      %v2636 = vshrl.u32 %v2635, 7
      %v2637 = vsub.s32 0, %v2636
      %v2638 = vrot.slane %v2633, %v2637
      %v2641 = vsel %vm826, %v2627, 0
      %v2644 = vsel %vm826, %v2628, 0
      %v2647 = vsel %vm826, %v2629, 0
      %2649 = vmatprep.subr.mxu0 0.0
      %2650 = vmatpush1.msra.mxu0 %v2631
      %2651 = vmatprep.subr.mxu0 0.0
      %2652 = vmatpush1.msra.mxu0 0.0
      %2653 = vmatprep.subr.mxu0 0.0
      %2654 = vmatpush1.msra.mxu0 0.0
      %2655 = vmatprep.subr.mxu0 0.0
      %2656 = vmatpush1.msra.mxu0 0.0
      %2657 = vmatprep.subr.mxu0 0.0
      %2658 = vmatpush1.msra.mxu0 0.0
      %2659 = vmatprep.subr.mxu0 0.0
      %2660 = vmatpush1.msra.mxu0 0.0
      %2661 = vmatprep.subr.mxu0 0.0
      %2662 = vmatpush1.msra.mxu0 0.0
      %2663 = vmatprep.subr.mxu0 0.0
      %2664 = vmatpush1.msra.mxu0 0.0
      %2665 = vmatprep.subr.mxu0 0.0
      %2666 = vmatpush1.msra.mxu0 0.0
      %2667 = vmatprep.subr.mxu0 0.0
      %2668 = vmatpush1.msra.mxu0 0.0
      %2669 = vmatprep.subr.mxu0 0.0
      %2670 = vmatpush1.msra.mxu0 0.0
      %2671 = vmatprep.subr.mxu0 0.0
      %2672 = vmatpush1.msra.mxu0 0.0
      %2673 = vmatprep.subr.mxu0 0.0
      %2674 = vmatpush1.msra.mxu0 0.0
      %2675 = vmatprep.subr.mxu0 0.0
      %2676 = vmatpush1.msra.mxu0 0.0
      %2677 = vmatprep.subr.mxu0 0.0
      %2678 = vmatpush1.msra.mxu0 0.0
      %2679 = vmatprep.subr.mxu0 0.0
      %2680 = vmatpush1.msra.mxu0 0.0
      %2681 = vmatprep.subr.mxu0 0.0
      %2682 = vmatpush1.msra.mxu0 0.0
      %2683 = vmatprep.subr.mxu0 0.0
      %2684 = vmatpush1.msra.mxu0 0.0
      %2685 = vmatprep.subr.mxu0 0.0
      %2686 = vmatpush1.msra.mxu0 0.0
      %2687 = vmatprep.subr.mxu0 0.0
      %2688 = vmatpush1.msra.mxu0 0.0
      %2689 = vmatprep.subr.mxu0 0.0
      %2690 = vmatpush1.msra.mxu0 0.0
      %2691 = vmatprep.subr.mxu0 0.0
      %2692 = vmatpush1.msra.mxu0 0.0
      %2693 = vmatprep.subr.mxu0 0.0
      %2694 = vmatpush1.msra.mxu0 0.0
      %2695 = vmatprep.subr.mxu0 0.0
      %2696 = vmatpush1.msra.mxu0 0.0
      %2697 = vmatprep.subr.mxu0 0.0
      %2698 = vmatpush1.msra.mxu0 0.0
      %2699 = vmatprep.subr.mxu0 0.0
      %2700 = vmatpush1.msra.mxu0 0.0
      %2701 = vmatprep.subr.mxu0 0.0
      %2702 = vmatpush1.msra.mxu0 0.0
      %2703 = vmatprep.subr.mxu0 0.0
      %2704 = vmatpush1.msra.mxu0 0.0
      %2705 = vmatprep.subr.mxu0 0.0
      %2706 = vmatpush1.msra.mxu0 0.0
      %2707 = vmatprep.subr.mxu0 0.0
      %2708 = vmatpush1.msra.mxu0 0.0
      %2709 = vmatprep.subr.mxu0 0.0
      %2710 = vmatpush1.msra.mxu0 0.0
      %2711 = vmatprep.subr.mxu0 0.0
      %2712 = vmatpush1.msra.mxu0 0.0
      %2713 = vmatprep.mubr.f32.mxu0 0.0
      %2714 = vmatmul.mubr.f32.gmra.mrb[0].mxu0 %v2641
      %v2715 = vpop.f32.mrb[0].mxu0
      %v2716 = vadd.f32 %v2638, %v2715
      %v2717 = vpop.f32.mrb[0].mxu0
      %2718 = vmatprep.mubr.f32.mxu0 0.0
      %2719 = vmatmul.mubr.f32.gmra.mrb[0].mxu0 %v2644
      %v2720 = vpop.f32.mrb[0].mxu0
      %v2721 = vadd.f32 %v2638, %v2720
      %v2722 = vpop.f32.mrb[0].mxu0
      %2723 = vmatprep.mubr.f32.mxu0 0.0
      %2724 = vmatmul.mubr.f32.gmra.mrb[0].mxu0 %v2647
      %v2725 = vpop.f32.mrb[0].mxu0
      %v2726 = vadd.f32 %v2638, %v2725
      %v2727 = vpop.f32.mrb[0].mxu0
      %2728 = vdwg.mxu0
      %v2729 = vmul.f32 %v2716, %v2716
      %v2730 = vmul.f32 %v2721, %v2721
      %v2731 = vmul.f32 %v2726, %v2726
      %v2732 = vmul.f32 %v2716, %v2729
      %v2733 = vmul.f32 %v2721, %v2730
      %v2734 = vmul.f32 %v2726, %v2731
      %v2735 = vmul.f32 %v2732, 0.044715
      %v2736 = vmul.f32 %v2733, 0.044715
      %v2737 = vmul.f32 %v2734, 0.044715
      %v2738 = vadd.f32 %v2716, %v2735
      %v2739 = vadd.f32 %v2721, %v2736
      %v2740 = vadd.f32 %v2726, %v2737
      %v2741 = vmul.f32 %v2738, 0.7978846
      %v2742 = vmul.f32 %v2739, 0.7978846
      %v2743 = vmul.f32 %v2740, 0.7978846
      %v2744 = vtanh.pop %v2741
      %v2745 = vtanh.pop %v2742
      %v2746 = vtanh.pop %v2743
      %v2747 = vadd.f32 %v2744, 1.0
      %v2748 = vadd.f32 %v2745, 1.0
      %v2749 = vadd.f32 %v2746, 1.0
      %v2750 = vmul.f32 %v2747, 0.5
      %v2751 = vmul.f32 %v2748, 0.5
      %v2752 = vmul.f32 %v2749, 0.5
      %v2753 = vmul.f32 %v2716, %v2750
      %v2754 = vmul.f32 %v2721, %v2751
      %v2755 = vmul.f32 %v2726, %v2752
      %s2756 = scalar_lea.vmem %s706, 32
      %v2757 = vld [vmem:[%s2756] sm:$0xff]
      %v2758 = vld [vmem:[%s2756 + $0x8] sm:$0xff]
      %v2759 = vld [vmem:[%s2756 + $0x10] sm:$0xff]
      %v2760 = vld [vmem:[%s2756 + $0x18] sm:$0xff]
      %s2761 = scalar_lea.vmem %s710, 1
      %v2762 = vld [vmem:[%s2761] sm:$0x1]
      %v2764 = vlaneseq
      %v2765 = vshrl.u32 %v2764, 7
      %v2766 = vsub.s32 0, %v2765
      %v2767 = vrot.slane %v2762, %v2766
      %v2770 = vsel %vm1727, %v2753, 0
      %v2773 = vsel %vm1727, %v2754, 0
      %v2776 = vsel %vm1727, %v2755, 0
      %2778 = vmatprep.subr.mxu0 0.0
      %2779 = vmatpush1.msra.mxu0 %v2757
      %2780 = vmatprep.subr.mxu0 0.0
      %2781 = vmatpush1.msra.mxu0 %v2758
      %2782 = vmatprep.subr.mxu0 0.0
      %2783 = vmatpush1.msra.mxu0 %v2759
      %2784 = vmatprep.subr.mxu0 0.0
      %2785 = vmatpush1.msra.mxu0 %v2760
      %2786 = vmatprep.subr.mxu0 0.0
      %2787 = vmatpush1.msra.mxu0 0.0
      %2788 = vmatprep.subr.mxu0 0.0
      %2789 = vmatpush1.msra.mxu0 0.0
      %2790 = vmatprep.subr.mxu0 0.0
      %2791 = vmatpush1.msra.mxu0 0.0
      %2792 = vmatprep.subr.mxu0 0.0
      %2793 = vmatpush1.msra.mxu0 0.0
      %2794 = vmatprep.subr.mxu0 0.0
      %2795 = vmatpush1.msra.mxu0 0.0
      %2796 = vmatprep.subr.mxu0 0.0
      %2797 = vmatpush1.msra.mxu0 0.0
      %2798 = vmatprep.subr.mxu0 0.0
      %2799 = vmatpush1.msra.mxu0 0.0
      %2800 = vmatprep.subr.mxu0 0.0
      %2801 = vmatpush1.msra.mxu0 0.0
      %2802 = vmatprep.subr.mxu0 0.0
      %2803 = vmatpush1.msra.mxu0 0.0
      %2804 = vmatprep.subr.mxu0 0.0
      %2805 = vmatpush1.msra.mxu0 0.0
      %2806 = vmatprep.subr.mxu0 0.0
      %2807 = vmatpush1.msra.mxu0 0.0
      %2808 = vmatprep.subr.mxu0 0.0
      %2809 = vmatpush1.msra.mxu0 0.0
      %2810 = vmatprep.subr.mxu0 0.0
      %2811 = vmatpush1.msra.mxu0 0.0
      %2812 = vmatprep.subr.mxu0 0.0
      %2813 = vmatpush1.msra.mxu0 0.0
      %2814 = vmatprep.subr.mxu0 0.0
      %2815 = vmatpush1.msra.mxu0 0.0
      %2816 = vmatprep.subr.mxu0 0.0
      %2817 = vmatpush1.msra.mxu0 0.0
      %2818 = vmatprep.subr.mxu0 0.0
      %2819 = vmatpush1.msra.mxu0 0.0
      %2820 = vmatprep.subr.mxu0 0.0
      %2821 = vmatpush1.msra.mxu0 0.0
      %2822 = vmatprep.subr.mxu0 0.0
      %2823 = vmatpush1.msra.mxu0 0.0
      %2824 = vmatprep.subr.mxu0 0.0
      %2825 = vmatpush1.msra.mxu0 0.0
      %2826 = vmatprep.subr.mxu0 0.0
      %2827 = vmatpush1.msra.mxu0 0.0
      %2828 = vmatprep.subr.mxu0 0.0
      %2829 = vmatpush1.msra.mxu0 0.0
      %2830 = vmatprep.subr.mxu0 0.0
      %2831 = vmatpush1.msra.mxu0 0.0
      %2832 = vmatprep.subr.mxu0 0.0
      %2833 = vmatpush1.msra.mxu0 0.0
      %2834 = vmatprep.subr.mxu0 0.0
      %2835 = vmatpush1.msra.mxu0 0.0
      %2836 = vmatprep.subr.mxu0 0.0
      %2837 = vmatpush1.msra.mxu0 0.0
      %2838 = vmatprep.subr.mxu0 0.0
      %2839 = vmatpush1.msra.mxu0 0.0
      %2840 = vmatprep.subr.mxu0 0.0
      %2841 = vmatpush1.msra.mxu0 0.0
      %2842 = vmatprep.mubr.f32.mxu0 0.0
      %2843 = vmatmul.mubr.f32.gmra.mrb[0].mxu0 %v2770
      %v2844 = vpop.f32.mrb[0].mxu0
      %v2845 = vadd.f32 %v2767, %v2844
      %v2846 = vpop.f32.mrb[0].mxu0
      %2847 = vmatprep.mubr.f32.mxu0 0.0
      %2848 = vmatmul.mubr.f32.gmra.mrb[0].mxu0 %v2773
      %v2849 = vpop.f32.mrb[0].mxu0
      %v2850 = vpop.f32.mrb[0].mxu0
      %2851 = vmatprep.mubr.f32.mxu0 0.0
      %2852 = vmatmul.mubr.f32.gmra.mrb[0].mxu0 %v2776
      %v2853 = vpop.f32.mrb[0].mxu0
      %v2854 = vpop.f32.mrb[0].mxu0
      %2855 = vdwg.mxu0
      %v2856 = vadd.f32 %v2845, %v2627
      %s2857 = scalar_lea.vmem %s714, 1
      %v2858 = vld [vmem:[%s2857] sm:$0x1]
      %s2859 = scalar_lea.vmem %s718, 1
      %v2860 = vld [vmem:[%s2859] sm:$0x1]
      %v2861 = vsel %vm826, %v2856, 0.0
      %2862 = vadd.xlane.f32.xlu0 %v2861
      %v2863 = vpop.xlane.xlu0 %2862
      %v2864 = vmul.f32 %v2863, %v1543
      %v2865 = vsub.f32 %v2856, %v2864
      %v2866 = vmul.f32 %v2865, %v2865
      %v2867 = vsel %vm826, %v2866, 0.0
      %2868 = vadd.xlane.f32.xlu0 %v2867
      %v2869 = vpop.xlane.xlu0 %2868
      %v2870 = vmul.f32 %v2869, %v1543
      %v2871 = vadd.f32 %v2870, 1e-05
      %v2872 = vrsqrt.pop %v2871
      %v2873 = vmul.f32 %v2865, %v2872
      %v2875 = vlaneseq
      %v2876 = vshrl.u32 %v2875, 7
      %v2877 = vsub.s32 0, %v2876
      %v2878 = vrot.slane %v2858, %v2877
      %v2880 = vmul.f32 %v2873, %v2878
      %v2882 = vlaneseq
      %v2883 = vshrl.u32 %v2882, 7
      %v2884 = vsub.s32 0, %v2883
      %v2885 = vrot.slane %v2860, %v2884
      %v2887 = vadd.f32 %v2880, %v2885
      %2888 = vst.msk [vmem:[%s722] sm:$0x1] %vm824, %v2887
      %s2889 = scalar_lea.vmem %s0, 16
      %v2890 = vld [vmem:[%s2889] sm:$0xff]
      %v2891 = vld [vmem:[%s2889 + $0x8] sm:$0xff]
      %v2893 = vsel %vm741, %v2890, 0
      %v2896 = vsel %vm741, %v2891, 0
      %2898 = vmatprep.subr.mxu0 0.0
      %2899 = vmatpush1.msra.mxu0 %v723
      %2900 = vmatprep.subr.mxu0 0.0
      %2901 = vmatpush1.msra.mxu0 %v724
      %2902 = vmatprep.subr.mxu0 0.0
      %2903 = vmatpush1.msra.mxu0 %v725
      %2904 = vmatprep.subr.mxu0 0.0
      %2905 = vmatpush1.msra.mxu0 %v726
      %2906 = vmatprep.subr.mxu0 0.0
      %2907 = vmatpush1.msra.mxu0 %v727
      %2908 = vmatprep.subr.mxu0 0.0
      %2909 = vmatpush1.msra.mxu0 %v728
      %2910 = vmatprep.subr.mxu0 0.0
      %2911 = vmatpush1.msra.mxu0 0.0
      %2912 = vmatprep.subr.mxu0 0.0
      %2913 = vmatpush1.msra.mxu0 0.0
      %2914 = vmatprep.subr.mxu0 0.0
      %2915 = vmatpush1.msra.mxu0 0.0
      %2916 = vmatprep.subr.mxu0 0.0
      %2917 = vmatpush1.msra.mxu0 0.0
      %2918 = vmatprep.subr.mxu0 0.0
      %2919 = vmatpush1.msra.mxu0 0.0
      %2920 = vmatprep.subr.mxu0 0.0
      %2921 = vmatpush1.msra.mxu0 0.0
      %2922 = vmatprep.subr.mxu0 0.0
      %2923 = vmatpush1.msra.mxu0 0.0
      %2924 = vmatprep.subr.mxu0 0.0
      %2925 = vmatpush1.msra.mxu0 0.0
      %2926 = vmatprep.subr.mxu0 0.0
      %2927 = vmatpush1.msra.mxu0 0.0
      %2928 = vmatprep.subr.mxu0 0.0
      %2929 = vmatpush1.msra.mxu0 0.0
      %2930 = vmatprep.subr.mxu0 0.0
      %2931 = vmatpush1.msra.mxu0 0.0
      %2932 = vmatprep.subr.mxu0 0.0
      %2933 = vmatpush1.msra.mxu0 0.0
      %2934 = vmatprep.subr.mxu0 0.0
      %2935 = vmatpush1.msra.mxu0 0.0
      %2936 = vmatprep.subr.mxu0 0.0
      %2937 = vmatpush1.msra.mxu0 0.0
      %2938 = vmatprep.subr.mxu0 0.0
      %2939 = vmatpush1.msra.mxu0 0.0
      %2940 = vmatprep.subr.mxu0 0.0
      %2941 = vmatpush1.msra.mxu0 0.0
      %2942 = vmatprep.subr.mxu0 0.0
      %2943 = vmatpush1.msra.mxu0 0.0
      %2944 = vmatprep.subr.mxu0 0.0
      %2945 = vmatpush1.msra.mxu0 0.0
      %2946 = vmatprep.subr.mxu0 0.0
      %2947 = vmatpush1.msra.mxu0 0.0
      %2948 = vmatprep.subr.mxu0 0.0
      %2949 = vmatpush1.msra.mxu0 0.0
      %2950 = vmatprep.subr.mxu0 0.0
      %2951 = vmatpush1.msra.mxu0 0.0
      %2952 = vmatprep.subr.mxu0 0.0
      %2953 = vmatpush1.msra.mxu0 0.0
      %2954 = vmatprep.subr.mxu0 0.0
      %2955 = vmatpush1.msra.mxu0 0.0
      %2956 = vmatprep.subr.mxu0 0.0
      %2957 = vmatpush1.msra.mxu0 0.0
      %2958 = vmatprep.subr.mxu0 0.0
      %2959 = vmatpush1.msra.mxu0 0.0
      %2960 = vmatprep.subr.mxu0 0.0
      %2961 = vmatpush1.msra.mxu0 0.0
      %2962 = vmatprep.mubr.f32.mxu0 0.0
      %2963 = vmatmul.mubr.f32.gmra.mrb[0].mxu0 %v2893
      %v2964 = vpop.f32.mrb[0].mxu0
      %v2965 = vadd.f32 %v739, %v2964
      %v2966 = vpop.f32.mrb[0].mxu0
      %2967 = vmatprep.mubr.f32.mxu0 0.0
      %2968 = vmatmul.mubr.f32.gmra.mrb[0].mxu0 %v2896
      %v2969 = vpop.f32.mrb[0].mxu0
      %v2970 = vadd.f32 %v739, %v2969
      %v2971 = vpop.f32.mrb[0].mxu0
      %2972 = vdwg.mxu0
      %v2973 = vld [vmem:[%s669] sm:$0x1]
      %2974 = vst.msk [vmem:[#allocation2] sm:$0x1] %vm824, %v2973
      %2975 = vst.msk [vmem:[#allocation2 + $0x1] sm:$0xff] %vm826, %v2965
      %2976 = vst.msk [vmem:[#allocation2 + $0x9] sm:$0xff] %vm826, %v2970
      %v2977 = vld [vmem:[#allocation2] sm:$0xff]
      %v2978 = vld [vmem:[#allocation2 + $0x8] sm:$0xff]
      %v2979 = vld [vmem:[#allocation2 + $0x10] sm:$0x1]
      %v2980 = vadd.f32 %v2977, %v730
      %v2981 = vadd.f32 %v2978, %v731
      %v2982 = vadd.f32 %v2979, %v732
      %v2983 = vld [vmem:[%s679] sm:$0xff]
      %v2985 = vsel %vm826, %v2980, 0
      %v2988 = vsel %vm826, %v2981, 0
      %v2991 = vsel %vm826, %v2982, 0
      %2993 = vmatprep.subr.mxu0 0.0
      %2994 = vmatpush1.msra.mxu0 %v2983
      %2995 = vmatprep.subr.mxu0 0.0
      %2996 = vmatpush1.msra.mxu0 0.0
      %2997 = vmatprep.subr.mxu0 0.0
      %2998 = vmatpush1.msra.mxu0 0.0
      %2999 = vmatprep.subr.mxu0 0.0
      %3000 = vmatpush1.msra.mxu0 0.0
      %3001 = vmatprep.subr.mxu0 0.0
      %3002 = vmatpush1.msra.mxu0 0.0
      %3003 = vmatprep.subr.mxu0 0.0
      %3004 = vmatpush1.msra.mxu0 0.0
      %3005 = vmatprep.subr.mxu0 0.0
      %3006 = vmatpush1.msra.mxu0 0.0
      %3007 = vmatprep.subr.mxu0 0.0
      %3008 = vmatpush1.msra.mxu0 0.0
      %3009 = vmatprep.subr.mxu0 0.0
      %3010 = vmatpush1.msra.mxu0 0.0
      %3011 = vmatprep.subr.mxu0 0.0
      %3012 = vmatpush1.msra.mxu0 0.0
      %3013 = vmatprep.subr.mxu0 0.0
      %3014 = vmatpush1.msra.mxu0 0.0
      %3015 = vmatprep.subr.mxu0 0.0
      %3016 = vmatpush1.msra.mxu0 0.0
      %3017 = vmatprep.subr.mxu0 0.0
      %3018 = vmatpush1.msra.mxu0 0.0
      %3019 = vmatprep.subr.mxu0 0.0
      %3020 = vmatpush1.msra.mxu0 0.0
      %3021 = vmatprep.subr.mxu0 0.0
      %3022 = vmatpush1.msra.mxu0 0.0
      %3023 = vmatprep.subr.mxu0 0.0
      %3024 = vmatpush1.msra.mxu0 0.0
      %3025 = vmatprep.subr.mxu0 0.0
      %3026 = vmatpush1.msra.mxu0 0.0
      %3027 = vmatprep.subr.mxu0 0.0
      %3028 = vmatpush1.msra.mxu0 0.0
      %3029 = vmatprep.subr.mxu0 0.0
      %3030 = vmatpush1.msra.mxu0 0.0
      %3031 = vmatprep.subr.mxu0 0.0
      %3032 = vmatpush1.msra.mxu0 0.0
      %3033 = vmatprep.subr.mxu0 0.0
      %3034 = vmatpush1.msra.mxu0 0.0
      %3035 = vmatprep.subr.mxu0 0.0
      %3036 = vmatpush1.msra.mxu0 0.0
      %3037 = vmatprep.subr.mxu0 0.0
      %3038 = vmatpush1.msra.mxu0 0.0
      %3039 = vmatprep.subr.mxu0 0.0
      %3040 = vmatpush1.msra.mxu0 0.0
      %3041 = vmatprep.subr.mxu0 0.0
      %3042 = vmatpush1.msra.mxu0 0.0
      %3043 = vmatprep.subr.mxu0 0.0
      %3044 = vmatpush1.msra.mxu0 0.0
      %3045 = vmatprep.subr.mxu0 0.0
      %3046 = vmatpush1.msra.mxu0 0.0
      %3047 = vmatprep.subr.mxu0 0.0
      %3048 = vmatpush1.msra.mxu0 0.0
      %3049 = vmatprep.subr.mxu0 0.0
      %3050 = vmatpush1.msra.mxu0 0.0
      %3051 = vmatprep.subr.mxu0 0.0
      %3052 = vmatpush1.msra.mxu0 0.0
      %3053 = vmatprep.subr.mxu0 0.0
      %3054 = vmatpush1.msra.mxu0 0.0
      %3055 = vmatprep.subr.mxu0 0.0
      %3056 = vmatpush1.msra.mxu0 0.0
      %3057 = vmatprep.mubr.f32.mxu0 0.0
      %3058 = vmatmul.mubr.f32.gmra.mrb[0].mxu0 %v2985
      %v3059 = vpop.f32.mrb[0].mxu0
      %v3060 = vadd.f32 0.0, %v3059
      %v3061 = vpop.f32.mrb[0].mxu0
      %3062 = vmatprep.mubr.f32.mxu0 0.0
      %3063 = vmatmul.mubr.f32.gmra.mrb[0].mxu0 %v2988
      %v3064 = vpop.f32.mrb[0].mxu0
      %v3065 = vadd.f32 0.0, %v3064
      %v3066 = vpop.f32.mrb[0].mxu0
      %3067 = vmatprep.mubr.f32.mxu0 0.0
      %3068 = vmatmul.mubr.f32.gmra.mrb[0].mxu0 %v2991
      %v3069 = vpop.f32.mrb[0].mxu0
      %v3070 = vadd.f32 0.0, %v3069
      %v3071 = vpop.f32.mrb[0].mxu0
      %3072 = vdwg.mxu0
      %3073 = vst.msk [vmem:[#allocation3] sm:$0xff] %vm925, %v3060
      %3074 = vst.msk [vmem:[#allocation3 + $0x8] sm:$0xff] %vm925, %v3065
      %3075 = vst.msk [vmem:[#allocation3 + $0x10] sm:$0x1] %vm928, %v3070
      %v3076 = vld [vmem:[#allocation3] sm:$0xff]
      %v3077 = vld [vmem:[#allocation3 + $0x8] sm:$0xff]
      %v3078 = vld [vmem:[#allocation3 + $0x10] sm:$0x1]
      %3082 = vrot.lane.b32.xlu0 %v3076, 120
      %v3083 = vpop.permute.xlu0 %3082
      %3084 = vrot.lane.b32.xlu0 %v3077, 120
      %v3085 = vpop.permute.xlu0 %3084
      %3086 = vrot.lane.b32.xlu0 %v3078, 120
      %v3087 = vpop.permute.xlu0 %3086
      %v3088 = vsel %vm942, %v3076, 0
      %v3090 = vsel %vm942, %v3077, 0
      %v3092 = vsel %vm942, %v3078, 0
      %v3094 = vsel %vm942, %v3083, 0
      %v3096 = vsel %vm942, %v3085, 0
      %v3098 = vsel %vm942, %v3087, 0
      %3100 = vmatprep.subr.mxu0 0.0
      %3101 = vmatpush1.xpose.msra.mxu0 %v3094
      %3102 = vmatprep.subr.mxu0 0.0
      %3103 = vmatpush1.xpose.msra.mxu0 %v3096
      %3104 = vmatprep.subr.mxu0 0.0
      %3105 = vmatpush1.xpose.msra.mxu0 %v3098
      %3106 = vmatprep.subr.mxu0 0.0
      %3107 = vmatpush1.xpose.msra.mxu0 0.0
      %3108 = vmatprep.subr.mxu0 0.0
      %3109 = vmatpush1.xpose.msra.mxu0 0.0
      %3110 = vmatprep.subr.mxu0 0.0
      %3111 = vmatpush1.xpose.msra.mxu0 0.0
      %3112 = vmatprep.subr.mxu0 0.0
      %3113 = vmatpush1.xpose.msra.mxu0 0.0
      %3114 = vmatprep.subr.mxu0 0.0
      %3115 = vmatpush1.xpose.msra.mxu0 0.0
      %3116 = vmatprep.subr.mxu0 0.0
      %3117 = vmatpush1.xpose.msra.mxu0 0.0
      %3118 = vmatprep.subr.mxu0 0.0
      %3119 = vmatpush1.xpose.msra.mxu0 0.0
      %3120 = vmatprep.subr.mxu0 0.0
      %3121 = vmatpush1.xpose.msra.mxu0 0.0
      %3122 = vmatprep.subr.mxu0 0.0
      %3123 = vmatpush1.xpose.msra.mxu0 0.0
      %3124 = vmatprep.subr.mxu0 0.0
      %3125 = vmatpush1.xpose.msra.mxu0 0.0
      %3126 = vmatprep.subr.mxu0 0.0
      %3127 = vmatpush1.xpose.msra.mxu0 0.0
      %3128 = vmatprep.subr.mxu0 0.0
      %3129 = vmatpush1.xpose.msra.mxu0 0.0
      %3130 = vmatprep.subr.mxu0 0.0
      %3131 = vmatpush1.xpose.msra.mxu0 0.0
      %3132 = vmatprep.subr.mxu0 0.0
      %3133 = vmatpush1.xpose.msra.mxu0 0.0
      %3134 = vmatprep.subr.mxu0 0.0
      %3135 = vmatpush1.xpose.msra.mxu0 0.0
      %3136 = vmatprep.subr.mxu0 0.0
      %3137 = vmatpush1.xpose.msra.mxu0 0.0
      %3138 = vmatprep.subr.mxu0 0.0
      %3139 = vmatpush1.xpose.msra.mxu0 0.0
      %3140 = vmatprep.subr.mxu0 0.0
      %3141 = vmatpush1.xpose.msra.mxu0 0.0
      %3142 = vmatprep.subr.mxu0 0.0
      %3143 = vmatpush1.xpose.msra.mxu0 0.0
      %3144 = vmatprep.subr.mxu0 0.0
      %3145 = vmatpush1.xpose.msra.mxu0 0.0
      %3146 = vmatprep.subr.mxu0 0.0
      %3147 = vmatpush1.xpose.msra.mxu0 0.0
      %3148 = vmatprep.subr.mxu0 0.0
      %3149 = vmatpush1.xpose.msra.mxu0 0.0
      %3150 = vmatprep.subr.mxu0 0.0
      %3151 = vmatpush1.xpose.msra.mxu0 0.0
      %3152 = vmatprep.subr.mxu0 0.0
      %3153 = vmatpush1.xpose.msra.mxu0 0.0
      %3154 = vmatprep.subr.mxu0 0.0
      %3155 = vmatpush1.xpose.msra.mxu0 0.0
      %3156 = vmatprep.subr.mxu0 0.0
      %3157 = vmatpush1.xpose.msra.mxu0 0.0
      %3158 = vmatprep.subr.mxu0 0.0
      %3159 = vmatpush1.xpose.msra.mxu0 0.0
      %3160 = vmatprep.subr.mxu0 0.0
      %3161 = vmatpush1.xpose.msra.mxu0 0.0
      %3162 = vmatprep.subr.mxu0 0.0
      %3163 = vmatpush1.xpose.msra.mxu0 0.0
      %3164 = vmatprep.mubr.f32.mxu0 0.0
      %3165 = vmatmul.mubr.f32.gmra.mrb[0].mxu0 %v3088
      %v3166 = vpop.f32.mrb[0].mxu0
      %v3167 = vadd.f32 0.0, %v3166
      %v3168 = vpop.f32.mrb[0].mxu0
      %3169 = vmatprep.mubr.f32.mxu0 0.0
      %3170 = vmatmul.mubr.f32.gmra.mrb[0].mxu0 %v3090
      %v3171 = vpop.f32.mrb[0].mxu0
      %v3172 = vadd.f32 0.0, %v3171
      %v3173 = vpop.f32.mrb[0].mxu0
      %3174 = vmatprep.mubr.f32.mxu0 0.0
      %3175 = vmatmul.mubr.f32.gmra.mrb[0].mxu0 %v3092
      %v3176 = vpop.f32.mrb[0].mxu0
      %v3177 = vadd.f32 0.0, %v3176
      %v3178 = vpop.f32.mrb[0].mxu0
      %3179 = vdwg.mxu0
      %v3180 = vmul.f32 %v3167, 0.5
      %v3181 = vmul.f32 %v3172, 0.5
      %v3182 = vmul.f32 %v3177, 0.5
      %v3183 = vsel %vm1038, %v3180, -inf
      %3184 = vmax.xlane.f32.xlu0 %v3183
      %v3185 = vpop.xlane.xlu0 %3184
      %v3186 = vsel %vm1038, %v3181, -inf
      %3187 = vmax.xlane.f32.xlu0 %v3186
      %v3188 = vpop.xlane.xlu0 %3187
      %v3189 = vsel %vm1045, %v3182, -inf
      %3190 = vmax.xlane.f32.xlu0 %v3189
      %v3191 = vpop.xlane.xlu0 %3190
      %v3192 = vsub.f32 %v3180, %v3185
      %v3193 = vsub.f32 %v3181, %v3188
      %v3194 = vsub.f32 %v3182, %v3191
      %v3195 = vmul.f32 %v3192, 1.442695
      %v3196 = vpow.pop %v3195
      %v3197 = vmul.f32 %v3193, 1.442695
      %v3198 = vpow.pop %v3197
      %v3199 = vmul.f32 %v3194, 1.442695
      %v3200 = vpow.pop %v3199
      %v3201 = vsel %vm1038, %v3196, 0.0
      %3202 = vadd.xlane.f32.xlu0 %v3201
      %v3203 = vpop.xlane.xlu0 %3202
      %v3204 = vsel %vm1038, %v3198, 0.0
      %3205 = vadd.xlane.f32.xlu0 %v3204
      %v3206 = vpop.xlane.xlu0 %3205
      %v3207 = vsel %vm1045, %v3200, 0.0
      %3208 = vadd.xlane.f32.xlu0 %v3207
      %v3209 = vpop.xlane.xlu0 %3208
      %v3210 = vrcp.pop %v3203
      %v3211 = vrcp.pop %v3206
      %v3212 = vrcp.pop %v3209
      %v3213 = vmul.f32 %v3196, %v3210
      %v3214 = vmul.f32 %v3198, %v3211
      %v3215 = vmul.f32 %v3200, %v3212
      %3216 = vrot.lane.b32.xlu0 %v3076, 112
      %v3217 = vpop.permute.xlu0 %3216
      %3218 = vrot.lane.b32.xlu0 %v3077, 112
      %v3219 = vpop.permute.xlu0 %3218
      %3220 = vrot.lane.b32.xlu0 %v3078, 112
      %v3221 = vpop.permute.xlu0 %3220
      %v3225 = vsel %vm1038, %v3213, 0
      %v3228 = vsel %vm1038, %v3214, 0
      %v3231 = vsel %vm1038, %v3215, 0
      %v3233 = vsel %vm1090, %v3221, 0
      %3235 = vmatprep.subr.mxu0 0.0
      %3236 = vmatpush1.msra.mxu0 %v3217
      %3237 = vmatprep.subr.mxu0 0.0
      %3238 = vmatpush1.msra.mxu0 %v3219
      %3239 = vmatprep.subr.mxu0 0.0
      %3240 = vmatpush1.msra.mxu0 %v3233
      %3241 = vmatprep.subr.mxu0 0.0
      %3242 = vmatpush1.msra.mxu0 0.0
      %3243 = vmatprep.subr.mxu0 0.0
      %3244 = vmatpush1.msra.mxu0 0.0
      %3245 = vmatprep.subr.mxu0 0.0
      %3246 = vmatpush1.msra.mxu0 0.0
      %3247 = vmatprep.subr.mxu0 0.0
      %3248 = vmatpush1.msra.mxu0 0.0
      %3249 = vmatprep.subr.mxu0 0.0
      %3250 = vmatpush1.msra.mxu0 0.0
      %3251 = vmatprep.subr.mxu0 0.0
      %3252 = vmatpush1.msra.mxu0 0.0
      %3253 = vmatprep.subr.mxu0 0.0
      %3254 = vmatpush1.msra.mxu0 0.0
      %3255 = vmatprep.subr.mxu0 0.0
      %3256 = vmatpush1.msra.mxu0 0.0
      %3257 = vmatprep.subr.mxu0 0.0
      %3258 = vmatpush1.msra.mxu0 0.0
      %3259 = vmatprep.subr.mxu0 0.0
      %3260 = vmatpush1.msra.mxu0 0.0
      %3261 = vmatprep.subr.mxu0 0.0
      %3262 = vmatpush1.msra.mxu0 0.0
      %3263 = vmatprep.subr.mxu0 0.0
      %3264 = vmatpush1.msra.mxu0 0.0
      %3265 = vmatprep.subr.mxu0 0.0
      %3266 = vmatpush1.msra.mxu0 0.0
      %3267 = vmatprep.subr.mxu0 0.0
      %3268 = vmatpush1.msra.mxu0 0.0
      %3269 = vmatprep.subr.mxu0 0.0
      %3270 = vmatpush1.msra.mxu0 0.0
      %3271 = vmatprep.subr.mxu0 0.0
      %3272 = vmatpush1.msra.mxu0 0.0
      %3273 = vmatprep.subr.mxu0 0.0
      %3274 = vmatpush1.msra.mxu0 0.0
      %3275 = vmatprep.subr.mxu0 0.0
      %3276 = vmatpush1.msra.mxu0 0.0
      %3277 = vmatprep.subr.mxu0 0.0
      %3278 = vmatpush1.msra.mxu0 0.0
      %3279 = vmatprep.subr.mxu0 0.0
      %3280 = vmatpush1.msra.mxu0 0.0
      %3281 = vmatprep.subr.mxu0 0.0
      %3282 = vmatpush1.msra.mxu0 0.0
      %3283 = vmatprep.subr.mxu0 0.0
      %3284 = vmatpush1.msra.mxu0 0.0
      %3285 = vmatprep.subr.mxu0 0.0
      %3286 = vmatpush1.msra.mxu0 0.0
      %3287 = vmatprep.subr.mxu0 0.0
      %3288 = vmatpush1.msra.mxu0 0.0
      %3289 = vmatprep.subr.mxu0 0.0
      %3290 = vmatpush1.msra.mxu0 0.0
      %3291 = vmatprep.subr.mxu0 0.0
      %3292 = vmatpush1.msra.mxu0 0.0
      %3293 = vmatprep.subr.mxu0 0.0
      %3294 = vmatpush1.msra.mxu0 0.0
      %3295 = vmatprep.subr.mxu0 0.0
      %3296 = vmatpush1.msra.mxu0 0.0
      %3297 = vmatprep.subr.mxu0 0.0
      %3298 = vmatpush1.msra.mxu0 0.0
      %3299 = vmatprep.mubr.f32.mxu0 0.0
      %3300 = vmatmul.mubr.f32.gmra.mrb[0].mxu0 %v3225
      %v3301 = vpop.f32.mrb[0].mxu0
      %v3302 = vadd.f32 0.0, %v3301
      %v3303 = vpop.f32.mrb[0].mxu0
      %3304 = vmatprep.mubr.f32.mxu0 0.0
      %3305 = vmatmul.mubr.f32.gmra.mrb[0].mxu0 %v3228
      %v3306 = vpop.f32.mrb[0].mxu0
      %v3307 = vadd.f32 0.0, %v3306
      %v3308 = vpop.f32.mrb[0].mxu0
      %3309 = vmatprep.mubr.f32.mxu0 0.0
      %3310 = vmatmul.mubr.f32.gmra.mrb[0].mxu0 %v3231
      %v3311 = vpop.f32.mrb[0].mxu0
      %v3312 = vadd.f32 0.0, %v3311
      %v3313 = vpop.f32.mrb[0].mxu0
      %3314 = vdwg.mxu0
      %3315 = vst.msk [vmem:[#allocation4] sm:$0xff] %vm942, %v3302
      %3316 = vst.msk [vmem:[#allocation4 + $0x8] sm:$0xff] %vm942, %v3307
      %3317 = vst.msk [vmem:[#allocation4 + $0x10] sm:$0x1] %vm1175, %v3312
      %v3318 = vld [vmem:[#allocation3] sm:$0xff]
      %v3319 = vld [vmem:[#allocation3 + $0x8] sm:$0xff]
      %v3320 = vld [vmem:[#allocation3 + $0x10] sm:$0x1]
      %3324 = vrot.lane.b32.xlu0 %v3318, 124
      %v3325 = vpop.permute.xlu0 %3324
      %3326 = vrot.lane.b32.xlu0 %v3319, 124
      %v3327 = vpop.permute.xlu0 %3326
      %3328 = vrot.lane.b32.xlu0 %v3320, 124
      %v3329 = vpop.permute.xlu0 %3328
      %3330 = vrot.lane.b32.xlu0 %v3318, 116
      %v3331 = vpop.permute.xlu0 %3330
      %3332 = vrot.lane.b32.xlu0 %v3319, 116
      %v3333 = vpop.permute.xlu0 %3332
      %3334 = vrot.lane.b32.xlu0 %v3320, 116
      %v3335 = vpop.permute.xlu0 %3334
      %v3336 = vsel %vm942, %v3325, 0
      %v3338 = vsel %vm942, %v3327, 0
      %v3340 = vsel %vm942, %v3329, 0
      %v3342 = vsel %vm942, %v3331, 0
      %v3344 = vsel %vm942, %v3333, 0
      %v3346 = vsel %vm942, %v3335, 0
      %3348 = vmatprep.subr.mxu0 0.0
      %3349 = vmatpush1.xpose.msra.mxu0 %v3342
      %3350 = vmatprep.subr.mxu0 0.0
      %3351 = vmatpush1.xpose.msra.mxu0 %v3344
      %3352 = vmatprep.subr.mxu0 0.0
      %3353 = vmatpush1.xpose.msra.mxu0 %v3346
      %3354 = vmatprep.subr.mxu0 0.0
      %3355 = vmatpush1.xpose.msra.mxu0 0.0
      %3356 = vmatprep.subr.mxu0 0.0
      %3357 = vmatpush1.xpose.msra.mxu0 0.0
      %3358 = vmatprep.subr.mxu0 0.0
      %3359 = vmatpush1.xpose.msra.mxu0 0.0
      %3360 = vmatprep.subr.mxu0 0.0
      %3361 = vmatpush1.xpose.msra.mxu0 0.0
      %3362 = vmatprep.subr.mxu0 0.0
      %3363 = vmatpush1.xpose.msra.mxu0 0.0
      %3364 = vmatprep.subr.mxu0 0.0
      %3365 = vmatpush1.xpose.msra.mxu0 0.0
      %3366 = vmatprep.subr.mxu0 0.0
      %3367 = vmatpush1.xpose.msra.mxu0 0.0
      %3368 = vmatprep.subr.mxu0 0.0
      %3369 = vmatpush1.xpose.msra.mxu0 0.0
      %3370 = vmatprep.subr.mxu0 0.0
      %3371 = vmatpush1.xpose.msra.mxu0 0.0
      %3372 = vmatprep.subr.mxu0 0.0
      %3373 = vmatpush1.xpose.msra.mxu0 0.0
      %3374 = vmatprep.subr.mxu0 0.0
      %3375 = vmatpush1.xpose.msra.mxu0 0.0
      %3376 = vmatprep.subr.mxu0 0.0
      %3377 = vmatpush1.xpose.msra.mxu0 0.0
      %3378 = vmatprep.subr.mxu0 0.0
      %3379 = vmatpush1.xpose.msra.mxu0 0.0
      %3380 = vmatprep.subr.mxu0 0.0
      %3381 = vmatpush1.xpose.msra.mxu0 0.0
      %3382 = vmatprep.subr.mxu0 0.0
      %3383 = vmatpush1.xpose.msra.mxu0 0.0
      %3384 = vmatprep.subr.mxu0 0.0
      %3385 = vmatpush1.xpose.msra.mxu0 0.0
      %3386 = vmatprep.subr.mxu0 0.0
      %3387 = vmatpush1.xpose.msra.mxu0 0.0
      %3388 = vmatprep.subr.mxu0 0.0
      %3389 = vmatpush1.xpose.msra.mxu0 0.0
      %3390 = vmatprep.subr.mxu0 0.0
      %3391 = vmatpush1.xpose.msra.mxu0 0.0
      %3392 = vmatprep.subr.mxu0 0.0
      %3393 = vmatpush1.xpose.msra.mxu0 0.0
      %3394 = vmatprep.subr.mxu0 0.0
      %3395 = vmatpush1.xpose.msra.mxu0 0.0
      %3396 = vmatprep.subr.mxu0 0.0
      %3397 = vmatpush1.xpose.msra.mxu0 0.0
      %3398 = vmatprep.subr.mxu0 0.0
      %3399 = vmatpush1.xpose.msra.mxu0 0.0
      %3400 = vmatprep.subr.mxu0 0.0
      %3401 = vmatpush1.xpose.msra.mxu0 0.0
      %3402 = vmatprep.subr.mxu0 0.0
      %3403 = vmatpush1.xpose.msra.mxu0 0.0
      %3404 = vmatprep.subr.mxu0 0.0
      %3405 = vmatpush1.xpose.msra.mxu0 0.0
      %3406 = vmatprep.subr.mxu0 0.0
      %3407 = vmatpush1.xpose.msra.mxu0 0.0
      %3408 = vmatprep.subr.mxu0 0.0
      %3409 = vmatpush1.xpose.msra.mxu0 0.0
      %3410 = vmatprep.subr.mxu0 0.0
      %3411 = vmatpush1.xpose.msra.mxu0 0.0
      %3412 = vmatprep.mubr.f32.mxu0 0.0
      %3413 = vmatmul.mubr.f32.gmra.mrb[0].mxu0 %v3336
      %v3414 = vpop.f32.mrb[0].mxu0
      %v3415 = vadd.f32 0.0, %v3414
      %v3416 = vpop.f32.mrb[0].mxu0
      %3417 = vmatprep.mubr.f32.mxu0 0.0
      %3418 = vmatmul.mubr.f32.gmra.mrb[0].mxu0 %v3338
      %v3419 = vpop.f32.mrb[0].mxu0
      %v3420 = vadd.f32 0.0, %v3419
      %v3421 = vpop.f32.mrb[0].mxu0
      %3422 = vmatprep.mubr.f32.mxu0 0.0
      %3423 = vmatmul.mubr.f32.gmra.mrb[0].mxu0 %v3340
      %v3424 = vpop.f32.mrb[0].mxu0
      %v3425 = vadd.f32 0.0, %v3424
      %v3426 = vpop.f32.mrb[0].mxu0
      %3427 = vdwg.mxu0
      %v3428 = vmul.f32 %v3415, 0.5
      %v3429 = vmul.f32 %v3420, 0.5
      %v3430 = vmul.f32 %v3425, 0.5
      %v3431 = vsel %vm1038, %v3428, -inf
      %3432 = vmax.xlane.f32.xlu0 %v3431
      %v3433 = vpop.xlane.xlu0 %3432
      %v3434 = vsel %vm1038, %v3429, -inf
      %3435 = vmax.xlane.f32.xlu0 %v3434
      %v3436 = vpop.xlane.xlu0 %3435
      %v3437 = vsel %vm1045, %v3430, -inf
      %3438 = vmax.xlane.f32.xlu0 %v3437
      %v3439 = vpop.xlane.xlu0 %3438
      %v3440 = vsub.f32 %v3428, %v3433
      %v3441 = vsub.f32 %v3429, %v3436
      %v3442 = vsub.f32 %v3430, %v3439
      %v3443 = vmul.f32 %v3440, 1.442695
      %v3444 = vpow.pop %v3443
      %v3445 = vmul.f32 %v3441, 1.442695
      %v3446 = vpow.pop %v3445
      %v3447 = vmul.f32 %v3442, 1.442695
      %v3448 = vpow.pop %v3447
      %v3449 = vsel %vm1038, %v3444, 0.0
      %3450 = vadd.xlane.f32.xlu0 %v3449
      %v3451 = vpop.xlane.xlu0 %3450
      %v3452 = vsel %vm1038, %v3446, 0.0
      %3453 = vadd.xlane.f32.xlu0 %v3452
      %v3454 = vpop.xlane.xlu0 %3453
      %v3455 = vsel %vm1045, %v3448, 0.0
      %3456 = vadd.xlane.f32.xlu0 %v3455
      %v3457 = vpop.xlane.xlu0 %3456
      %v3458 = vrcp.pop %v3451
      %v3459 = vrcp.pop %v3454
      %v3460 = vrcp.pop %v3457
      %v3461 = vmul.f32 %v3444, %v3458
      %v3462 = vmul.f32 %v3446, %v3459
      %v3463 = vmul.f32 %v3448, %v3460
      %3464 = vrot.lane.b32.xlu0 %v3318, 108
      %v3465 = vpop.permute.xlu0 %3464
      %3466 = vrot.lane.b32.xlu0 %v3319, 108
      %v3467 = vpop.permute.xlu0 %3466
      %3468 = vrot.lane.b32.xlu0 %v3320, 108
      %v3469 = vpop.permute.xlu0 %3468
      %v3473 = vsel %vm1038, %v3461, 0
      %v3476 = vsel %vm1038, %v3462, 0
      %v3479 = vsel %vm1038, %v3463, 0
      %v3481 = vsel %vm1090, %v3469, 0
      %3483 = vmatprep.subr.mxu0 0.0
      %3484 = vmatpush1.msra.mxu0 %v3465
      %3485 = vmatprep.subr.mxu0 0.0
      %3486 = vmatpush1.msra.mxu0 %v3467
      %3487 = vmatprep.subr.mxu0 0.0
      %3488 = vmatpush1.msra.mxu0 %v3481
      %3489 = vmatprep.subr.mxu0 0.0
      %3490 = vmatpush1.msra.mxu0 0.0
      %3491 = vmatprep.subr.mxu0 0.0
      %3492 = vmatpush1.msra.mxu0 0.0
      %3493 = vmatprep.subr.mxu0 0.0
      %3494 = vmatpush1.msra.mxu0 0.0
      %3495 = vmatprep.subr.mxu0 0.0
      %3496 = vmatpush1.msra.mxu0 0.0
      %3497 = vmatprep.subr.mxu0 0.0
      %3498 = vmatpush1.msra.mxu0 0.0
      %3499 = vmatprep.subr.mxu0 0.0
      %3500 = vmatpush1.msra.mxu0 0.0
      %3501 = vmatprep.subr.mxu0 0.0
      %3502 = vmatpush1.msra.mxu0 0.0
      %3503 = vmatprep.subr.mxu0 0.0
      %3504 = vmatpush1.msra.mxu0 0.0
      %3505 = vmatprep.subr.mxu0 0.0
      %3506 = vmatpush1.msra.mxu0 0.0
      %3507 = vmatprep.subr.mxu0 0.0
      %3508 = vmatpush1.msra.mxu0 0.0
      %3509 = vmatprep.subr.mxu0 0.0
      %3510 = vmatpush1.msra.mxu0 0.0
      %3511 = vmatprep.subr.mxu0 0.0
      %3512 = vmatpush1.msra.mxu0 0.0
      %3513 = vmatprep.subr.mxu0 0.0
      %3514 = vmatpush1.msra.mxu0 0.0
      %3515 = vmatprep.subr.mxu0 0.0
      %3516 = vmatpush1.msra.mxu0 0.0
      %3517 = vmatprep.subr.mxu0 0.0
      %3518 = vmatpush1.msra.mxu0 0.0
      %3519 = vmatprep.subr.mxu0 0.0
      %3520 = vmatpush1.msra.mxu0 0.0
      %3521 = vmatprep.subr.mxu0 0.0
      %3522 = vmatpush1.msra.mxu0 0.0
      %3523 = vmatprep.subr.mxu0 0.0
      %3524 = vmatpush1.msra.mxu0 0.0
      %3525 = vmatprep.subr.mxu0 0.0
      %3526 = vmatpush1.msra.mxu0 0.0
      %3527 = vmatprep.subr.mxu0 0.0
      %3528 = vmatpush1.msra.mxu0 0.0
      %3529 = vmatprep.subr.mxu0 0.0
      %3530 = vmatpush1.msra.mxu0 0.0
      %3531 = vmatprep.subr.mxu0 0.0
      %3532 = vmatpush1.msra.mxu0 0.0
      %3533 = vmatprep.subr.mxu0 0.0
      %3534 = vmatpush1.msra.mxu0 0.0
      %3535 = vmatprep.subr.mxu0 0.0
      %3536 = vmatpush1.msra.mxu0 0.0
      %3537 = vmatprep.subr.mxu0 0.0
      %3538 = vmatpush1.msra.mxu0 0.0
      %3539 = vmatprep.subr.mxu0 0.0
      %3540 = vmatpush1.msra.mxu0 0.0
      %3541 = vmatprep.subr.mxu0 0.0
      %3542 = vmatpush1.msra.mxu0 0.0
      %3543 = vmatprep.subr.mxu0 0.0
      %3544 = vmatpush1.msra.mxu0 0.0
      %3545 = vmatprep.subr.mxu0 0.0
      %3546 = vmatpush1.msra.mxu0 0.0
      %3547 = vmatprep.mubr.f32.mxu0 0.0
      %3548 = vmatmul.mubr.f32.gmra.mrb[0].mxu0 %v3473
      %v3549 = vpop.f32.mrb[0].mxu0
      %v3550 = vadd.f32 0.0, %v3549
      %v3551 = vpop.f32.mrb[0].mxu0
      %3552 = vmatprep.mubr.f32.mxu0 0.0
      %3553 = vmatmul.mubr.f32.gmra.mrb[0].mxu0 %v3476
      %v3554 = vpop.f32.mrb[0].mxu0
      %v3555 = vadd.f32 0.0, %v3554
      %v3556 = vpop.f32.mrb[0].mxu0
      %3557 = vmatprep.mubr.f32.mxu0 0.0
      %3558 = vmatmul.mubr.f32.gmra.mrb[0].mxu0 %v3479
      %v3559 = vpop.f32.mrb[0].mxu0
      %v3560 = vadd.f32 0.0, %v3559
      %v3561 = vpop.f32.mrb[0].mxu0
      %3562 = vdwg.mxu0
      %3566 = vrot.lane.b32.xlu0 %v3550, 4
      %v3567 = vpop.permute.xlu0 %3566
      %3568 = vrot.lane.b32.xlu0 %v3555, 4
      %v3569 = vpop.permute.xlu0 %3568
      %3570 = vrot.lane.b32.xlu0 %v3560, 4
      %v3571 = vpop.permute.xlu0 %3570
      %3575 = vst.msk [vmem:[#allocation4] sm:$0xff] %vm1434, %v3567
      %3576 = vst.msk [vmem:[#allocation4 + $0x8] sm:$0xff] %vm1434, %v3569
      %3577 = vst.msk [vmem:[#allocation4 + $0x10] sm:$0x1] %vm1437, %v3571
      %v3578 = vld [vmem:[#allocation4] sm:$0xff]
      %v3579 = vld [vmem:[#allocation4 + $0x8] sm:$0xff]
      %v3580 = vld [vmem:[#allocation4 + $0x10] sm:$0x1]
      %v3581 = vld [vmem:[%s684] sm:$0xff]
      %v3583 = vsel %vm826, %v3578, 0
      %v3586 = vsel %vm826, %v3579, 0
      %v3589 = vsel %vm826, %v3580, 0
      %3591 = vmatprep.subr.mxu0 0.0
      %3592 = vmatpush1.msra.mxu0 %v3581
      %3593 = vmatprep.subr.mxu0 0.0
      %3594 = vmatpush1.msra.mxu0 0.0
      %3595 = vmatprep.subr.mxu0 0.0
      %3596 = vmatpush1.msra.mxu0 0.0
      %3597 = vmatprep.subr.mxu0 0.0
      %3598 = vmatpush1.msra.mxu0 0.0
      %3599 = vmatprep.subr.mxu0 0.0
      %3600 = vmatpush1.msra.mxu0 0.0
      %3601 = vmatprep.subr.mxu0 0.0
      %3602 = vmatpush1.msra.mxu0 0.0
      %3603 = vmatprep.subr.mxu0 0.0
      %3604 = vmatpush1.msra.mxu0 0.0
      %3605 = vmatprep.subr.mxu0 0.0
      %3606 = vmatpush1.msra.mxu0 0.0
      %3607 = vmatprep.subr.mxu0 0.0
      %3608 = vmatpush1.msra.mxu0 0.0
      %3609 = vmatprep.subr.mxu0 0.0
      %3610 = vmatpush1.msra.mxu0 0.0
      %3611 = vmatprep.subr.mxu0 0.0
      %3612 = vmatpush1.msra.mxu0 0.0
      %3613 = vmatprep.subr.mxu0 0.0
      %3614 = vmatpush1.msra.mxu0 0.0
      %3615 = vmatprep.subr.mxu0 0.0
      %3616 = vmatpush1.msra.mxu0 0.0
      %3617 = vmatprep.subr.mxu0 0.0
      %3618 = vmatpush1.msra.mxu0 0.0
      %3619 = vmatprep.subr.mxu0 0.0
      %3620 = vmatpush1.msra.mxu0 0.0
      %3621 = vmatprep.subr.mxu0 0.0
      %3622 = vmatpush1.msra.mxu0 0.0
      %3623 = vmatprep.subr.mxu0 0.0
      %3624 = vmatpush1.msra.mxu0 0.0
      %3625 = vmatprep.subr.mxu0 0.0
      %3626 = vmatpush1.msra.mxu0 0.0
      %3627 = vmatprep.subr.mxu0 0.0
      %3628 = vmatpush1.msra.mxu0 0.0
      %3629 = vmatprep.subr.mxu0 0.0
      %3630 = vmatpush1.msra.mxu0 0.0
      %3631 = vmatprep.subr.mxu0 0.0
      %3632 = vmatpush1.msra.mxu0 0.0
      %3633 = vmatprep.subr.mxu0 0.0
      %3634 = vmatpush1.msra.mxu0 0.0
      %3635 = vmatprep.subr.mxu0 0.0
      %3636 = vmatpush1.msra.mxu0 0.0
      %3637 = vmatprep.subr.mxu0 0.0
      %3638 = vmatpush1.msra.mxu0 0.0
      %3639 = vmatprep.subr.mxu0 0.0
      %3640 = vmatpush1.msra.mxu0 0.0
      %3641 = vmatprep.subr.mxu0 0.0
      %3642 = vmatpush1.msra.mxu0 0.0
      %3643 = vmatprep.subr.mxu0 0.0
      %3644 = vmatpush1.msra.mxu0 0.0
      %3645 = vmatprep.subr.mxu0 0.0
      %3646 = vmatpush1.msra.mxu0 0.0
      %3647 = vmatprep.subr.mxu0 0.0
      %3648 = vmatpush1.msra.mxu0 0.0
      %3649 = vmatprep.subr.mxu0 0.0
      %3650 = vmatpush1.msra.mxu0 0.0
      %3651 = vmatprep.subr.mxu0 0.0
      %3652 = vmatpush1.msra.mxu0 0.0
      %3653 = vmatprep.subr.mxu0 0.0
      %3654 = vmatpush1.msra.mxu0 0.0
      %3655 = vmatprep.mubr.f32.mxu0 0.0
      %3656 = vmatmul.mubr.f32.gmra.mrb[0].mxu0 %v3583
      %v3657 = vpop.f32.mrb[0].mxu0
      %v3658 = vadd.f32 %v2980, %v3657
      %v3659 = vpop.f32.mrb[0].mxu0
      %3660 = vmatprep.mubr.f32.mxu0 0.0
      %3661 = vmatmul.mubr.f32.gmra.mrb[0].mxu0 %v3586
      %v3662 = vpop.f32.mrb[0].mxu0
      %v3663 = vadd.f32 %v2981, %v3662
      %v3664 = vpop.f32.mrb[0].mxu0
      %3665 = vmatprep.mubr.f32.mxu0 0.0
      %3666 = vmatmul.mubr.f32.gmra.mrb[0].mxu0 %v3589
      %v3667 = vpop.f32.mrb[0].mxu0
      %v3668 = vadd.f32 %v2982, %v3667
      %v3669 = vpop.f32.mrb[0].mxu0
      %3670 = vdwg.mxu0
      %v3671 = vld [vmem:[%s688] sm:$0x1]
      %v3672 = vld [vmem:[%s692] sm:$0x1]
      %v3673 = vsel %vm826, %v3658, 0.0
      %3674 = vadd.xlane.f32.xlu0 %v3673
      %v3675 = vpop.xlane.xlu0 %3674
      %v3676 = vsel %vm826, %v3663, 0.0
      %3677 = vadd.xlane.f32.xlu0 %v3676
      %v3678 = vpop.xlane.xlu0 %3677
      %v3679 = vsel %vm824, %v3668, 0.0
      %3680 = vadd.xlane.f32.xlu0 %v3679
      %v3681 = vpop.xlane.xlu0 %3680
      %v3682 = vmul.f32 %v3675, %v1543
      %v3683 = vmul.f32 %v3678, %v1543
      %v3684 = vmul.f32 %v3681, %v1543
      %v3685 = vsub.f32 %v3658, %v3682
      %v3686 = vsub.f32 %v3663, %v3683
      %v3687 = vsub.f32 %v3668, %v3684
      %v3688 = vmul.f32 %v3685, %v3685
      %v3689 = vmul.f32 %v3686, %v3686
      %v3690 = vmul.f32 %v3687, %v3687
      %v3691 = vsel %vm826, %v3688, 0.0
      %3692 = vadd.xlane.f32.xlu0 %v3691
      %v3693 = vpop.xlane.xlu0 %3692
      %v3694 = vsel %vm826, %v3689, 0.0
      %3695 = vadd.xlane.f32.xlu0 %v3694
      %v3696 = vpop.xlane.xlu0 %3695
      %v3697 = vsel %vm824, %v3690, 0.0
      %3698 = vadd.xlane.f32.xlu0 %v3697
      %v3699 = vpop.xlane.xlu0 %3698
      %v3700 = vmul.f32 %v3693, %v1543
      %v3701 = vmul.f32 %v3696, %v1543
      %v3702 = vmul.f32 %v3699, %v1543
      %v3703 = vadd.f32 %v3700, 1e-05
      %v3704 = vadd.f32 %v3701, 1e-05
      %v3705 = vadd.f32 %v3702, 1e-05
      %v3706 = vrsqrt.pop %v3703
      %v3707 = vrsqrt.pop %v3704
      %v3708 = vrsqrt.pop %v3705
      %v3709 = vmul.f32 %v3685, %v3706
      %v3710 = vmul.f32 %v3686, %v3707
      %v3711 = vmul.f32 %v3687, %v3708
      %v3713 = vlaneseq
      %v3714 = vshrl.u32 %v3713, 7
      %v3715 = vsub.s32 0, %v3714
      %v3716 = vrot.slane %v3671, %v3715
      %v3718 = vmul.f32 %v3709, %v3716
      %v3719 = vmul.f32 %v3710, %v3716
      %v3720 = vmul.f32 %v3711, %v3716
      %v3722 = vlaneseq
      %v3723 = vshrl.u32 %v3722, 7
      %v3724 = vsub.s32 0, %v3723
      %v3725 = vrot.slane %v3672, %v3724
      %v3727 = vadd.f32 %v3718, %v3725
      %v3728 = vadd.f32 %v3719, %v3725
      %v3729 = vadd.f32 %v3720, %v3725
      %v3730 = vld [vmem:[%s697] sm:$0xff]
      %v3731 = vld [vmem:[%s701] sm:$0x1]
      %v3733 = vlaneseq
      %v3734 = vshrl.u32 %v3733, 7
      %v3735 = vsub.s32 0, %v3734
      %v3736 = vrot.slane %v3731, %v3735
      %v3739 = vsel %vm826, %v3727, 0
      %v3742 = vsel %vm826, %v3728, 0
      %v3745 = vsel %vm826, %v3729, 0
      %3747 = vmatprep.subr.mxu0 0.0
      %3748 = vmatpush1.msra.mxu0 %v3730
      %3749 = vmatprep.subr.mxu0 0.0
      %3750 = vmatpush1.msra.mxu0 0.0
      %3751 = vmatprep.subr.mxu0 0.0
      %3752 = vmatpush1.msra.mxu0 0.0
      %3753 = vmatprep.subr.mxu0 0.0
      %3754 = vmatpush1.msra.mxu0 0.0
      %3755 = vmatprep.subr.mxu0 0.0
      %3756 = vmatpush1.msra.mxu0 0.0
      %3757 = vmatprep.subr.mxu0 0.0
      %3758 = vmatpush1.msra.mxu0 0.0
      %3759 = vmatprep.subr.mxu0 0.0
      %3760 = vmatpush1.msra.mxu0 0.0
      %3761 = vmatprep.subr.mxu0 0.0
      %3762 = vmatpush1.msra.mxu0 0.0
      %3763 = vmatprep.subr.mxu0 0.0
      %3764 = vmatpush1.msra.mxu0 0.0
      %3765 = vmatprep.subr.mxu0 0.0
      %3766 = vmatpush1.msra.mxu0 0.0
      %3767 = vmatprep.subr.mxu0 0.0
      %3768 = vmatpush1.msra.mxu0 0.0
      %3769 = vmatprep.subr.mxu0 0.0
      %3770 = vmatpush1.msra.mxu0 0.0
      %3771 = vmatprep.subr.mxu0 0.0
      %3772 = vmatpush1.msra.mxu0 0.0
      %3773 = vmatprep.subr.mxu0 0.0
      %3774 = vmatpush1.msra.mxu0 0.0
      %3775 = vmatprep.subr.mxu0 0.0
      %3776 = vmatpush1.msra.mxu0 0.0
      %3777 = vmatprep.subr.mxu0 0.0
      %3778 = vmatpush1.msra.mxu0 0.0
      %3779 = vmatprep.subr.mxu0 0.0
      %3780 = vmatpush1.msra.mxu0 0.0
      %3781 = vmatprep.subr.mxu0 0.0
      %3782 = vmatpush1.msra.mxu0 0.0
      %3783 = vmatprep.subr.mxu0 0.0
      %3784 = vmatpush1.msra.mxu0 0.0
      %3785 = vmatprep.subr.mxu0 0.0
      %3786 = vmatpush1.msra.mxu0 0.0
      %3787 = vmatprep.subr.mxu0 0.0
      %3788 = vmatpush1.msra.mxu0 0.0
      %3789 = vmatprep.subr.mxu0 0.0
      %3790 = vmatpush1.msra.mxu0 0.0
      %3791 = vmatprep.subr.mxu0 0.0
      %3792 = vmatpush1.msra.mxu0 0.0
      %3793 = vmatprep.subr.mxu0 0.0
      %3794 = vmatpush1.msra.mxu0 0.0
      %3795 = vmatprep.subr.mxu0 0.0
      %3796 = vmatpush1.msra.mxu0 0.0
      %3797 = vmatprep.subr.mxu0 0.0
      %3798 = vmatpush1.msra.mxu0 0.0
      %3799 = vmatprep.subr.mxu0 0.0
      %3800 = vmatpush1.msra.mxu0 0.0
      %3801 = vmatprep.subr.mxu0 0.0
      %3802 = vmatpush1.msra.mxu0 0.0
      %3803 = vmatprep.subr.mxu0 0.0
      %3804 = vmatpush1.msra.mxu0 0.0
      %3805 = vmatprep.subr.mxu0 0.0
      %3806 = vmatpush1.msra.mxu0 0.0
      %3807 = vmatprep.subr.mxu0 0.0
      %3808 = vmatpush1.msra.mxu0 0.0
      %3809 = vmatprep.subr.mxu0 0.0
      %3810 = vmatpush1.msra.mxu0 0.0
      %3811 = vmatprep.mubr.f32.mxu0 0.0
      %3812 = vmatmul.mubr.f32.gmra.mrb[0].mxu0 %v3739
      %v3813 = vpop.f32.mrb[0].mxu0
      %v3814 = vadd.f32 %v3736, %v3813
      %v3815 = vpop.f32.mrb[0].mxu0
      %3816 = vmatprep.mubr.f32.mxu0 0.0
      %3817 = vmatmul.mubr.f32.gmra.mrb[0].mxu0 %v3742
      %v3818 = vpop.f32.mrb[0].mxu0
      %v3819 = vadd.f32 %v3736, %v3818
      %v3820 = vpop.f32.mrb[0].mxu0
      %3821 = vmatprep.mubr.f32.mxu0 0.0
      %3822 = vmatmul.mubr.f32.gmra.mrb[0].mxu0 %v3745
      %v3823 = vpop.f32.mrb[0].mxu0
      %v3824 = vadd.f32 %v3736, %v3823
      %v3825 = vpop.f32.mrb[0].mxu0
      %3826 = vdwg.mxu0
      %v3827 = vmul.f32 %v3814, %v3814
      %v3828 = vmul.f32 %v3819, %v3819
      %v3829 = vmul.f32 %v3824, %v3824
      %v3830 = vmul.f32 %v3814, %v3827
      %v3831 = vmul.f32 %v3819, %v3828
      %v3832 = vmul.f32 %v3824, %v3829
      %v3833 = vmul.f32 %v3830, 0.044715
      %v3834 = vmul.f32 %v3831, 0.044715
      %v3835 = vmul.f32 %v3832, 0.044715
      %v3836 = vadd.f32 %v3814, %v3833
      %v3837 = vadd.f32 %v3819, %v3834
      %v3838 = vadd.f32 %v3824, %v3835
      %v3839 = vmul.f32 %v3836, 0.7978846
      %v3840 = vmul.f32 %v3837, 0.7978846
      %v3841 = vmul.f32 %v3838, 0.7978846
      %v3842 = vtanh.pop %v3839
      %v3843 = vtanh.pop %v3840
      %v3844 = vtanh.pop %v3841
      %v3845 = vadd.f32 %v3842, 1.0
      %v3846 = vadd.f32 %v3843, 1.0
      %v3847 = vadd.f32 %v3844, 1.0
      %v3848 = vmul.f32 %v3845, 0.5
      %v3849 = vmul.f32 %v3846, 0.5
      %v3850 = vmul.f32 %v3847, 0.5
      %v3851 = vmul.f32 %v3814, %v3848
      %v3852 = vmul.f32 %v3819, %v3849
      %v3853 = vmul.f32 %v3824, %v3850
      %v3854 = vld [vmem:[%s706] sm:$0xff]
      %v3855 = vld [vmem:[%s706 + $0x8] sm:$0xff]
      %v3856 = vld [vmem:[%s706 + $0x10] sm:$0xff]
      %v3857 = vld [vmem:[%s706 + $0x18] sm:$0xff]
      %v3858 = vld [vmem:[%s710] sm:$0x1]
      %v3860 = vlaneseq
      %v3861 = vshrl.u32 %v3860, 7
      %v3862 = vsub.s32 0, %v3861
      %v3863 = vrot.slane %v3858, %v3862
      %v3866 = vsel %vm1727, %v3851, 0
      %v3869 = vsel %vm1727, %v3852, 0
      %v3872 = vsel %vm1727, %v3853, 0
      %3874 = vmatprep.subr.mxu0 0.0
      %3875 = vmatpush1.msra.mxu0 %v3854
      %3876 = vmatprep.subr.mxu0 0.0
      %3877 = vmatpush1.msra.mxu0 %v3855
      %3878 = vmatprep.subr.mxu0 0.0
      %3879 = vmatpush1.msra.mxu0 %v3856
      %3880 = vmatprep.subr.mxu0 0.0
      %3881 = vmatpush1.msra.mxu0 %v3857
      %3882 = vmatprep.subr.mxu0 0.0
      %3883 = vmatpush1.msra.mxu0 0.0
      %3884 = vmatprep.subr.mxu0 0.0
      %3885 = vmatpush1.msra.mxu0 0.0
      %3886 = vmatprep.subr.mxu0 0.0
      %3887 = vmatpush1.msra.mxu0 0.0
      %3888 = vmatprep.subr.mxu0 0.0
      %3889 = vmatpush1.msra.mxu0 0.0
      %3890 = vmatprep.subr.mxu0 0.0
      %3891 = vmatpush1.msra.mxu0 0.0
      %3892 = vmatprep.subr.mxu0 0.0
      %3893 = vmatpush1.msra.mxu0 0.0
      %3894 = vmatprep.subr.mxu0 0.0
      %3895 = vmatpush1.msra.mxu0 0.0
      %3896 = vmatprep.subr.mxu0 0.0
      %3897 = vmatpush1.msra.mxu0 0.0
      %3898 = vmatprep.subr.mxu0 0.0
      %3899 = vmatpush1.msra.mxu0 0.0
      %3900 = vmatprep.subr.mxu0 0.0
      %3901 = vmatpush1.msra.mxu0 0.0
      %3902 = vmatprep.subr.mxu0 0.0
      %3903 = vmatpush1.msra.mxu0 0.0
      %3904 = vmatprep.subr.mxu0 0.0
      %3905 = vmatpush1.msra.mxu0 0.0
      %3906 = vmatprep.subr.mxu0 0.0
      %3907 = vmatpush1.msra.mxu0 0.0
      %3908 = vmatprep.subr.mxu0 0.0
      %3909 = vmatpush1.msra.mxu0 0.0
      %3910 = vmatprep.subr.mxu0 0.0
      %3911 = vmatpush1.msra.mxu0 0.0
      %3912 = vmatprep.subr.mxu0 0.0
      %3913 = vmatpush1.msra.mxu0 0.0
      %3914 = vmatprep.subr.mxu0 0.0
      %3915 = vmatpush1.msra.mxu0 0.0
      %3916 = vmatprep.subr.mxu0 0.0
      %3917 = vmatpush1.msra.mxu0 0.0
      %3918 = vmatprep.subr.mxu0 0.0
      %3919 = vmatpush1.msra.mxu0 0.0
      %3920 = vmatprep.subr.mxu0 0.0
      %3921 = vmatpush1.msra.mxu0 0.0
      %3922 = vmatprep.subr.mxu0 0.0
      %3923 = vmatpush1.msra.mxu0 0.0
      %3924 = vmatprep.subr.mxu0 0.0
      %3925 = vmatpush1.msra.mxu0 0.0
      %3926 = vmatprep.subr.mxu0 0.0
      %3927 = vmatpush1.msra.mxu0 0.0
      %3928 = vmatprep.subr.mxu0 0.0
      %3929 = vmatpush1.msra.mxu0 0.0
      %3930 = vmatprep.subr.mxu0 0.0
      %3931 = vmatpush1.msra.mxu0 0.0
      %3932 = vmatprep.subr.mxu0 0.0
      %3933 = vmatpush1.msra.mxu0 0.0
      %3934 = vmatprep.subr.mxu0 0.0
      %3935 = vmatpush1.msra.mxu0 0.0
      %3936 = vmatprep.subr.mxu0 0.0
      %3937 = vmatpush1.msra.mxu0 0.0
      %3938 = vmatprep.mubr.f32.mxu0 0.0
      %3939 = vmatmul.mubr.f32.gmra.mrb[0].mxu0 %v3866
      %v3940 = vpop.f32.mrb[0].mxu0
      %v3941 = vadd.f32 %v3863, %v3940
      %v3942 = vpop.f32.mrb[0].mxu0
      %3943 = vmatprep.mubr.f32.mxu0 0.0
      %3944 = vmatmul.mubr.f32.gmra.mrb[0].mxu0 %v3869
      %v3945 = vpop.f32.mrb[0].mxu0
      %v3946 = vadd.f32 %v3863, %v3945
      %v3947 = vpop.f32.mrb[0].mxu0
      %3948 = vmatprep.mubr.f32.mxu0 0.0
      %3949 = vmatmul.mubr.f32.gmra.mrb[0].mxu0 %v3872
      %v3950 = vpop.f32.mrb[0].mxu0
      %v3951 = vadd.f32 %v3863, %v3950
      %v3952 = vpop.f32.mrb[0].mxu0
      %3953 = vdwg.mxu0
      %v3954 = vadd.f32 %v3941, %v3727
      %v3955 = vadd.f32 %v3946, %v3728
      %v3956 = vadd.f32 %v3951, %v3729
      %v3957 = vld [vmem:[%s714] sm:$0x1]
      %v3958 = vld [vmem:[%s718] sm:$0x1]
      %v3959 = vsel %vm826, %v3954, 0.0
      %3960 = vadd.xlane.f32.xlu0 %v3959
      %v3961 = vpop.xlane.xlu0 %3960
      %v3962 = vsel %vm826, %v3955, 0.0
      %3963 = vadd.xlane.f32.xlu0 %v3962
      %v3964 = vpop.xlane.xlu0 %3963
      %v3965 = vsel %vm824, %v3956, 0.0
      %3966 = vadd.xlane.f32.xlu0 %v3965
      %v3967 = vpop.xlane.xlu0 %3966
      %v3968 = vmul.f32 %v3961, %v1543
      %v3969 = vmul.f32 %v3964, %v1543
      %v3970 = vmul.f32 %v3967, %v1543
      %v3971 = vsub.f32 %v3954, %v3968
      %v3972 = vsub.f32 %v3955, %v3969
      %v3973 = vsub.f32 %v3956, %v3970
      %v3974 = vmul.f32 %v3971, %v3971
      %v3975 = vmul.f32 %v3972, %v3972
      %v3976 = vmul.f32 %v3973, %v3973
      %v3977 = vsel %vm826, %v3974, 0.0
      %3978 = vadd.xlane.f32.xlu0 %v3977
      %v3979 = vpop.xlane.xlu0 %3978
      %v3980 = vsel %vm826, %v3975, 0.0
      %3981 = vadd.xlane.f32.xlu0 %v3980
      %v3982 = vpop.xlane.xlu0 %3981
      %v3983 = vsel %vm824, %v3976, 0.0
      %3984 = vadd.xlane.f32.xlu0 %v3983
      %v3985 = vpop.xlane.xlu0 %3984
      %v3986 = vmul.f32 %v3979, %v1543
      %v3987 = vmul.f32 %v3982, %v1543
      %v3988 = vmul.f32 %v3985, %v1543
      %v3989 = vadd.f32 %v3986, 1e-05
      %v3990 = vadd.f32 %v3987, 1e-05
      %v3991 = vadd.f32 %v3988, 1e-05
      %v3992 = vrsqrt.pop %v3989
      %v3993 = vrsqrt.pop %v3990
      %v3994 = vrsqrt.pop %v3991
      %v3995 = vmul.f32 %v3971, %v3992
      %v3996 = vmul.f32 %v3972, %v3993
      %v3997 = vmul.f32 %v3973, %v3994
      %v3999 = vlaneseq
      %v4000 = vshrl.u32 %v3999, 7
      %v4001 = vsub.s32 0, %v4000
      %v4002 = vrot.slane %v3957, %v4001
      %v4004 = vmul.f32 %v3995, %v4002
      %v4005 = vmul.f32 %v3996, %v4002
      %v4006 = vmul.f32 %v3997, %v4002
      %v4008 = vlaneseq
      %v4009 = vshrl.u32 %v4008, 7
      %v4010 = vsub.s32 0, %v4009
      %v4011 = vrot.slane %v3958, %v4010
      %v4013 = vadd.f32 %v4004, %v4011
      %v4014 = vadd.f32 %v4005, %v4011
      %v4015 = vadd.f32 %v4006, %v4011
      %v4016 = vld [vmem:[%s1879] sm:$0xff]
      %v4018 = vsel %vm826, %v4013, 0
      %v4021 = vsel %vm826, %v4014, 0
      %v4024 = vsel %vm826, %v4015, 0
      %4026 = vmatprep.subr.mxu0 0.0
      %4027 = vmatpush1.msra.mxu0 %v4016
      %4028 = vmatprep.subr.mxu0 0.0
      %4029 = vmatpush1.msra.mxu0 0.0
      %4030 = vmatprep.subr.mxu0 0.0
      %4031 = vmatpush1.msra.mxu0 0.0
      %4032 = vmatprep.subr.mxu0 0.0
      %4033 = vmatpush1.msra.mxu0 0.0
      %4034 = vmatprep.subr.mxu0 0.0
      %4035 = vmatpush1.msra.mxu0 0.0
      %4036 = vmatprep.subr.mxu0 0.0
      %4037 = vmatpush1.msra.mxu0 0.0
      %4038 = vmatprep.subr.mxu0 0.0
      %4039 = vmatpush1.msra.mxu0 0.0
      %4040 = vmatprep.subr.mxu0 0.0
      %4041 = vmatpush1.msra.mxu0 0.0
      %4042 = vmatprep.subr.mxu0 0.0
      %4043 = vmatpush1.msra.mxu0 0.0
      %4044 = vmatprep.subr.mxu0 0.0
      %4045 = vmatpush1.msra.mxu0 0.0
      %4046 = vmatprep.subr.mxu0 0.0
      %4047 = vmatpush1.msra.mxu0 0.0
      %4048 = vmatprep.subr.mxu0 0.0
      %4049 = vmatpush1.msra.mxu0 0.0
      %4050 = vmatprep.subr.mxu0 0.0
      %4051 = vmatpush1.msra.mxu0 0.0
      %4052 = vmatprep.subr.mxu0 0.0
      %4053 = vmatpush1.msra.mxu0 0.0
      %4054 = vmatprep.subr.mxu0 0.0
      %4055 = vmatpush1.msra.mxu0 0.0
      %4056 = vmatprep.subr.mxu0 0.0
      %4057 = vmatpush1.msra.mxu0 0.0
      %4058 = vmatprep.subr.mxu0 0.0
      %4059 = vmatpush1.msra.mxu0 0.0
      %4060 = vmatprep.subr.mxu0 0.0
      %4061 = vmatpush1.msra.mxu0 0.0
      %4062 = vmatprep.subr.mxu0 0.0
      %4063 = vmatpush1.msra.mxu0 0.0
      %4064 = vmatprep.subr.mxu0 0.0
      %4065 = vmatpush1.msra.mxu0 0.0
      %4066 = vmatprep.subr.mxu0 0.0
      %4067 = vmatpush1.msra.mxu0 0.0
      %4068 = vmatprep.subr.mxu0 0.0
      %4069 = vmatpush1.msra.mxu0 0.0
      %4070 = vmatprep.subr.mxu0 0.0
      %4071 = vmatpush1.msra.mxu0 0.0
      %4072 = vmatprep.subr.mxu0 0.0
      %4073 = vmatpush1.msra.mxu0 0.0
      %4074 = vmatprep.subr.mxu0 0.0
      %4075 = vmatpush1.msra.mxu0 0.0
      %4076 = vmatprep.subr.mxu0 0.0
      %4077 = vmatpush1.msra.mxu0 0.0
      %4078 = vmatprep.subr.mxu0 0.0
      %4079 = vmatpush1.msra.mxu0 0.0
      %4080 = vmatprep.subr.mxu0 0.0
      %4081 = vmatpush1.msra.mxu0 0.0
      %4082 = vmatprep.subr.mxu0 0.0
      %4083 = vmatpush1.msra.mxu0 0.0
      %4084 = vmatprep.subr.mxu0 0.0
      %4085 = vmatpush1.msra.mxu0 0.0
      %4086 = vmatprep.subr.mxu0 0.0
      %4087 = vmatpush1.msra.mxu0 0.0
      %4088 = vmatprep.subr.mxu0 0.0
      %4089 = vmatpush1.msra.mxu0 0.0
      %4090 = vmatprep.mubr.f32.mxu0 0.0
      %4091 = vmatmul.mubr.f32.gmra.mrb[0].mxu0 %v4018
      %v4092 = vpop.f32.mrb[0].mxu0
      %v4093 = vadd.f32 0.0, %v4092
      %v4094 = vpop.f32.mrb[0].mxu0
      %4095 = vmatprep.mubr.f32.mxu0 0.0
      %4096 = vmatmul.mubr.f32.gmra.mrb[0].mxu0 %v4021
      %v4097 = vpop.f32.mrb[0].mxu0
      %v4098 = vadd.f32 0.0, %v4097
      %v4099 = vpop.f32.mrb[0].mxu0
      %4100 = vmatprep.mubr.f32.mxu0 0.0
      %4101 = vmatmul.mubr.f32.gmra.mrb[0].mxu0 %v4024
      %v4102 = vpop.f32.mrb[0].mxu0
      %v4103 = vadd.f32 0.0, %v4102
      %v4104 = vpop.f32.mrb[0].mxu0
      %4105 = vdwg.mxu0
      %4106 = vst.msk [vmem:[#allocation3] sm:$0xff] %vm925, %v4093
      %4107 = vst.msk [vmem:[#allocation3 + $0x8] sm:$0xff] %vm925, %v4098
      %4108 = vst.msk [vmem:[#allocation3 + $0x10] sm:$0x1] %vm928, %v4103
      %v4109 = vld [vmem:[#allocation3] sm:$0xff]
      %v4110 = vld [vmem:[#allocation3 + $0x8] sm:$0xff]
      %v4111 = vld [vmem:[#allocation3 + $0x10] sm:$0x1]
      %4115 = vrot.lane.b32.xlu0 %v4109, 120
      %v4116 = vpop.permute.xlu0 %4115
      %4117 = vrot.lane.b32.xlu0 %v4110, 120
      %v4118 = vpop.permute.xlu0 %4117
      %4119 = vrot.lane.b32.xlu0 %v4111, 120
      %v4120 = vpop.permute.xlu0 %4119
      %v4121 = vsel %vm942, %v4109, 0
      %v4123 = vsel %vm942, %v4110, 0
      %v4125 = vsel %vm942, %v4111, 0
      %v4127 = vsel %vm942, %v4116, 0
      %v4129 = vsel %vm942, %v4118, 0
      %v4131 = vsel %vm942, %v4120, 0
      %4133 = vmatprep.subr.mxu0 0.0
      %4134 = vmatpush1.xpose.msra.mxu0 %v4127
      %4135 = vmatprep.subr.mxu0 0.0
      %4136 = vmatpush1.xpose.msra.mxu0 %v4129
      %4137 = vmatprep.subr.mxu0 0.0
      %4138 = vmatpush1.xpose.msra.mxu0 %v4131
      %4139 = vmatprep.subr.mxu0 0.0
      %4140 = vmatpush1.xpose.msra.mxu0 0.0
      %4141 = vmatprep.subr.mxu0 0.0
      %4142 = vmatpush1.xpose.msra.mxu0 0.0
      %4143 = vmatprep.subr.mxu0 0.0
      %4144 = vmatpush1.xpose.msra.mxu0 0.0
      %4145 = vmatprep.subr.mxu0 0.0
      %4146 = vmatpush1.xpose.msra.mxu0 0.0
      %4147 = vmatprep.subr.mxu0 0.0
      %4148 = vmatpush1.xpose.msra.mxu0 0.0
      %4149 = vmatprep.subr.mxu0 0.0
      %4150 = vmatpush1.xpose.msra.mxu0 0.0
      %4151 = vmatprep.subr.mxu0 0.0
      %4152 = vmatpush1.xpose.msra.mxu0 0.0
      %4153 = vmatprep.subr.mxu0 0.0
      %4154 = vmatpush1.xpose.msra.mxu0 0.0
      %4155 = vmatprep.subr.mxu0 0.0
      %4156 = vmatpush1.xpose.msra.mxu0 0.0
      %4157 = vmatprep.subr.mxu0 0.0
      %4158 = vmatpush1.xpose.msra.mxu0 0.0
      %4159 = vmatprep.subr.mxu0 0.0
      %4160 = vmatpush1.xpose.msra.mxu0 0.0
      %4161 = vmatprep.subr.mxu0 0.0
      %4162 = vmatpush1.xpose.msra.mxu0 0.0
      %4163 = vmatprep.subr.mxu0 0.0
      %4164 = vmatpush1.xpose.msra.mxu0 0.0
      %4165 = vmatprep.subr.mxu0 0.0
      %4166 = vmatpush1.xpose.msra.mxu0 0.0
      %4167 = vmatprep.subr.mxu0 0.0
      %4168 = vmatpush1.xpose.msra.mxu0 0.0
      %4169 = vmatprep.subr.mxu0 0.0
      %4170 = vmatpush1.xpose.msra.mxu0 0.0
      %4171 = vmatprep.subr.mxu0 0.0
      %4172 = vmatpush1.xpose.msra.mxu0 0.0
      %4173 = vmatprep.subr.mxu0 0.0
      %4174 = vmatpush1.xpose.msra.mxu0 0.0
      %4175 = vmatprep.subr.mxu0 0.0
      %4176 = vmatpush1.xpose.msra.mxu0 0.0
      %4177 = vmatprep.subr.mxu0 0.0
      %4178 = vmatpush1.xpose.msra.mxu0 0.0
      %4179 = vmatprep.subr.mxu0 0.0
      %4180 = vmatpush1.xpose.msra.mxu0 0.0
      %4181 = vmatprep.subr.mxu0 0.0
      %4182 = vmatpush1.xpose.msra.mxu0 0.0
      %4183 = vmatprep.subr.mxu0 0.0
      %4184 = vmatpush1.xpose.msra.mxu0 0.0
      %4185 = vmatprep.subr.mxu0 0.0
      %4186 = vmatpush1.xpose.msra.mxu0 0.0
      %4187 = vmatprep.subr.mxu0 0.0
      %4188 = vmatpush1.xpose.msra.mxu0 0.0
      %4189 = vmatprep.subr.mxu0 0.0
      %4190 = vmatpush1.xpose.msra.mxu0 0.0
      %4191 = vmatprep.subr.mxu0 0.0
      %4192 = vmatpush1.xpose.msra.mxu0 0.0
      %4193 = vmatprep.subr.mxu0 0.0
      %4194 = vmatpush1.xpose.msra.mxu0 0.0
      %4195 = vmatprep.subr.mxu0 0.0
      %4196 = vmatpush1.xpose.msra.mxu0 0.0
      %4197 = vmatprep.mubr.f32.mxu0 0.0
      %4198 = vmatmul.mubr.f32.gmra.mrb[0].mxu0 %v4121
      %v4199 = vpop.f32.mrb[0].mxu0
      %v4200 = vadd.f32 0.0, %v4199
      %v4201 = vpop.f32.mrb[0].mxu0
      %4202 = vmatprep.mubr.f32.mxu0 0.0
      %4203 = vmatmul.mubr.f32.gmra.mrb[0].mxu0 %v4123
      %v4204 = vpop.f32.mrb[0].mxu0
      %v4205 = vadd.f32 0.0, %v4204
      %v4206 = vpop.f32.mrb[0].mxu0
      %4207 = vmatprep.mubr.f32.mxu0 0.0
      %4208 = vmatmul.mubr.f32.gmra.mrb[0].mxu0 %v4125
      %v4209 = vpop.f32.mrb[0].mxu0
      %v4210 = vadd.f32 0.0, %v4209
      %v4211 = vpop.f32.mrb[0].mxu0
      %4212 = vdwg.mxu0
      %v4213 = vmul.f32 %v4200, 0.5
      %v4214 = vmul.f32 %v4205, 0.5
      %v4215 = vmul.f32 %v4210, 0.5
      %v4216 = vsel %vm1038, %v4213, -inf
      %4217 = vmax.xlane.f32.xlu0 %v4216
      %v4218 = vpop.xlane.xlu0 %4217
      %v4219 = vsel %vm1038, %v4214, -inf
      %4220 = vmax.xlane.f32.xlu0 %v4219
      %v4221 = vpop.xlane.xlu0 %4220
      %v4222 = vsel %vm1045, %v4215, -inf
      %4223 = vmax.xlane.f32.xlu0 %v4222
      %v4224 = vpop.xlane.xlu0 %4223
      %v4225 = vsub.f32 %v4213, %v4218
      %v4226 = vsub.f32 %v4214, %v4221
      %v4227 = vsub.f32 %v4215, %v4224
      %v4228 = vmul.f32 %v4225, 1.442695
      %v4229 = vpow.pop %v4228
      %v4230 = vmul.f32 %v4226, 1.442695
      %v4231 = vpow.pop %v4230
      %v4232 = vmul.f32 %v4227, 1.442695
      %v4233 = vpow.pop %v4232
      %v4234 = vsel %vm1038, %v4229, 0.0
      %4235 = vadd.xlane.f32.xlu0 %v4234
      %v4236 = vpop.xlane.xlu0 %4235
      %v4237 = vsel %vm1038, %v4231, 0.0
      %4238 = vadd.xlane.f32.xlu0 %v4237
      %v4239 = vpop.xlane.xlu0 %4238
      %v4240 = vsel %vm1045, %v4233, 0.0
      %4241 = vadd.xlane.f32.xlu0 %v4240
      %v4242 = vpop.xlane.xlu0 %4241
      %v4243 = vrcp.pop %v4236
      %v4244 = vrcp.pop %v4239
      %v4245 = vrcp.pop %v4242
      %v4246 = vmul.f32 %v4229, %v4243
      %v4247 = vmul.f32 %v4231, %v4244
      %v4248 = vmul.f32 %v4233, %v4245
      %4249 = vrot.lane.b32.xlu0 %v4109, 112
      %v4250 = vpop.permute.xlu0 %4249
      %4251 = vrot.lane.b32.xlu0 %v4110, 112
      %v4252 = vpop.permute.xlu0 %4251
      %4253 = vrot.lane.b32.xlu0 %v4111, 112
      %v4254 = vpop.permute.xlu0 %4253
      %v4258 = vsel %vm1038, %v4246, 0
      %v4261 = vsel %vm1038, %v4247, 0
      %v4264 = vsel %vm1038, %v4248, 0
      %v4266 = vsel %vm1090, %v4254, 0
      %4268 = vmatprep.subr.mxu0 0.0
      %4269 = vmatpush1.msra.mxu0 %v4250
      %4270 = vmatprep.subr.mxu0 0.0
      %4271 = vmatpush1.msra.mxu0 %v4252
      %4272 = vmatprep.subr.mxu0 0.0
      %4273 = vmatpush1.msra.mxu0 %v4266
      %4274 = vmatprep.subr.mxu0 0.0
      %4275 = vmatpush1.msra.mxu0 0.0
      %4276 = vmatprep.subr.mxu0 0.0
      %4277 = vmatpush1.msra.mxu0 0.0
      %4278 = vmatprep.subr.mxu0 0.0
      %4279 = vmatpush1.msra.mxu0 0.0
      %4280 = vmatprep.subr.mxu0 0.0
      %4281 = vmatpush1.msra.mxu0 0.0
      %4282 = vmatprep.subr.mxu0 0.0
      %4283 = vmatpush1.msra.mxu0 0.0
      %4284 = vmatprep.subr.mxu0 0.0
      %4285 = vmatpush1.msra.mxu0 0.0
      %4286 = vmatprep.subr.mxu0 0.0
      %4287 = vmatpush1.msra.mxu0 0.0
      %4288 = vmatprep.subr.mxu0 0.0
      %4289 = vmatpush1.msra.mxu0 0.0
      %4290 = vmatprep.subr.mxu0 0.0
      %4291 = vmatpush1.msra.mxu0 0.0
      %4292 = vmatprep.subr.mxu0 0.0
      %4293 = vmatpush1.msra.mxu0 0.0
      %4294 = vmatprep.subr.mxu0 0.0
      %4295 = vmatpush1.msra.mxu0 0.0
      %4296 = vmatprep.subr.mxu0 0.0
      %4297 = vmatpush1.msra.mxu0 0.0
      %4298 = vmatprep.subr.mxu0 0.0
      %4299 = vmatpush1.msra.mxu0 0.0
      %4300 = vmatprep.subr.mxu0 0.0
      %4301 = vmatpush1.msra.mxu0 0.0
      %4302 = vmatprep.subr.mxu0 0.0
      %4303 = vmatpush1.msra.mxu0 0.0
      %4304 = vmatprep.subr.mxu0 0.0
      %4305 = vmatpush1.msra.mxu0 0.0
      %4306 = vmatprep.subr.mxu0 0.0
      %4307 = vmatpush1.msra.mxu0 0.0
      %4308 = vmatprep.subr.mxu0 0.0
      %4309 = vmatpush1.msra.mxu0 0.0
      %4310 = vmatprep.subr.mxu0 0.0
      %4311 = vmatpush1.msra.mxu0 0.0
      %4312 = vmatprep.subr.mxu0 0.0
      %4313 = vmatpush1.msra.mxu0 0.0
      %4314 = vmatprep.subr.mxu0 0.0
      %4315 = vmatpush1.msra.mxu0 0.0
      %4316 = vmatprep.subr.mxu0 0.0
      %4317 = vmatpush1.msra.mxu0 0.0
      %4318 = vmatprep.subr.mxu0 0.0
      %4319 = vmatpush1.msra.mxu0 0.0
      %4320 = vmatprep.subr.mxu0 0.0
      %4321 = vmatpush1.msra.mxu0 0.0
      %4322 = vmatprep.subr.mxu0 0.0
      %4323 = vmatpush1.msra.mxu0 0.0
      %4324 = vmatprep.subr.mxu0 0.0
      %4325 = vmatpush1.msra.mxu0 0.0
      %4326 = vmatprep.subr.mxu0 0.0
      %4327 = vmatpush1.msra.mxu0 0.0
      %4328 = vmatprep.subr.mxu0 0.0
      %4329 = vmatpush1.msra.mxu0 0.0
      %4330 = vmatprep.subr.mxu0 0.0
      %4331 = vmatpush1.msra.mxu0 0.0
      %4332 = vmatprep.mubr.f32.mxu0 0.0
      %4333 = vmatmul.mubr.f32.gmra.mrb[0].mxu0 %v4258
      %v4334 = vpop.f32.mrb[0].mxu0
      %v4335 = vadd.f32 0.0, %v4334
      %v4336 = vpop.f32.mrb[0].mxu0
      %4337 = vmatprep.mubr.f32.mxu0 0.0
      %4338 = vmatmul.mubr.f32.gmra.mrb[0].mxu0 %v4261
      %v4339 = vpop.f32.mrb[0].mxu0
      %v4340 = vadd.f32 0.0, %v4339
      %v4341 = vpop.f32.mrb[0].mxu0
      %4342 = vmatprep.mubr.f32.mxu0 0.0
      %4343 = vmatmul.mubr.f32.gmra.mrb[0].mxu0 %v4264
      %v4344 = vpop.f32.mrb[0].mxu0
      %v4345 = vadd.f32 0.0, %v4344
      %v4346 = vpop.f32.mrb[0].mxu0
      %4347 = vdwg.mxu0
      %4348 = vst.msk [vmem:[#allocation4] sm:$0xff] %vm942, %v4335
      %4349 = vst.msk [vmem:[#allocation4 + $0x8] sm:$0xff] %vm942, %v4340
      %4350 = vst.msk [vmem:[#allocation4 + $0x10] sm:$0x1] %vm1175, %v4345
      %v4351 = vld [vmem:[#allocation3] sm:$0xff]
      %v4352 = vld [vmem:[#allocation3 + $0x8] sm:$0xff]
      %v4353 = vld [vmem:[#allocation3 + $0x10] sm:$0x1]
      %4357 = vrot.lane.b32.xlu0 %v4351, 124
      %v4358 = vpop.permute.xlu0 %4357
      %4359 = vrot.lane.b32.xlu0 %v4352, 124
      %v4360 = vpop.permute.xlu0 %4359
      %4361 = vrot.lane.b32.xlu0 %v4353, 124
      %v4362 = vpop.permute.xlu0 %4361
      %4363 = vrot.lane.b32.xlu0 %v4351, 116
      %v4364 = vpop.permute.xlu0 %4363
      %4365 = vrot.lane.b32.xlu0 %v4352, 116
      %v4366 = vpop.permute.xlu0 %4365
      %4367 = vrot.lane.b32.xlu0 %v4353, 116
      %v4368 = vpop.permute.xlu0 %4367
      %v4369 = vsel %vm942, %v4358, 0
      %v4371 = vsel %vm942, %v4360, 0
      %v4373 = vsel %vm942, %v4362, 0
      %v4375 = vsel %vm942, %v4364, 0
      %v4377 = vsel %vm942, %v4366, 0
      %v4379 = vsel %vm942, %v4368, 0
      %4381 = vmatprep.subr.mxu0 0.0
      %4382 = vmatpush1.xpose.msra.mxu0 %v4375
      %4383 = vmatprep.subr.mxu0 0.0
      %4384 = vmatpush1.xpose.msra.mxu0 %v4377
      %4385 = vmatprep.subr.mxu0 0.0
      %4386 = vmatpush1.xpose.msra.mxu0 %v4379
      %4387 = vmatprep.subr.mxu0 0.0
      %4388 = vmatpush1.xpose.msra.mxu0 0.0
      %4389 = vmatprep.subr.mxu0 0.0
      %4390 = vmatpush1.xpose.msra.mxu0 0.0
      %4391 = vmatprep.subr.mxu0 0.0
      %4392 = vmatpush1.xpose.msra.mxu0 0.0
      %4393 = vmatprep.subr.mxu0 0.0
      %4394 = vmatpush1.xpose.msra.mxu0 0.0
      %4395 = vmatprep.subr.mxu0 0.0
      %4396 = vmatpush1.xpose.msra.mxu0 0.0
      %4397 = vmatprep.subr.mxu0 0.0
      %4398 = vmatpush1.xpose.msra.mxu0 0.0
      %4399 = vmatprep.subr.mxu0 0.0
      %4400 = vmatpush1.xpose.msra.mxu0 0.0
      %4401 = vmatprep.subr.mxu0 0.0
      %4402 = vmatpush1.xpose.msra.mxu0 0.0
      %4403 = vmatprep.subr.mxu0 0.0
      %4404 = vmatpush1.xpose.msra.mxu0 0.0
      %4405 = vmatprep.subr.mxu0 0.0
      %4406 = vmatpush1.xpose.msra.mxu0 0.0
      %4407 = vmatprep.subr.mxu0 0.0
      %4408 = vmatpush1.xpose.msra.mxu0 0.0
      %4409 = vmatprep.subr.mxu0 0.0
      %4410 = vmatpush1.xpose.msra.mxu0 0.0
      %4411 = vmatprep.subr.mxu0 0.0
      %4412 = vmatpush1.xpose.msra.mxu0 0.0
      %4413 = vmatprep.subr.mxu0 0.0
      %4414 = vmatpush1.xpose.msra.mxu0 0.0
      %4415 = vmatprep.subr.mxu0 0.0
      %4416 = vmatpush1.xpose.msra.mxu0 0.0
      %4417 = vmatprep.subr.mxu0 0.0
      %4418 = vmatpush1.xpose.msra.mxu0 0.0
      %4419 = vmatprep.subr.mxu0 0.0
      %4420 = vmatpush1.xpose.msra.mxu0 0.0
      %4421 = vmatprep.subr.mxu0 0.0
      %4422 = vmatpush1.xpose.msra.mxu0 0.0
      %4423 = vmatprep.subr.mxu0 0.0
      %4424 = vmatpush1.xpose.msra.mxu0 0.0
      %4425 = vmatprep.subr.mxu0 0.0
      %4426 = vmatpush1.xpose.msra.mxu0 0.0
      %4427 = vmatprep.subr.mxu0 0.0
      %4428 = vmatpush1.xpose.msra.mxu0 0.0
      %4429 = vmatprep.subr.mxu0 0.0
      %4430 = vmatpush1.xpose.msra.mxu0 0.0
      %4431 = vmatprep.subr.mxu0 0.0
      %4432 = vmatpush1.xpose.msra.mxu0 0.0
      %4433 = vmatprep.subr.mxu0 0.0
      %4434 = vmatpush1.xpose.msra.mxu0 0.0
      %4435 = vmatprep.subr.mxu0 0.0
      %4436 = vmatpush1.xpose.msra.mxu0 0.0
      %4437 = vmatprep.subr.mxu0 0.0
      %4438 = vmatpush1.xpose.msra.mxu0 0.0
      %4439 = vmatprep.subr.mxu0 0.0
      %4440 = vmatpush1.xpose.msra.mxu0 0.0
      %4441 = vmatprep.subr.mxu0 0.0
      %4442 = vmatpush1.xpose.msra.mxu0 0.0
      %4443 = vmatprep.subr.mxu0 0.0
      %4444 = vmatpush1.xpose.msra.mxu0 0.0
      %4445 = vmatprep.mubr.f32.mxu0 0.0
      %4446 = vmatmul.mubr.f32.gmra.mrb[0].mxu0 %v4369
      %v4447 = vpop.f32.mrb[0].mxu0
      %v4448 = vadd.f32 0.0, %v4447
      %v4449 = vpop.f32.mrb[0].mxu0
      %4450 = vmatprep.mubr.f32.mxu0 0.0
      %4451 = vmatmul.mubr.f32.gmra.mrb[0].mxu0 %v4371
      %v4452 = vpop.f32.mrb[0].mxu0
      %v4453 = vadd.f32 0.0, %v4452
      %v4454 = vpop.f32.mrb[0].mxu0
      %4455 = vmatprep.mubr.f32.mxu0 0.0
      %4456 = vmatmul.mubr.f32.gmra.mrb[0].mxu0 %v4373
      %v4457 = vpop.f32.mrb[0].mxu0
      %v4458 = vadd.f32 0.0, %v4457
      %v4459 = vpop.f32.mrb[0].mxu0
      %4460 = vdwg.mxu0
      %v4461 = vmul.f32 %v4448, 0.5
      %v4462 = vmul.f32 %v4453, 0.5
      %v4463 = vmul.f32 %v4458, 0.5
      %v4464 = vsel %vm1038, %v4461, -inf
      %4465 = vmax.xlane.f32.xlu0 %v4464
      %v4466 = vpop.xlane.xlu0 %4465
      %v4467 = vsel %vm1038, %v4462, -inf
      %4468 = vmax.xlane.f32.xlu0 %v4467
      %v4469 = vpop.xlane.xlu0 %4468
      %v4470 = vsel %vm1045, %v4463, -inf
      %4471 = vmax.xlane.f32.xlu0 %v4470
      %v4472 = vpop.xlane.xlu0 %4471
      %v4473 = vsub.f32 %v4461, %v4466
      %v4474 = vsub.f32 %v4462, %v4469
      %v4475 = vsub.f32 %v4463, %v4472
      %v4476 = vmul.f32 %v4473, 1.442695
      %v4477 = vpow.pop %v4476
      %v4478 = vmul.f32 %v4474, 1.442695
      %v4479 = vpow.pop %v4478
      %v4480 = vmul.f32 %v4475, 1.442695
      %v4481 = vpow.pop %v4480
      %v4482 = vsel %vm1038, %v4477, 0.0
      %4483 = vadd.xlane.f32.xlu0 %v4482
      %v4484 = vpop.xlane.xlu0 %4483
      %v4485 = vsel %vm1038, %v4479, 0.0
      %4486 = vadd.xlane.f32.xlu0 %v4485
      %v4487 = vpop.xlane.xlu0 %4486
      %v4488 = vsel %vm1045, %v4481, 0.0
      %4489 = vadd.xlane.f32.xlu0 %v4488
      %v4490 = vpop.xlane.xlu0 %4489
      %v4491 = vrcp.pop %v4484
      %v4492 = vrcp.pop %v4487
      %v4493 = vrcp.pop %v4490
      %v4494 = vmul.f32 %v4477, %v4491
      %v4495 = vmul.f32 %v4479, %v4492
      %v4496 = vmul.f32 %v4481, %v4493
      %4497 = vrot.lane.b32.xlu0 %v4351, 108
      %v4498 = vpop.permute.xlu0 %4497
      %4499 = vrot.lane.b32.xlu0 %v4352, 108
      %v4500 = vpop.permute.xlu0 %4499
      %4501 = vrot.lane.b32.xlu0 %v4353, 108
      %v4502 = vpop.permute.xlu0 %4501
      %v4506 = vsel %vm1038, %v4494, 0
      %v4509 = vsel %vm1038, %v4495, 0
      %v4512 = vsel %vm1038, %v4496, 0
      %v4514 = vsel %vm1090, %v4502, 0
      %4516 = vmatprep.subr.mxu0 0.0
      %4517 = vmatpush1.msra.mxu0 %v4498
      %4518 = vmatprep.subr.mxu0 0.0
      %4519 = vmatpush1.msra.mxu0 %v4500
      %4520 = vmatprep.subr.mxu0 0.0
      %4521 = vmatpush1.msra.mxu0 %v4514
      %4522 = vmatprep.subr.mxu0 0.0
      %4523 = vmatpush1.msra.mxu0 0.0
      %4524 = vmatprep.subr.mxu0 0.0
      %4525 = vmatpush1.msra.mxu0 0.0
      %4526 = vmatprep.subr.mxu0 0.0
      %4527 = vmatpush1.msra.mxu0 0.0
      %4528 = vmatprep.subr.mxu0 0.0
      %4529 = vmatpush1.msra.mxu0 0.0
      %4530 = vmatprep.subr.mxu0 0.0
      %4531 = vmatpush1.msra.mxu0 0.0
      %4532 = vmatprep.subr.mxu0 0.0
      %4533 = vmatpush1.msra.mxu0 0.0
      %4534 = vmatprep.subr.mxu0 0.0
      %4535 = vmatpush1.msra.mxu0 0.0
      %4536 = vmatprep.subr.mxu0 0.0
      %4537 = vmatpush1.msra.mxu0 0.0
      %4538 = vmatprep.subr.mxu0 0.0
      %4539 = vmatpush1.msra.mxu0 0.0
      %4540 = vmatprep.subr.mxu0 0.0
      %4541 = vmatpush1.msra.mxu0 0.0
      %4542 = vmatprep.subr.mxu0 0.0
      %4543 = vmatpush1.msra.mxu0 0.0
      %4544 = vmatprep.subr.mxu0 0.0
      %4545 = vmatpush1.msra.mxu0 0.0
      %4546 = vmatprep.subr.mxu0 0.0
      %4547 = vmatpush1.msra.mxu0 0.0
      %4548 = vmatprep.subr.mxu0 0.0
      %4549 = vmatpush1.msra.mxu0 0.0
      %4550 = vmatprep.subr.mxu0 0.0
      %4551 = vmatpush1.msra.mxu0 0.0
      %4552 = vmatprep.subr.mxu0 0.0
      %4553 = vmatpush1.msra.mxu0 0.0
      %4554 = vmatprep.subr.mxu0 0.0
      %4555 = vmatpush1.msra.mxu0 0.0
      %4556 = vmatprep.subr.mxu0 0.0
      %4557 = vmatpush1.msra.mxu0 0.0
      %4558 = vmatprep.subr.mxu0 0.0
      %4559 = vmatpush1.msra.mxu0 0.0
      %4560 = vmatprep.subr.mxu0 0.0
      %4561 = vmatpush1.msra.mxu0 0.0
      %4562 = vmatprep.subr.mxu0 0.0
      %4563 = vmatpush1.msra.mxu0 0.0
      %4564 = vmatprep.subr.mxu0 0.0
      %4565 = vmatpush1.msra.mxu0 0.0
      %4566 = vmatprep.subr.mxu0 0.0
      %4567 = vmatpush1.msra.mxu0 0.0
      %4568 = vmatprep.subr.mxu0 0.0
      %4569 = vmatpush1.msra.mxu0 0.0
      %4570 = vmatprep.subr.mxu0 0.0
      %4571 = vmatpush1.msra.mxu0 0.0
      %4572 = vmatprep.subr.mxu0 0.0
      %4573 = vmatpush1.msra.mxu0 0.0
      %4574 = vmatprep.subr.mxu0 0.0
      %4575 = vmatpush1.msra.mxu0 0.0
      %4576 = vmatprep.subr.mxu0 0.0
      %4577 = vmatpush1.msra.mxu0 0.0
      %4578 = vmatprep.subr.mxu0 0.0
      %4579 = vmatpush1.msra.mxu0 0.0
      %4580 = vmatprep.mubr.f32.mxu0 0.0
      %4581 = vmatmul.mubr.f32.gmra.mrb[0].mxu0 %v4506
      %v4582 = vpop.f32.mrb[0].mxu0
      %v4583 = vadd.f32 0.0, %v4582
      %v4584 = vpop.f32.mrb[0].mxu0
      %4585 = vmatprep.mubr.f32.mxu0 0.0
      %4586 = vmatmul.mubr.f32.gmra.mrb[0].mxu0 %v4509
      %v4587 = vpop.f32.mrb[0].mxu0
      %v4588 = vadd.f32 0.0, %v4587
      %v4589 = vpop.f32.mrb[0].mxu0
      %4590 = vmatprep.mubr.f32.mxu0 0.0
      %4591 = vmatmul.mubr.f32.gmra.mrb[0].mxu0 %v4512
      %v4592 = vpop.f32.mrb[0].mxu0
      %v4593 = vadd.f32 0.0, %v4592
      %v4594 = vpop.f32.mrb[0].mxu0
      %4595 = vdwg.mxu0
      %4599 = vrot.lane.b32.xlu0 %v4583, 4
      %v4600 = vpop.permute.xlu0 %4599
      %4601 = vrot.lane.b32.xlu0 %v4588, 4
      %v4602 = vpop.permute.xlu0 %4601
      %4603 = vrot.lane.b32.xlu0 %v4593, 4
      %v4604 = vpop.permute.xlu0 %4603
      %4608 = vst.msk [vmem:[#allocation4] sm:$0xff] %vm1434, %v4600
      %4609 = vst.msk [vmem:[#allocation4 + $0x8] sm:$0xff] %vm1434, %v4602
      %4610 = vst.msk [vmem:[#allocation4 + $0x10] sm:$0x1] %vm1437, %v4604
      %v4611 = vld [vmem:[#allocation4] sm:$0xff]
      %v4612 = vld [vmem:[#allocation4 + $0x8] sm:$0xff]
      %v4613 = vld [vmem:[#allocation4 + $0x10] sm:$0x1]
      %v4614 = vld [vmem:[%s2478] sm:$0xff]
      %v4616 = vsel %vm826, %v4611, 0
      %v4619 = vsel %vm826, %v4612, 0
      %v4622 = vsel %vm826, %v4613, 0
      %4624 = vmatprep.subr.mxu0 0.0
      %4625 = vmatpush1.msra.mxu0 %v4614
      %4626 = vmatprep.subr.mxu0 0.0
      %4627 = vmatpush1.msra.mxu0 0.0
      %4628 = vmatprep.subr.mxu0 0.0
      %4629 = vmatpush1.msra.mxu0 0.0
      %4630 = vmatprep.subr.mxu0 0.0
      %4631 = vmatpush1.msra.mxu0 0.0
      %4632 = vmatprep.subr.mxu0 0.0
      %4633 = vmatpush1.msra.mxu0 0.0
      %4634 = vmatprep.subr.mxu0 0.0
      %4635 = vmatpush1.msra.mxu0 0.0
      %4636 = vmatprep.subr.mxu0 0.0
      %4637 = vmatpush1.msra.mxu0 0.0
      %4638 = vmatprep.subr.mxu0 0.0
      %4639 = vmatpush1.msra.mxu0 0.0
      %4640 = vmatprep.subr.mxu0 0.0
      %4641 = vmatpush1.msra.mxu0 0.0
      %4642 = vmatprep.subr.mxu0 0.0
      %4643 = vmatpush1.msra.mxu0 0.0
      %4644 = vmatprep.subr.mxu0 0.0
      %4645 = vmatpush1.msra.mxu0 0.0
      %4646 = vmatprep.subr.mxu0 0.0
      %4647 = vmatpush1.msra.mxu0 0.0
      %4648 = vmatprep.subr.mxu0 0.0
      %4649 = vmatpush1.msra.mxu0 0.0
      %4650 = vmatprep.subr.mxu0 0.0
      %4651 = vmatpush1.msra.mxu0 0.0
      %4652 = vmatprep.subr.mxu0 0.0
      %4653 = vmatpush1.msra.mxu0 0.0
      %4654 = vmatprep.subr.mxu0 0.0
      %4655 = vmatpush1.msra.mxu0 0.0
      %4656 = vmatprep.subr.mxu0 0.0
      %4657 = vmatpush1.msra.mxu0 0.0
      %4658 = vmatprep.subr.mxu0 0.0
      %4659 = vmatpush1.msra.mxu0 0.0
      %4660 = vmatprep.subr.mxu0 0.0
      %4661 = vmatpush1.msra.mxu0 0.0
      %4662 = vmatprep.subr.mxu0 0.0
      %4663 = vmatpush1.msra.mxu0 0.0
      %4664 = vmatprep.subr.mxu0 0.0
      %4665 = vmatpush1.msra.mxu0 0.0
      %4666 = vmatprep.subr.mxu0 0.0
      %4667 = vmatpush1.msra.mxu0 0.0
      %4668 = vmatprep.subr.mxu0 0.0
      %4669 = vmatpush1.msra.mxu0 0.0
      %4670 = vmatprep.subr.mxu0 0.0
      %4671 = vmatpush1.msra.mxu0 0.0
      %4672 = vmatprep.subr.mxu0 0.0
      %4673 = vmatpush1.msra.mxu0 0.0
      %4674 = vmatprep.subr.mxu0 0.0
      %4675 = vmatpush1.msra.mxu0 0.0
      %4676 = vmatprep.subr.mxu0 0.0
      %4677 = vmatpush1.msra.mxu0 0.0
      %4678 = vmatprep.subr.mxu0 0.0
      %4679 = vmatpush1.msra.mxu0 0.0
      %4680 = vmatprep.subr.mxu0 0.0
      %4681 = vmatpush1.msra.mxu0 0.0
      %4682 = vmatprep.subr.mxu0 0.0
      %4683 = vmatpush1.msra.mxu0 0.0
      %4684 = vmatprep.subr.mxu0 0.0
      %4685 = vmatpush1.msra.mxu0 0.0
      %4686 = vmatprep.subr.mxu0 0.0
      %4687 = vmatpush1.msra.mxu0 0.0
      %4688 = vmatprep.mubr.f32.mxu0 0.0
      %4689 = vmatmul.mubr.f32.gmra.mrb[0].mxu0 %v4616
      %v4690 = vpop.f32.mrb[0].mxu0
      %v4691 = vadd.f32 %v4013, %v4690
      %v4692 = vpop.f32.mrb[0].mxu0
      %4693 = vmatprep.mubr.f32.mxu0 0.0
      %4694 = vmatmul.mubr.f32.gmra.mrb[0].mxu0 %v4619
      %v4695 = vpop.f32.mrb[0].mxu0
      %v4696 = vadd.f32 %v4014, %v4695
      %v4697 = vpop.f32.mrb[0].mxu0
      %4698 = vmatprep.mubr.f32.mxu0 0.0
      %4699 = vmatmul.mubr.f32.gmra.mrb[0].mxu0 %v4622
      %v4700 = vpop.f32.mrb[0].mxu0
      %v4701 = vadd.f32 %v4015, %v4700
      %v4702 = vpop.f32.mrb[0].mxu0
      %4703 = vdwg.mxu0
      %v4704 = vld [vmem:[%s2569] sm:$0x1]
      %v4705 = vld [vmem:[%s2571] sm:$0x1]
      %v4706 = vsel %vm826, %v4691, 0.0
      %4707 = vadd.xlane.f32.xlu0 %v4706
      %v4708 = vpop.xlane.xlu0 %4707
      %v4709 = vsel %vm826, %v4696, 0.0
      %4710 = vadd.xlane.f32.xlu0 %v4709
      %v4711 = vpop.xlane.xlu0 %4710
      %v4712 = vsel %vm824, %v4701, 0.0
      %4713 = vadd.xlane.f32.xlu0 %v4712
      %v4714 = vpop.xlane.xlu0 %4713
      %v4715 = vmul.f32 %v4708, %v1543
      %v4716 = vmul.f32 %v4711, %v1543
      %v4717 = vmul.f32 %v4714, %v1543
      %v4718 = vsub.f32 %v4691, %v4715
      %v4719 = vsub.f32 %v4696, %v4716
      %v4720 = vsub.f32 %v4701, %v4717
      %v4721 = vmul.f32 %v4718, %v4718
      %v4722 = vmul.f32 %v4719, %v4719
      %v4723 = vmul.f32 %v4720, %v4720
      %v4724 = vsel %vm826, %v4721, 0.0
      %4725 = vadd.xlane.f32.xlu0 %v4724
      %v4726 = vpop.xlane.xlu0 %4725
      %v4727 = vsel %vm826, %v4722, 0.0
      %4728 = vadd.xlane.f32.xlu0 %v4727
      %v4729 = vpop.xlane.xlu0 %4728
      %v4730 = vsel %vm824, %v4723, 0.0
      %4731 = vadd.xlane.f32.xlu0 %v4730
      %v4732 = vpop.xlane.xlu0 %4731
      %v4733 = vmul.f32 %v4726, %v1543
      %v4734 = vmul.f32 %v4729, %v1543
      %v4735 = vmul.f32 %v4732, %v1543
      %v4736 = vadd.f32 %v4733, 1e-05
      %v4737 = vadd.f32 %v4734, 1e-05
      %v4738 = vadd.f32 %v4735, 1e-05
      %v4739 = vrsqrt.pop %v4736
      %v4740 = vrsqrt.pop %v4737
      %v4741 = vrsqrt.pop %v4738
      %v4742 = vmul.f32 %v4718, %v4739
      %v4743 = vmul.f32 %v4719, %v4740
      %v4744 = vmul.f32 %v4720, %v4741
      %v4746 = vlaneseq
      %v4747 = vshrl.u32 %v4746, 7
      %v4748 = vsub.s32 0, %v4747
      %v4749 = vrot.slane %v4704, %v4748
      %v4751 = vmul.f32 %v4742, %v4749
      %v4752 = vmul.f32 %v4743, %v4749
      %v4753 = vmul.f32 %v4744, %v4749
      %v4755 = vlaneseq
      %v4756 = vshrl.u32 %v4755, 7
      %v4757 = vsub.s32 0, %v4756
      %v4758 = vrot.slane %v4705, %v4757
      %v4760 = vadd.f32 %v4751, %v4758
      %v4761 = vadd.f32 %v4752, %v4758
      %v4762 = vadd.f32 %v4753, %v4758
      %v4763 = vld [vmem:[%s2630] sm:$0xff]
      %v4764 = vld [vmem:[%s2632] sm:$0x1]
      %v4766 = vlaneseq
      %v4767 = vshrl.u32 %v4766, 7
      %v4768 = vsub.s32 0, %v4767
      %v4769 = vrot.slane %v4764, %v4768
      %v4772 = vsel %vm826, %v4760, 0
      %v4775 = vsel %vm826, %v4761, 0
      %v4778 = vsel %vm826, %v4762, 0
      %4780 = vmatprep.subr.mxu0 0.0
      %4781 = vmatpush1.msra.mxu0 %v4763
      %4782 = vmatprep.subr.mxu0 0.0
      %4783 = vmatpush1.msra.mxu0 0.0
      %4784 = vmatprep.subr.mxu0 0.0
      %4785 = vmatpush1.msra.mxu0 0.0
      %4786 = vmatprep.subr.mxu0 0.0
      %4787 = vmatpush1.msra.mxu0 0.0
      %4788 = vmatprep.subr.mxu0 0.0
      %4789 = vmatpush1.msra.mxu0 0.0
      %4790 = vmatprep.subr.mxu0 0.0
      %4791 = vmatpush1.msra.mxu0 0.0
      %4792 = vmatprep.subr.mxu0 0.0
      %4793 = vmatpush1.msra.mxu0 0.0
      %4794 = vmatprep.subr.mxu0 0.0
      %4795 = vmatpush1.msra.mxu0 0.0
      %4796 = vmatprep.subr.mxu0 0.0
      %4797 = vmatpush1.msra.mxu0 0.0
      %4798 = vmatprep.subr.mxu0 0.0
      %4799 = vmatpush1.msra.mxu0 0.0
      %4800 = vmatprep.subr.mxu0 0.0
      %4801 = vmatpush1.msra.mxu0 0.0
      %4802 = vmatprep.subr.mxu0 0.0
      %4803 = vmatpush1.msra.mxu0 0.0
      %4804 = vmatprep.subr.mxu0 0.0
      %4805 = vmatpush1.msra.mxu0 0.0
      %4806 = vmatprep.subr.mxu0 0.0
      %4807 = vmatpush1.msra.mxu0 0.0
      %4808 = vmatprep.subr.mxu0 0.0
      %4809 = vmatpush1.msra.mxu0 0.0
      %4810 = vmatprep.subr.mxu0 0.0
      %4811 = vmatpush1.msra.mxu0 0.0
      %4812 = vmatprep.subr.mxu0 0.0
      %4813 = vmatpush1.msra.mxu0 0.0
      %4814 = vmatprep.subr.mxu0 0.0
      %4815 = vmatpush1.msra.mxu0 0.0
      %4816 = vmatprep.subr.mxu0 0.0
      %4817 = vmatpush1.msra.mxu0 0.0
      %4818 = vmatprep.subr.mxu0 0.0
      %4819 = vmatpush1.msra.mxu0 0.0
      %4820 = vmatprep.subr.mxu0 0.0
      %4821 = vmatpush1.msra.mxu0 0.0
      %4822 = vmatprep.subr.mxu0 0.0
      %4823 = vmatpush1.msra.mxu0 0.0
      %4824 = vmatprep.subr.mxu0 0.0
      %4825 = vmatpush1.msra.mxu0 0.0
      %4826 = vmatprep.subr.mxu0 0.0
      %4827 = vmatpush1.msra.mxu0 0.0
      %4828 = vmatprep.subr.mxu0 0.0
      %4829 = vmatpush1.msra.mxu0 0.0
      %4830 = vmatprep.subr.mxu0 0.0
      %4831 = vmatpush1.msra.mxu0 0.0
      %4832 = vmatprep.subr.mxu0 0.0
      %4833 = vmatpush1.msra.mxu0 0.0
      %4834 = vmatprep.subr.mxu0 0.0
      %4835 = vmatpush1.msra.mxu0 0.0
      %4836 = vmatprep.subr.mxu0 0.0
      %4837 = vmatpush1.msra.mxu0 0.0
      %4838 = vmatprep.subr.mxu0 0.0
      %4839 = vmatpush1.msra.mxu0 0.0
      %4840 = vmatprep.subr.mxu0 0.0
      %4841 = vmatpush1.msra.mxu0 0.0
      %4842 = vmatprep.subr.mxu0 0.0
      %4843 = vmatpush1.msra.mxu0 0.0
      %4844 = vmatprep.mubr.f32.mxu0 0.0
      %4845 = vmatmul.mubr.f32.gmra.mrb[0].mxu0 %v4772
      %v4846 = vpop.f32.mrb[0].mxu0
      %v4847 = vadd.f32 %v4769, %v4846
      %v4848 = vpop.f32.mrb[0].mxu0
      %4849 = vmatprep.mubr.f32.mxu0 0.0
      %4850 = vmatmul.mubr.f32.gmra.mrb[0].mxu0 %v4775
      %v4851 = vpop.f32.mrb[0].mxu0
      %v4852 = vadd.f32 %v4769, %v4851
      %v4853 = vpop.f32.mrb[0].mxu0
      %4854 = vmatprep.mubr.f32.mxu0 0.0
      %4855 = vmatmul.mubr.f32.gmra.mrb[0].mxu0 %v4778
      %v4856 = vpop.f32.mrb[0].mxu0
      %v4857 = vadd.f32 %v4769, %v4856
      %v4858 = vpop.f32.mrb[0].mxu0
      %4859 = vdwg.mxu0
      %v4860 = vmul.f32 %v4847, %v4847
      %v4861 = vmul.f32 %v4852, %v4852
      %v4862 = vmul.f32 %v4857, %v4857
      %v4863 = vmul.f32 %v4847, %v4860
      %v4864 = vmul.f32 %v4852, %v4861
      %v4865 = vmul.f32 %v4857, %v4862
      %v4866 = vmul.f32 %v4863, 0.044715
      %v4867 = vmul.f32 %v4864, 0.044715
      %v4868 = vmul.f32 %v4865, 0.044715
      %v4869 = vadd.f32 %v4847, %v4866
      %v4870 = vadd.f32 %v4852, %v4867
      %v4871 = vadd.f32 %v4857, %v4868
      %v4872 = vmul.f32 %v4869, 0.7978846
      %v4873 = vmul.f32 %v4870, 0.7978846
      %v4874 = vmul.f32 %v4871, 0.7978846
      %v4875 = vtanh.pop %v4872
      %v4876 = vtanh.pop %v4873
      %v4877 = vtanh.pop %v4874
      %v4878 = vadd.f32 %v4875, 1.0
      %v4879 = vadd.f32 %v4876, 1.0
      %v4880 = vadd.f32 %v4877, 1.0
      %v4881 = vmul.f32 %v4878, 0.5
      %v4882 = vmul.f32 %v4879, 0.5
      %v4883 = vmul.f32 %v4880, 0.5
      %v4884 = vmul.f32 %v4847, %v4881
      %v4885 = vmul.f32 %v4852, %v4882
      %v4886 = vmul.f32 %v4857, %v4883
      %v4887 = vld [vmem:[%s2756] sm:$0xff]
      %v4888 = vld [vmem:[%s2756 + $0x8] sm:$0xff]
      %v4889 = vld [vmem:[%s2756 + $0x10] sm:$0xff]
      %v4890 = vld [vmem:[%s2756 + $0x18] sm:$0xff]
      %v4891 = vld [vmem:[%s2761] sm:$0x1]
      %v4893 = vlaneseq
      %v4894 = vshrl.u32 %v4893, 7
      %v4895 = vsub.s32 0, %v4894
      %v4896 = vrot.slane %v4891, %v4895
      %v4899 = vsel %vm1727, %v4884, 0
      %v4902 = vsel %vm1727, %v4885, 0
      %v4905 = vsel %vm1727, %v4886, 0
      %4907 = vmatprep.subr.mxu0 0.0
      %4908 = vmatpush1.msra.mxu0 %v4887
      %4909 = vmatprep.subr.mxu0 0.0
      %4910 = vmatpush1.msra.mxu0 %v4888
      %4911 = vmatprep.subr.mxu0 0.0
      %4912 = vmatpush1.msra.mxu0 %v4889
      %4913 = vmatprep.subr.mxu0 0.0
      %4914 = vmatpush1.msra.mxu0 %v4890
      %4915 = vmatprep.subr.mxu0 0.0
      %4916 = vmatpush1.msra.mxu0 0.0
      %4917 = vmatprep.subr.mxu0 0.0
      %4918 = vmatpush1.msra.mxu0 0.0
      %4919 = vmatprep.subr.mxu0 0.0
      %4920 = vmatpush1.msra.mxu0 0.0
      %4921 = vmatprep.subr.mxu0 0.0
      %4922 = vmatpush1.msra.mxu0 0.0
      %4923 = vmatprep.subr.mxu0 0.0
      %4924 = vmatpush1.msra.mxu0 0.0
      %4925 = vmatprep.subr.mxu0 0.0
      %4926 = vmatpush1.msra.mxu0 0.0
      %4927 = vmatprep.subr.mxu0 0.0
      %4928 = vmatpush1.msra.mxu0 0.0
      %4929 = vmatprep.subr.mxu0 0.0
      %4930 = vmatpush1.msra.mxu0 0.0
      %4931 = vmatprep.subr.mxu0 0.0
      %4932 = vmatpush1.msra.mxu0 0.0
      %4933 = vmatprep.subr.mxu0 0.0
      %4934 = vmatpush1.msra.mxu0 0.0
      %4935 = vmatprep.subr.mxu0 0.0
      %4936 = vmatpush1.msra.mxu0 0.0
      %4937 = vmatprep.subr.mxu0 0.0
      %4938 = vmatpush1.msra.mxu0 0.0
      %4939 = vmatprep.subr.mxu0 0.0
      %4940 = vmatpush1.msra.mxu0 0.0
      %4941 = vmatprep.subr.mxu0 0.0
      %4942 = vmatpush1.msra.mxu0 0.0
      %4943 = vmatprep.subr.mxu0 0.0
      %4944 = vmatpush1.msra.mxu0 0.0
      %4945 = vmatprep.subr.mxu0 0.0
      %4946 = vmatpush1.msra.mxu0 0.0
      %4947 = vmatprep.subr.mxu0 0.0
      %4948 = vmatpush1.msra.mxu0 0.0
      %4949 = vmatprep.subr.mxu0 0.0
      %4950 = vmatpush1.msra.mxu0 0.0
      %4951 = vmatprep.subr.mxu0 0.0
      %4952 = vmatpush1.msra.mxu0 0.0
      %4953 = vmatprep.subr.mxu0 0.0
      %4954 = vmatpush1.msra.mxu0 0.0
      %4955 = vmatprep.subr.mxu0 0.0
      %4956 = vmatpush1.msra.mxu0 0.0
      %4957 = vmatprep.subr.mxu0 0.0
      %4958 = vmatpush1.msra.mxu0 0.0
      %4959 = vmatprep.subr.mxu0 0.0
      %4960 = vmatpush1.msra.mxu0 0.0
      %4961 = vmatprep.subr.mxu0 0.0
      %4962 = vmatpush1.msra.mxu0 0.0
      %4963 = vmatprep.subr.mxu0 0.0
      %4964 = vmatpush1.msra.mxu0 0.0
      %4965 = vmatprep.subr.mxu0 0.0
      %4966 = vmatpush1.msra.mxu0 0.0
      %4967 = vmatprep.subr.mxu0 0.0
      %4968 = vmatpush1.msra.mxu0 0.0
      %4969 = vmatprep.subr.mxu0 0.0
      %4970 = vmatpush1.msra.mxu0 0.0
      %4971 = vmatprep.mubr.f32.mxu0 0.0
      %4972 = vmatmul.mubr.f32.gmra.mrb[0].mxu0 %v4899
      %v4973 = vpop.f32.mrb[0].mxu0
      %v4974 = vadd.f32 %v4896, %v4973
      %v4975 = vpop.f32.mrb[0].mxu0
      %4976 = vmatprep.mubr.f32.mxu0 0.0
      %4977 = vmatmul.mubr.f32.gmra.mrb[0].mxu0 %v4902
      %v4978 = vpop.f32.mrb[0].mxu0
      %v4979 = vpop.f32.mrb[0].mxu0
      %4980 = vmatprep.mubr.f32.mxu0 0.0
      %4981 = vmatmul.mubr.f32.gmra.mrb[0].mxu0 %v4905
      %v4982 = vpop.f32.mrb[0].mxu0
      %v4983 = vpop.f32.mrb[0].mxu0
      %4984 = vdwg.mxu0
      %v4985 = vadd.f32 %v4974, %v4760
      %v4986 = vld [vmem:[%s2857] sm:$0x1]
      %v4987 = vld [vmem:[%s2859] sm:$0x1]
      %v4988 = vsel %vm826, %v4985, 0.0
      %4989 = vadd.xlane.f32.xlu0 %v4988
      %v4990 = vpop.xlane.xlu0 %4989
      %v4991 = vmul.f32 %v4990, %v1543
      %v4992 = vsub.f32 %v4985, %v4991
      %v4993 = vmul.f32 %v4992, %v4992
      %v4994 = vsel %vm826, %v4993, 0.0
      %4995 = vadd.xlane.f32.xlu0 %v4994
      %v4996 = vpop.xlane.xlu0 %4995
      %v4997 = vmul.f32 %v4996, %v1543
      %v4998 = vadd.f32 %v4997, 1e-05
      %v4999 = vrsqrt.pop %v4998
      %v5000 = vmul.f32 %v4992, %v4999
      %v5002 = vlaneseq
      %v5003 = vshrl.u32 %v5002, 7
      %v5004 = vsub.s32 0, %v5003
      %v5005 = vrot.slane %v4986, %v5004
      %v5007 = vmul.f32 %v5000, %v5005
      %v5009 = vlaneseq
      %v5010 = vshrl.u32 %v5009, 7
      %v5011 = vsub.s32 0, %v5010
      %v5012 = vrot.slane %v4987, %v5011
      %v5014 = vadd.f32 %v5007, %v5012
      %5015 = vst.msk [vmem:[%s722 + $0x1] sm:$0x1] %vm824, %v5014
      %p5016 = scmp.lt.s32.totalorder %s26, 1
      %s5017 = scalar_select %p5016, %s26, 1
      %s5018 = smul.addr %s5017, 2
      %s5019 = scalar_lea.vmem %s15, %s5018
      // Predicated region
      $region81: #{encoder_transformer_forward.2} parent=79 // pred_check
        %p5020 = pneg %p429
      $region82: #{encoder_transformer_forward.2} parent=79 // pred_check_branch
        %5022 = sbr.rel (%p5020) target = $region84
      $region83: #{encoder_transformer_forward.2} parent=79 // pred_region
        _
      $region84: #{encoder_transformer_forward.2} parent=79 // pred_fallthru
        _
    $region80: #{encoder_transformer_forward.2} parent=5 // pred_fallthru
      _
    %p5023 = scmp.le.s32.totalorder 2, %s21
    // Predicated region
    $region85: #{encoder_transformer_forward.2} parent=5 // pred_check
      %p5024 = pneg %p5023
    $region86: #{encoder_transformer_forward.2} parent=5 // pred_check_branch
      %5026 = sbr.rel (%p5024) target = $region88
    $region87: #{encoder_transformer_forward.2} parent=5 // pred_region
      %s5027 = ssub.s32 %s21, 2
      // Predicated region
      $region89: #{encoder_transformer_forward.2} parent=87 // pred_check
        %p5028 = pneg %p435
      $region90: #{encoder_transformer_forward.2} parent=87 // pred_check_branch
        %5030 = sbr.rel (%p5028) target = $region92
      $region91: #{encoder_transformer_forward.2} parent=87 // pred_region
        %p5031 = scmp.lt.s32.totalorder %s27, 1
        %s5032 = scalar_select %p5031, %s27, 1
        %s5033 = smul.addr %s5032, 2
        %s5034 = scalar_lea.vmem %s15, %s5033
      $region92: #{encoder_transformer_forward.2} parent=87 // pred_fallthru
        _
    $region88: #{encoder_transformer_forward.2} parent=5 // pred_fallthru
      _
  $region6: #{encoder_transformer_forward.2} parent=0 // loop_footer
    %s25 = sadd.s32 1, %s21
  $region7: #{encoder_transformer_forward.2} parent=0 // loop_footer_branch
    %20 = sbr.rel target = $region3
  $region8: #{encoder_transformer_forward.2} parent=0 // loop_exit
    _

</llo_original>
